<compile_context>
chip_gen: v7x
topology: tpu7x:2x2x1
jax: 0.10.0
libtpu: 0.0.40
codegen_flags: <defaults>
</compile_context>

<pallas_src>
import functools

import jax
import jax.numpy as jnp
from jax.experimental import pallas as pl
from jax.experimental.pallas import tpu as pltpu

LANE = 128


def _round_up(x, m):
    return (x + m - 1) // m * m


def _pad_vec(v, n):
    v = v.astype(jnp.float32)
    return jnp.pad(v, (0, n - v.shape[0])).reshape(1, n)


# ----------------------------------------------------------------------------
# Kernel A: full conv (all kh*kw taps unrolled in-kernel, one grid step per
#           batch element), fused bias + LayerNorm(channels) + LeakyReLU.
# ----------------------------------------------------------------------------

def _conv_fused_kernel(x_ref, w_ref, b_ref, lnw_ref, lnb_ref, mask_ref, o_ref,
                       *, m_rows, kw, w_flat, n_taps, act, use_ln, c_real, eps):
    cin = x_ref.shape[-1]
    cout = w_ref.shape[-1]
    # Tap (dy, dx) -> row offset d into the flattened padded image.  The slice
    # x_flat[d : d + m_rows] is exactly this tap's contribution for every
    # output pixel (rows at wrapped columns are garbage and discarded by the
    # wrapper), so patches are formed in VMEM with no HBM inflation.  All tap
    # offsets and weight sub-blocks are static -> fully unrolled MXU chain.
    acc = jnp.zeros((m_rows, cout), jnp.float32)
    for t in range(n_taps):
        d = (t // kw) * w_flat + (t % kw)
        xs = x_ref[0, d:d + m_rows, :].astype(jnp.bfloat16)
        acc = acc + jnp.dot(xs, w_ref[t * cin:(t + 1) * cin, :],
                            preferred_element_type=jnp.float32)
    y = acc + b_ref[...]
    if use_ln:
        m = mask_ref[...]
        mu = jnp.sum(y * m, axis=-1, keepdims=True) * (1.0 / c_real)
        yc = (y - mu) * m
        var = jnp.sum(yc * yc, axis=-1, keepdims=True) * (1.0 / c_real)
        y = yc * jax.lax.rsqrt(var + eps) * lnw_ref[...] + lnb_ref[...]
    if act == "leaky":
        y = jnp.where(y >= 0, y, 0.2 * y)
    o_ref[0] = y.astype(o_ref.dtype)


def conv_taps(x_flat, w_taps, bias, ln_w, ln_b, mask, *, n_taps, kw, w_flat,
              m_rows, act, use_ln, c_real, eps=1e-6):
    B, R, cin = x_flat.shape
    ktot, cout = w_taps.shape           # ktot == n_taps * cin
    kern = functools.partial(_conv_fused_kernel, m_rows=m_rows, kw=kw,
                             w_flat=w_flat, n_taps=n_taps, act=act,
                             use_ln=use_ln, c_real=float(c_real), eps=eps)
    return pl.pallas_call(
        kern,
        out_shape=jax.ShapeDtypeStruct((B, m_rows, cout), jnp.float32),
        grid=(B,),
        in_specs=[
            pl.BlockSpec((1, R, cin), lambda b: (b, 0, 0)),
            pl.BlockSpec((ktot, cout), lambda b: (0, 0)),
            pl.BlockSpec((1, cout), lambda b: (0, 0)),
            pl.BlockSpec((1, cout), lambda b: (0, 0)),
            pl.BlockSpec((1, cout), lambda b: (0, 0)),
            pl.BlockSpec((1, cout), lambda b: (0, 0)),
        ],
        out_specs=pl.BlockSpec((1, m_rows, cout), lambda b: (b, 0, 0)),
        compiler_params=pltpu.CompilerParams(
            dimension_semantics=("parallel",)),
    )(x_flat, w_taps, bias, ln_w, ln_b, mask)


# ----------------------------------------------------------------------------
# Conv weight layout conversion + conv wrappers
# ----------------------------------------------------------------------------

def _s2d_weight(w, cin_pad, cout_pad):
    """PyTorch (Co,Ci,4,4) stride-2 conv -> 4 unit-stride taps on the
    space-to-depth input: rows = tap(qy,qx)-major, (ry*2+rx)*cin_pad + ci."""
    co, ci, kh, kw = w.shape            # kh == kw == 4
    wf = jnp.zeros((cout_pad, cin_pad, kh, kw), jnp.float32)
    wf = wf.at[:co, :ci].set(w.astype(jnp.float32))
    w6 = wf.reshape(cout_pad, cin_pad, 2, 2, 2, 2)      # (co, ci, qy, ry, qx, rx)
    wt = jnp.transpose(w6, (2, 4, 3, 5, 1, 0))          # (qy, qx, ry, rx, ci, co)
    return wt.reshape(4 * 4 * cin_pad, cout_pad)


def _s1_weight(w, cin_pad, cout_pad):
    """PyTorch (Co,Ci,kh,kw) stride-1 conv -> kh*kw taps, rows = ci."""
    co, ci, kh, kw = w.shape
    wf = jnp.zeros((cout_pad, cin_pad, kh, kw), jnp.float32)
    wf = wf.at[:co, :ci].set(w.astype(jnp.float32))
    wt = jnp.transpose(wf, (2, 3, 1, 0))                # (dy, dx, ci, co)
    return wt.reshape(kh * kw * cin_pad, cout_pad)


def conv4x4_s2(x, w_taps, bias, ln_w, ln_b, mask, *, use_ln, c_real):
    """4x4 stride-2 pad-1 conv (+ optional LN + LeakyReLU).  Stride is handled
    by a space-to-depth reshape in the wrapper (no data inflation), so the
    kernel only needs 4 unit-stride taps."""
    B, H, W, C = x.shape
    cout = w_taps.shape[1]
    xp = jnp.pad(x, ((0, 0), (1, 1), (1, 1), (0, 0)))
    Hsd, Wsd = (H + 2) // 2, (W + 2) // 2
    xsd = xp.reshape(B, Hsd, 2, Wsd, 2, C)
    xsd = jnp.transpose(xsd, (0, 1, 3, 2, 4, 5)).reshape(B, Hsd, Wsd, 4 * C)
    Ho, Wo = Hsd - 1, Wsd - 1
    m_rows = Ho * Wsd
    R = _round_up(m_rows + Wsd + 1, 8)
    xf = xsd.reshape(B, Hsd * Wsd, 4 * C)
    xf = jnp.pad(xf, ((0, 0), (0, R - Hsd * Wsd), (0, 0)))
    y = conv_taps(xf, w_taps, bias, ln_w, ln_b, mask, n_taps=4, kw=2,
                  w_flat=Wsd, m_rows=m_rows, act="leaky", use_ln=use_ln,
                  c_real=c_real)
    return y.reshape(B, Ho, Wsd, cout)[:, :, :Wo, :]


def conv4x4_s1(x, w_taps, bias):
    """4x4 stride-1 pad-1 conv (PatchGAN head), computed lane-dense (N=128)."""
    B, H, W, C = x.shape
    cout = w_taps.shape[1]
    xp = jnp.pad(x, ((0, 0), (1, 1), (1, 1), (0, 0)))
    Hp, Wp = H + 2, W + 2
    Ho, Wo = Hp - 3, Wp - 3
    m_rows = Ho * Wp
    R = _round_up(m_rows + 3 * Wp + 3, 8)
    xf = jnp.pad(xp.reshape(B, Hp * Wp, C), ((0, 0), (0, R - Hp * Wp), (0, 0)))
    dummy = jnp.zeros((1, cout), jnp.float32)
    y = conv_taps(xf, w_taps, bias, dummy, dummy, dummy, n_taps=16, kw=4,
                  w_flat=Wp, m_rows=m_rows, act="none", use_ln=False, c_real=1)
    return y.reshape(B, Ho, Wp, cout)[:, :, :Wo, :]


# ----------------------------------------------------------------------------
# Kernel B: fused hyper ConvNeXt block (per-sample depthwise 3x3 + LN +
#           pw1/GELU + pw2 + layer-scale + residual) per batch element.
# ----------------------------------------------------------------------------

def _hyper_convnext_kernel(x_ref, dww_ref, dwb_ref, lnw_ref, lnb_ref, mask_ref,
                           pw1w_ref, pw1b_ref, pw2w_ref, pw2b_ref, gamma_ref,
                           o_ref, *, m_rows, w_flat, c_real, eps):
    C = x_ref.shape[-1]
    # per-sample (hyper-generated) depthwise 3x3 conv over the padded image
    acc = jnp.zeros((m_rows, C), jnp.float32) + dwb_ref[0]
    for t in range(9):
        d = (t // 3) * w_flat + (t % 3)
        acc = acc + x_ref[0, d:d + m_rows, :] * dww_ref[0, t:t + 1, :]
    # LayerNorm over the real channels (padded lanes masked to stay 0)
    m = mask_ref[...]
    mu = jnp.sum(acc * m, axis=-1, keepdims=True) * (1.0 / c_real)
    yc = (acc - mu) * m
    var = jnp.sum(yc * yc, axis=-1, keepdims=True) * (1.0 / c_real)
    y = yc * jax.lax.rsqrt(var + eps) * lnw_ref[...] + lnb_ref[...]
    # pointwise MLP on the MXU (bf16 operands, f32 accumulation)
    h = jnp.dot(y.astype(jnp.bfloat16), pw1w_ref[...],
                preferred_element_type=jnp.float32) + pw1b_ref[...]
    # TODO(synk): torch nn.GELU() is exact-erf; tanh approximation used here.
    h = jax.nn.gelu(h, approximate=True)
    h2 = jnp.dot(h.astype(jnp.bfloat16), pw2w_ref[...],
                 preferred_element_type=jnp.float32) + pw2b_ref[...]
    # residual = center tap slice of the padded input (== unpadded x rows)
    res = x_ref[0, w_flat + 1:w_flat + 1 + m_rows, :]
    o_ref[0] = (res + gamma_ref[...] * h2).astype(o_ref.dtype)


def hyper_convnext_block(x, dw_w, dw_b, bp, mask, *, c_real, eps=1e-6):
    B, H, W, C = x.shape
    xp = jnp.pad(x, ((0, 0), (1, 1), (1, 1), (0, 0)))
    Hp, Wp = H + 2, W + 2
    m_rows = H * Wp
    R = _round_up(m_rows + 2 * Wp + 2, 8)
    xf = jnp.pad(xp.reshape(B, Hp * Wp, C), ((0, 0), (0, R - Hp * Wp), (0, 0)))
    n_hidden = bp['pw1_b'].shape[1]
    kern = functools.partial(_hyper_convnext_kernel, m_rows=m_rows, w_flat=Wp,
                             c_real=float(c_real), eps=eps)
    y = pl.pallas_call(
        kern,
        out_shape=jax.ShapeDtypeStruct((B, m_rows, C), jnp.float32),
        grid=(B,),
        in_specs=[
            pl.BlockSpec((1, R, C), lambda b: (b, 0, 0)),
            pl.BlockSpec((1, 9, C), lambda b: (b, 0, 0)),
            pl.BlockSpec((1, 1, C), lambda b: (b, 0, 0)),
            pl.BlockSpec((1, C), lambda b: (0, 0)),
            pl.BlockSpec((1, C), lambda b: (0, 0)),
            pl.BlockSpec((1, C), lambda b: (0, 0)),
            pl.BlockSpec((C, n_hidden), lambda b: (0, 0)),
            pl.BlockSpec((1, n_hidden), lambda b: (0, 0)),
            pl.BlockSpec((n_hidden, C), lambda b: (0, 0)),
            pl.BlockSpec((1, C), lambda b: (0, 0)),
            pl.BlockSpec((1, C), lambda b: (0, 0)),
        ],
        out_specs=pl.BlockSpec((1, m_rows, C), lambda b: (b, 0, 0)),
        compiler_params=pltpu.CompilerParams(dimension_semantics=("parallel",)),
    )(xf, dw_w, dw_b, bp['ln_w'], bp['ln_b'], mask,
      bp['pw1_w'], bp['pw1_b'], bp['pw2_w'], bp['pw2_b'], bp['gamma'])
    return y.reshape(B, H, Wp, C)[:, :, :W, :]


# ----------------------------------------------------------------------------
# Kernel C: fused GroupNorm(32) + single-head spatial attention + residual
# ----------------------------------------------------------------------------

def _attn_kernel(x_ref, pg_ref, gnw_ref, gnb_ref, wq_ref, bq_ref, wk_ref,
                 bk_ref, wv_ref, bv_ref, wp_ref, bp_ref, o_ref, *,
                 n_per_group, c_real, eps):
    xb = x_ref[0]                                      # (HW, C) f32
    hw = xb.shape[0]
    # GroupNorm stats: per-channel sums, broadcast group mean/var back to the
    # channel lanes with a single (C, C) group-pair matmul; padded lanes stay 0.
    s1 = jnp.sum(xb, axis=0, keepdims=True)
    s2 = jnp.sum(xb * xb, axis=0, keepdims=True)
    inv_n = 1.0 / float(hw * n_per_group)
    mu = jnp.dot(s1, pg_ref[...], preferred_element_type=jnp.float32) * inv_n
    ex2 = jnp.dot(s2, pg_ref[...], preferred_element_type=jnp.float32) * inv_n
    var = jnp.maximum(ex2 - mu * mu, 0.0)
    h = (xb - mu) * jax.lax.rsqrt(var + eps) * gnw_ref[...] + gnb_ref[...]
    hb = h.astype(jnp.bfloat16)
    q = jnp.dot(hb, wq_ref[...], preferred_element_type=jnp.float32) + bq_ref[...]
    k = jnp.dot(hb, wk_ref[...], preferred_element_type=jnp.float32) + bk_ref[...]
    v = jnp.dot(hb, wv_ref[...], preferred_element_type=jnp.float32) + bv_ref[...]
    attn = jax.lax.dot_general(q.astype(jnp.bfloat16), k.astype(jnp.bfloat16),
                               (((1,), (1,)), ((), ())),
                               preferred_element_type=jnp.float32)
    attn = attn * (float(c_real) ** -0.5)
    attn = attn - jnp.max(attn, axis=-1, keepdims=True)
    p = jnp.exp(attn)
    p = p * pl.reciprocal(jnp.sum(p, axis=-1, keepdims=True), approx=True)
    h2 = jnp.dot(p.astype(jnp.bfloat16), v.astype(jnp.bfloat16),
                 preferred_element_type=jnp.float32)
    h2 = jnp.dot(h2.astype(jnp.bfloat16), wp_ref[...],
                 preferred_element_type=jnp.float32) + bp_ref[...]
    o_ref[0] = (xb + h2).astype(o_ref.dtype)


def attn_block(x, ap, *, c_real, num_groups=32, eps=1e-6):
    B, H, W, C = x.shape
    HW = H * W
    xr = x.reshape(B, HW, C)
    cg = c_real // num_groups
    ch = jnp.arange(C)
    pg = ((ch[:, None] // cg) == (ch[None, :] // cg))
    pg = pg & (ch[:, None] < c_real) & (ch[None, :] < c_real)
    pg = pg.astype(jnp.float32)

    def wpad(w):
        return jnp.pad(w.astype(jnp.float32),
                       ((0, C - w.shape[0]), (0, C - w.shape[1]))
                       ).astype(jnp.bfloat16)

    kern = functools.partial(_attn_kernel, n_per_group=cg, c_real=c_real,
                             eps=eps)
    full_cc = pl.BlockSpec((C, C), lambda b: (0, 0))
    full_1c = pl.BlockSpec((1, C), lambda b: (0, 0))
    y = pl.pallas_call(
        kern,
        out_shape=jax.ShapeDtypeStruct((B, HW, C), jnp.float32),
        grid=(B,),
        in_specs=[pl.BlockSpec((1, HW, C), lambda b: (b, 0, 0)),
                  full_cc, full_1c, full_1c,
                  full_cc, full_1c, full_cc, full_1c,
                  full_cc, full_1c, full_cc, full_1c],
        out_specs=pl.BlockSpec((1, HW, C), lambda b: (b, 0, 0)),
        compiler_params=pltpu.CompilerParams(dimension_semantics=("parallel",)),
    )(xr, pg, _pad_vec(ap['gn_w'], C), _pad_vec(ap['gn_b'], C),
      wpad(ap['wq']), _pad_vec(ap['bq'], C),
      wpad(ap['wk']), _pad_vec(ap['bk'], C),
      wpad(ap['wv']), _pad_vec(ap['bv'], C),
      wpad(ap['wp']), _pad_vec(ap['bp'], C))
    return y.reshape(B, H, W, C)


# ----------------------------------------------------------------------------
# Forward pass
# ----------------------------------------------------------------------------

def discriminator_forward(params, x_nchw, s):
    f32 = jnp.float32
    B = x_nchw.shape[0]
    x = jnp.transpose(x_nchw, (0, 2, 3, 1)).astype(f32)      # NCHW -> NHWC

    # ---- encoder: Conv(k4,s2,p1)+LeakyReLU, then [Conv + LN + LeakyReLU]* ----
    layers = [dict(w=params['enc0_w'], b=params['enc0_b'], ln=None)]
    for lyr in params['enc_rest']:
        layers.append(dict(w=lyr['w'], b=lyr['b'], ln=(lyr['ln_w'], lyr['ln_b'])))

    for lyr in layers:
        w = lyr['w']
        co = w.shape[0]
        cin_pad = x.shape[-1]
        cout_pad = _round_up(co, LANE)
        w_taps = _s2d_weight(w, cin_pad, cout_pad).astype(jnp.bfloat16)
        bias = _pad_vec(lyr['b'], cout_pad)
        if lyr['ln'] is None:
            zeros = jnp.zeros((1, cout_pad), f32)
            x = conv4x4_s2(x, w_taps, bias, zeros, zeros, zeros,
                           use_ln=False, c_real=1)
        else:
            ln_w = _pad_vec(lyr['ln'][0], cout_pad)
            ln_b = _pad_vec(lyr['ln'][1], cout_pad)
            msk = (jnp.arange(cout_pad) < co).astype(f32).reshape(1, cout_pad)
            x = conv4x4_s2(x, w_taps, bias, ln_w, ln_b, msk,
                           use_ln=True, c_real=co)

    dim = layers[-1]['w'].shape[0]
    C = x.shape[-1]
    mask_dim = (jnp.arange(C) < dim).astype(f32).reshape(1, C)

    # ---- hyperAttnResBlock: 2 hyper ConvNeXt residual blocks + attention ----
    # TODO(synk): hyperAttnResBlock internals are reconstructed, not ported.
    hid = 4 * dim
    hid_pad = _round_up(hid, LANE)
    for blk in params['blocks']:
        h = jnp.dot(s, blk['fc_w']) + blk['fc_b']            # tiny hypernet: XLA
        wt = jnp.dot(h, blk['bank_w']).reshape(B, 9, dim)
        bt = jnp.dot(h, blk['bank_b']).reshape(B, 1, dim)
        wt = jnp.pad(wt, ((0, 0), (0, 0), (0, C - dim))).astype(f32)
        bt = jnp.pad(bt, ((0, 0), (0, 0), (0, C - dim))).astype(f32)
        pw1_w = jnp.zeros((C, hid_pad), f32).at[:dim, :hid].set(blk['pw1_w'])
        pw1_b = jnp.zeros((1, hid_pad), f32).at[0, :hid].set(blk['pw1_b'])
        pw2_w = jnp.zeros((hid_pad, C), f32).at[:hid, :dim].set(blk['pw2_w'])
        bp = dict(ln_w=_pad_vec(blk['ln_w'], C), ln_b=_pad_vec(blk['ln_b'], C),
                  pw1_w=pw1_w.astype(jnp.bfloat16), pw1_b=pw1_b,
                  pw2_w=pw2_w.astype(jnp.bfloat16),
                  pw2_b=_pad_vec(blk['pw2_b'], C),
                  gamma=_pad_vec(blk['gamma'], C))
        x = hyper_convnext_block(x, wt, bt, bp, mask_dim, c_real=dim)

    x = attn_block(x, params['attn'], c_real=dim, num_groups=32)

    # ---- conv_out: Conv(dim -> 1, k4, s1, p1), lane-dense then sliced ----
    w_taps = _s1_weight(params['out_w'], C, LANE).astype(jnp.bfloat16)
    bias = _pad_vec(params['out_b'], LANE)
    y = conv4x4_s1(x, w_taps, bias)                          # (B, Ho, Wo, 128)
    out = jnp.transpose(y[..., :params['out_w'].shape[0]], (0, 3, 1, 2))
    return out


# ----------------------------------------------------------------------------
# Deterministic parameter initialization (synthetic; shapes follow __init__)
# ----------------------------------------------------------------------------

def init_params(key, args):
    c_in = args['in_channels']
    c_enc = args['conv_channels']
    lsiv = args['layer_scale_init_value']
    hyper_dim = args['hyper_conv_dim']
    style_dim = args['style_dim']

    keys = iter(jax.random.split(key, 64))

    def nrm(shape, scale=0.1):
        return (scale * jax.random.normal(next(keys), shape)).astype(jnp.float32)

    params = {}
    params['enc0_w'] = nrm((c_enc[0], c_in, 4, 4))
    params['enc0_b'] = nrm((c_enc[0],), 0.01)

    enc_rest = []
    nc_pre = c_enc[0]
    for nc in c_enc[1:]:
        enc_rest.append(dict(
            w=nrm((nc, nc_pre, 4, 4)), b=nrm((nc,), 0.01),
            ln_w=jnp.ones((nc,), jnp.float32), ln_b=jnp.zeros((nc,), jnp.float32)))
        nc_pre = nc
    params['enc_rest'] = enc_rest
    dim = nc_pre

    blocks = []
    for _ in range(2):
        blocks.append(dict(
            fc_w=nrm((style_dim, hyper_dim)), fc_b=nrm((hyper_dim,), 0.01),
            bank_w=nrm((hyper_dim, 9 * dim)), bank_b=nrm((hyper_dim, dim), 0.01),
            ln_w=jnp.ones((dim,), jnp.float32), ln_b=jnp.zeros((dim,), jnp.float32),
            pw1_w=nrm((dim, 4 * dim)), pw1_b=nrm((4 * dim,), 0.01),
            pw2_w=nrm((4 * dim, dim)), pw2_b=nrm((dim,), 0.01),
            gamma=jnp.full((dim,), lsiv, jnp.float32)))
    params['blocks'] = blocks

    params['attn'] = dict(
        gn_w=jnp.ones((dim,), jnp.float32), gn_b=jnp.zeros((dim,), jnp.float32),
        wq=nrm((dim, dim)), bq=nrm((dim,), 0.01),
        wk=nrm((dim, dim)), bk=nrm((dim,), 0.01),
        wv=nrm((dim, dim)), bv=nrm((dim,), 0.01),
        wp=nrm((dim, dim)), bp=nrm((dim,), 0.01))

    params['out_w'] = nrm((1, dim, 4, 4))
    params['out_b'] = nrm((1,), 0.01)
    return params


# ----------------------------------------------------------------------------
# Main
# ----------------------------------------------------------------------------

if __name__ == "__main__":
    args = {
        'in_channels': 4,
        'conv_channels': [32, 64],
        'layer_scale_init_value': 1e-6,
        'hyper_conv_dim': 8,
        'style_dim': 8,
    }
    key = jax.random.PRNGKey(0)
    kp, kx, ks = jax.random.split(key, 3)
    params = init_params(kp, args)
    x = jax.random.normal(kx, (2, args['in_channels'], 16, 16), dtype=jnp.float32)
    s = jax.random.normal(ks, (2, args['style_dim']), dtype=jnp.float32)

    fwd = jax.jit(discriminator_forward)
    out = fwd(params, x, s)
    jax.block_until_ready(out)

    # 16 -> 8 -> 4 (two stride-2 convs), then k4/s1/p1 -> 3x3 patch map
    assert out.shape == (2, 1, 3, 3), out.shape
    assert out.dtype == jnp.float32
    print("KERNEL_OK")
</pallas_src>

<mosaic_0001>
module attributes {stable_mosaic.version = 11 : i64} {
  func.func @_conv_fused_kernel(%arg0: i32, %arg1: memref<1x88x16xf32, #tpu.memory_space<vmem>>, %arg2: memref<64x128xbf16, #tpu.memory_space<vmem>>, %arg3: memref<1x128xf32, #tpu.memory_space<vmem>>, %arg4: memref<1x128xf32, #tpu.memory_space<vmem>>, %arg5: memref<1x128xf32, #tpu.memory_space<vmem>>, %arg6: memref<1x128xf32, #tpu.memory_space<vmem>>, %arg7: memref<1x72x128xf32, #tpu.memory_space<vmem>>) attributes {dimension_semantics = [#tpu.dimension_semantics<parallel>], iteration_bounds = array<i64: 2>, scalar_prefetch = 0 : i64, scratch_operands = 0 : i64, tpu.core_type = #tpu.core_type<tc>, window_params = [{transform_indices = @transform_0, window_bounds = array<i64: 1, 88, 16>}, {pipeline_mode = #tpu.pipeline_mode<synchronous>, transform_indices = @transform_1, window_bounds = array<i64: 64, 128>}, {pipeline_mode = #tpu.pipeline_mode<synchronous>, transform_indices = @transform_2, window_bounds = array<i64: 1, 128>}, {pipeline_mode = #tpu.pipeline_mode<synchronous>, transform_indices = @transform_3, window_bounds = array<i64: 1, 128>}, {pipeline_mode = #tpu.pipeline_mode<synchronous>, transform_indices = @transform_4, window_bounds = array<i64: 1, 128>}, {pipeline_mode = #tpu.pipeline_mode<synchronous>, transform_indices = @transform_5, window_bounds = array<i64: 1, 128>}, {transform_indices = @transform_6, window_bounds = array<i64: 1, 72, 128>}]} {
    %cst = arith.constant 0.000000e+00 : f32
    %0 = vector.broadcast %cst : f32 to vector<72x128xf32>
    %c0 = arith.constant 0 : index
    %c0_0 = arith.constant 0 : index
    %c0_1 = arith.constant 0 : index
    %1 = vector.load %arg1[%c0, %c0_0, %c0_1] : memref<1x88x16xf32, #tpu.memory_space<vmem>>, vector<1x72x16xf32>
    %2 = vector.shape_cast %1 : vector<1x72x16xf32> to vector<72x16xf32>
    %3 = arith.truncf %2 : vector<72x16xf32> to vector<72x16xbf16>
    %c0_2 = arith.constant 0 : index
    %c0_3 = arith.constant 0 : index
    %4 = vector.load %arg2[%c0_2, %c0_3] : memref<64x128xbf16, #tpu.memory_space<vmem>>, vector<16x128xbf16>
    %cst_4 = arith.constant dense<0.000000e+00> : vector<72x128xf32>
    %5 = tpu.matmul %3, %4, %cst_4 {dimension_numbers = #tpu.dot_dimension_numbers<[1], [0], [0], [1], [0, 0, 1, 1], [], []>} : vector<72x16xbf16>, vector<16x128xbf16>, vector<72x128xf32> -> vector<72x128xf32>
    %6 = arith.addf %0, %5 : vector<72x128xf32>
    %c0_5 = arith.constant 0 : index
    %c1 = arith.constant 1 : index
    %c0_6 = arith.constant 0 : index
    %7 = vector.load %arg1[%c0_5, %c1, %c0_6] : memref<1x88x16xf32, #tpu.memory_space<vmem>>, vector<1x72x16xf32>
    %8 = vector.shape_cast %7 : vector<1x72x16xf32> to vector<72x16xf32>
    %9 = arith.truncf %8 : vector<72x16xf32> to vector<72x16xbf16>
    %c16 = arith.constant 16 : index
    %c0_7 = arith.constant 0 : index
    %10 = vector.load %arg2[%c16, %c0_7] : memref<64x128xbf16, #tpu.memory_space<vmem>>, vector<16x128xbf16>
    %cst_8 = arith.constant dense<0.000000e+00> : vector<72x128xf32>
    %11 = tpu.matmul %9, %10, %cst_8 {dimension_numbers = #tpu.dot_dimension_numbers<[1], [0], [0], [1], [0, 0, 1, 1], [], []>} : vector<72x16xbf16>, vector<16x128xbf16>, vector<72x128xf32> -> vector<72x128xf32>
    %12 = arith.addf %6, %11 : vector<72x128xf32>
    %c0_9 = arith.constant 0 : index
    %c9 = arith.constant 9 : index
    %c0_10 = arith.constant 0 : index
    %13 = vector.load %arg1[%c0_9, %c9, %c0_10] : memref<1x88x16xf32, #tpu.memory_space<vmem>>, vector<1x72x16xf32>
    %14 = vector.shape_cast %13 : vector<1x72x16xf32> to vector<72x16xf32>
    %15 = arith.truncf %14 : vector<72x16xf32> to vector<72x16xbf16>
    %c32 = arith.constant 32 : index
    %c0_11 = arith.constant 0 : index
    %16 = vector.load %arg2[%c32, %c0_11] : memref<64x128xbf16, #tpu.memory_space<vmem>>, vector<16x128xbf16>
    %cst_12 = arith.constant dense<0.000000e+00> : vector<72x128xf32>
    %17 = tpu.matmul %15, %16, %cst_12 {dimension_numbers = #tpu.dot_dimension_numbers<[1], [0], [0], [1], [0, 0, 1, 1], [], []>} : vector<72x16xbf16>, vector<16x128xbf16>, vector<72x128xf32> -> vector<72x128xf32>
    %18 = arith.addf %12, %17 : vector<72x128xf32>
    %c0_13 = arith.constant 0 : index
    %c10 = arith.constant 10 : index
    %c0_14 = arith.constant 0 : index
    %19 = vector.load %arg1[%c0_13, %c10, %c0_14] : memref<1x88x16xf32, #tpu.memory_space<vmem>>, vector<1x72x16xf32>
    %20 = vector.shape_cast %19 : vector<1x72x16xf32> to vector<72x16xf32>
    %21 = arith.truncf %20 : vector<72x16xf32> to vector<72x16xbf16>
    %c48 = arith.constant 48 : index
    %c0_15 = arith.constant 0 : index
    %22 = vector.load %arg2[%c48, %c0_15] : memref<64x128xbf16, #tpu.memory_space<vmem>>, vector<16x128xbf16>
    %cst_16 = arith.constant dense<0.000000e+00> : vector<72x128xf32>
    %23 = tpu.matmul %21, %22, %cst_16 {dimension_numbers = #tpu.dot_dimension_numbers<[1], [0], [0], [1], [0, 0, 1, 1], [], []>} : vector<72x16xbf16>, vector<16x128xbf16>, vector<72x128xf32> -> vector<72x128xf32>
    %24 = arith.addf %18, %23 : vector<72x128xf32>
    %c0_17 = arith.constant 0 : index
    %c0_18 = arith.constant 0 : index
    %25 = vector.load %arg3[%c0_17, %c0_18] : memref<1x128xf32, #tpu.memory_space<vmem>>, vector<1x128xf32>
    %26 = vector.broadcast %25 : vector<1x128xf32> to vector<72x128xf32>
    %27 = arith.addf %24, %26 : vector<72x128xf32>
    %cst_19 = arith.constant 0.000000e+00 : f32
    %28 = vector.broadcast %cst_19 : f32 to vector<72x128xf32>
    %29 = arith.cmpf oge, %27, %28 : vector<72x128xf32>
    %cst_20 = arith.constant 2.000000e-01 : f32
    %30 = vector.broadcast %cst_20 : f32 to vector<72x128xf32>
    %31 = arith.mulf %30, %27 : vector<72x128xf32>
    %32 = arith.select %29, %27, %31 : vector<72x128xi1>, vector<72x128xf32>
    %c0_21 = arith.constant 0 : index
    %c0_22 = arith.constant 0 : index
    %c0_23 = arith.constant 0 : index
    %33 = vector.load %arg7[%c0_21, %c0_22, %c0_23] : memref<1x72x128xf32, #tpu.memory_space<vmem>>, vector<1x72x128xf32>
    %34 = vector.shape_cast %33 : vector<1x72x128xf32> to vector<72x128xf32>
    %35 = vector.shape_cast %32 : vector<72x128xf32> to vector<1x72x128xf32>
    tpu.vector_store %arg7[%c0_21, %c0_22, %c0_23], %35 {strides = array<i32>} : memref<1x72x128xf32, #tpu.memory_space<vmem>>, vector<1x72x128xf32>,
    return
  }
  func.func @transform_0(%arg0: i32) -> (i32, i32, i32) {
    %c0_i32 = arith.constant 0 : i32
    %c0_i32_0 = arith.constant 0 : i32
    %c0_i32_1 = arith.constant 0 : i32
    return %arg0, %c0_i32, %c0_i32_0 : i32, i32, i32
  }
  func.func @transform_1(%arg0: i32) -> (i32, i32) {
    %c0_i32 = arith.constant 0 : i32
    %c0_i32_0 = arith.constant 0 : i32
    %c0_i32_1 = arith.constant 0 : i32
    return %c0_i32, %c0_i32_0 : i32, i32
  }
  func.func @transform_2(%arg0: i32) -> (i32, i32) {
    %c0_i32 = arith.constant 0 : i32
    %c0_i32_0 = arith.constant 0 : i32
    %c0_i32_1 = arith.constant 0 : i32
    return %c0_i32, %c0_i32_0 : i32, i32
  }
  func.func @transform_3(%arg0: i32) -> (i32, i32) {
    %c0_i32 = arith.constant 0 : i32
    %c0_i32_0 = arith.constant 0 : i32
    %c0_i32_1 = arith.constant 0 : i32
    return %c0_i32, %c0_i32_0 : i32, i32
  }
  func.func @transform_4(%arg0: i32) -> (i32, i32) {
    %c0_i32 = arith.constant 0 : i32
    %c0_i32_0 = arith.constant 0 : i32
    %c0_i32_1 = arith.constant 0 : i32
    return %c0_i32, %c0_i32_0 : i32, i32
  }
  func.func @transform_5(%arg0: i32) -> (i32, i32) {
    %c0_i32 = arith.constant 0 : i32
    %c0_i32_0 = arith.constant 0 : i32
    %c0_i32_1 = arith.constant 0 : i32
    return %c0_i32, %c0_i32_0 : i32, i32
  }
  func.func @transform_6(%arg0: i32) -> (i32, i32, i32) {
    %c0_i32 = arith.constant 0 : i32
    %c0_i32_0 = arith.constant 0 : i32
    %c0_i32_1 = arith.constant 0 : i32
    return %arg0, %c0_i32, %c0_i32_0 : i32, i32, i32
  }
}

module attributes {stable_mosaic.version = 11 : i64} {
  func.func @_conv_fused_kernel(%arg0: i32, %arg1: memref<1x32x512xf32, #tpu.memory_space<vmem>>, %arg2: memref<2048x128xbf16, #tpu.memory_space<vmem>>, %arg3: memref<1x128xf32, #tpu.memory_space<vmem>>, %arg4: memref<1x128xf32, #tpu.memory_space<vmem>>, %arg5: memref<1x128xf32, #tpu.memory_space<vmem>>, %arg6: memref<1x128xf32, #tpu.memory_space<vmem>>, %arg7: memref<1x20x128xf32, #tpu.memory_space<vmem>>) attributes {dimension_semantics = [#tpu.dimension_semantics<parallel>], iteration_bounds = array<i64: 2>, scalar_prefetch = 0 : i64, scratch_operands = 0 : i64, tpu.core_type = #tpu.core_type<tc>, window_params = [{transform_indices = @transform_0, window_bounds = array<i64: 1, 32, 512>}, {pipeline_mode = #tpu.pipeline_mode<synchronous>, transform_indices = @transform_1, window_bounds = array<i64: 2048, 128>}, {pipeline_mode = #tpu.pipeline_mode<synchronous>, transform_indices = @transform_2, window_bounds = array<i64: 1, 128>}, {pipeline_mode = #tpu.pipeline_mode<synchronous>, transform_indices = @transform_3, window_bounds = array<i64: 1, 128>}, {pipeline_mode = #tpu.pipeline_mode<synchronous>, transform_indices = @transform_4, window_bounds = array<i64: 1, 128>}, {pipeline_mode = #tpu.pipeline_mode<synchronous>, transform_indices = @transform_5, window_bounds = array<i64: 1, 128>}, {transform_indices = @transform_6, window_bounds = array<i64: 1, 20, 128>}]} {
    %cst = arith.constant 0.000000e+00 : f32
    %0 = vector.broadcast %cst : f32 to vector<20x128xf32>
    %c0 = arith.constant 0 : index
    %c0_0 = arith.constant 0 : index
    %c0_1 = arith.constant 0 : index
    %1 = vector.load %arg1[%c0, %c0_0, %c0_1] : memref<1x32x512xf32, #tpu.memory_space<vmem>>, vector<1x20x512xf32>
    %2 = vector.shape_cast %1 : vector<1x20x512xf32> to vector<20x512xf32>
    %3 = arith.truncf %2 : vector<20x512xf32> to vector<20x512xbf16>
    %c0_2 = arith.constant 0 : index
    %c0_3 = arith.constant 0 : index
    %4 = vector.load %arg2[%c0_2, %c0_3] : memref<2048x128xbf16, #tpu.memory_space<vmem>>, vector<512x128xbf16>
    %cst_4 = arith.constant dense<0.000000e+00> : vector<20x128xf32>
    %5 = tpu.matmul %3, %4, %cst_4 {dimension_numbers = #tpu.dot_dimension_numbers<[1], [0], [0], [1], [0, 0, 1, 1], [], []>} : vector<20x512xbf16>, vector<512x128xbf16>, vector<20x128xf32> -> vector<20x128xf32>
    %6 = arith.addf %0, %5 : vector<20x128xf32>
    %c0_5 = arith.constant 0 : index
    %c1 = arith.constant 1 : index
    %c0_6 = arith.constant 0 : index
    %7 = vector.load %arg1[%c0_5, %c1, %c0_6] : memref<1x32x512xf32, #tpu.memory_space<vmem>>, vector<1x20x512xf32>
    %8 = vector.shape_cast %7 : vector<1x20x512xf32> to vector<20x512xf32>
    %9 = arith.truncf %8 : vector<20x512xf32> to vector<20x512xbf16>
    %c512 = arith.constant 512 : index
    %c0_7 = arith.constant 0 : index
    %10 = vector.load %arg2[%c512, %c0_7] : memref<2048x128xbf16, #tpu.memory_space<vmem>>, vector<512x128xbf16>
    %cst_8 = arith.constant dense<0.000000e+00> : vector<20x128xf32>
    %11 = tpu.matmul %9, %10, %cst_8 {dimension_numbers = #tpu.dot_dimension_numbers<[1], [0], [0], [1], [0, 0, 1, 1], [], []>} : vector<20x512xbf16>, vector<512x128xbf16>, vector<20x128xf32> -> vector<20x128xf32>
    %12 = arith.addf %6, %11 : vector<20x128xf32>
    %c0_9 = arith.constant 0 : index
    %c5 = arith.constant 5 : index
    %c0_10 = arith.constant 0 : index
    %13 = vector.load %arg1[%c0_9, %c5, %c0_10] : memref<1x32x512xf32, #tpu.memory_space<vmem>>, vector<1x20x512xf32>
    %14 = vector.shape_cast %13 : vector<1x20x512xf32> to vector<20x512xf32>
    %15 = arith.truncf %14 : vector<20x512xf32> to vector<20x512xbf16>
    %c1024 = arith.constant 1024 : index
    %c0_11 = arith.constant 0 : index
    %16 = vector.load %arg2[%c1024, %c0_11] : memref<2048x128xbf16, #tpu.memory_space<vmem>>, vector<512x128xbf16>
    %cst_12 = arith.constant dense<0.000000e+00> : vector<20x128xf32>
    %17 = tpu.matmul %15, %16, %cst_12 {dimension_numbers = #tpu.dot_dimension_numbers<[1], [0], [0], [1], [0, 0, 1, 1], [], []>} : vector<20x512xbf16>, vector<512x128xbf16>, vector<20x128xf32> -> vector<20x128xf32>
    %18 = arith.addf %12, %17 : vector<20x128xf32>
    %c0_13 = arith.constant 0 : index
    %c6 = arith.constant 6 : index
    %c0_14 = arith.constant 0 : index
    %19 = vector.load %arg1[%c0_13, %c6, %c0_14] : memref<1x32x512xf32, #tpu.memory_space<vmem>>, vector<1x20x512xf32>
    %20 = vector.shape_cast %19 : vector<1x20x512xf32> to vector<20x512xf32>
    %21 = arith.truncf %20 : vector<20x512xf32> to vector<20x512xbf16>
    %c1536 = arith.constant 1536 : index
    %c0_15 = arith.constant 0 : index
    %22 = vector.load %arg2[%c1536, %c0_15] : memref<2048x128xbf16, #tpu.memory_space<vmem>>, vector<512x128xbf16>
    %cst_16 = arith.constant dense<0.000000e+00> : vector<20x128xf32>
    %23 = tpu.matmul %21, %22, %cst_16 {dimension_numbers = #tpu.dot_dimension_numbers<[1], [0], [0], [1], [0, 0, 1, 1], [], []>} : vector<20x512xbf16>, vector<512x128xbf16>, vector<20x128xf32> -> vector<20x128xf32>
    %24 = arith.addf %18, %23 : vector<20x128xf32>
    %c0_17 = arith.constant 0 : index
    %c0_18 = arith.constant 0 : index
    %25 = vector.load %arg3[%c0_17, %c0_18] : memref<1x128xf32, #tpu.memory_space<vmem>>, vector<1x128xf32>
    %26 = vector.broadcast %25 : vector<1x128xf32> to vector<20x128xf32>
    %27 = arith.addf %24, %26 : vector<20x128xf32>
    %c0_19 = arith.constant 0 : index
    %c0_20 = arith.constant 0 : index
    %28 = vector.load %arg6[%c0_19, %c0_20] : memref<1x128xf32, #tpu.memory_space<vmem>>, vector<1x128xf32>
    %29 = vector.broadcast %28 : vector<1x128xf32> to vector<20x128xf32>
    %30 = arith.mulf %27, %29 : vector<20x128xf32>
    %cst_21 = arith.constant dense<0.000000e+00> : vector<20xf32>
    %31 = vector.multi_reduction <add>, %30, %cst_21 [1] : vector<20x128xf32> to vector<20xf32>
    %32 = vector.shape_cast %31 : vector<20xf32> to vector<20x1xf32>
    %cst_22 = arith.constant 1.562500e-02 : f32
    %33 = vector.broadcast %cst_22 : f32 to vector<20x1xf32>
    %34 = arith.mulf %32, %33 : vector<20x1xf32>
    %35 = vector.broadcast %34 : vector<20x1xf32> to vector<20x128xf32>
    %36 = arith.subf %27, %35 : vector<20x128xf32>
    %37 = vector.broadcast %28 : vector<1x128xf32> to vector<20x128xf32>
    %38 = arith.mulf %36, %37 : vector<20x128xf32>
    %39 = arith.mulf %38, %38 : vector<20x128xf32>
    %cst_23 = arith.constant dense<0.000000e+00> : vector<20xf32>
    %40 = vector.multi_reduction <add>, %39, %cst_23 [1] : vector<20x128xf32> to vector<20xf32>
    %41 = vector.shape_cast %40 : vector<20xf32> to vector<20x1xf32>
    %cst_24 = arith.constant 1.562500e-02 : f32
    %42 = vector.broadcast %cst_24 : f32 to vector<20x1xf32>
    %43 = arith.mulf %41, %42 : vector<20x1xf32>
    %cst_25 = arith.constant 9.99999997E-7 : f32
    %44 = vector.broadcast %cst_25 : f32 to vector<20x1xf32>
    %45 = arith.addf %43, %44 : vector<20x1xf32>
    %46 = math.rsqrt %45 : vector<20x1xf32>
    %47 = vector.broadcast %46 : vector<20x1xf32> to vector<20x128xf32>
    %48 = arith.mulf %38, %47 : vector<20x128xf32>
    %c0_26 = arith.constant 0 : index
    %c0_27 = arith.constant 0 : index
    %49 = vector.load %arg4[%c0_26, %c0_27] : memref<1x128xf32, #tpu.memory_space<vmem>>, vector<1x128xf32>
    %50 = vector.broadcast %49 : vector<1x128xf32> to vector<20x128xf32>
    %51 = arith.mulf %48, %50 : vector<20x128xf32>
    %c0_28 = arith.constant 0 : index
    %c0_29 = arith.constant 0 : index
    %52 = vector.load %arg5[%c0_28, %c0_29] : memref<1x128xf32, #tpu.memory_space<vmem>>, vector<1x128xf32>
    %53 = vector.broadcast %52 : vector<1x128xf32> to vector<20x128xf32>
    %54 = arith.addf %51, %53 : vector<20x128xf32>
    %cst_30 = arith.constant 0.000000e+00 : f32
    %55 = vector.broadcast %cst_30 : f32 to vector<20x128xf32>
    %56 = arith.cmpf oge, %54, %55 : vector<20x128xf32>
    %cst_31 = arith.constant 2.000000e-01 : f32
    %57 = vector.broadcast %cst_31 : f32 to vector<20x128xf32>
    %58 = arith.mulf %57, %54 : vector<20x128xf32>
    %59 = arith.select %56, %54, %58 : vector<20x128xi1>, vector<20x128xf32>
    %c0_32 = arith.constant 0 : index
    %c0_33 = arith.constant 0 : index
    %c0_34 = arith.constant 0 : index
    %60 = vector.load %arg7[%c0_32, %c0_33, %c0_34] : memref<1x20x128xf32, #tpu.memory_space<vmem>>, vector<1x20x128xf32>
    %61 = vector.shape_cast %60 : vector<1x20x128xf32> to vector<20x128xf32>
    %62 = vector.shape_cast %59 : vector<20x128xf32> to vector<1x20x128xf32>
    tpu.vector_store %arg7[%c0_32, %c0_33, %c0_34], %62 {strides = array<i32>} : memref<1x20x128xf32, #tpu.memory_space<vmem>>, vector<1x20x128xf32>,
    return
  }
  func.func @transform_0(%arg0: i32) -> (i32, i32, i32) {
    %c0_i32 = arith.constant 0 : i32
    %c0_i32_0 = arith.constant 0 : i32
    %c0_i32_1 = arith.constant 0 : i32
    return %arg0, %c0_i32, %c0_i32_0 : i32, i32, i32
  }
  func.func @transform_1(%arg0: i32) -> (i32, i32) {
    %c0_i32 = arith.constant 0 : i32
    %c0_i32_0 = arith.constant 0 : i32
    %c0_i32_1 = arith.constant 0 : i32
    return %c0_i32, %c0_i32_0 : i32, i32
  }
  func.func @transform_2(%arg0: i32) -> (i32, i32) {
    %c0_i32 = arith.constant 0 : i32
    %c0_i32_0 = arith.constant 0 : i32
    %c0_i32_1 = arith.constant 0 : i32
    return %c0_i32, %c0_i32_0 : i32, i32
  }
  func.func @transform_3(%arg0: i32) -> (i32, i32) {
    %c0_i32 = arith.constant 0 : i32
    %c0_i32_0 = arith.constant 0 : i32
    %c0_i32_1 = arith.constant 0 : i32
    return %c0_i32, %c0_i32_0 : i32, i32
  }
  func.func @transform_4(%arg0: i32) -> (i32, i32) {
    %c0_i32 = arith.constant 0 : i32
    %c0_i32_0 = arith.constant 0 : i32
    %c0_i32_1 = arith.constant 0 : i32
    return %c0_i32, %c0_i32_0 : i32, i32
  }
  func.func @transform_5(%arg0: i32) -> (i32, i32) {
    %c0_i32 = arith.constant 0 : i32
    %c0_i32_0 = arith.constant 0 : i32
    %c0_i32_1 = arith.constant 0 : i32
    return %c0_i32, %c0_i32_0 : i32, i32
  }
  func.func @transform_6(%arg0: i32) -> (i32, i32, i32) {
    %c0_i32 = arith.constant 0 : i32
    %c0_i32_0 = arith.constant 0 : i32
    %c0_i32_1 = arith.constant 0 : i32
    return %arg0, %c0_i32, %c0_i32_0 : i32, i32, i32
  }
}

module attributes {stable_mosaic.version = 11 : i64} {
  func.func @_hyper_convnext_kernel(%arg0: i32, %arg1: memref<1x40x128xf32, #tpu.memory_space<vmem>>, %arg2: memref<1x9x128xf32, #tpu.memory_space<vmem>>, %arg3: memref<1x1x128xf32, #tpu.memory_space<vmem>>, %arg4: memref<1x128xf32, #tpu.memory_space<vmem>>, %arg5: memref<1x128xf32, #tpu.memory_space<vmem>>, %arg6: memref<1x128xf32, #tpu.memory_space<vmem>>, %arg7: memref<128x256xbf16, #tpu.memory_space<vmem>>, %arg8: memref<1x256xf32, #tpu.memory_space<vmem>>, %arg9: memref<256x128xbf16, #tpu.memory_space<vmem>>, %arg10: memref<1x128xf32, #tpu.memory_space<vmem>>, %arg11: memref<1x128xf32, #tpu.memory_space<vmem>>, %arg12: memref<1x24x128xf32, #tpu.memory_space<vmem>>) attributes {dimension_semantics = [#tpu.dimension_semantics<parallel>], iteration_bounds = array<i64: 2>, scalar_prefetch = 0 : i64, scratch_operands = 0 : i64, tpu.core_type = #tpu.core_type<tc>, window_params = [{transform_indices = @transform_0, window_bounds = array<i64: 1, 40, 128>}, {transform_indices = @transform_1, window_bounds = array<i64: 1, 9, 128>}, {transform_indices = @transform_2, window_bounds = array<i64: 1, 1, 128>}, {pipeline_mode = #tpu.pipeline_mode<synchronous>, transform_indices = @transform_3, window_bounds = array<i64: 1, 128>}, {pipeline_mode = #tpu.pipeline_mode<synchronous>, transform_indices = @transform_4, window_bounds = array<i64: 1, 128>}, {pipeline_mode = #tpu.pipeline_mode<synchronous>, transform_indices = @transform_5, window_bounds = array<i64: 1, 128>}, {pipeline_mode = #tpu.pipeline_mode<synchronous>, transform_indices = @transform_6, window_bounds = array<i64: 128, 256>}, {pipeline_mode = #tpu.pipeline_mode<synchronous>, transform_indices = @transform_7, window_bounds = array<i64: 1, 256>}, {pipeline_mode = #tpu.pipeline_mode<synchronous>, transform_indices = @transform_8, window_bounds = array<i64: 256, 128>}, {pipeline_mode = #tpu.pipeline_mode<synchronous>, transform_indices = @transform_9, window_bounds = array<i64: 1, 128>}, {pipeline_mode = #tpu.pipeline_mode<synchronous>, transform_indices = @transform_10, window_bounds = array<i64: 1, 128>}, {transform_indices = @transform_11, window_bounds = array<i64: 1, 24, 128>}]} {
    %cst = arith.constant 0.000000e+00 : f32
    %0 = vector.broadcast %cst : f32 to vector<24x128xf32>
    %c0 = arith.constant 0 : index
    %c0_0 = arith.constant 0 : index
    %c0_1 = arith.constant 0 : index
    %1 = vector.load %arg3[%c0, %c0_0, %c0_1] : memref<1x1x128xf32, #tpu.memory_space<vmem>>, vector<1x1x128xf32>
    %2 = vector.shape_cast %1 : vector<1x1x128xf32> to vector<1x128xf32>
    %3 = vector.broadcast %2 : vector<1x128xf32> to vector<24x128xf32>
    %4 = arith.addf %0, %3 : vector<24x128xf32>
    %c0_2 = arith.constant 0 : index
    %c0_3 = arith.constant 0 : index
    %c0_4 = arith.constant 0 : index
    %5 = vector.load %arg1[%c0_2, %c0_3, %c0_4] : memref<1x40x128xf32, #tpu.memory_space<vmem>>, vector<1x24x128xf32>
    %6 = vector.shape_cast %5 : vector<1x24x128xf32> to vector<24x128xf32>
    %c0_5 = arith.constant 0 : index
    %c0_6 = arith.constant 0 : index
    %c0_7 = arith.constant 0 : index
    %7 = vector.load %arg2[%c0_5, %c0_6, %c0_7] : memref<1x9x128xf32, #tpu.memory_space<vmem>>, vector<1x1x128xf32>
    %8 = vector.shape_cast %7 : vector<1x1x128xf32> to vector<1x128xf32>
    %9 = vector.broadcast %8 : vector<1x128xf32> to vector<24x128xf32>
    %10 = arith.mulf %6, %9 : vector<24x128xf32>
    %11 = arith.addf %4, %10 : vector<24x128xf32>
    %c0_8 = arith.constant 0 : index
    %c1 = arith.constant 1 : index
    %c0_9 = arith.constant 0 : index
    %12 = vector.load %arg1[%c0_8, %c1, %c0_9] : memref<1x40x128xf32, #tpu.memory_space<vmem>>, vector<1x24x128xf32>
    %13 = vector.shape_cast %12 : vector<1x24x128xf32> to vector<24x128xf32>
    %c0_10 = arith.constant 0 : index
    %c1_11 = arith.constant 1 : index
    %c0_12 = arith.constant 0 : index
    %14 = vector.load %arg2[%c0_10, %c1_11, %c0_12] : memref<1x9x128xf32, #tpu.memory_space<vmem>>, vector<1x1x128xf32>
    %15 = vector.shape_cast %14 : vector<1x1x128xf32> to vector<1x128xf32>
    %16 = vector.broadcast %15 : vector<1x128xf32> to vector<24x128xf32>
    %17 = arith.mulf %13, %16 : vector<24x128xf32>
    %18 = arith.addf %11, %17 : vector<24x128xf32>
    %c0_13 = arith.constant 0 : index
    %c2 = arith.constant 2 : index
    %c0_14 = arith.constant 0 : index
    %19 = vector.load %arg1[%c0_13, %c2, %c0_14] : memref<1x40x128xf32, #tpu.memory_space<vmem>>, vector<1x24x128xf32>
    %20 = vector.shape_cast %19 : vector<1x24x128xf32> to vector<24x128xf32>
    %c0_15 = arith.constant 0 : index
    %c2_16 = arith.constant 2 : index
    %c0_17 = arith.constant 0 : index
    %21 = vector.load %arg2[%c0_15, %c2_16, %c0_17] : memref<1x9x128xf32, #tpu.memory_space<vmem>>, vector<1x1x128xf32>
    %22 = vector.shape_cast %21 : vector<1x1x128xf32> to vector<1x128xf32>
    %23 = vector.broadcast %22 : vector<1x128xf32> to vector<24x128xf32>
    %24 = arith.mulf %20, %23 : vector<24x128xf32>
    %25 = arith.addf %18, %24 : vector<24x128xf32>
    %c0_18 = arith.constant 0 : index
    %c6 = arith.constant 6 : index
    %c0_19 = arith.constant 0 : index
    %26 = vector.load %arg1[%c0_18, %c6, %c0_19] : memref<1x40x128xf32, #tpu.memory_space<vmem>>, vector<1x24x128xf32>
    %27 = vector.shape_cast %26 : vector<1x24x128xf32> to vector<24x128xf32>
    %c0_20 = arith.constant 0 : index
    %c3 = arith.constant 3 : index
    %c0_21 = arith.constant 0 : index
    %28 = vector.load %arg2[%c0_20, %c3, %c0_21] : memref<1x9x128xf32, #tpu.memory_space<vmem>>, vector<1x1x128xf32>
    %29 = vector.shape_cast %28 : vector<1x1x128xf32> to vector<1x128xf32>
    %30 = vector.broadcast %29 : vector<1x128xf32> to vector<24x128xf32>
    %31 = arith.mulf %27, %30 : vector<24x128xf32>
    %32 = arith.addf %25, %31 : vector<24x128xf32>
    %c0_22 = arith.constant 0 : index
    %c7 = arith.constant 7 : index
    %c0_23 = arith.constant 0 : index
    %33 = vector.load %arg1[%c0_22, %c7, %c0_23] : memref<1x40x128xf32, #tpu.memory_space<vmem>>, vector<1x24x128xf32>
    %34 = vector.shape_cast %33 : vector<1x24x128xf32> to vector<24x128xf32>
    %c0_24 = arith.constant 0 : index
    %c4 = arith.constant 4 : index
    %c0_25 = arith.constant 0 : index
    %35 = vector.load %arg2[%c0_24, %c4, %c0_25] : memref<1x9x128xf32, #tpu.memory_space<vmem>>, vector<1x1x128xf32>
    %36 = vector.shape_cast %35 : vector<1x1x128xf32> to vector<1x128xf32>
    %37 = vector.broadcast %36 : vector<1x128xf32> to vector<24x128xf32>
    %38 = arith.mulf %34, %37 : vector<24x128xf32>
    %39 = arith.addf %32, %38 : vector<24x128xf32>
    %c0_26 = arith.constant 0 : index
    %c8 = arith.constant 8 : index
    %c0_27 = arith.constant 0 : index
    %40 = vector.load %arg1[%c0_26, %c8, %c0_27] : memref<1x40x128xf32, #tpu.memory_space<vmem>>, vector<1x24x128xf32>
    %41 = vector.shape_cast %40 : vector<1x24x128xf32> to vector<24x128xf32>
    %c0_28 = arith.constant 0 : index
    %c5 = arith.constant 5 : index
    %c0_29 = arith.constant 0 : index
    %42 = vector.load %arg2[%c0_28, %c5, %c0_29] : memref<1x9x128xf32, #tpu.memory_space<vmem>>, vector<1x1x128xf32>
    %43 = vector.shape_cast %42 : vector<1x1x128xf32> to vector<1x128xf32>
    %44 = vector.broadcast %43 : vector<1x128xf32> to vector<24x128xf32>
    %45 = arith.mulf %41, %44 : vector<24x128xf32>
    %46 = arith.addf %39, %45 : vector<24x128xf32>
    %c0_30 = arith.constant 0 : index
    %c12 = arith.constant 12 : index
    %c0_31 = arith.constant 0 : index
    %47 = vector.load %arg1[%c0_30, %c12, %c0_31] : memref<1x40x128xf32, #tpu.memory_space<vmem>>, vector<1x24x128xf32>
    %48 = vector.shape_cast %47 : vector<1x24x128xf32> to vector<24x128xf32>
    %c0_32 = arith.constant 0 : index
    %c6_33 = arith.constant 6 : index
    %c0_34 = arith.constant 0 : index
    %49 = vector.load %arg2[%c0_32, %c6_33, %c0_34] : memref<1x9x128xf32, #tpu.memory_space<vmem>>, vector<1x1x128xf32>
    %50 = vector.shape_cast %49 : vector<1x1x128xf32> to vector<1x128xf32>
    %51 = vector.broadcast %50 : vector<1x128xf32> to vector<24x128xf32>
    %52 = arith.mulf %48, %51 : vector<24x128xf32>
    %53 = arith.addf %46, %52 : vector<24x128xf32>
    %c0_35 = arith.constant 0 : index
    %c13 = arith.constant 13 : index
    %c0_36 = arith.constant 0 : index
    %54 = vector.load %arg1[%c0_35, %c13, %c0_36] : memref<1x40x128xf32, #tpu.memory_space<vmem>>, vector<1x24x128xf32>
    %55 = vector.shape_cast %54 : vector<1x24x128xf32> to vector<24x128xf32>
    %c0_37 = arith.constant 0 : index
    %c7_38 = arith.constant 7 : index
    %c0_39 = arith.constant 0 : index
    %56 = vector.load %arg2[%c0_37, %c7_38, %c0_39] : memref<1x9x128xf32, #tpu.memory_space<vmem>>, vector<1x1x128xf32>
    %57 = vector.shape_cast %56 : vector<1x1x128xf32> to vector<1x128xf32>
    %58 = vector.broadcast %57 : vector<1x128xf32> to vector<24x128xf32>
    %59 = arith.mulf %55, %58 : vector<24x128xf32>
    %60 = arith.addf %53, %59 : vector<24x128xf32>
    %c0_40 = arith.constant 0 : index
    %c14 = arith.constant 14 : index
    %c0_41 = arith.constant 0 : index
    %61 = vector.load %arg1[%c0_40, %c14, %c0_41] : memref<1x40x128xf32, #tpu.memory_space<vmem>>, vector<1x24x128xf32>
    %62 = vector.shape_cast %61 : vector<1x24x128xf32> to vector<24x128xf32>
    %c0_42 = arith.constant 0 : index
    %c8_43 = arith.constant 8 : index
    %c0_44 = arith.constant 0 : index
    %63 = vector.load %arg2[%c0_42, %c8_43, %c0_44] : memref<1x9x128xf32, #tpu.memory_space<vmem>>, vector<1x1x128xf32>
    %64 = vector.shape_cast %63 : vector<1x1x128xf32> to vector<1x128xf32>
    %65 = vector.broadcast %64 : vector<1x128xf32> to vector<24x128xf32>
    %66 = arith.mulf %62, %65 : vector<24x128xf32>
    %67 = arith.addf %60, %66 : vector<24x128xf32>
    %c0_45 = arith.constant 0 : index
    %c0_46 = arith.constant 0 : index
    %68 = vector.load %arg6[%c0_45, %c0_46] : memref<1x128xf32, #tpu.memory_space<vmem>>, vector<1x128xf32>
    %69 = vector.broadcast %68 : vector<1x128xf32> to vector<24x128xf32>
    %70 = arith.mulf %67, %69 : vector<24x128xf32>
    %cst_47 = arith.constant dense<0.000000e+00> : vector<24xf32>
    %71 = vector.multi_reduction <add>, %70, %cst_47 [1] : vector<24x128xf32> to vector<24xf32>
    %72 = vector.shape_cast %71 : vector<24xf32> to vector<24x1xf32>
    %cst_48 = arith.constant 1.562500e-02 : f32
    %73 = vector.broadcast %cst_48 : f32 to vector<24x1xf32>
    %74 = arith.mulf %72, %73 : vector<24x1xf32>
    %75 = vector.broadcast %74 : vector<24x1xf32> to vector<24x128xf32>
    %76 = arith.subf %67, %75 : vector<24x128xf32>
    %77 = vector.broadcast %68 : vector<1x128xf32> to vector<24x128xf32>
    %78 = arith.mulf %76, %77 : vector<24x128xf32>
    %79 = arith.mulf %78, %78 : vector<24x128xf32>
    %cst_49 = arith.constant dense<0.000000e+00> : vector<24xf32>
    %80 = vector.multi_reduction <add>, %79, %cst_49 [1] : vector<24x128xf32> to vector<24xf32>
    %81 = vector.shape_cast %80 : vector<24xf32> to vector<24x1xf32>
    %cst_50 = arith.constant 1.562500e-02 : f32
    %82 = vector.broadcast %cst_50 : f32 to vector<24x1xf32>
    %83 = arith.mulf %81, %82 : vector<24x1xf32>
    %cst_51 = arith.constant 9.99999997E-7 : f32
    %84 = vector.broadcast %cst_51 : f32 to vector<24x1xf32>
    %85 = arith.addf %83, %84 : vector<24x1xf32>
    %86 = math.rsqrt %85 : vector<24x1xf32>
    %87 = vector.broadcast %86 : vector<24x1xf32> to vector<24x128xf32>
    %88 = arith.mulf %78, %87 : vector<24x128xf32>
    %c0_52 = arith.constant 0 : index
    %c0_53 = arith.constant 0 : index
    %89 = vector.load %arg4[%c0_52, %c0_53] : memref<1x128xf32, #tpu.memory_space<vmem>>, vector<1x128xf32>
    %90 = vector.broadcast %89 : vector<1x128xf32> to vector<24x128xf32>
    %91 = arith.mulf %88, %90 : vector<24x128xf32>
    %c0_54 = arith.constant 0 : index
    %c0_55 = arith.constant 0 : index
    %92 = vector.load %arg5[%c0_54, %c0_55] : memref<1x128xf32, #tpu.memory_space<vmem>>, vector<1x128xf32>
    %93 = vector.broadcast %92 : vector<1x128xf32> to vector<24x128xf32>
    %94 = arith.addf %91, %93 : vector<24x128xf32>
    %95 = arith.truncf %94 : vector<24x128xf32> to vector<24x128xbf16>
    %c0_56 = arith.constant 0 : index
    %c0_57 = arith.constant 0 : index
    %96 = vector.load %arg7[%c0_56, %c0_57] : memref<128x256xbf16, #tpu.memory_space<vmem>>, vector<128x256xbf16>
    %cst_58 = arith.constant dense<0.000000e+00> : vector<24x256xf32>
    %97 = tpu.matmul %95, %96, %cst_58 {dimension_numbers = #tpu.dot_dimension_numbers<[1], [0], [0], [1], [0, 0, 1, 1], [], []>} : vector<24x128xbf16>, vector<128x256xbf16>, vector<24x256xf32> -> vector<24x256xf32>
    %c0_59 = arith.constant 0 : index
    %c0_60 = arith.constant 0 : index
    %98 = vector.load %arg8[%c0_59, %c0_60] : memref<1x256xf32, #tpu.memory_space<vmem>>, vector<1x256xf32>
    %99 = vector.broadcast %98 : vector<1x256xf32> to vector<24x256xf32>
    %100 = arith.addf %97, %99 : vector<24x256xf32>
    %101 = arith.mulf %100, %100 : vector<24x256xf32>
    %102 = arith.mulf %100, %101 : vector<24x256xf32>
    %cst_61 = arith.constant 4.471500e-02 : f32
    %103 = vector.broadcast %cst_61 : f32 to vector<24x256xf32>
    %104 = arith.mulf %103, %102 : vector<24x256xf32>
    %105 = arith.addf %100, %104 : vector<24x256xf32>
    %cst_62 = arith.constant 0.797884583 : f32
    %106 = vector.broadcast %cst_62 : f32 to vector<24x256xf32>
    %107 = arith.mulf %106, %105 : vector<24x256xf32>
    %108 = math.tanh %107 : vector<24x256xf32>
    %cst_63 = arith.constant 1.000000e+00 : f32
    %109 = vector.broadcast %cst_63 : f32 to vector<24x256xf32>
    %110 = arith.addf %109, %108 : vector<24x256xf32>
    %cst_64 = arith.constant 5.000000e-01 : f32
    %111 = vector.broadcast %cst_64 : f32 to vector<24x256xf32>
    %112 = arith.mulf %111, %110 : vector<24x256xf32>
    %113 = arith.mulf %100, %112 : vector<24x256xf32>
    %114 = arith.truncf %113 : vector<24x256xf32> to vector<24x256xbf16>
    %c0_65 = arith.constant 0 : index
    %c0_66 = arith.constant 0 : index
    %115 = vector.load %arg9[%c0_65, %c0_66] : memref<256x128xbf16, #tpu.memory_space<vmem>>, vector<256x128xbf16>
    %cst_67 = arith.constant dense<0.000000e+00> : vector<24x128xf32>
    %116 = tpu.matmul %114, %115, %cst_67 {dimension_numbers = #tpu.dot_dimension_numbers<[1], [0], [0], [1], [0, 0, 1, 1], [], []>} : vector<24x256xbf16>, vector<256x128xbf16>, vector<24x128xf32> -> vector<24x128xf32>
    %c0_68 = arith.constant 0 : index
    %c0_69 = arith.constant 0 : index
    %117 = vector.load %arg10[%c0_68, %c0_69] : memref<1x128xf32, #tpu.memory_space<vmem>>, vector<1x128xf32>
    %118 = vector.broadcast %117 : vector<1x128xf32> to vector<24x128xf32>
    %119 = arith.addf %116, %118 : vector<24x128xf32>
    %c0_70 = arith.constant 0 : index
    %c7_71 = arith.constant 7 : index
    %c0_72 = arith.constant 0 : index
    %120 = vector.load %arg1[%c0_70, %c7_71, %c0_72] : memref<1x40x128xf32, #tpu.memory_space<vmem>>, vector<1x24x128xf32>
    %121 = vector.shape_cast %120 : vector<1x24x128xf32> to vector<24x128xf32>
    %c0_73 = arith.constant 0 : index
    %c0_74 = arith.constant 0 : index
    %122 = vector.load %arg11[%c0_73, %c0_74] : memref<1x128xf32, #tpu.memory_space<vmem>>, vector<1x128xf32>
    %123 = vector.broadcast %122 : vector<1x128xf32> to vector<24x128xf32>
    %124 = arith.mulf %123, %119 : vector<24x128xf32>
    %125 = arith.addf %121, %124 : vector<24x128xf32>
    %c0_75 = arith.constant 0 : index
    %c0_76 = arith.constant 0 : index
    %c0_77 = arith.constant 0 : index
    %126 = vector.load %arg12[%c0_75, %c0_76, %c0_77] : memref<1x24x128xf32, #tpu.memory_space<vmem>>, vector<1x24x128xf32>
    %127 = vector.shape_cast %126 : vector<1x24x128xf32> to vector<24x128xf32>
    %128 = vector.shape_cast %125 : vector<24x128xf32> to vector<1x24x128xf32>
    tpu.vector_store %arg12[%c0_75, %c0_76, %c0_77], %128 {strides = array<i32>} : memref<1x24x128xf32, #tpu.memory_space<vmem>>, vector<1x24x128xf32>,
    return
  }
  func.func @transform_0(%arg0: i32) -> (i32, i32, i32) {
    %c0_i32 = arith.constant 0 : i32
    %c0_i32_0 = arith.constant 0 : i32
    %c0_i32_1 = arith.constant 0 : i32
    return %arg0, %c0_i32, %c0_i32_0 : i32, i32, i32
  }
  func.func @transform_1(%arg0: i32) -> (i32, i32, i32) {
    %c0_i32 = arith.constant 0 : i32
    %c0_i32_0 = arith.constant 0 : i32
    %c0_i32_1 = arith.constant 0 : i32
    return %arg0, %c0_i32, %c0_i32_0 : i32, i32, i32
  }
  func.func @transform_2(%arg0: i32) -> (i32, i32, i32) {
    %c0_i32 = arith.constant 0 : i32
    %c0_i32_0 = arith.constant 0 : i32
    %c0_i32_1 = arith.constant 0 : i32
    return %arg0, %c0_i32, %c0_i32_0 : i32, i32, i32
  }
  func.func @transform_3(%arg0: i32) -> (i32, i32) {
    %c0_i32 = arith.constant 0 : i32
    %c0_i32_0 = arith.constant 0 : i32
    %c0_i32_1 = arith.constant 0 : i32
    return %c0_i32, %c0_i32_0 : i32, i32
  }
  func.func @transform_4(%arg0: i32) -> (i32, i32) {
    %c0_i32 = arith.constant 0 : i32
    %c0_i32_0 = arith.constant 0 : i32
    %c0_i32_1 = arith.constant 0 : i32
    return %c0_i32, %c0_i32_0 : i32, i32
  }
  func.func @transform_5(%arg0: i32) -> (i32, i32) {
    %c0_i32 = arith.constant 0 : i32
    %c0_i32_0 = arith.constant 0 : i32
    %c0_i32_1 = arith.constant 0 : i32
    return %c0_i32, %c0_i32_0 : i32, i32
  }
  func.func @transform_6(%arg0: i32) -> (i32, i32) {
    %c0_i32 = arith.constant 0 : i32
    %c0_i32_0 = arith.constant 0 : i32
    %c0_i32_1 = arith.constant 0 : i32
    return %c0_i32, %c0_i32_0 : i32, i32
  }
  func.func @transform_7(%arg0: i32) -> (i32, i32) {
    %c0_i32 = arith.constant 0 : i32
    %c0_i32_0 = arith.constant 0 : i32
    %c0_i32_1 = arith.constant 0 : i32
    return %c0_i32, %c0_i32_0 : i32, i32
  }
  func.func @transform_8(%arg0: i32) -> (i32, i32) {
    %c0_i32 = arith.constant 0 : i32
    %c0_i32_0 = arith.constant 0 : i32
    %c0_i32_1 = arith.constant 0 : i32
    return %c0_i32, %c0_i32_0 : i32, i32
  }
  func.func @transform_9(%arg0: i32) -> (i32, i32) {
    %c0_i32 = arith.constant 0 : i32
    %c0_i32_0 = arith.constant 0 : i32
    %c0_i32_1 = arith.constant 0 : i32
    return %c0_i32, %c0_i32_0 : i32, i32
  }
  func.func @transform_10(%arg0: i32) -> (i32, i32) {
    %c0_i32 = arith.constant 0 : i32
    %c0_i32_0 = arith.constant 0 : i32
    %c0_i32_1 = arith.constant 0 : i32
    return %c0_i32, %c0_i32_0 : i32, i32
  }
  func.func @transform_11(%arg0: i32) -> (i32, i32, i32) {
    %c0_i32 = arith.constant 0 : i32
    %c0_i32_0 = arith.constant 0 : i32
    %c0_i32_1 = arith.constant 0 : i32
    return %arg0, %c0_i32, %c0_i32_0 : i32, i32, i32
  }
}

module attributes {stable_mosaic.version = 11 : i64} {
  func.func @_attn_kernel(%arg0: i32, %arg1: memref<1x16x128xf32, #tpu.memory_space<vmem>>, %arg2: memref<128x128xf32, #tpu.memory_space<vmem>>, %arg3: memref<1x128xf32, #tpu.memory_space<vmem>>, %arg4: memref<1x128xf32, #tpu.memory_space<vmem>>, %arg5: memref<128x128xbf16, #tpu.memory_space<vmem>>, %arg6: memref<1x128xf32, #tpu.memory_space<vmem>>, %arg7: memref<128x128xbf16, #tpu.memory_space<vmem>>, %arg8: memref<1x128xf32, #tpu.memory_space<vmem>>, %arg9: memref<128x128xbf16, #tpu.memory_space<vmem>>, %arg10: memref<1x128xf32, #tpu.memory_space<vmem>>, %arg11: memref<128x128xbf16, #tpu.memory_space<vmem>>, %arg12: memref<1x128xf32, #tpu.memory_space<vmem>>, %arg13: memref<1x16x128xf32, #tpu.memory_space<vmem>>) attributes {dimension_semantics = [#tpu.dimension_semantics<parallel>], iteration_bounds = array<i64: 2>, scalar_prefetch = 0 : i64, scratch_operands = 0 : i64, tpu.core_type = #tpu.core_type<tc>, window_params = [{transform_indices = @transform_0, window_bounds = array<i64: 1, 16, 128>}, {pipeline_mode = #tpu.pipeline_mode<synchronous>, transform_indices = @transform_1, window_bounds = array<i64: 128, 128>}, {pipeline_mode = #tpu.pipeline_mode<synchronous>, transform_indices = @transform_2, window_bounds = array<i64: 1, 128>}, {pipeline_mode = #tpu.pipeline_mode<synchronous>, transform_indices = @transform_3, window_bounds = array<i64: 1, 128>}, {pipeline_mode = #tpu.pipeline_mode<synchronous>, transform_indices = @transform_4, window_bounds = array<i64: 128, 128>}, {pipeline_mode = #tpu.pipeline_mode<synchronous>, transform_indices = @transform_5, window_bounds = array<i64: 1, 128>}, {pipeline_mode = #tpu.pipeline_mode<synchronous>, transform_indices = @transform_6, window_bounds = array<i64: 128, 128>}, {pipeline_mode = #tpu.pipeline_mode<synchronous>, transform_indices = @transform_7, window_bounds = array<i64: 1, 128>}, {pipeline_mode = #tpu.pipeline_mode<synchronous>, transform_indices = @transform_8, window_bounds = array<i64: 128, 128>}, {pipeline_mode = #tpu.pipeline_mode<synchronous>, transform_indices = @transform_9, window_bounds = array<i64: 1, 128>}, {pipeline_mode = #tpu.pipeline_mode<synchronous>, transform_indices = @transform_10, window_bounds = array<i64: 128, 128>}, {pipeline_mode = #tpu.pipeline_mode<synchronous>, transform_indices = @transform_11, window_bounds = array<i64: 1, 128>}, {transform_indices = @transform_12, window_bounds = array<i64: 1, 16, 128>}]} {
    %c0 = arith.constant 0 : index
    %c0_0 = arith.constant 0 : index
    %c0_1 = arith.constant 0 : index
    %0 = vector.load %arg1[%c0, %c0_0, %c0_1] : memref<1x16x128xf32, #tpu.memory_space<vmem>>, vector<1x16x128xf32>
    %1 = vector.shape_cast %0 : vector<1x16x128xf32> to vector<16x128xf32>
    %cst = arith.constant dense<0.000000e+00> : vector<128xf32>
    %2 = vector.multi_reduction <add>, %1, %cst [0] : vector<16x128xf32> to vector<128xf32>
    %3 = vector.shape_cast %2 : vector<128xf32> to vector<1x128xf32>
    %4 = arith.mulf %1, %1 : vector<16x128xf32>
    %cst_2 = arith.constant dense<0.000000e+00> : vector<128xf32>
    %5 = vector.multi_reduction <add>, %4, %cst_2 [0] : vector<16x128xf32> to vector<128xf32>
    %6 = vector.shape_cast %5 : vector<128xf32> to vector<1x128xf32>
    %c0_3 = arith.constant 0 : index
    %c0_4 = arith.constant 0 : index
    %7 = vector.load %arg2[%c0_3, %c0_4] : memref<128x128xf32, #tpu.memory_space<vmem>>, vector<128x128xf32>
    %cst_5 = arith.constant dense<0.000000e+00> : vector<1x128xf32>
    %8 = tpu.matmul %3, %7, %cst_5 {dimension_numbers = #tpu.dot_dimension_numbers<[1], [0], [0], [1], [0, 0, 1, 1], [], []>} : vector<1x128xf32>, vector<128x128xf32>, vector<1x128xf32> -> vector<1x128xf32>
    %cst_6 = arith.constant 3.125000e-02 : f32
    %9 = vector.broadcast %cst_6 : f32 to vector<1x128xf32>
    %10 = arith.mulf %8, %9 : vector<1x128xf32>
    %c0_7 = arith.constant 0 : index
    %c0_8 = arith.constant 0 : index
    %11 = vector.load %arg2[%c0_7, %c0_8] : memref<128x128xf32, #tpu.memory_space<vmem>>, vector<128x128xf32>
    %cst_9 = arith.constant dense<0.000000e+00> : vector<1x128xf32>
    %12 = tpu.matmul %6, %11, %cst_9 {dimension_numbers = #tpu.dot_dimension_numbers<[1], [0], [0], [1], [0, 0, 1, 1], [], []>} : vector<1x128xf32>, vector<128x128xf32>, vector<1x128xf32> -> vector<1x128xf32>
    %cst_10 = arith.constant 3.125000e-02 : f32
    %13 = vector.broadcast %cst_10 : f32 to vector<1x128xf32>
    %14 = arith.mulf %12, %13 : vector<1x128xf32>
    %15 = arith.mulf %10, %10 : vector<1x128xf32>
    %16 = arith.subf %14, %15 : vector<1x128xf32>
    %cst_11 = arith.constant 0.000000e+00 : f32
    %17 = vector.broadcast %cst_11 : f32 to vector<1x128xf32>
    %18 = arith.maximumf %16, %17 : vector<1x128xf32>
    %19 = vector.broadcast %10 : vector<1x128xf32> to vector<16x128xf32>
    %20 = arith.subf %1, %19 : vector<16x128xf32>
    %cst_12 = arith.constant 9.99999997E-7 : f32
    %21 = vector.broadcast %cst_12 : f32 to vector<1x128xf32>
    %22 = arith.addf %18, %21 : vector<1x128xf32>
    %23 = math.rsqrt %22 : vector<1x128xf32>
    %24 = vector.broadcast %23 : vector<1x128xf32> to vector<16x128xf32>
    %25 = arith.mulf %20, %24 : vector<16x128xf32>
    %c0_13 = arith.constant 0 : index
    %c0_14 = arith.constant 0 : index
    %26 = vector.load %arg3[%c0_13, %c0_14] : memref<1x128xf32, #tpu.memory_space<vmem>>, vector<1x128xf32>
    %27 = vector.broadcast %26 : vector<1x128xf32> to vector<16x128xf32>
    %28 = arith.mulf %25, %27 : vector<16x128xf32>
    %c0_15 = arith.constant 0 : index
    %c0_16 = arith.constant 0 : index
    %29 = vector.load %arg4[%c0_15, %c0_16] : memref<1x128xf32, #tpu.memory_space<vmem>>, vector<1x128xf32>
    %30 = vector.broadcast %29 : vector<1x128xf32> to vector<16x128xf32>
    %31 = arith.addf %28, %30 : vector<16x128xf32>
    %32 = arith.truncf %31 : vector<16x128xf32> to vector<16x128xbf16>
    %c0_17 = arith.constant 0 : index
    %c0_18 = arith.constant 0 : index
    %33 = vector.load %arg5[%c0_17, %c0_18] : memref<128x128xbf16, #tpu.memory_space<vmem>>, vector<128x128xbf16>
    %cst_19 = arith.constant dense<0.000000e+00> : vector<16x128xf32>
    %34 = tpu.matmul %32, %33, %cst_19 {dimension_numbers = #tpu.dot_dimension_numbers<[1], [0], [0], [1], [0, 0, 1, 1], [], []>} : vector<16x128xbf16>, vector<128x128xbf16>, vector<16x128xf32> -> vector<16x128xf32>
    %c0_20 = arith.constant 0 : index
    %c0_21 = arith.constant 0 : index
    %35 = vector.load %arg6[%c0_20, %c0_21] : memref<1x128xf32, #tpu.memory_space<vmem>>, vector<1x128xf32>
    %36 = vector.broadcast %35 : vector<1x128xf32> to vector<16x128xf32>
    %37 = arith.addf %34, %36 : vector<16x128xf32>
    %c0_22 = arith.constant 0 : index
    %c0_23 = arith.constant 0 : index
    %38 = vector.load %arg7[%c0_22, %c0_23] : memref<128x128xbf16, #tpu.memory_space<vmem>>, vector<128x128xbf16>
    %cst_24 = arith.constant dense<0.000000e+00> : vector<16x128xf32>
    %39 = tpu.matmul %32, %38, %cst_24 {dimension_numbers = #tpu.dot_dimension_numbers<[1], [0], [0], [1], [0, 0, 1, 1], [], []>} : vector<16x128xbf16>, vector<128x128xbf16>, vector<16x128xf32> -> vector<16x128xf32>
    %c0_25 = arith.constant 0 : index
    %c0_26 = arith.constant 0 : index
    %40 = vector.load %arg8[%c0_25, %c0_26] : memref<1x128xf32, #tpu.memory_space<vmem>>, vector<1x128xf32>
    %41 = vector.broadcast %40 : vector<1x128xf32> to vector<16x128xf32>
    %42 = arith.addf %39, %41 : vector<16x128xf32>
    %c0_27 = arith.constant 0 : index
    %c0_28 = arith.constant 0 : index
    %43 = vector.load %arg9[%c0_27, %c0_28] : memref<128x128xbf16, #tpu.memory_space<vmem>>, vector<128x128xbf16>
    %cst_29 = arith.constant dense<0.000000e+00> : vector<16x128xf32>
    %44 = tpu.matmul %32, %43, %cst_29 {dimension_numbers = #tpu.dot_dimension_numbers<[1], [0], [0], [1], [0, 0, 1, 1], [], []>} : vector<16x128xbf16>, vector<128x128xbf16>, vector<16x128xf32> -> vector<16x128xf32>
    %c0_30 = arith.constant 0 : index
    %c0_31 = arith.constant 0 : index
    %45 = vector.load %arg10[%c0_30, %c0_31] : memref<1x128xf32, #tpu.memory_space<vmem>>, vector<1x128xf32>
    %46 = vector.broadcast %45 : vector<1x128xf32> to vector<16x128xf32>
    %47 = arith.addf %44, %46 : vector<16x128xf32>
    %48 = arith.truncf %37 : vector<16x128xf32> to vector<16x128xbf16>
    %49 = arith.truncf %42 : vector<16x128xf32> to vector<16x128xbf16>
    %cst_32 = arith.constant dense<0.000000e+00> : vector<16x16xf32>
    %50 = tpu.matmul %48, %49, %cst_32 {dimension_numbers = #tpu.dot_dimension_numbers<[1], [1], [0], [0], [0, 0, 1, 0], [], []>} : vector<16x128xbf16>, vector<16x128xbf16>, vector<16x16xf32> -> vector<16x16xf32>
    %cst_33 = arith.constant 1.250000e-01 : f32
    %51 = vector.broadcast %cst_33 : f32 to vector<16x16xf32>
    %52 = arith.mulf %50, %51 : vector<16x16xf32>
    %cst_34 = arith.constant dense<0xFF800000> : vector<16xf32>
    %53 = vector.multi_reduction <maximumf>, %52, %cst_34 [1] : vector<16x16xf32> to vector<16xf32>
    %54 = vector.shape_cast %53 : vector<16xf32> to vector<16x1xf32>
    %55 = vector.broadcast %54 : vector<16x1xf32> to vector<16x16xf32>
    %56 = arith.subf %52, %55 : vector<16x16xf32>
    %57 = math.exp %56 : vector<16x16xf32>
    %cst_35 = arith.constant dense<0.000000e+00> : vector<16xf32>
    %58 = vector.multi_reduction <add>, %57, %cst_35 [1] : vector<16x16xf32> to vector<16xf32>
    %59 = vector.shape_cast %58 : vector<16xf32> to vector<16x1xf32>
    %60 = tpu.reciprocal %59 {approx = true} : vector<16x1xf32> -> vector<16x1xf32>
    %61 = vector.broadcast %60 : vector<16x1xf32> to vector<16x16xf32>
    %62 = arith.mulf %57, %61 : vector<16x16xf32>
    %63 = arith.truncf %62 : vector<16x16xf32> to vector<16x16xbf16>
    %64 = arith.truncf %47 : vector<16x128xf32> to vector<16x128xbf16>
    %cst_36 = arith.constant dense<0.000000e+00> : vector<16x128xf32>
    %65 = tpu.matmul %63, %64, %cst_36 {dimension_numbers = #tpu.dot_dimension_numbers<[1], [0], [0], [1], [0, 0, 1, 1], [], []>} : vector<16x16xbf16>, vector<16x128xbf16>, vector<16x128xf32> -> vector<16x128xf32>
    %66 = arith.truncf %65 : vector<16x128xf32> to vector<16x128xbf16>
    %c0_37 = arith.constant 0 : index
    %c0_38 = arith.constant 0 : index
    %67 = vector.load %arg11[%c0_37, %c0_38] : memref<128x128xbf16, #tpu.memory_space<vmem>>, vector<128x128xbf16>
    %cst_39 = arith.constant dense<0.000000e+00> : vector<16x128xf32>
    %68 = tpu.matmul %66, %67, %cst_39 {dimension_numbers = #tpu.dot_dimension_numbers<[1], [0], [0], [1], [0, 0, 1, 1], [], []>} : vector<16x128xbf16>, vector<128x128xbf16>, vector<16x128xf32> -> vector<16x128xf32>
    %c0_40 = arith.constant 0 : index
    %c0_41 = arith.constant 0 : index
    %69 = vector.load %arg12[%c0_40, %c0_41] : memref<1x128xf32, #tpu.memory_space<vmem>>, vector<1x128xf32>
    %70 = vector.broadcast %69 : vector<1x128xf32> to vector<16x128xf32>
    %71 = arith.addf %68, %70 : vector<16x128xf32>
    %72 = arith.addf %1, %71 : vector<16x128xf32>
    %c0_42 = arith.constant 0 : index
    %c0_43 = arith.constant 0 : index
    %c0_44 = arith.constant 0 : index
    %73 = vector.load %arg13[%c0_42, %c0_43, %c0_44] : memref<1x16x128xf32, #tpu.memory_space<vmem>>, vector<1x16x128xf32>
    %74 = vector.shape_cast %73 : vector<1x16x128xf32> to vector<16x128xf32>
    %75 = vector.shape_cast %72 : vector<16x128xf32> to vector<1x16x128xf32>
    tpu.vector_store %arg13[%c0_42, %c0_43, %c0_44], %75 {strides = array<i32>} : memref<1x16x128xf32, #tpu.memory_space<vmem>>, vector<1x16x128xf32>,
    return
  }
  func.func @transform_0(%arg0: i32) -> (i32, i32, i32) {
    %c0_i32 = arith.constant 0 : i32
    %c0_i32_0 = arith.constant 0 : i32
    %c0_i32_1 = arith.constant 0 : i32
    return %arg0, %c0_i32, %c0_i32_0 : i32, i32, i32
  }
  func.func @transform_1(%arg0: i32) -> (i32, i32) {
    %c0_i32 = arith.constant 0 : i32
    %c0_i32_0 = arith.constant 0 : i32
    %c0_i32_1 = arith.constant 0 : i32
    return %c0_i32, %c0_i32_0 : i32, i32
  }
  func.func @transform_2(%arg0: i32) -> (i32, i32) {
    %c0_i32 = arith.constant 0 : i32
    %c0_i32_0 = arith.constant 0 : i32
    %c0_i32_1 = arith.constant 0 : i32
    return %c0_i32, %c0_i32_0 : i32, i32
  }
  func.func @transform_3(%arg0: i32) -> (i32, i32) {
    %c0_i32 = arith.constant 0 : i32
    %c0_i32_0 = arith.constant 0 : i32
    %c0_i32_1 = arith.constant 0 : i32
    return %c0_i32, %c0_i32_0 : i32, i32
  }
  func.func @transform_4(%arg0: i32) -> (i32, i32) {
    %c0_i32 = arith.constant 0 : i32
    %c0_i32_0 = arith.constant 0 : i32
    %c0_i32_1 = arith.constant 0 : i32
    return %c0_i32, %c0_i32_0 : i32, i32
  }
  func.func @transform_5(%arg0: i32) -> (i32, i32) {
    %c0_i32 = arith.constant 0 : i32
    %c0_i32_0 = arith.constant 0 : i32
    %c0_i32_1 = arith.constant 0 : i32
    return %c0_i32, %c0_i32_0 : i32, i32
  }
  func.func @transform_6(%arg0: i32) -> (i32, i32) {
    %c0_i32 = arith.constant 0 : i32
    %c0_i32_0 = arith.constant 0 : i32
    %c0_i32_1 = arith.constant 0 : i32
    return %c0_i32, %c0_i32_0 : i32, i32
  }
  func.func @transform_7(%arg0: i32) -> (i32, i32) {
    %c0_i32 = arith.constant 0 : i32
    %c0_i32_0 = arith.constant 0 : i32
    %c0_i32_1 = arith.constant 0 : i32
    return %c0_i32, %c0_i32_0 : i32, i32
  }
  func.func @transform_8(%arg0: i32) -> (i32, i32) {
    %c0_i32 = arith.constant 0 : i32
    %c0_i32_0 = arith.constant 0 : i32
    %c0_i32_1 = arith.constant 0 : i32
    return %c0_i32, %c0_i32_0 : i32, i32
  }
  func.func @transform_9(%arg0: i32) -> (i32, i32) {
    %c0_i32 = arith.constant 0 : i32
    %c0_i32_0 = arith.constant 0 : i32
    %c0_i32_1 = arith.constant 0 : i32
    return %c0_i32, %c0_i32_0 : i32, i32
  }
  func.func @transform_10(%arg0: i32) -> (i32, i32) {
    %c0_i32 = arith.constant 0 : i32
    %c0_i32_0 = arith.constant 0 : i32
    %c0_i32_1 = arith.constant 0 : i32
    return %c0_i32, %c0_i32_0 : i32, i32
  }
  func.func @transform_11(%arg0: i32) -> (i32, i32) {
    %c0_i32 = arith.constant 0 : i32
    %c0_i32_0 = arith.constant 0 : i32
    %c0_i32_1 = arith.constant 0 : i32
    return %c0_i32, %c0_i32_0 : i32, i32
  }
  func.func @transform_12(%arg0: i32) -> (i32, i32, i32) {
    %c0_i32 = arith.constant 0 : i32
    %c0_i32_0 = arith.constant 0 : i32
    %c0_i32_1 = arith.constant 0 : i32
    return %arg0, %c0_i32, %c0_i32_0 : i32, i32, i32
  }
}

module attributes {stable_mosaic.version = 11 : i64} {
  func.func @_conv_fused_kernel(%arg0: i32, %arg1: memref<1x40x128xf32, #tpu.memory_space<vmem>>, %arg2: memref<2048x128xbf16, #tpu.memory_space<vmem>>, %arg3: memref<1x128xf32, #tpu.memory_space<vmem>>, %arg4: memref<1x128xf32, #tpu.memory_space<vmem>>, %arg5: memref<1x128xf32, #tpu.memory_space<vmem>>, %arg6: memref<1x128xf32, #tpu.memory_space<vmem>>, %arg7: memref<1x18x128xf32, #tpu.memory_space<vmem>>) attributes {dimension_semantics = [#tpu.dimension_semantics<parallel>], iteration_bounds = array<i64: 2>, scalar_prefetch = 0 : i64, scratch_operands = 0 : i64, tpu.core_type = #tpu.core_type<tc>, window_params = [{transform_indices = @transform_0, window_bounds = array<i64: 1, 40, 128>}, {pipeline_mode = #tpu.pipeline_mode<synchronous>, transform_indices = @transform_1, window_bounds = array<i64: 2048, 128>}, {pipeline_mode = #tpu.pipeline_mode<synchronous>, transform_indices = @transform_2, window_bounds = array<i64: 1, 128>}, {pipeline_mode = #tpu.pipeline_mode<synchronous>, transform_indices = @transform_3, window_bounds = array<i64: 1, 128>}, {pipeline_mode = #tpu.pipeline_mode<synchronous>, transform_indices = @transform_4, window_bounds = array<i64: 1, 128>}, {pipeline_mode = #tpu.pipeline_mode<synchronous>, transform_indices = @transform_5, window_bounds = array<i64: 1, 128>}, {transform_indices = @transform_6, window_bounds = array<i64: 1, 18, 128>}]} {
    %cst = arith.constant 0.000000e+00 : f32
    %0 = vector.broadcast %cst : f32 to vector<18x128xf32>
    %c0 = arith.constant 0 : index
    %c0_0 = arith.constant 0 : index
    %c0_1 = arith.constant 0 : index
    %1 = vector.load %arg1[%c0, %c0_0, %c0_1] : memref<1x40x128xf32, #tpu.memory_space<vmem>>, vector<1x18x128xf32>
    %2 = vector.shape_cast %1 : vector<1x18x128xf32> to vector<18x128xf32>
    %3 = arith.truncf %2 : vector<18x128xf32> to vector<18x128xbf16>
    %c0_2 = arith.constant 0 : index
    %c0_3 = arith.constant 0 : index
    %4 = vector.load %arg2[%c0_2, %c0_3] : memref<2048x128xbf16, #tpu.memory_space<vmem>>, vector<128x128xbf16>
    %cst_4 = arith.constant dense<0.000000e+00> : vector<18x128xf32>
    %5 = tpu.matmul %3, %4, %cst_4 {dimension_numbers = #tpu.dot_dimension_numbers<[1], [0], [0], [1], [0, 0, 1, 1], [], []>} : vector<18x128xbf16>, vector<128x128xbf16>, vector<18x128xf32> -> vector<18x128xf32>
    %6 = arith.addf %0, %5 : vector<18x128xf32>
    %c0_5 = arith.constant 0 : index
    %c1 = arith.constant 1 : index
    %c0_6 = arith.constant 0 : index
    %7 = vector.load %arg1[%c0_5, %c1, %c0_6] : memref<1x40x128xf32, #tpu.memory_space<vmem>>, vector<1x18x128xf32>
    %8 = vector.shape_cast %7 : vector<1x18x128xf32> to vector<18x128xf32>
    %9 = arith.truncf %8 : vector<18x128xf32> to vector<18x128xbf16>
    %c128 = arith.constant 128 : index
    %c0_7 = arith.constant 0 : index
    %10 = vector.load %arg2[%c128, %c0_7] : memref<2048x128xbf16, #tpu.memory_space<vmem>>, vector<128x128xbf16>
    %cst_8 = arith.constant dense<0.000000e+00> : vector<18x128xf32>
    %11 = tpu.matmul %9, %10, %cst_8 {dimension_numbers = #tpu.dot_dimension_numbers<[1], [0], [0], [1], [0, 0, 1, 1], [], []>} : vector<18x128xbf16>, vector<128x128xbf16>, vector<18x128xf32> -> vector<18x128xf32>
    %12 = arith.addf %6, %11 : vector<18x128xf32>
    %c0_9 = arith.constant 0 : index
    %c2 = arith.constant 2 : index
    %c0_10 = arith.constant 0 : index
    %13 = vector.load %arg1[%c0_9, %c2, %c0_10] : memref<1x40x128xf32, #tpu.memory_space<vmem>>, vector<1x18x128xf32>
    %14 = vector.shape_cast %13 : vector<1x18x128xf32> to vector<18x128xf32>
    %15 = arith.truncf %14 : vector<18x128xf32> to vector<18x128xbf16>
    %c256 = arith.constant 256 : index
    %c0_11 = arith.constant 0 : index
    %16 = vector.load %arg2[%c256, %c0_11] : memref<2048x128xbf16, #tpu.memory_space<vmem>>, vector<128x128xbf16>
    %cst_12 = arith.constant dense<0.000000e+00> : vector<18x128xf32>
    %17 = tpu.matmul %15, %16, %cst_12 {dimension_numbers = #tpu.dot_dimension_numbers<[1], [0], [0], [1], [0, 0, 1, 1], [], []>} : vector<18x128xbf16>, vector<128x128xbf16>, vector<18x128xf32> -> vector<18x128xf32>
    %18 = arith.addf %12, %17 : vector<18x128xf32>
    %c0_13 = arith.constant 0 : index
    %c3 = arith.constant 3 : index
    %c0_14 = arith.constant 0 : index
    %19 = vector.load %arg1[%c0_13, %c3, %c0_14] : memref<1x40x128xf32, #tpu.memory_space<vmem>>, vector<1x18x128xf32>
    %20 = vector.shape_cast %19 : vector<1x18x128xf32> to vector<18x128xf32>
    %21 = arith.truncf %20 : vector<18x128xf32> to vector<18x128xbf16>
    %c384 = arith.constant 384 : index
    %c0_15 = arith.constant 0 : index
    %22 = vector.load %arg2[%c384, %c0_15] : memref<2048x128xbf16, #tpu.memory_space<vmem>>, vector<128x128xbf16>
    %cst_16 = arith.constant dense<0.000000e+00> : vector<18x128xf32>
    %23 = tpu.matmul %21, %22, %cst_16 {dimension_numbers = #tpu.dot_dimension_numbers<[1], [0], [0], [1], [0, 0, 1, 1], [], []>} : vector<18x128xbf16>, vector<128x128xbf16>, vector<18x128xf32> -> vector<18x128xf32>
    %24 = arith.addf %18, %23 : vector<18x128xf32>
    %c0_17 = arith.constant 0 : index
    %c6 = arith.constant 6 : index
    %c0_18 = arith.constant 0 : index
    %25 = vector.load %arg1[%c0_17, %c6, %c0_18] : memref<1x40x128xf32, #tpu.memory_space<vmem>>, vector<1x18x128xf32>
    %26 = vector.shape_cast %25 : vector<1x18x128xf32> to vector<18x128xf32>
    %27 = arith.truncf %26 : vector<18x128xf32> to vector<18x128xbf16>
    %c512 = arith.constant 512 : index
    %c0_19 = arith.constant 0 : index
    %28 = vector.load %arg2[%c512, %c0_19] : memref<2048x128xbf16, #tpu.memory_space<vmem>>, vector<128x128xbf16>
    %cst_20 = arith.constant dense<0.000000e+00> : vector<18x128xf32>
    %29 = tpu.matmul %27, %28, %cst_20 {dimension_numbers = #tpu.dot_dimension_numbers<[1], [0], [0], [1], [0, 0, 1, 1], [], []>} : vector<18x128xbf16>, vector<128x128xbf16>, vector<18x128xf32> -> vector<18x128xf32>
    %30 = arith.addf %24, %29 : vector<18x128xf32>
    %c0_21 = arith.constant 0 : index
    %c7 = arith.constant 7 : index
    %c0_22 = arith.constant 0 : index
    %31 = vector.load %arg1[%c0_21, %c7, %c0_22] : memref<1x40x128xf32, #tpu.memory_space<vmem>>, vector<1x18x128xf32>
    %32 = vector.shape_cast %31 : vector<1x18x128xf32> to vector<18x128xf32>
    %33 = arith.truncf %32 : vector<18x128xf32> to vector<18x128xbf16>
    %c640 = arith.constant 640 : index
    %c0_23 = arith.constant 0 : index
    %34 = vector.load %arg2[%c640, %c0_23] : memref<2048x128xbf16, #tpu.memory_space<vmem>>, vector<128x128xbf16>
    %cst_24 = arith.constant dense<0.000000e+00> : vector<18x128xf32>
    %35 = tpu.matmul %33, %34, %cst_24 {dimension_numbers = #tpu.dot_dimension_numbers<[1], [0], [0], [1], [0, 0, 1, 1], [], []>} : vector<18x128xbf16>, vector<128x128xbf16>, vector<18x128xf32> -> vector<18x128xf32>
    %36 = arith.addf %30, %35 : vector<18x128xf32>
    %c0_25 = arith.constant 0 : index
    %c8 = arith.constant 8 : index
    %c0_26 = arith.constant 0 : index
    %37 = vector.load %arg1[%c0_25, %c8, %c0_26] : memref<1x40x128xf32, #tpu.memory_space<vmem>>, vector<1x18x128xf32>
    %38 = vector.shape_cast %37 : vector<1x18x128xf32> to vector<18x128xf32>
    %39 = arith.truncf %38 : vector<18x128xf32> to vector<18x128xbf16>
    %c768 = arith.constant 768 : index
    %c0_27 = arith.constant 0 : index
    %40 = vector.load %arg2[%c768, %c0_27] : memref<2048x128xbf16, #tpu.memory_space<vmem>>, vector<128x128xbf16>
    %cst_28 = arith.constant dense<0.000000e+00> : vector<18x128xf32>
    %41 = tpu.matmul %39, %40, %cst_28 {dimension_numbers = #tpu.dot_dimension_numbers<[1], [0], [0], [1], [0, 0, 1, 1], [], []>} : vector<18x128xbf16>, vector<128x128xbf16>, vector<18x128xf32> -> vector<18x128xf32>
    %42 = arith.addf %36, %41 : vector<18x128xf32>
    %c0_29 = arith.constant 0 : index
    %c9 = arith.constant 9 : index
    %c0_30 = arith.constant 0 : index
    %43 = vector.load %arg1[%c0_29, %c9, %c0_30] : memref<1x40x128xf32, #tpu.memory_space<vmem>>, vector<1x18x128xf32>
    %44 = vector.shape_cast %43 : vector<1x18x128xf32> to vector<18x128xf32>
    %45 = arith.truncf %44 : vector<18x128xf32> to vector<18x128xbf16>
    %c896 = arith.constant 896 : index
    %c0_31 = arith.constant 0 : index
    %46 = vector.load %arg2[%c896, %c0_31] : memref<2048x128xbf16, #tpu.memory_space<vmem>>, vector<128x128xbf16>
    %cst_32 = arith.constant dense<0.000000e+00> : vector<18x128xf32>
    %47 = tpu.matmul %45, %46, %cst_32 {dimension_numbers = #tpu.dot_dimension_numbers<[1], [0], [0], [1], [0, 0, 1, 1], [], []>} : vector<18x128xbf16>, vector<128x128xbf16>, vector<18x128xf32> -> vector<18x128xf32>
    %48 = arith.addf %42, %47 : vector<18x128xf32>
    %c0_33 = arith.constant 0 : index
    %c12 = arith.constant 12 : index
    %c0_34 = arith.constant 0 : index
    %49 = vector.load %arg1[%c0_33, %c12, %c0_34] : memref<1x40x128xf32, #tpu.memory_space<vmem>>, vector<1x18x128xf32>
    %50 = vector.shape_cast %49 : vector<1x18x128xf32> to vector<18x128xf32>
    %51 = arith.truncf %50 : vector<18x128xf32> to vector<18x128xbf16>
    %c1024 = arith.constant 1024 : index
    %c0_35 = arith.constant 0 : index
    %52 = vector.load %arg2[%c1024, %c0_35] : memref<2048x128xbf16, #tpu.memory_space<vmem>>, vector<128x128xbf16>
    %cst_36 = arith.constant dense<0.000000e+00> : vector<18x128xf32>
    %53 = tpu.matmul %51, %52, %cst_36 {dimension_numbers = #tpu.dot_dimension_numbers<[1], [0], [0], [1], [0, 0, 1, 1], [], []>} : vector<18x128xbf16>, vector<128x128xbf16>, vector<18x128xf32> -> vector<18x128xf32>
    %54 = arith.addf %48, %53 : vector<18x128xf32>
    %c0_37 = arith.constant 0 : index
    %c13 = arith.constant 13 : index
    %c0_38 = arith.constant 0 : index
    %55 = vector.load %arg1[%c0_37, %c13, %c0_38] : memref<1x40x128xf32, #tpu.memory_space<vmem>>, vector<1x18x128xf32>
    %56 = vector.shape_cast %55 : vector<1x18x128xf32> to vector<18x128xf32>
    %57 = arith.truncf %56 : vector<18x128xf32> to vector<18x128xbf16>
    %c1152 = arith.constant 1152 : index
    %c0_39 = arith.constant 0 : index
    %58 = vector.load %arg2[%c1152, %c0_39] : memref<2048x128xbf16, #tpu.memory_space<vmem>>, vector<128x128xbf16>
    %cst_40 = arith.constant dense<0.000000e+00> : vector<18x128xf32>
    %59 = tpu.matmul %57, %58, %cst_40 {dimension_numbers = #tpu.dot_dimension_numbers<[1], [0], [0], [1], [0, 0, 1, 1], [], []>} : vector<18x128xbf16>, vector<128x128xbf16>, vector<18x128xf32> -> vector<18x128xf32>
    %60 = arith.addf %54, %59 : vector<18x128xf32>
    %c0_41 = arith.constant 0 : index
    %c14 = arith.constant 14 : index
    %c0_42 = arith.constant 0 : index
    %61 = vector.load %arg1[%c0_41, %c14, %c0_42] : memref<1x40x128xf32, #tpu.memory_space<vmem>>, vector<1x18x128xf32>
    %62 = vector.shape_cast %61 : vector<1x18x128xf32> to vector<18x128xf32>
    %63 = arith.truncf %62 : vector<18x128xf32> to vector<18x128xbf16>
    %c1280 = arith.constant 1280 : index
    %c0_43 = arith.constant 0 : index
    %64 = vector.load %arg2[%c1280, %c0_43] : memref<2048x128xbf16, #tpu.memory_space<vmem>>, vector<128x128xbf16>
    %cst_44 = arith.constant dense<0.000000e+00> : vector<18x128xf32>
    %65 = tpu.matmul %63, %64, %cst_44 {dimension_numbers = #tpu.dot_dimension_numbers<[1], [0], [0], [1], [0, 0, 1, 1], [], []>} : vector<18x128xbf16>, vector<128x128xbf16>, vector<18x128xf32> -> vector<18x128xf32>
    %66 = arith.addf %60, %65 : vector<18x128xf32>
    %c0_45 = arith.constant 0 : index
    %c15 = arith.constant 15 : index
    %c0_46 = arith.constant 0 : index
    %67 = vector.load %arg1[%c0_45, %c15, %c0_46] : memref<1x40x128xf32, #tpu.memory_space<vmem>>, vector<1x18x128xf32>
    %68 = vector.shape_cast %67 : vector<1x18x128xf32> to vector<18x128xf32>
    %69 = arith.truncf %68 : vector<18x128xf32> to vector<18x128xbf16>
    %c1408 = arith.constant 1408 : index
    %c0_47 = arith.constant 0 : index
    %70 = vector.load %arg2[%c1408, %c0_47] : memref<2048x128xbf16, #tpu.memory_space<vmem>>, vector<128x128xbf16>
    %cst_48 = arith.constant dense<0.000000e+00> : vector<18x128xf32>
    %71 = tpu.matmul %69, %70, %cst_48 {dimension_numbers = #tpu.dot_dimension_numbers<[1], [0], [0], [1], [0, 0, 1, 1], [], []>} : vector<18x128xbf16>, vector<128x128xbf16>, vector<18x128xf32> -> vector<18x128xf32>
    %72 = arith.addf %66, %71 : vector<18x128xf32>
    %c0_49 = arith.constant 0 : index
    %c18 = arith.constant 18 : index
    %c0_50 = arith.constant 0 : index
    %73 = vector.load %arg1[%c0_49, %c18, %c0_50] : memref<1x40x128xf32, #tpu.memory_space<vmem>>, vector<1x18x128xf32>
    %74 = vector.shape_cast %73 : vector<1x18x128xf32> to vector<18x128xf32>
    %75 = arith.truncf %74 : vector<18x128xf32> to vector<18x128xbf16>
    %c1536 = arith.constant 1536 : index
    %c0_51 = arith.constant 0 : index
    %76 = vector.load %arg2[%c1536, %c0_51] : memref<2048x128xbf16, #tpu.memory_space<vmem>>, vector<128x128xbf16>
    %cst_52 = arith.constant dense<0.000000e+00> : vector<18x128xf32>
    %77 = tpu.matmul %75, %76, %cst_52 {dimension_numbers = #tpu.dot_dimension_numbers<[1], [0], [0], [1], [0, 0, 1, 1], [], []>} : vector<18x128xbf16>, vector<128x128xbf16>, vector<18x128xf32> -> vector<18x128xf32>
    %78 = arith.addf %72, %77 : vector<18x128xf32>
    %c0_53 = arith.constant 0 : index
    %c19 = arith.constant 19 : index
    %c0_54 = arith.constant 0 : index
    %79 = vector.load %arg1[%c0_53, %c19, %c0_54] : memref<1x40x128xf32, #tpu.memory_space<vmem>>, vector<1x18x128xf32>
    %80 = vector.shape_cast %79 : vector<1x18x128xf32> to vector<18x128xf32>
    %81 = arith.truncf %80 : vector<18x128xf32> to vector<18x128xbf16>
    %c1664 = arith.constant 1664 : index
    %c0_55 = arith.constant 0 : index
    %82 = vector.load %arg2[%c1664, %c0_55] : memref<2048x128xbf16, #tpu.memory_space<vmem>>, vector<128x128xbf16>
    %cst_56 = arith.constant dense<0.000000e+00> : vector<18x128xf32>
    %83 = tpu.matmul %81, %82, %cst_56 {dimension_numbers = #tpu.dot_dimension_numbers<[1], [0], [0], [1], [0, 0, 1, 1], [], []>} : vector<18x128xbf16>, vector<128x128xbf16>, vector<18x128xf32> -> vector<18x128xf32>
    %84 = arith.addf %78, %83 : vector<18x128xf32>
    %c0_57 = arith.constant 0 : index
    %c20 = arith.constant 20 : index
    %c0_58 = arith.constant 0 : index
    %85 = vector.load %arg1[%c0_57, %c20, %c0_58] : memref<1x40x128xf32, #tpu.memory_space<vmem>>, vector<1x18x128xf32>
    %86 = vector.shape_cast %85 : vector<1x18x128xf32> to vector<18x128xf32>
    %87 = arith.truncf %86 : vector<18x128xf32> to vector<18x128xbf16>
    %c1792 = arith.constant 1792 : index
    %c0_59 = arith.constant 0 : index
    %88 = vector.load %arg2[%c1792, %c0_59] : memref<2048x128xbf16, #tpu.memory_space<vmem>>, vector<128x128xbf16>
    %cst_60 = arith.constant dense<0.000000e+00> : vector<18x128xf32>
    %89 = tpu.matmul %87, %88, %cst_60 {dimension_numbers = #tpu.dot_dimension_numbers<[1], [0], [0], [1], [0, 0, 1, 1], [], []>} : vector<18x128xbf16>, vector<128x128xbf16>, vector<18x128xf32> -> vector<18x128xf32>
    %90 = arith.addf %84, %89 : vector<18x128xf32>
    %c0_61 = arith.constant 0 : index
    %c21 = arith.constant 21 : index
    %c0_62 = arith.constant 0 : index
    %91 = vector.load %arg1[%c0_61, %c21, %c0_62] : memref<1x40x128xf32, #tpu.memory_space<vmem>>, vector<1x18x128xf32>
    %92 = vector.shape_cast %91 : vector<1x18x128xf32> to vector<18x128xf32>
    %93 = arith.truncf %92 : vector<18x128xf32> to vector<18x128xbf16>
    %c1920 = arith.constant 1920 : index
    %c0_63 = arith.constant 0 : index
    %94 = vector.load %arg2[%c1920, %c0_63] : memref<2048x128xbf16, #tpu.memory_space<vmem>>, vector<128x128xbf16>
    %cst_64 = arith.constant dense<0.000000e+00> : vector<18x128xf32>
    %95 = tpu.matmul %93, %94, %cst_64 {dimension_numbers = #tpu.dot_dimension_numbers<[1], [0], [0], [1], [0, 0, 1, 1], [], []>} : vector<18x128xbf16>, vector<128x128xbf16>, vector<18x128xf32> -> vector<18x128xf32>
    %96 = arith.addf %90, %95 : vector<18x128xf32>
    %c0_65 = arith.constant 0 : index
    %c0_66 = arith.constant 0 : index
    %97 = vector.load %arg3[%c0_65, %c0_66] : memref<1x128xf32, #tpu.memory_space<vmem>>, vector<1x128xf32>
    %98 = vector.broadcast %97 : vector<1x128xf32> to vector<18x128xf32>
    %99 = arith.addf %96, %98 : vector<18x128xf32>
    %c0_67 = arith.constant 0 : index
    %c0_68 = arith.constant 0 : index
    %c0_69 = arith.constant 0 : index
    %100 = vector.load %arg7[%c0_67, %c0_68, %c0_69] : memref<1x18x128xf32, #tpu.memory_space<vmem>>, vector<1x18x128xf32>
    %101 = vector.shape_cast %100 : vector<1x18x128xf32> to vector<18x128xf32>
    %102 = vector.shape_cast %99 : vector<18x128xf32> to vector<1x18x128xf32>
    tpu.vector_store %arg7[%c0_67, %c0_68, %c0_69], %102 {strides = array<i32>} : memref<1x18x128xf32, #tpu.memory_space<vmem>>, vector<1x18x128xf32>,
    return
  }
  func.func @transform_0(%arg0: i32) -> (i32, i32, i32) {
    %c0_i32 = arith.constant 0 : i32
    %c0_i32_0 = arith.constant 0 : i32
    %c0_i32_1 = arith.constant 0 : i32
    return %arg0, %c0_i32, %c0_i32_0 : i32, i32, i32
  }
  func.func @transform_1(%arg0: i32) -> (i32, i32) {
    %c0_i32 = arith.constant 0 : i32
    %c0_i32_0 = arith.constant 0 : i32
    %c0_i32_1 = arith.constant 0 : i32
    return %c0_i32, %c0_i32_0 : i32, i32
  }
  func.func @transform_2(%arg0: i32) -> (i32, i32) {
    %c0_i32 = arith.constant 0 : i32
    %c0_i32_0 = arith.constant 0 : i32
    %c0_i32_1 = arith.constant 0 : i32
    return %c0_i32, %c0_i32_0 : i32, i32
  }
  func.func @transform_3(%arg0: i32) -> (i32, i32) {
    %c0_i32 = arith.constant 0 : i32
    %c0_i32_0 = arith.constant 0 : i32
    %c0_i32_1 = arith.constant 0 : i32
    return %c0_i32, %c0_i32_0 : i32, i32
  }
  func.func @transform_4(%arg0: i32) -> (i32, i32) {
    %c0_i32 = arith.constant 0 : i32
    %c0_i32_0 = arith.constant 0 : i32
    %c0_i32_1 = arith.constant 0 : i32
    return %c0_i32, %c0_i32_0 : i32, i32
  }
  func.func @transform_5(%arg0: i32) -> (i32, i32) {
    %c0_i32 = arith.constant 0 : i32
    %c0_i32_0 = arith.constant 0 : i32
    %c0_i32_1 = arith.constant 0 : i32
    return %c0_i32, %c0_i32_0 : i32, i32
  }
  func.func @transform_6(%arg0: i32) -> (i32, i32, i32) {
    %c0_i32 = arith.constant 0 : i32
    %c0_i32_0 = arith.constant 0 : i32
    %c0_i32_1 = arith.constant 0 : i32
    return %arg0, %c0_i32, %c0_i32_0 : i32, i32, i32
  }
}

</mosaic_0001>

<llo_original>
// kernel: discriminator_forward.6
$region0: #{discriminator_forward.6}
  #allocation0 [shape = 'u32[]', space=smem, size = 0x4, offset = 0x4, fixed_abs, tag = 'smem constant byte address 0x4 - core index']
  #allocation1 [shape = 'u32[144,128]{1,0:T(1,128)}', space=vmem, size = 0x12000, scoped, tag = 'internal scratch']
  %s0 = inlined_call_operand.vmem [shape: f32[2,88,16], index: 0, kind: input, shape index: {}]
  %s1 = inlined_call_operand.vmem [shape: bf16[64,128], index: 1, kind: input, shape index: {}]
  %s2 = inlined_call_operand.vmem [shape: f32[1,128], index: 2, kind: input, shape index: {}]
  %s3 = inlined_call_operand.vmem [shape: f32[1,128], index: 3, kind: input, shape index: {}, may-alias: {3,4,5}]
  %s4 = inlined_call_operand.vmem [shape: f32[1,128], index: 4, kind: input, shape index: {}, may-alias: {3,4,5}]
  %s5 = inlined_call_operand.vmem [shape: f32[1,128], index: 5, kind: input, shape index: {}, may-alias: {3,4,5}]
  %s6 = inlined_call_operand.vmem [shape: f32[2,72,128], index: 6, kind: output, shape index: {}]
  %s7 = sld [smem:[#allocation0]]
  $region57: #{discriminator_forward.6} parent=0
    _
  %s9 = ssub.s32 1, %s7
  %s10 = scalar_select 0, %s9, %s7
  loop: start=0, step=1, limit=4
  $region2: #{discriminator_forward.6} parent=0 // loop_pre_header
    _
  $region3: #{discriminator_forward.6} parent=0 // loop_header
    %s12 = sphi 0, %s16
    %p13 = scmp.ge.s32.totalorder %s12, 4
    %s22 = sphi 0, %s24
    %s25 = sphi 0, %s22
    %s26 = sphi 0, %s25
    %s42 = sphi 0, %s26
    %s46 = sphi 0, %s46
    %s48 = sphi 0, %s46
    %s49 = sphi 0, %s48
    %s63 = sphi 0, %s49
    %s67 = sphi 0, %s67
    %s69 = sphi 0, %s67
    %s70 = sphi 0, %s69
    %s84 = sphi 0, %s70
    %s88 = sphi 0, %s88
    %s90 = sphi 0, %s88
    %s91 = sphi 0, %s90
    %s105 = sphi 0, %s91
    %s109 = sphi 0, %s109
    %s111 = sphi 0, %s109
    %s112 = sphi 0, %s111
    %s126 = sphi 0, %s112
    %s130 = sphi 0, %s130
    %s132 = sphi 0, %s130
    %s133 = sphi 0, %s132
    %s147 = sphi 0, %s133
    %s153 = sphi 0, %s155
    %s156 = sphi 0, %s153
    %s157 = sphi 0, %s156
    %s173 = sphi 0, %s157
  $region4: #{discriminator_forward.6} parent=0 // loop_header_branch
    %15 = sbr.rel (%p13) target = $region8
  $region5: #{discriminator_forward.6} parent=0 // loop_body
    %s17 = ssub.s32 %s12, 1
    %s18 = ssub.s32 %s12, 2
    %s19 = sadd.s32 %s12, 1
    %s20 = ssub.s32 %s12, %s19
    %p21 = scmp.eq.s32.totalorder %s20, 0
    %s23 = sadd.s32 %s22, 1
    %s24 = scalar_select %p21, %s22, %s23
    %p27 = pneg %p21
    %p28 = scmp.eq.s32.totalorder %s12, 1
    %p29 = por %p27, %p28
    %p30 = scmp.ne.s32.totalorder %s22, %s25
    %p31 = scmp.eq.s32.totalorder %s12, 0
    %p32 = por %p30, %p31
    %p33 = scmp.ne.s32.totalorder %s22, %s25
    %p34 = scmp.eq.s32.totalorder %s17, 1
    %p35 = por %p33, %p34
    %p36 = scmp.ne.s32.totalorder %s25, %s26
    %p37 = scmp.eq.s32.totalorder %s17, 0
    %p38 = por %p36, %p37
    %p39 = scmp.ne.s32.totalorder %s25, %s26
    %p40 = scmp.eq.s32.totalorder %s18, 1
    %p41 = por %p39, %p40
    %p43 = scmp.ne.s32.totalorder %s26, %s42
    %p44 = scmp.eq.s32.totalorder %s18, 0
    %p45 = por %p43, %p44
    %s47 = sadd.s32 %s46, 1
    %p50 = scmp.eq.s32.totalorder %s12, 1
    %p51 = scmp.ne.s32.totalorder %s46, %s48
    %p52 = scmp.eq.s32.totalorder %s12, 0
    %p53 = por %p51, %p52
    %p54 = scmp.ne.s32.totalorder %s46, %s48
    %p55 = scmp.eq.s32.totalorder %s17, 1
    %p56 = por %p54, %p55
    %p57 = scmp.ne.s32.totalorder %s48, %s49
    %p58 = scmp.eq.s32.totalorder %s17, 0
    %p59 = por %p57, %p58
    %p60 = scmp.ne.s32.totalorder %s48, %s49
    %p61 = scmp.eq.s32.totalorder %s18, 1
    %p62 = por %p60, %p61
    %p64 = scmp.ne.s32.totalorder %s49, %s63
    %p65 = scmp.eq.s32.totalorder %s18, 0
    %p66 = por %p64, %p65
    %s68 = sadd.s32 %s67, 1
    %p71 = scmp.eq.s32.totalorder %s12, 1
    %p72 = scmp.ne.s32.totalorder %s67, %s69
    %p73 = scmp.eq.s32.totalorder %s12, 0
    %p74 = por %p72, %p73
    %p75 = scmp.ne.s32.totalorder %s67, %s69
    %p76 = scmp.eq.s32.totalorder %s17, 1
    %p77 = por %p75, %p76
    %p78 = scmp.ne.s32.totalorder %s69, %s70
    %p79 = scmp.eq.s32.totalorder %s17, 0
    %p80 = por %p78, %p79
    %p81 = scmp.ne.s32.totalorder %s69, %s70
    %p82 = scmp.eq.s32.totalorder %s18, 1
    %p83 = por %p81, %p82
    %p85 = scmp.ne.s32.totalorder %s70, %s84
    %p86 = scmp.eq.s32.totalorder %s18, 0
    %p87 = por %p85, %p86
    %s89 = sadd.s32 %s88, 1
    %p92 = scmp.eq.s32.totalorder %s12, 1
    %p93 = scmp.ne.s32.totalorder %s88, %s90
    %p94 = scmp.eq.s32.totalorder %s12, 0
    %p95 = por %p93, %p94
    %p96 = scmp.ne.s32.totalorder %s88, %s90
    %p97 = scmp.eq.s32.totalorder %s17, 1
    %p98 = por %p96, %p97
    %p99 = scmp.ne.s32.totalorder %s90, %s91
    %p100 = scmp.eq.s32.totalorder %s17, 0
    %p101 = por %p99, %p100
    %p102 = scmp.ne.s32.totalorder %s90, %s91
    %p103 = scmp.eq.s32.totalorder %s18, 1
    %p104 = por %p102, %p103
    %p106 = scmp.ne.s32.totalorder %s91, %s105
    %p107 = scmp.eq.s32.totalorder %s18, 0
    %p108 = por %p106, %p107
    %s110 = sadd.s32 %s109, 1
    %p113 = scmp.eq.s32.totalorder %s12, 1
    %p114 = scmp.ne.s32.totalorder %s109, %s111
    %p115 = scmp.eq.s32.totalorder %s12, 0
    %p116 = por %p114, %p115
    %p117 = scmp.ne.s32.totalorder %s109, %s111
    %p118 = scmp.eq.s32.totalorder %s17, 1
    %p119 = por %p117, %p118
    %p120 = scmp.ne.s32.totalorder %s111, %s112
    %p121 = scmp.eq.s32.totalorder %s17, 0
    %p122 = por %p120, %p121
    %p123 = scmp.ne.s32.totalorder %s111, %s112
    %p124 = scmp.eq.s32.totalorder %s18, 1
    %p125 = por %p123, %p124
    %p127 = scmp.ne.s32.totalorder %s112, %s126
    %p128 = scmp.eq.s32.totalorder %s18, 0
    %p129 = por %p127, %p128
    %s131 = sadd.s32 %s130, 1
    %p134 = scmp.eq.s32.totalorder %s12, 1
    %p135 = scmp.ne.s32.totalorder %s130, %s132
    %p136 = scmp.eq.s32.totalorder %s12, 0
    %p137 = por %p135, %p136
    %p138 = scmp.ne.s32.totalorder %s130, %s132
    %p139 = scmp.eq.s32.totalorder %s17, 1
    %p140 = por %p138, %p139
    %p141 = scmp.ne.s32.totalorder %s132, %s133
    %p142 = scmp.eq.s32.totalorder %s17, 0
    %p143 = por %p141, %p142
    %p144 = scmp.ne.s32.totalorder %s132, %s133
    %p145 = scmp.eq.s32.totalorder %s18, 1
    %p146 = por %p144, %p145
    %p148 = scmp.ne.s32.totalorder %s133, %s147
    %p149 = scmp.eq.s32.totalorder %s18, 0
    %p150 = por %p148, %p149
    %s151 = ssub.s32 %s12, %s19
    %p152 = scmp.eq.s32.totalorder %s151, 0
    %s154 = sadd.s32 %s153, 1
    %s155 = scalar_select %p152, %s153, %s154
    %p158 = pneg %p152
    %p159 = scmp.eq.s32.totalorder %s12, 1
    %p160 = por %p158, %p159
    %p161 = scmp.ne.s32.totalorder %s153, %s156
    %p162 = scmp.eq.s32.totalorder %s12, 0
    %p163 = por %p161, %p162
    %p164 = scmp.ne.s32.totalorder %s153, %s156
    %p165 = scmp.eq.s32.totalorder %s17, 1
    %p166 = por %p164, %p165
    %p167 = scmp.ne.s32.totalorder %s156, %s157
    %p168 = scmp.eq.s32.totalorder %s17, 0
    %p169 = por %p167, %p168
    %p170 = scmp.ne.s32.totalorder %s156, %s157
    %p171 = scmp.eq.s32.totalorder %s18, 1
    %p172 = por %p170, %p171
    %p174 = scmp.ne.s32.totalorder %s157, %s173
    %p175 = scmp.eq.s32.totalorder %s18, 0
    %p176 = por %p174, %p175
    %p177 = scmp.le.s32.totalorder 1, %s12
    %p178 = scmp.lt.s32.totalorder %s12, 3
    %p179 = pnand %p177, %p178
    %p180 = pneg %p179
    // Predicated region
    $region9: #{discriminator_forward.6} parent=5 // pred_check
      _
    $region10: #{discriminator_forward.6} parent=5 // pred_check_branch
      %182 = sbr.rel (%p179) target = $region12
    $region11: #{discriminator_forward.6} parent=5 // pred_region
      %s183 = ssub.s32 %s12, 1
      // Predicated region
      $region13: #{discriminator_forward.6} parent=11 // pred_check
        %p184 = pneg %p59
      $region14: #{discriminator_forward.6} parent=11 // pred_check_branch
        %186 = sbr.rel (%p184) target = $region16
      $region15: #{discriminator_forward.6} parent=11 // pred_region
        _
      $region16: #{discriminator_forward.6} parent=11 // pred_fallthru
        _
      // Predicated region
      $region17: #{discriminator_forward.6} parent=11 // pred_check
        %p187 = pneg %p80
      $region18: #{discriminator_forward.6} parent=11 // pred_check_branch
        %189 = sbr.rel (%p187) target = $region20
      $region19: #{discriminator_forward.6} parent=11 // pred_region
        _
      $region20: #{discriminator_forward.6} parent=11 // pred_fallthru
        _
      // Predicated region
      $region21: #{discriminator_forward.6} parent=11 // pred_check
        %p190 = pneg %p101
      $region22: #{discriminator_forward.6} parent=11 // pred_check_branch
        %192 = sbr.rel (%p190) target = $region24
      $region23: #{discriminator_forward.6} parent=11 // pred_region
        _
      $region24: #{discriminator_forward.6} parent=11 // pred_fallthru
        _
      // Predicated region
      $region25: #{discriminator_forward.6} parent=11 // pred_check
        %p193 = pneg %p122
      $region26: #{discriminator_forward.6} parent=11 // pred_check_branch
        %195 = sbr.rel (%p193) target = $region28
      $region27: #{discriminator_forward.6} parent=11 // pred_region
        _
      $region28: #{discriminator_forward.6} parent=11 // pred_fallthru
        _
      // Predicated region
      $region29: #{discriminator_forward.6} parent=11 // pred_check
        %p196 = pneg %p143
      $region30: #{discriminator_forward.6} parent=11 // pred_check_branch
        %198 = sbr.rel (%p196) target = $region32
      $region31: #{discriminator_forward.6} parent=11 // pred_region
        _
      $region32: #{discriminator_forward.6} parent=11 // pred_fallthru
        _
    $region12: #{discriminator_forward.6} parent=5 // pred_fallthru
      _
    %p199 = scmp.lt.s32.totalorder %s12, 2
    // Predicated region
    $region33: #{discriminator_forward.6} parent=5 // pred_check
      %p200 = pneg %p199
    $region34: #{discriminator_forward.6} parent=5 // pred_check_branch
      %202 = sbr.rel (%p200) target = $region36
    $region35: #{discriminator_forward.6} parent=5 // pred_region
      // Predicated region
      $region37: #{discriminator_forward.6} parent=35 // pred_check
        %p203 = pneg %p32
      $region38: #{discriminator_forward.6} parent=35 // pred_check_branch
        %205 = sbr.rel (%p203) target = $region40
      $region39: #{discriminator_forward.6} parent=35 // pred_region
        %p206 = scmp.lt.s32.totalorder %s12, 1
        %s207 = scalar_select %p206, %s12, 1
        %s208 = smul.addr %s207, 11
        %s209 = smul.addr %s208, 8
        %s210 = scalar_lea.vmem %s0, %s209
      $region40: #{discriminator_forward.6} parent=35 // pred_fallthru
        _
    $region36: #{discriminator_forward.6} parent=5 // pred_fallthru
      _
    %p211 = scmp.le.s32.totalorder 1, %s12
    %p212 = scmp.lt.s32.totalorder %s12, 3
    %p213 = pnand %p211, %p212
    %p214 = pneg %p213
    // Predicated region
    $region41: #{discriminator_forward.6} parent=5 // pred_check
      _
    $region42: #{discriminator_forward.6} parent=5 // pred_check_branch
      %216 = sbr.rel (%p213) target = $region44
    $region43: #{discriminator_forward.6} parent=5 // pred_region
      %s217 = ssub.s32 %s12, 1
      %p218 = scmp.lt.s32.totalorder %s17, 1
      %s219 = scalar_select %p218, %s17, 1
      %s220 = smul.addr %s219, 11
      %s221 = smul.addr %s220, 8
      %s222 = scalar_lea.vmem %s0, %s221
      %p223 = pneg %p38
      %p224 = pneg %p35
      %p225 = pneg %p59
      %p226 = pneg %p56
      %p227 = pneg %p80
      %p228 = pneg %p77
      %p229 = pneg %p101
      %p230 = pneg %p98
      %p231 = pneg %p122
      %p232 = pneg %p119
      %p233 = pneg %p143
      %p234 = pneg %p140
      %p235 = pneg %p169
      %p236 = pneg %p166
      %p237 = scmp.lt.s32.totalorder %s17, 1
      %s238 = scalar_select %p237, %s17, 1
      %s239 = smul.addr %s238, 9
      %s240 = smul.addr %s239, 8
      %s241 = scalar_lea.vmem %s6, %s240
      %p242 = scmp.lt.s32.totalorder %s17, 1
      %s243 = scalar_select %p242, %s17, 1
      %s244 = smul.addr %s243, 11
      %s245 = smul.addr %s244, 8
      %s246 = scalar_lea.vmem %s0, %s245
      %p247 = scmp.lt.s32.totalorder %s17, 1
      %s248 = scalar_select %p247, %s17, 1
      %s249 = smul.addr %s248, 9
      %s250 = smul.addr %s249, 8
      %s251 = scalar_lea.vmem %s6, %s250
      %v253 = vld [vmem:[%s246] sm:$0xff]
      %v254 = vld [vmem:[%s246 + $0x8] sm:$0xff]
      %v255 = vld [vmem:[%s246 + $0x10] sm:$0xff]
      %v256 = vld [vmem:[%s246 + $0x18] sm:$0xff]
      %v257 = vld [vmem:[%s246 + $0x20] sm:$0xff]
      %v258 = vld [vmem:[%s246 + $0x28] sm:$0xff]
      %v259 = vld [vmem:[%s246 + $0x30] sm:$0xff]
      %v260 = vld [vmem:[%s246 + $0x38] sm:$0xff]
      %v261 = vld [vmem:[%s246 + $0x40] sm:$0xff]
      %v262 = vpack.c.bf16 %v254, %v253
      %v263 = vpack.c.bf16 %v256, %v255
      %v264 = vpack.c.bf16 %v258, %v257
      %v265 = vpack.c.bf16 %v260, %v259
      %v266 = vpack.c.bf16 %v261, %v261
      %v267 = vld [vmem:[%s1] sm:$0xf]
      %v268 = vld [vmem:[%s1 + $0x4] sm:$0xf]
      %v269 = vld [vmem:[%s246 + $0x1] sm:$0xff]
      %v270 = vld [vmem:[%s246 + $0x9] sm:$0xff]
      %v271 = vld [vmem:[%s246 + $0x11] sm:$0xff]
      %v272 = vld [vmem:[%s246 + $0x19] sm:$0xff]
      %v273 = vld [vmem:[%s246 + $0x21] sm:$0xff]
      %v274 = vld [vmem:[%s246 + $0x29] sm:$0xff]
      %v275 = vld [vmem:[%s246 + $0x31] sm:$0xff]
      %v276 = vld [vmem:[%s246 + $0x39] sm:$0xff]
      %v277 = vld [vmem:[%s246 + $0x41] sm:$0xff]
      %v278 = vpack.c.bf16 %v270, %v269
      %v279 = vpack.c.bf16 %v272, %v271
      %v280 = vpack.c.bf16 %v274, %v273
      %v281 = vpack.c.bf16 %v276, %v275
      %v282 = vpack.c.bf16 %v277, %v277
      %v283 = vld [vmem:[%s1 + $0x8] sm:$0xf]
      %v284 = vld [vmem:[%s1 + $0xc] sm:$0xf]
      %v287 = vunpack.c.l.b16 %v283
      %v288 = vunpack.c.l.b16 %v284
      %v289 = vpack.c.b16 %v288, %v287
      %vm291 = vcmask 130048
      %v293 = vsel %vm291, %v278, 0
      %v296 = vsel %vm291, %v279, 0
      %v299 = vsel %vm291, %v280, 0
      %v302 = vsel %vm291, %v281, 0
      %v305 = vsel %vm291, %v282, 0
      %307 = vmatprep.subr.bf16.mxu0 0
      %308 = vmatpush1.bf16.msra.mxu0 %v289
      %309 = vmatprep.subr.bf16.mxu0 0
      %310 = vmatpush1.bf16.msra.mxu0 0
      %311 = vmatprep.subr.bf16.mxu0 0
      %312 = vmatpush1.bf16.msra.mxu0 0
      %313 = vmatprep.subr.bf16.mxu0 0
      %314 = vmatpush1.bf16.msra.mxu0 0
      %315 = vmatprep.subr.bf16.mxu0 0
      %316 = vmatpush1.bf16.msra.mxu0 0
      %317 = vmatprep.subr.bf16.mxu0 0
      %318 = vmatpush1.bf16.msra.mxu0 0
      %319 = vmatprep.subr.bf16.mxu0 0
      %320 = vmatpush1.bf16.msra.mxu0 0
      %321 = vmatprep.subr.bf16.mxu0 0
      %322 = vmatpush1.bf16.msra.mxu0 0
      %323 = vmatprep.subr.bf16.mxu0 0
      %324 = vmatpush1.bf16.msra.mxu0 0
      %325 = vmatprep.subr.bf16.mxu0 0
      %326 = vmatpush1.bf16.msra.mxu0 0
      %327 = vmatprep.subr.bf16.mxu0 0
      %328 = vmatpush1.bf16.msra.mxu0 0
      %329 = vmatprep.subr.bf16.mxu0 0
      %330 = vmatpush1.bf16.msra.mxu0 0
      %331 = vmatprep.subr.bf16.mxu0 0
      %332 = vmatpush1.bf16.msra.mxu0 0
      %333 = vmatprep.subr.bf16.mxu0 0
      %334 = vmatpush1.bf16.msra.mxu0 0
      %335 = vmatprep.subr.bf16.mxu0 0
      %336 = vmatpush1.bf16.msra.mxu0 0
      %337 = vmatprep.subr.bf16.mxu0 0
      %338 = vmatpush1.bf16.msra.mxu0 0
      %339 = vmatprep.mubr.bf16.mxu0 0
      %340 = vmatmul.mubr.bf16.gmra.mrb[0].mxu0 %v293
      %v341 = vpop.f32.mrb[0].mxu0
      %v342 = vadd.f32 0.0, %v341
      %v343 = vpop.f32.mrb[0].mxu0
      %v344 = vpop.f32.mrb[0].mxu0
      %v345 = vadd.f32 0.0, %v344
      %v346 = vpop.f32.mrb[0].mxu0
      %347 = vmatprep.mubr.bf16.mxu0 0
      %348 = vmatmul.mubr.bf16.gmra.mrb[0].mxu0 %v296
      %v349 = vpop.f32.mrb[0].mxu0
      %v350 = vadd.f32 0.0, %v349
      %v351 = vpop.f32.mrb[0].mxu0
      %v352 = vpop.f32.mrb[0].mxu0
      %v353 = vadd.f32 0.0, %v352
      %v354 = vpop.f32.mrb[0].mxu0
      %355 = vmatprep.mubr.bf16.mxu0 0
      %356 = vmatmul.mubr.bf16.gmra.mrb[0].mxu0 %v299
      %v357 = vpop.f32.mrb[0].mxu0
      %v358 = vadd.f32 0.0, %v357
      %v359 = vpop.f32.mrb[0].mxu0
      %v360 = vpop.f32.mrb[0].mxu0
      %v361 = vadd.f32 0.0, %v360
      %v362 = vpop.f32.mrb[0].mxu0
      %363 = vmatprep.mubr.bf16.mxu0 0
      %364 = vmatmul.mubr.bf16.gmra.mrb[0].mxu0 %v302
      %v365 = vpop.f32.mrb[0].mxu0
      %v366 = vadd.f32 0.0, %v365
      %v367 = vpop.f32.mrb[0].mxu0
      %v368 = vpop.f32.mrb[0].mxu0
      %v369 = vadd.f32 0.0, %v368
      %v370 = vpop.f32.mrb[0].mxu0
      %371 = vmatprep.mubr.bf16.mxu0 0
      %372 = vmatmul.mubr.bf16.gmra.mrb[0].mxu0 %v305
      %v373 = vpop.f32.mrb[0].mxu0
      %v374 = vadd.f32 0.0, %v373
      %v375 = vpop.f32.mrb[0].mxu0
      %v376 = vpop.f32.mrb[0].mxu0
      %v377 = vpop.f32.mrb[0].mxu0
      %378 = vdwg.mxu0
      %v381 = vunpack.c.l.b16 %v267
      %v382 = vunpack.c.l.b16 %v268
      %v383 = vpack.c.b16 %v382, %v381
      %v386 = vsel %vm291, %v262, 0
      %v389 = vsel %vm291, %v263, 0
      %v392 = vsel %vm291, %v264, 0
      %v395 = vsel %vm291, %v265, 0
      %v398 = vsel %vm291, %v266, 0
      %400 = vmatprep.subr.bf16.mxu0 0
      %401 = vmatpush1.bf16.msra.mxu0 %v383
      %402 = vmatprep.subr.bf16.mxu0 0
      %403 = vmatpush1.bf16.msra.mxu0 0
      %404 = vmatprep.subr.bf16.mxu0 0
      %405 = vmatpush1.bf16.msra.mxu0 0
      %406 = vmatprep.subr.bf16.mxu0 0
      %407 = vmatpush1.bf16.msra.mxu0 0
      %408 = vmatprep.subr.bf16.mxu0 0
      %409 = vmatpush1.bf16.msra.mxu0 0
      %410 = vmatprep.subr.bf16.mxu0 0
      %411 = vmatpush1.bf16.msra.mxu0 0
      %412 = vmatprep.subr.bf16.mxu0 0
      %413 = vmatpush1.bf16.msra.mxu0 0
      %414 = vmatprep.subr.bf16.mxu0 0
      %415 = vmatpush1.bf16.msra.mxu0 0
      %416 = vmatprep.subr.bf16.mxu0 0
      %417 = vmatpush1.bf16.msra.mxu0 0
      %418 = vmatprep.subr.bf16.mxu0 0
      %419 = vmatpush1.bf16.msra.mxu0 0
      %420 = vmatprep.subr.bf16.mxu0 0
      %421 = vmatpush1.bf16.msra.mxu0 0
      %422 = vmatprep.subr.bf16.mxu0 0
      %423 = vmatpush1.bf16.msra.mxu0 0
      %424 = vmatprep.subr.bf16.mxu0 0
      %425 = vmatpush1.bf16.msra.mxu0 0
      %426 = vmatprep.subr.bf16.mxu0 0
      %427 = vmatpush1.bf16.msra.mxu0 0
      %428 = vmatprep.subr.bf16.mxu0 0
      %429 = vmatpush1.bf16.msra.mxu0 0
      %430 = vmatprep.subr.bf16.mxu0 0
      %431 = vmatpush1.bf16.msra.mxu0 0
      %432 = vmatprep.mubr.bf16.mxu0 0
      %433 = vmatmul.mubr.bf16.gmra.mrb[0].mxu0 %v386
      %v434 = vpop.f32.mrb[0].mxu0
      %v435 = vadd.f32 %v342, %v434
      %v436 = vpop.f32.mrb[0].mxu0
      %v437 = vpop.f32.mrb[0].mxu0
      %v438 = vadd.f32 %v345, %v437
      %v439 = vpop.f32.mrb[0].mxu0
      %440 = vmatprep.mubr.bf16.mxu0 0
      %441 = vmatmul.mubr.bf16.gmra.mrb[0].mxu0 %v389
      %v442 = vpop.f32.mrb[0].mxu0
      %v443 = vadd.f32 %v350, %v442
      %v444 = vpop.f32.mrb[0].mxu0
      %v445 = vpop.f32.mrb[0].mxu0
      %v446 = vadd.f32 %v353, %v445
      %v447 = vpop.f32.mrb[0].mxu0
      %448 = vmatprep.mubr.bf16.mxu0 0
      %449 = vmatmul.mubr.bf16.gmra.mrb[0].mxu0 %v392
      %v450 = vpop.f32.mrb[0].mxu0
      %v451 = vadd.f32 %v358, %v450
      %v452 = vpop.f32.mrb[0].mxu0
      %v453 = vpop.f32.mrb[0].mxu0
      %v454 = vadd.f32 %v361, %v453
      %v455 = vpop.f32.mrb[0].mxu0
      %456 = vmatprep.mubr.bf16.mxu0 0
      %457 = vmatmul.mubr.bf16.gmra.mrb[0].mxu0 %v395
      %v458 = vpop.f32.mrb[0].mxu0
      %v459 = vadd.f32 %v366, %v458
      %v460 = vpop.f32.mrb[0].mxu0
      %v461 = vpop.f32.mrb[0].mxu0
      %v462 = vadd.f32 %v369, %v461
      %v463 = vpop.f32.mrb[0].mxu0
      %464 = vmatprep.mubr.bf16.mxu0 0
      %465 = vmatmul.mubr.bf16.gmra.mrb[0].mxu0 %v398
      %v466 = vpop.f32.mrb[0].mxu0
      %v467 = vadd.f32 %v374, %v466
      %v468 = vpop.f32.mrb[0].mxu0
      %v469 = vpop.f32.mrb[0].mxu0
      %v470 = vpop.f32.mrb[0].mxu0
      %471 = vdwg.mxu0
      %v472 = vld [vmem:[%s246 + $0x9] sm:$0xff]
      %v473 = vld [vmem:[%s246 + $0x11] sm:$0xff]
      %v474 = vld [vmem:[%s246 + $0x19] sm:$0xff]
      %v475 = vld [vmem:[%s246 + $0x21] sm:$0xff]
      %v476 = vld [vmem:[%s246 + $0x29] sm:$0xff]
      %v477 = vld [vmem:[%s246 + $0x31] sm:$0xff]
      %v478 = vld [vmem:[%s246 + $0x39] sm:$0xff]
      %v479 = vld [vmem:[%s246 + $0x41] sm:$0xff]
      %v480 = vld [vmem:[%s246 + $0x49] sm:$0xff]
      %v481 = vpack.c.bf16 %v473, %v472
      %v482 = vpack.c.bf16 %v475, %v474
      %v483 = vpack.c.bf16 %v477, %v476
      %v484 = vpack.c.bf16 %v479, %v478
      %v485 = vpack.c.bf16 %v480, %v480
      %v486 = vld [vmem:[%s1 + $0x10] sm:$0xf]
      %v487 = vld [vmem:[%s1 + $0x14] sm:$0xf]
      %v490 = vunpack.c.l.b16 %v486
      %v491 = vunpack.c.l.b16 %v487
      %v492 = vpack.c.b16 %v491, %v490
      %v495 = vsel %vm291, %v481, 0
      %v498 = vsel %vm291, %v482, 0
      %v501 = vsel %vm291, %v483, 0
      %v504 = vsel %vm291, %v484, 0
      %v507 = vsel %vm291, %v485, 0
      %509 = vmatprep.subr.bf16.mxu0 0
      %510 = vmatpush1.bf16.msra.mxu0 %v492
      %511 = vmatprep.subr.bf16.mxu0 0
      %512 = vmatpush1.bf16.msra.mxu0 0
      %513 = vmatprep.subr.bf16.mxu0 0
      %514 = vmatpush1.bf16.msra.mxu0 0
      %515 = vmatprep.subr.bf16.mxu0 0
      %516 = vmatpush1.bf16.msra.mxu0 0
      %517 = vmatprep.subr.bf16.mxu0 0
      %518 = vmatpush1.bf16.msra.mxu0 0
      %519 = vmatprep.subr.bf16.mxu0 0
      %520 = vmatpush1.bf16.msra.mxu0 0
      %521 = vmatprep.subr.bf16.mxu0 0
      %522 = vmatpush1.bf16.msra.mxu0 0
      %523 = vmatprep.subr.bf16.mxu0 0
      %524 = vmatpush1.bf16.msra.mxu0 0
      %525 = vmatprep.subr.bf16.mxu0 0
      %526 = vmatpush1.bf16.msra.mxu0 0
      %527 = vmatprep.subr.bf16.mxu0 0
      %528 = vmatpush1.bf16.msra.mxu0 0
      %529 = vmatprep.subr.bf16.mxu0 0
      %530 = vmatpush1.bf16.msra.mxu0 0
      %531 = vmatprep.subr.bf16.mxu0 0
      %532 = vmatpush1.bf16.msra.mxu0 0
      %533 = vmatprep.subr.bf16.mxu0 0
      %534 = vmatpush1.bf16.msra.mxu0 0
      %535 = vmatprep.subr.bf16.mxu0 0
      %536 = vmatpush1.bf16.msra.mxu0 0
      %537 = vmatprep.subr.bf16.mxu0 0
      %538 = vmatpush1.bf16.msra.mxu0 0
      %539 = vmatprep.subr.bf16.mxu0 0
      %540 = vmatpush1.bf16.msra.mxu0 0
      %541 = vmatprep.mubr.bf16.mxu0 0
      %542 = vmatmul.mubr.bf16.gmra.mrb[0].mxu0 %v495
      %v543 = vpop.f32.mrb[0].mxu0
      %v544 = vadd.f32 0.0, %v543
      %v545 = vpop.f32.mrb[0].mxu0
      %v546 = vpop.f32.mrb[0].mxu0
      %v547 = vadd.f32 0.0, %v546
      %v548 = vpop.f32.mrb[0].mxu0
      %549 = vmatprep.mubr.bf16.mxu0 0
      %550 = vmatmul.mubr.bf16.gmra.mrb[0].mxu0 %v498
      %v551 = vpop.f32.mrb[0].mxu0
      %v552 = vadd.f32 0.0, %v551
      %v553 = vpop.f32.mrb[0].mxu0
      %v554 = vpop.f32.mrb[0].mxu0
      %v555 = vadd.f32 0.0, %v554
      %v556 = vpop.f32.mrb[0].mxu0
      %557 = vmatprep.mubr.bf16.mxu0 0
      %558 = vmatmul.mubr.bf16.gmra.mrb[0].mxu0 %v501
      %v559 = vpop.f32.mrb[0].mxu0
      %v560 = vadd.f32 0.0, %v559
      %v561 = vpop.f32.mrb[0].mxu0
      %v562 = vpop.f32.mrb[0].mxu0
      %v563 = vadd.f32 0.0, %v562
      %v564 = vpop.f32.mrb[0].mxu0
      %565 = vmatprep.mubr.bf16.mxu0 0
      %566 = vmatmul.mubr.bf16.gmra.mrb[0].mxu0 %v504
      %v567 = vpop.f32.mrb[0].mxu0
      %v568 = vadd.f32 0.0, %v567
      %v569 = vpop.f32.mrb[0].mxu0
      %v570 = vpop.f32.mrb[0].mxu0
      %v571 = vadd.f32 0.0, %v570
      %v572 = vpop.f32.mrb[0].mxu0
      %573 = vmatprep.mubr.bf16.mxu0 0
      %574 = vmatmul.mubr.bf16.gmra.mrb[0].mxu0 %v507
      %v575 = vpop.f32.mrb[0].mxu0
      %v576 = vadd.f32 0.0, %v575
      %v577 = vpop.f32.mrb[0].mxu0
      %v578 = vpop.f32.mrb[0].mxu0
      %v579 = vpop.f32.mrb[0].mxu0
      %580 = vdwg.mxu0
      %v581 = vadd.f32 %v435, %v544
      %v582 = vadd.f32 %v438, %v547
      %v583 = vadd.f32 %v443, %v552
      %v584 = vadd.f32 %v446, %v555
      %v585 = vadd.f32 %v451, %v560
      %v586 = vadd.f32 %v454, %v563
      %v587 = vadd.f32 %v459, %v568
      %v588 = vadd.f32 %v462, %v571
      %v589 = vadd.f32 %v467, %v576
      %v590 = vld [vmem:[%s246 + $0xa] sm:$0xff]
      %v591 = vld [vmem:[%s246 + $0x12] sm:$0xff]
      %v592 = vld [vmem:[%s246 + $0x1a] sm:$0xff]
      %v593 = vld [vmem:[%s246 + $0x22] sm:$0xff]
      %v594 = vld [vmem:[%s246 + $0x2a] sm:$0xff]
      %v595 = vld [vmem:[%s246 + $0x32] sm:$0xff]
      %v596 = vld [vmem:[%s246 + $0x3a] sm:$0xff]
      %v597 = vld [vmem:[%s246 + $0x42] sm:$0xff]
      %v598 = vld [vmem:[%s246 + $0x4a] sm:$0xff]
      %v599 = vpack.c.bf16 %v591, %v590
      %v600 = vpack.c.bf16 %v593, %v592
      %v601 = vpack.c.bf16 %v595, %v594
      %v602 = vpack.c.bf16 %v597, %v596
      %v603 = vpack.c.bf16 %v598, %v598
      %v604 = vld [vmem:[%s1 + $0x18] sm:$0xf]
      %v605 = vld [vmem:[%s1 + $0x1c] sm:$0xf]
      %v608 = vunpack.c.l.b16 %v604
      %v609 = vunpack.c.l.b16 %v605
      %v610 = vpack.c.b16 %v609, %v608
      %v613 = vsel %vm291, %v599, 0
      %v616 = vsel %vm291, %v600, 0
      %v619 = vsel %vm291, %v601, 0
      %v622 = vsel %vm291, %v602, 0
      %v625 = vsel %vm291, %v603, 0
      %627 = vmatprep.subr.bf16.mxu0 0
      %628 = vmatpush1.bf16.msra.mxu0 %v610
      %629 = vmatprep.subr.bf16.mxu0 0
      %630 = vmatpush1.bf16.msra.mxu0 0
      %631 = vmatprep.subr.bf16.mxu0 0
      %632 = vmatpush1.bf16.msra.mxu0 0
      %633 = vmatprep.subr.bf16.mxu0 0
      %634 = vmatpush1.bf16.msra.mxu0 0
      %635 = vmatprep.subr.bf16.mxu0 0
      %636 = vmatpush1.bf16.msra.mxu0 0
      %637 = vmatprep.subr.bf16.mxu0 0
      %638 = vmatpush1.bf16.msra.mxu0 0
      %639 = vmatprep.subr.bf16.mxu0 0
      %640 = vmatpush1.bf16.msra.mxu0 0
      %641 = vmatprep.subr.bf16.mxu0 0
      %642 = vmatpush1.bf16.msra.mxu0 0
      %643 = vmatprep.subr.bf16.mxu0 0
      %644 = vmatpush1.bf16.msra.mxu0 0
      %645 = vmatprep.subr.bf16.mxu0 0
      %646 = vmatpush1.bf16.msra.mxu0 0
      %647 = vmatprep.subr.bf16.mxu0 0
      %648 = vmatpush1.bf16.msra.mxu0 0
      %649 = vmatprep.subr.bf16.mxu0 0
      %650 = vmatpush1.bf16.msra.mxu0 0
      %651 = vmatprep.subr.bf16.mxu0 0
      %652 = vmatpush1.bf16.msra.mxu0 0
      %653 = vmatprep.subr.bf16.mxu0 0
      %654 = vmatpush1.bf16.msra.mxu0 0
      %655 = vmatprep.subr.bf16.mxu0 0
      %656 = vmatpush1.bf16.msra.mxu0 0
      %657 = vmatprep.subr.bf16.mxu0 0
      %658 = vmatpush1.bf16.msra.mxu0 0
      %659 = vmatprep.mubr.bf16.mxu0 0
      %660 = vmatmul.mubr.bf16.gmra.mrb[0].mxu0 %v613
      %v661 = vpop.f32.mrb[0].mxu0
      %v662 = vadd.f32 0.0, %v661
      %v663 = vpop.f32.mrb[0].mxu0
      %v664 = vpop.f32.mrb[0].mxu0
      %v665 = vadd.f32 0.0, %v664
      %v666 = vpop.f32.mrb[0].mxu0
      %667 = vmatprep.mubr.bf16.mxu0 0
      %668 = vmatmul.mubr.bf16.gmra.mrb[0].mxu0 %v616
      %v669 = vpop.f32.mrb[0].mxu0
      %v670 = vadd.f32 0.0, %v669
      %v671 = vpop.f32.mrb[0].mxu0
      %v672 = vpop.f32.mrb[0].mxu0
      %v673 = vadd.f32 0.0, %v672
      %v674 = vpop.f32.mrb[0].mxu0
      %675 = vmatprep.mubr.bf16.mxu0 0
      %676 = vmatmul.mubr.bf16.gmra.mrb[0].mxu0 %v619
      %v677 = vpop.f32.mrb[0].mxu0
      %v678 = vadd.f32 0.0, %v677
      %v679 = vpop.f32.mrb[0].mxu0
      %v680 = vpop.f32.mrb[0].mxu0
      %v681 = vadd.f32 0.0, %v680
      %v682 = vpop.f32.mrb[0].mxu0
      %683 = vmatprep.mubr.bf16.mxu0 0
      %684 = vmatmul.mubr.bf16.gmra.mrb[0].mxu0 %v622
      %v685 = vpop.f32.mrb[0].mxu0
      %v686 = vadd.f32 0.0, %v685
      %v687 = vpop.f32.mrb[0].mxu0
      %v688 = vpop.f32.mrb[0].mxu0
      %v689 = vadd.f32 0.0, %v688
      %v690 = vpop.f32.mrb[0].mxu0
      %691 = vmatprep.mubr.bf16.mxu0 0
      %692 = vmatmul.mubr.bf16.gmra.mrb[0].mxu0 %v625
      %v693 = vpop.f32.mrb[0].mxu0
      %v694 = vadd.f32 0.0, %v693
      %v695 = vpop.f32.mrb[0].mxu0
      %v696 = vpop.f32.mrb[0].mxu0
      %v697 = vpop.f32.mrb[0].mxu0
      %698 = vdwg.mxu0
      %v699 = vadd.f32 %v581, %v662
      %v700 = vadd.f32 %v582, %v665
      %v701 = vadd.f32 %v583, %v670
      %v702 = vadd.f32 %v584, %v673
      %v703 = vadd.f32 %v585, %v678
      %v704 = vadd.f32 %v586, %v681
      %v705 = vadd.f32 %v587, %v686
      %v706 = vadd.f32 %v588, %v689
      %v707 = vadd.f32 %v589, %v694
      %v708 = vld [vmem:[%s2] sm:$0x1]
      %v710 = vlaneseq
      %v711 = vshrl.u32 %v710, 7
      %v712 = vsub.s32 0, %v711
      %v713 = vrot.slane %v708, %v712
      %v715 = vadd.f32 %v699, %v713
      %v716 = vadd.f32 %v700, %v713
      %v717 = vadd.f32 %v701, %v713
      %v718 = vadd.f32 %v702, %v713
      %v719 = vadd.f32 %v703, %v713
      %v720 = vadd.f32 %v704, %v713
      %v721 = vadd.f32 %v705, %v713
      %v722 = vadd.f32 %v706, %v713
      %v723 = vadd.f32 %v707, %v713
      %vm724 = vcmp.ge.f32.partialorder %v715, 0.0
      %vm725 = vcmp.ge.f32.partialorder %v716, 0.0
      %vm726 = vcmp.ge.f32.partialorder %v717, 0.0
      %vm727 = vcmp.ge.f32.partialorder %v718, 0.0
      %vm728 = vcmp.ge.f32.partialorder %v719, 0.0
      %vm729 = vcmp.ge.f32.partialorder %v720, 0.0
      %vm730 = vcmp.ge.f32.partialorder %v721, 0.0
      %vm731 = vcmp.ge.f32.partialorder %v722, 0.0
      %vm732 = vcmp.ge.f32.partialorder %v723, 0.0
      %v733 = vmul.f32 %v715, 0.2
      %v734 = vmul.f32 %v716, 0.2
      %v735 = vmul.f32 %v717, 0.2
      %v736 = vmul.f32 %v718, 0.2
      %v737 = vmul.f32 %v719, 0.2
      %v738 = vmul.f32 %v720, 0.2
      %v739 = vmul.f32 %v721, 0.2
      %v740 = vmul.f32 %v722, 0.2
      %v741 = vmul.f32 %v723, 0.2
      %v742 = vsel %vm724, %v715, %v733
      %v743 = vsel %vm725, %v716, %v734
      %v744 = vsel %vm726, %v717, %v735
      %v745 = vsel %vm727, %v718, %v736
      %v746 = vsel %vm728, %v719, %v737
      %v747 = vsel %vm729, %v720, %v738
      %v748 = vsel %vm730, %v721, %v739
      %v749 = vsel %vm731, %v722, %v740
      %v750 = vsel %vm732, %v723, %v741
      %751 = vst [vmem:[%s251] sm:$0xff] %v742
      %752 = vst [vmem:[%s251 + $0x8] sm:$0xff] %v743
      %753 = vst [vmem:[%s251 + $0x10] sm:$0xff] %v744
      %754 = vst [vmem:[%s251 + $0x18] sm:$0xff] %v745
      %755 = vst [vmem:[%s251 + $0x20] sm:$0xff] %v746
      %756 = vst [vmem:[%s251 + $0x28] sm:$0xff] %v747
      %757 = vst [vmem:[%s251 + $0x30] sm:$0xff] %v748
      %758 = vst [vmem:[%s251 + $0x38] sm:$0xff] %v749
      %759 = vst [vmem:[%s251 + $0x40] sm:$0xff] %v750
      %p760 = scmp.lt.s32.totalorder %s17, 1
      %s761 = scalar_select %p760, %s17, 1
      %s762 = smul.addr %s761, 9
      %s763 = smul.addr %s762, 8
      %s764 = scalar_lea.vmem %s6, %s763
      // Predicated region
      $region45: #{discriminator_forward.6} parent=43 // pred_check
        %p765 = pneg %p166
      $region46: #{discriminator_forward.6} parent=43 // pred_check_branch
        %767 = sbr.rel (%p765) target = $region48
      $region47: #{discriminator_forward.6} parent=43 // pred_region
        _
      $region48: #{discriminator_forward.6} parent=43 // pred_fallthru
        _
    $region44: #{discriminator_forward.6} parent=5 // pred_fallthru
      _
    %p768 = scmp.le.s32.totalorder 2, %s12
    // Predicated region
    $region49: #{discriminator_forward.6} parent=5 // pred_check
      %p769 = pneg %p768
    $region50: #{discriminator_forward.6} parent=5 // pred_check_branch
      %771 = sbr.rel (%p769) target = $region52
    $region51: #{discriminator_forward.6} parent=5 // pred_region
      %s772 = ssub.s32 %s12, 2
      // Predicated region
      $region53: #{discriminator_forward.6} parent=51 // pred_check
        %p773 = pneg %p172
      $region54: #{discriminator_forward.6} parent=51 // pred_check_branch
        %775 = sbr.rel (%p773) target = $region56
      $region55: #{discriminator_forward.6} parent=51 // pred_region
        %p776 = scmp.lt.s32.totalorder %s18, 1
        %s777 = scalar_select %p776, %s18, 1
        %s778 = smul.addr %s777, 9
        %s779 = smul.addr %s778, 8
        %s780 = scalar_lea.vmem %s6, %s779
      $region56: #{discriminator_forward.6} parent=51 // pred_fallthru
        _
    $region52: #{discriminator_forward.6} parent=5 // pred_fallthru
      _
  $region6: #{discriminator_forward.6} parent=0 // loop_footer
    %s16 = sadd.s32 1, %s12
  $region7: #{discriminator_forward.6} parent=0 // loop_footer_branch
    %11 = sbr.rel target = $region3
  $region8: #{discriminator_forward.6} parent=0 // loop_exit
    _

// kernel: discriminator_forward.7
$region0: #{discriminator_forward.7}
  #allocation0 [shape = 'u32[]', space=smem, size = 0x4, offset = 0x4, fixed_abs, tag = 'smem constant byte address 0x4 - core index']
  #allocation1 [shape = 'u32[144,128]{1,0:T(1,128)}', space=vmem, size = 0x12000, scoped, tag = 'internal scratch']
  %s0 = inlined_call_operand.vmem [shape: f32[2,32,512], index: 0, kind: input, shape index: {}]
  %s1 = inlined_call_operand.vmem [shape: bf16[2048,128], index: 1, kind: input, shape index: {}]
  %s2 = inlined_call_operand.vmem [shape: f32[1,128], index: 2, kind: input, shape index: {}]
  %s3 = inlined_call_operand.vmem [shape: f32[1,128], index: 3, kind: input, shape index: {}]
  %s4 = inlined_call_operand.vmem [shape: f32[1,128], index: 4, kind: input, shape index: {}]
  %s5 = inlined_call_operand.vmem [shape: f32[1,128], index: 5, kind: input, shape index: {}]
  %s6 = inlined_call_operand.vmem [shape: f32[2,20,128], index: 6, kind: output, shape index: {}]
  %s7 = sld [smem:[#allocation0]]
  $region57: #{discriminator_forward.7} parent=0
    _
  %s9 = ssub.s32 1, %s7
  %s10 = scalar_select 0, %s9, %s7
  loop: start=0, step=1, limit=4
  $region2: #{discriminator_forward.7} parent=0 // loop_pre_header
    _
  $region3: #{discriminator_forward.7} parent=0 // loop_header
    %s12 = sphi 0, %s16
    %p13 = scmp.ge.s32.totalorder %s12, 4
    %s22 = sphi 0, %s24
    %s25 = sphi 0, %s22
    %s26 = sphi 0, %s25
    %s42 = sphi 0, %s26
    %s46 = sphi 0, %s46
    %s48 = sphi 0, %s46
    %s49 = sphi 0, %s48
    %s63 = sphi 0, %s49
    %s67 = sphi 0, %s67
    %s69 = sphi 0, %s67
    %s70 = sphi 0, %s69
    %s84 = sphi 0, %s70
    %s88 = sphi 0, %s88
    %s90 = sphi 0, %s88
    %s91 = sphi 0, %s90
    %s105 = sphi 0, %s91
    %s109 = sphi 0, %s109
    %s111 = sphi 0, %s109
    %s112 = sphi 0, %s111
    %s126 = sphi 0, %s112
    %s130 = sphi 0, %s130
    %s132 = sphi 0, %s130
    %s133 = sphi 0, %s132
    %s147 = sphi 0, %s133
    %s153 = sphi 0, %s155
    %s156 = sphi 0, %s153
    %s157 = sphi 0, %s156
    %s173 = sphi 0, %s157
  $region4: #{discriminator_forward.7} parent=0 // loop_header_branch
    %15 = sbr.rel (%p13) target = $region8
  $region5: #{discriminator_forward.7} parent=0 // loop_body
    %s17 = ssub.s32 %s12, 1
    %s18 = ssub.s32 %s12, 2
    %s19 = sadd.s32 %s12, 1
    %s20 = ssub.s32 %s12, %s19
    %p21 = scmp.eq.s32.totalorder %s20, 0
    %s23 = sadd.s32 %s22, 1
    %s24 = scalar_select %p21, %s22, %s23
    %p27 = pneg %p21
    %p28 = scmp.eq.s32.totalorder %s12, 1
    %p29 = por %p27, %p28
    %p30 = scmp.ne.s32.totalorder %s22, %s25
    %p31 = scmp.eq.s32.totalorder %s12, 0
    %p32 = por %p30, %p31
    %p33 = scmp.ne.s32.totalorder %s22, %s25
    %p34 = scmp.eq.s32.totalorder %s17, 1
    %p35 = por %p33, %p34
    %p36 = scmp.ne.s32.totalorder %s25, %s26
    %p37 = scmp.eq.s32.totalorder %s17, 0
    %p38 = por %p36, %p37
    %p39 = scmp.ne.s32.totalorder %s25, %s26
    %p40 = scmp.eq.s32.totalorder %s18, 1
    %p41 = por %p39, %p40
    %p43 = scmp.ne.s32.totalorder %s26, %s42
    %p44 = scmp.eq.s32.totalorder %s18, 0
    %p45 = por %p43, %p44
    %s47 = sadd.s32 %s46, 1
    %p50 = scmp.eq.s32.totalorder %s12, 1
    %p51 = scmp.ne.s32.totalorder %s46, %s48
    %p52 = scmp.eq.s32.totalorder %s12, 0
    %p53 = por %p51, %p52
    %p54 = scmp.ne.s32.totalorder %s46, %s48
    %p55 = scmp.eq.s32.totalorder %s17, 1
    %p56 = por %p54, %p55
    %p57 = scmp.ne.s32.totalorder %s48, %s49
    %p58 = scmp.eq.s32.totalorder %s17, 0
    %p59 = por %p57, %p58
    %p60 = scmp.ne.s32.totalorder %s48, %s49
    %p61 = scmp.eq.s32.totalorder %s18, 1
    %p62 = por %p60, %p61
    %p64 = scmp.ne.s32.totalorder %s49, %s63
    %p65 = scmp.eq.s32.totalorder %s18, 0
    %p66 = por %p64, %p65
    %s68 = sadd.s32 %s67, 1
    %p71 = scmp.eq.s32.totalorder %s12, 1
    %p72 = scmp.ne.s32.totalorder %s67, %s69
    %p73 = scmp.eq.s32.totalorder %s12, 0
    %p74 = por %p72, %p73
    %p75 = scmp.ne.s32.totalorder %s67, %s69
    %p76 = scmp.eq.s32.totalorder %s17, 1
    %p77 = por %p75, %p76
    %p78 = scmp.ne.s32.totalorder %s69, %s70
    %p79 = scmp.eq.s32.totalorder %s17, 0
    %p80 = por %p78, %p79
    %p81 = scmp.ne.s32.totalorder %s69, %s70
    %p82 = scmp.eq.s32.totalorder %s18, 1
    %p83 = por %p81, %p82
    %p85 = scmp.ne.s32.totalorder %s70, %s84
    %p86 = scmp.eq.s32.totalorder %s18, 0
    %p87 = por %p85, %p86
    %s89 = sadd.s32 %s88, 1
    %p92 = scmp.eq.s32.totalorder %s12, 1
    %p93 = scmp.ne.s32.totalorder %s88, %s90
    %p94 = scmp.eq.s32.totalorder %s12, 0
    %p95 = por %p93, %p94
    %p96 = scmp.ne.s32.totalorder %s88, %s90
    %p97 = scmp.eq.s32.totalorder %s17, 1
    %p98 = por %p96, %p97
    %p99 = scmp.ne.s32.totalorder %s90, %s91
    %p100 = scmp.eq.s32.totalorder %s17, 0
    %p101 = por %p99, %p100
    %p102 = scmp.ne.s32.totalorder %s90, %s91
    %p103 = scmp.eq.s32.totalorder %s18, 1
    %p104 = por %p102, %p103
    %p106 = scmp.ne.s32.totalorder %s91, %s105
    %p107 = scmp.eq.s32.totalorder %s18, 0
    %p108 = por %p106, %p107
    %s110 = sadd.s32 %s109, 1
    %p113 = scmp.eq.s32.totalorder %s12, 1
    %p114 = scmp.ne.s32.totalorder %s109, %s111
    %p115 = scmp.eq.s32.totalorder %s12, 0
    %p116 = por %p114, %p115
    %p117 = scmp.ne.s32.totalorder %s109, %s111
    %p118 = scmp.eq.s32.totalorder %s17, 1
    %p119 = por %p117, %p118
    %p120 = scmp.ne.s32.totalorder %s111, %s112
    %p121 = scmp.eq.s32.totalorder %s17, 0
    %p122 = por %p120, %p121
    %p123 = scmp.ne.s32.totalorder %s111, %s112
    %p124 = scmp.eq.s32.totalorder %s18, 1
    %p125 = por %p123, %p124
    %p127 = scmp.ne.s32.totalorder %s112, %s126
    %p128 = scmp.eq.s32.totalorder %s18, 0
    %p129 = por %p127, %p128
    %s131 = sadd.s32 %s130, 1
    %p134 = scmp.eq.s32.totalorder %s12, 1
    %p135 = scmp.ne.s32.totalorder %s130, %s132
    %p136 = scmp.eq.s32.totalorder %s12, 0
    %p137 = por %p135, %p136
    %p138 = scmp.ne.s32.totalorder %s130, %s132
    %p139 = scmp.eq.s32.totalorder %s17, 1
    %p140 = por %p138, %p139
    %p141 = scmp.ne.s32.totalorder %s132, %s133
    %p142 = scmp.eq.s32.totalorder %s17, 0
    %p143 = por %p141, %p142
    %p144 = scmp.ne.s32.totalorder %s132, %s133
    %p145 = scmp.eq.s32.totalorder %s18, 1
    %p146 = por %p144, %p145
    %p148 = scmp.ne.s32.totalorder %s133, %s147
    %p149 = scmp.eq.s32.totalorder %s18, 0
    %p150 = por %p148, %p149
    %s151 = ssub.s32 %s12, %s19
    %p152 = scmp.eq.s32.totalorder %s151, 0
    %s154 = sadd.s32 %s153, 1
    %s155 = scalar_select %p152, %s153, %s154
    %p158 = pneg %p152
    %p159 = scmp.eq.s32.totalorder %s12, 1
    %p160 = por %p158, %p159
    %p161 = scmp.ne.s32.totalorder %s153, %s156
    %p162 = scmp.eq.s32.totalorder %s12, 0
    %p163 = por %p161, %p162
    %p164 = scmp.ne.s32.totalorder %s153, %s156
    %p165 = scmp.eq.s32.totalorder %s17, 1
    %p166 = por %p164, %p165
    %p167 = scmp.ne.s32.totalorder %s156, %s157
    %p168 = scmp.eq.s32.totalorder %s17, 0
    %p169 = por %p167, %p168
    %p170 = scmp.ne.s32.totalorder %s156, %s157
    %p171 = scmp.eq.s32.totalorder %s18, 1
    %p172 = por %p170, %p171
    %p174 = scmp.ne.s32.totalorder %s157, %s173
    %p175 = scmp.eq.s32.totalorder %s18, 0
    %p176 = por %p174, %p175
    %p177 = scmp.le.s32.totalorder 1, %s12
    %p178 = scmp.lt.s32.totalorder %s12, 3
    %p179 = pnand %p177, %p178
    %p180 = pneg %p179
    // Predicated region
    $region9: #{discriminator_forward.7} parent=5 // pred_check
      _
    $region10: #{discriminator_forward.7} parent=5 // pred_check_branch
      %182 = sbr.rel (%p179) target = $region12
    $region11: #{discriminator_forward.7} parent=5 // pred_region
      %s183 = ssub.s32 %s12, 1
      // Predicated region
      $region13: #{discriminator_forward.7} parent=11 // pred_check
        %p184 = pneg %p59
      $region14: #{discriminator_forward.7} parent=11 // pred_check_branch
        %186 = sbr.rel (%p184) target = $region16
      $region15: #{discriminator_forward.7} parent=11 // pred_region
        _
      $region16: #{discriminator_forward.7} parent=11 // pred_fallthru
        _
      // Predicated region
      $region17: #{discriminator_forward.7} parent=11 // pred_check
        %p187 = pneg %p80
      $region18: #{discriminator_forward.7} parent=11 // pred_check_branch
        %189 = sbr.rel (%p187) target = $region20
      $region19: #{discriminator_forward.7} parent=11 // pred_region
        _
      $region20: #{discriminator_forward.7} parent=11 // pred_fallthru
        _
      // Predicated region
      $region21: #{discriminator_forward.7} parent=11 // pred_check
        %p190 = pneg %p101
      $region22: #{discriminator_forward.7} parent=11 // pred_check_branch
        %192 = sbr.rel (%p190) target = $region24
      $region23: #{discriminator_forward.7} parent=11 // pred_region
        _
      $region24: #{discriminator_forward.7} parent=11 // pred_fallthru
        _
      // Predicated region
      $region25: #{discriminator_forward.7} parent=11 // pred_check
        %p193 = pneg %p122
      $region26: #{discriminator_forward.7} parent=11 // pred_check_branch
        %195 = sbr.rel (%p193) target = $region28
      $region27: #{discriminator_forward.7} parent=11 // pred_region
        _
      $region28: #{discriminator_forward.7} parent=11 // pred_fallthru
        _
      // Predicated region
      $region29: #{discriminator_forward.7} parent=11 // pred_check
        %p196 = pneg %p143
      $region30: #{discriminator_forward.7} parent=11 // pred_check_branch
        %198 = sbr.rel (%p196) target = $region32
      $region31: #{discriminator_forward.7} parent=11 // pred_region
        _
      $region32: #{discriminator_forward.7} parent=11 // pred_fallthru
        _
    $region12: #{discriminator_forward.7} parent=5 // pred_fallthru
      _
    %p199 = scmp.lt.s32.totalorder %s12, 2
    // Predicated region
    $region33: #{discriminator_forward.7} parent=5 // pred_check
      %p200 = pneg %p199
    $region34: #{discriminator_forward.7} parent=5 // pred_check_branch
      %202 = sbr.rel (%p200) target = $region36
    $region35: #{discriminator_forward.7} parent=5 // pred_region
      // Predicated region
      $region37: #{discriminator_forward.7} parent=35 // pred_check
        %p203 = pneg %p32
      $region38: #{discriminator_forward.7} parent=35 // pred_check_branch
        %205 = sbr.rel (%p203) target = $region40
      $region39: #{discriminator_forward.7} parent=35 // pred_region
        %p206 = scmp.lt.s32.totalorder %s12, 1
        %s207 = scalar_select %p206, %s12, 1
        %s208 = smul.addr %s207, 16
        %s209 = smul.addr %s208, 8
        %s210 = scalar_lea.vmem %s0, %s209
      $region40: #{discriminator_forward.7} parent=35 // pred_fallthru
        _
    $region36: #{discriminator_forward.7} parent=5 // pred_fallthru
      _
    %p211 = scmp.le.s32.totalorder 1, %s12
    %p212 = scmp.lt.s32.totalorder %s12, 3
    %p213 = pnand %p211, %p212
    %p214 = pneg %p213
    // Predicated region
    $region41: #{discriminator_forward.7} parent=5 // pred_check
      _
    $region42: #{discriminator_forward.7} parent=5 // pred_check_branch
      %216 = sbr.rel (%p213) target = $region44
    $region43: #{discriminator_forward.7} parent=5 // pred_region
      %s217 = ssub.s32 %s12, 1
      %p218 = scmp.lt.s32.totalorder %s17, 1
      %s219 = scalar_select %p218, %s17, 1
      %s220 = smul.addr %s219, 16
      %s221 = smul.addr %s220, 8
      %s222 = scalar_lea.vmem %s0, %s221
      %p223 = pneg %p38
      %p224 = pneg %p35
      %p225 = pneg %p59
      %p226 = pneg %p56
      %p227 = pneg %p80
      %p228 = pneg %p77
      %p229 = pneg %p101
      %p230 = pneg %p98
      %p231 = pneg %p122
      %p232 = pneg %p119
      %p233 = pneg %p143
      %p234 = pneg %p140
      %p235 = pneg %p169
      %p236 = pneg %p166
      %p237 = scmp.lt.s32.totalorder %s17, 1
      %s238 = scalar_select %p237, %s17, 1
      %s239 = smul.addr %s238, 3
      %s240 = smul.addr %s239, 8
      %s241 = scalar_lea.vmem %s6, %s240
      %p242 = scmp.lt.s32.totalorder %s17, 1
      %s243 = scalar_select %p242, %s17, 1
      %s244 = smul.addr %s243, 16
      %s245 = smul.addr %s244, 8
      %s246 = scalar_lea.vmem %s0, %s245
      %p247 = scmp.lt.s32.totalorder %s17, 1
      %s248 = scalar_select %p247, %s17, 1
      %s249 = smul.addr %s248, 3
      %s250 = smul.addr %s249, 8
      %s251 = scalar_lea.vmem %s6, %s250
      %v253 = vld [vmem:[%s246] sm:$0xff]
      %v254 = vld [vmem:[%s246 + $0x8] sm:$0xff]
      %v255 = vld [vmem:[%s246 + $0x10] sm:$0xff]
      %v256 = vld [vmem:[%s246 + $0x18] sm:$0xff]
      %v257 = vld [vmem:[%s246 + $0x20] sm:$0xff]
      %v258 = vld [vmem:[%s246 + $0x28] sm:$0xff]
      %v259 = vld [vmem:[%s246 + $0x30] sm:$0xff]
      %v260 = vld [vmem:[%s246 + $0x38] sm:$0xff]
      %v261 = vld [vmem:[%s246 + $0x40] sm:$0xf]
      %v262 = vld [vmem:[%s246 + $0x48] sm:$0xf]
      %v263 = vld [vmem:[%s246 + $0x50] sm:$0xf]
      %v264 = vld [vmem:[%s246 + $0x58] sm:$0xf]
      %v265 = vpack.c.bf16 %v257, %v253
      %v266 = vpack.c.bf16 %v258, %v254
      %v267 = vpack.c.bf16 %v259, %v255
      %v268 = vpack.c.bf16 %v260, %v256
      %v269 = vpack.c.bf16 %v261, %v261
      %v270 = vpack.c.bf16 %v262, %v262
      %v271 = vpack.c.bf16 %v263, %v263
      %v272 = vpack.c.bf16 %v264, %v264
      %v273 = vld [vmem:[%s1] sm:$0xf]
      %v274 = vld [vmem:[%s1 + $0x4] sm:$0xf]
      %v275 = vld [vmem:[%s1 + $0x8] sm:$0xf]
      %v276 = vld [vmem:[%s1 + $0xc] sm:$0xf]
      %v277 = vld [vmem:[%s1 + $0x10] sm:$0xf]
      %v278 = vld [vmem:[%s1 + $0x14] sm:$0xf]
      %v279 = vld [vmem:[%s1 + $0x18] sm:$0xf]
      %v280 = vld [vmem:[%s1 + $0x1c] sm:$0xf]
      %v281 = vld [vmem:[%s1 + $0x20] sm:$0xf]
      %v282 = vld [vmem:[%s1 + $0x24] sm:$0xf]
      %v283 = vld [vmem:[%s1 + $0x28] sm:$0xf]
      %v284 = vld [vmem:[%s1 + $0x2c] sm:$0xf]
      %v285 = vld [vmem:[%s1 + $0x30] sm:$0xf]
      %v286 = vld [vmem:[%s1 + $0x34] sm:$0xf]
      %v287 = vld [vmem:[%s1 + $0x38] sm:$0xf]
      %v288 = vld [vmem:[%s1 + $0x3c] sm:$0xf]
      %v289 = vld [vmem:[%s1 + $0x40] sm:$0xf]
      %v290 = vld [vmem:[%s1 + $0x44] sm:$0xf]
      %v291 = vld [vmem:[%s1 + $0x48] sm:$0xf]
      %v292 = vld [vmem:[%s1 + $0x4c] sm:$0xf]
      %v293 = vld [vmem:[%s1 + $0x50] sm:$0xf]
      %v294 = vld [vmem:[%s1 + $0x54] sm:$0xf]
      %v295 = vld [vmem:[%s1 + $0x58] sm:$0xf]
      %v296 = vld [vmem:[%s1 + $0x5c] sm:$0xf]
      %v297 = vld [vmem:[%s1 + $0x60] sm:$0xf]
      %v298 = vld [vmem:[%s1 + $0x64] sm:$0xf]
      %v299 = vld [vmem:[%s1 + $0x68] sm:$0xf]
      %v300 = vld [vmem:[%s1 + $0x6c] sm:$0xf]
      %v301 = vld [vmem:[%s1 + $0x70] sm:$0xf]
      %v302 = vld [vmem:[%s1 + $0x74] sm:$0xf]
      %v303 = vld [vmem:[%s1 + $0x78] sm:$0xf]
      %v304 = vld [vmem:[%s1 + $0x7c] sm:$0xf]
      %v305 = vld [vmem:[%s1 + $0x80] sm:$0xf]
      %v306 = vld [vmem:[%s1 + $0x84] sm:$0xf]
      %v307 = vld [vmem:[%s1 + $0x88] sm:$0xf]
      %v308 = vld [vmem:[%s1 + $0x8c] sm:$0xf]
      %v309 = vld [vmem:[%s1 + $0x90] sm:$0xf]
      %v310 = vld [vmem:[%s1 + $0x94] sm:$0xf]
      %v311 = vld [vmem:[%s1 + $0x98] sm:$0xf]
      %v312 = vld [vmem:[%s1 + $0x9c] sm:$0xf]
      %v313 = vld [vmem:[%s1 + $0xa0] sm:$0xf]
      %v314 = vld [vmem:[%s1 + $0xa4] sm:$0xf]
      %v315 = vld [vmem:[%s1 + $0xa8] sm:$0xf]
      %v316 = vld [vmem:[%s1 + $0xac] sm:$0xf]
      %v317 = vld [vmem:[%s1 + $0xb0] sm:$0xf]
      %v318 = vld [vmem:[%s1 + $0xb4] sm:$0xf]
      %v319 = vld [vmem:[%s1 + $0xb8] sm:$0xf]
      %v320 = vld [vmem:[%s1 + $0xbc] sm:$0xf]
      %v321 = vld [vmem:[%s1 + $0xc0] sm:$0xf]
      %v322 = vld [vmem:[%s1 + $0xc4] sm:$0xf]
      %v323 = vld [vmem:[%s1 + $0xc8] sm:$0xf]
      %v324 = vld [vmem:[%s1 + $0xcc] sm:$0xf]
      %v325 = vld [vmem:[%s1 + $0xd0] sm:$0xf]
      %v326 = vld [vmem:[%s1 + $0xd4] sm:$0xf]
      %v327 = vld [vmem:[%s1 + $0xd8] sm:$0xf]
      %v328 = vld [vmem:[%s1 + $0xdc] sm:$0xf]
      %v329 = vld [vmem:[%s1 + $0xe0] sm:$0xf]
      %v330 = vld [vmem:[%s1 + $0xe4] sm:$0xf]
      %v331 = vld [vmem:[%s1 + $0xe8] sm:$0xf]
      %v332 = vld [vmem:[%s1 + $0xec] sm:$0xf]
      %v333 = vld [vmem:[%s1 + $0xf0] sm:$0xf]
      %v334 = vld [vmem:[%s1 + $0xf4] sm:$0xf]
      %v335 = vld [vmem:[%s1 + $0xf8] sm:$0xf]
      %v336 = vld [vmem:[%s1 + $0xfc] sm:$0xf]
      %v337 = vld [vmem:[%s246] sm:$0xfe]
      %v338 = vld [vmem:[%s246 + $0x8] sm:$0xfe]
      %v339 = vld [vmem:[%s246 + $0x10] sm:$0xfe]
      %v340 = vld [vmem:[%s246 + $0x18] sm:$0xfe]
      %v341 = vld [vmem:[%s246 + $0x40] sm:$0x1f]
      %v342 = vld [vmem:[%s246 + $0x48] sm:$0x1f]
      %v343 = vld [vmem:[%s246 + $0x50] sm:$0x1f]
      %v344 = vld [vmem:[%s246 + $0x58] sm:$0x1f]
      %v345 = vpack.c.bf16 %v257, %v337
      %v346 = vpack.c.bf16 %v258, %v338
      %v347 = vpack.c.bf16 %v259, %v339
      %v348 = vpack.c.bf16 %v260, %v340
      %v349 = vpack.c.bf16 %v341, %v341
      %v350 = vpack.c.bf16 %v342, %v342
      %v351 = vpack.c.bf16 %v343, %v343
      %v352 = vpack.c.bf16 %v344, %v344
      %v353 = vld [vmem:[%s1 + $0x100] sm:$0xf]
      %v354 = vld [vmem:[%s1 + $0x104] sm:$0xf]
      %v355 = vld [vmem:[%s1 + $0x108] sm:$0xf]
      %v356 = vld [vmem:[%s1 + $0x10c] sm:$0xf]
      %v357 = vld [vmem:[%s1 + $0x110] sm:$0xf]
      %v358 = vld [vmem:[%s1 + $0x114] sm:$0xf]
      %v359 = vld [vmem:[%s1 + $0x118] sm:$0xf]
      %v360 = vld [vmem:[%s1 + $0x11c] sm:$0xf]
      %v361 = vld [vmem:[%s1 + $0x120] sm:$0xf]
      %v362 = vld [vmem:[%s1 + $0x124] sm:$0xf]
      %v363 = vld [vmem:[%s1 + $0x128] sm:$0xf]
      %v364 = vld [vmem:[%s1 + $0x12c] sm:$0xf]
      %v365 = vld [vmem:[%s1 + $0x130] sm:$0xf]
      %v366 = vld [vmem:[%s1 + $0x134] sm:$0xf]
      %v367 = vld [vmem:[%s1 + $0x138] sm:$0xf]
      %v368 = vld [vmem:[%s1 + $0x13c] sm:$0xf]
      %v369 = vld [vmem:[%s1 + $0x140] sm:$0xf]
      %v370 = vld [vmem:[%s1 + $0x144] sm:$0xf]
      %v371 = vld [vmem:[%s1 + $0x148] sm:$0xf]
      %v372 = vld [vmem:[%s1 + $0x14c] sm:$0xf]
      %v373 = vld [vmem:[%s1 + $0x150] sm:$0xf]
      %v374 = vld [vmem:[%s1 + $0x154] sm:$0xf]
      %v375 = vld [vmem:[%s1 + $0x158] sm:$0xf]
      %v376 = vld [vmem:[%s1 + $0x15c] sm:$0xf]
      %v377 = vld [vmem:[%s1 + $0x160] sm:$0xf]
      %v378 = vld [vmem:[%s1 + $0x164] sm:$0xf]
      %v379 = vld [vmem:[%s1 + $0x168] sm:$0xf]
      %v380 = vld [vmem:[%s1 + $0x16c] sm:$0xf]
      %v381 = vld [vmem:[%s1 + $0x170] sm:$0xf]
      %v382 = vld [vmem:[%s1 + $0x174] sm:$0xf]
      %v383 = vld [vmem:[%s1 + $0x178] sm:$0xf]
      %v384 = vld [vmem:[%s1 + $0x17c] sm:$0xf]
      %v385 = vld [vmem:[%s1 + $0x180] sm:$0xf]
      %v386 = vld [vmem:[%s1 + $0x184] sm:$0xf]
      %v387 = vld [vmem:[%s1 + $0x188] sm:$0xf]
      %v388 = vld [vmem:[%s1 + $0x18c] sm:$0xf]
      %v389 = vld [vmem:[%s1 + $0x190] sm:$0xf]
      %v390 = vld [vmem:[%s1 + $0x194] sm:$0xf]
      %v391 = vld [vmem:[%s1 + $0x198] sm:$0xf]
      %v392 = vld [vmem:[%s1 + $0x19c] sm:$0xf]
      %v393 = vld [vmem:[%s1 + $0x1a0] sm:$0xf]
      %v394 = vld [vmem:[%s1 + $0x1a4] sm:$0xf]
      %v395 = vld [vmem:[%s1 + $0x1a8] sm:$0xf]
      %v396 = vld [vmem:[%s1 + $0x1ac] sm:$0xf]
      %v397 = vld [vmem:[%s1 + $0x1b0] sm:$0xf]
      %v398 = vld [vmem:[%s1 + $0x1b4] sm:$0xf]
      %v399 = vld [vmem:[%s1 + $0x1b8] sm:$0xf]
      %v400 = vld [vmem:[%s1 + $0x1bc] sm:$0xf]
      %v401 = vld [vmem:[%s1 + $0x1c0] sm:$0xf]
      %v402 = vld [vmem:[%s1 + $0x1c4] sm:$0xf]
      %v403 = vld [vmem:[%s1 + $0x1c8] sm:$0xf]
      %v404 = vld [vmem:[%s1 + $0x1cc] sm:$0xf]
      %v405 = vld [vmem:[%s1 + $0x1d0] sm:$0xf]
      %v406 = vld [vmem:[%s1 + $0x1d4] sm:$0xf]
      %v407 = vld [vmem:[%s1 + $0x1d8] sm:$0xf]
      %v408 = vld [vmem:[%s1 + $0x1dc] sm:$0xf]
      %v409 = vld [vmem:[%s1 + $0x1e0] sm:$0xf]
      %v410 = vld [vmem:[%s1 + $0x1e4] sm:$0xf]
      %v411 = vld [vmem:[%s1 + $0x1e8] sm:$0xf]
      %v412 = vld [vmem:[%s1 + $0x1ec] sm:$0xf]
      %v413 = vld [vmem:[%s1 + $0x1f0] sm:$0xf]
      %v414 = vld [vmem:[%s1 + $0x1f4] sm:$0xf]
      %v415 = vld [vmem:[%s1 + $0x1f8] sm:$0xf]
      %v416 = vld [vmem:[%s1 + $0x1fc] sm:$0xf]
      %vm417 = vsmask.f32 7424
      %v419 = vshrl.u32 %v345, 16
      %v421 = vshll.u32 %v345, 16
      %v423 = vrot.slane %v421, 1
      %v424 = vor.u32 %v419, %v423
      %v426 = vshll.u32 %v349, 16
      %v428 = vrot.slane %v426, 1
      %v429 = vsel %vm417, %v424, %v428
      %v431 = vshrl.u32 %v346, 16
      %v433 = vshll.u32 %v346, 16
      %v435 = vrot.slane %v433, 1
      %v436 = vor.u32 %v431, %v435
      %v438 = vshll.u32 %v350, 16
      %v440 = vrot.slane %v438, 1
      %v441 = vsel %vm417, %v436, %v440
      %v443 = vshrl.u32 %v347, 16
      %v445 = vshll.u32 %v347, 16
      %v447 = vrot.slane %v445, 1
      %v448 = vor.u32 %v443, %v447
      %v450 = vshll.u32 %v351, 16
      %v452 = vrot.slane %v450, 1
      %v453 = vsel %vm417, %v448, %v452
      %v455 = vshrl.u32 %v348, 16
      %v457 = vshll.u32 %v348, 16
      %v459 = vrot.slane %v457, 1
      %v460 = vor.u32 %v455, %v459
      %v462 = vshll.u32 %v352, 16
      %v464 = vrot.slane %v462, 1
      %v465 = vsel %vm417, %v460, %v464
      %v466 = vshrl.u32 %v349, 16
      %v468 = vor.u32 %v466, %v428
      %v469 = vshrl.u32 %v350, 16
      %v471 = vor.u32 %v469, %v440
      %v472 = vshrl.u32 %v351, 16
      %v474 = vor.u32 %v472, %v452
      %v475 = vshrl.u32 %v352, 16
      %v477 = vor.u32 %v475, %v464
      %v550 = vunpack.c.l.b16 %v353
      %v551 = vunpack.c.l.b16 %v354
      %v552 = vunpack.c.l.b16 %v355
      %v553 = vunpack.c.l.b16 %v356
      %v554 = vunpack.c.l.b16 %v357
      %v555 = vunpack.c.l.b16 %v358
      %v556 = vunpack.c.l.b16 %v359
      %v557 = vunpack.c.l.b16 %v360
      %v558 = vunpack.c.l.b16 %v361
      %v559 = vunpack.c.l.b16 %v362
      %v560 = vunpack.c.l.b16 %v363
      %v561 = vunpack.c.l.b16 %v364
      %v562 = vunpack.c.l.b16 %v365
      %v563 = vunpack.c.l.b16 %v366
      %v564 = vunpack.c.l.b16 %v367
      %v565 = vunpack.c.l.b16 %v368
      %v566 = vunpack.c.l.b16 %v369
      %v567 = vunpack.c.l.b16 %v370
      %v568 = vunpack.c.l.b16 %v371
      %v569 = vunpack.c.l.b16 %v372
      %v570 = vunpack.c.l.b16 %v373
      %v571 = vunpack.c.l.b16 %v374
      %v572 = vunpack.c.l.b16 %v375
      %v573 = vunpack.c.l.b16 %v376
      %v574 = vunpack.c.l.b16 %v377
      %v575 = vunpack.c.l.b16 %v378
      %v576 = vunpack.c.l.b16 %v379
      %v577 = vunpack.c.l.b16 %v380
      %v578 = vunpack.c.l.b16 %v381
      %v579 = vunpack.c.l.b16 %v382
      %v580 = vunpack.c.l.b16 %v383
      %v581 = vunpack.c.l.b16 %v384
      %v582 = vunpack.c.l.b16 %v385
      %v583 = vunpack.c.l.b16 %v386
      %v584 = vunpack.c.l.b16 %v387
      %v585 = vunpack.c.l.b16 %v388
      %v586 = vunpack.c.l.b16 %v389
      %v587 = vunpack.c.l.b16 %v390
      %v588 = vunpack.c.l.b16 %v391
      %v589 = vunpack.c.l.b16 %v392
      %v590 = vunpack.c.l.b16 %v393
      %v591 = vunpack.c.l.b16 %v394
      %v592 = vunpack.c.l.b16 %v395
      %v593 = vunpack.c.l.b16 %v396
      %v594 = vunpack.c.l.b16 %v397
      %v595 = vunpack.c.l.b16 %v398
      %v596 = vunpack.c.l.b16 %v399
      %v597 = vunpack.c.l.b16 %v400
      %v598 = vunpack.c.l.b16 %v401
      %v599 = vunpack.c.l.b16 %v402
      %v600 = vunpack.c.l.b16 %v403
      %v601 = vunpack.c.l.b16 %v404
      %v602 = vunpack.c.l.b16 %v405
      %v603 = vunpack.c.l.b16 %v406
      %v604 = vunpack.c.l.b16 %v407
      %v605 = vunpack.c.l.b16 %v408
      %v606 = vunpack.c.l.b16 %v409
      %v607 = vunpack.c.l.b16 %v410
      %v608 = vunpack.c.l.b16 %v411
      %v609 = vunpack.c.l.b16 %v412
      %v610 = vunpack.c.l.b16 %v413
      %v611 = vunpack.c.l.b16 %v414
      %v612 = vunpack.c.l.b16 %v415
      %v613 = vunpack.c.l.b16 %v416
      %v614 = vpack.c.b16 %v551, %v550
      %v615 = vpack.c.b16 %v553, %v552
      %v616 = vpack.c.b16 %v555, %v554
      %v617 = vpack.c.b16 %v557, %v556
      %v618 = vpack.c.b16 %v559, %v558
      %v619 = vpack.c.b16 %v561, %v560
      %v620 = vpack.c.b16 %v563, %v562
      %v621 = vpack.c.b16 %v565, %v564
      %v622 = vpack.c.b16 %v567, %v566
      %v623 = vpack.c.b16 %v569, %v568
      %v624 = vpack.c.b16 %v571, %v570
      %v625 = vpack.c.b16 %v573, %v572
      %v626 = vpack.c.b16 %v575, %v574
      %v627 = vpack.c.b16 %v577, %v576
      %v628 = vpack.c.b16 %v579, %v578
      %v629 = vpack.c.b16 %v581, %v580
      %v630 = vpack.c.b16 %v583, %v582
      %v631 = vpack.c.b16 %v585, %v584
      %v632 = vpack.c.b16 %v587, %v586
      %v633 = vpack.c.b16 %v589, %v588
      %v634 = vpack.c.b16 %v591, %v590
      %v635 = vpack.c.b16 %v593, %v592
      %v636 = vpack.c.b16 %v595, %v594
      %v637 = vpack.c.b16 %v597, %v596
      %v638 = vpack.c.b16 %v599, %v598
      %v639 = vpack.c.b16 %v601, %v600
      %v640 = vpack.c.b16 %v603, %v602
      %v641 = vpack.c.b16 %v605, %v604
      %v642 = vpack.c.b16 %v607, %v606
      %v643 = vpack.c.b16 %v609, %v608
      %v644 = vpack.c.b16 %v611, %v610
      %v645 = vpack.c.b16 %v613, %v612
      %678 = vmatprep.subr.bf16.mxu0 0
      %679 = vmatpush1.bf16.msra.mxu0 %v614
      %680 = vmatprep.subr.bf16.mxu0 0
      %681 = vmatpush1.bf16.msra.mxu0 %v615
      %682 = vmatprep.subr.bf16.mxu0 0
      %683 = vmatpush1.bf16.msra.mxu0 %v616
      %684 = vmatprep.subr.bf16.mxu0 0
      %685 = vmatpush1.bf16.msra.mxu0 %v617
      %686 = vmatprep.subr.bf16.mxu0 0
      %687 = vmatpush1.bf16.msra.mxu0 %v618
      %688 = vmatprep.subr.bf16.mxu0 0
      %689 = vmatpush1.bf16.msra.mxu0 %v619
      %690 = vmatprep.subr.bf16.mxu0 0
      %691 = vmatpush1.bf16.msra.mxu0 %v620
      %692 = vmatprep.subr.bf16.mxu0 0
      %693 = vmatpush1.bf16.msra.mxu0 %v621
      %694 = vmatprep.subr.bf16.mxu0 0
      %695 = vmatpush1.bf16.msra.mxu0 %v622
      %696 = vmatprep.subr.bf16.mxu0 0
      %697 = vmatpush1.bf16.msra.mxu0 %v623
      %698 = vmatprep.subr.bf16.mxu0 0
      %699 = vmatpush1.bf16.msra.mxu0 %v624
      %700 = vmatprep.subr.bf16.mxu0 0
      %701 = vmatpush1.bf16.msra.mxu0 %v625
      %702 = vmatprep.subr.bf16.mxu0 0
      %703 = vmatpush1.bf16.msra.mxu0 %v626
      %704 = vmatprep.subr.bf16.mxu0 0
      %705 = vmatpush1.bf16.msra.mxu0 %v627
      %706 = vmatprep.subr.bf16.mxu0 0
      %707 = vmatpush1.bf16.msra.mxu0 %v628
      %708 = vmatprep.subr.bf16.mxu0 0
      %709 = vmatpush1.bf16.msra.mxu0 %v629
      %710 = vmatprep.mubr.bf16.mxu0 %v441
      %711 = vmatmul.mubr.bf16.gmra.mrb[0].mxu0 %v429
      %v712 = vpop.f32.mrb[0].mxu0
      %v713 = vadd.f32 0.0, %v712
      %v714 = vpop.f32.mrb[0].mxu0
      %v715 = vpop.f32.mrb[0].mxu0
      %v716 = vadd.f32 0.0, %v715
      %v717 = vpop.f32.mrb[0].mxu0
      %718 = vmatprep.mubr.bf16.mxu0 %v471
      %719 = vmatmul.mubr.bf16.gmra.mrb[0].mxu0 %v468
      %v720 = vpop.f32.mrb[0].mxu0
      %v721 = vadd.f32 0.0, %v720
      %v722 = vpop.f32.mrb[0].mxu0
      %v723 = vpop.f32.mrb[0].mxu0
      %v724 = vpop.f32.mrb[0].mxu0
      %725 = vdwg.mxu0
      %726 = vmatprep.subr.bf16.mxu0 0
      %727 = vmatpush1.bf16.msra.mxu0 %v630
      %728 = vmatprep.subr.bf16.mxu0 0
      %729 = vmatpush1.bf16.msra.mxu0 %v631
      %730 = vmatprep.subr.bf16.mxu0 0
      %731 = vmatpush1.bf16.msra.mxu0 %v632
      %732 = vmatprep.subr.bf16.mxu0 0
      %733 = vmatpush1.bf16.msra.mxu0 %v633
      %734 = vmatprep.subr.bf16.mxu0 0
      %735 = vmatpush1.bf16.msra.mxu0 %v634
      %736 = vmatprep.subr.bf16.mxu0 0
      %737 = vmatpush1.bf16.msra.mxu0 %v635
      %738 = vmatprep.subr.bf16.mxu0 0
      %739 = vmatpush1.bf16.msra.mxu0 %v636
      %740 = vmatprep.subr.bf16.mxu0 0
      %741 = vmatpush1.bf16.msra.mxu0 %v637
      %742 = vmatprep.subr.bf16.mxu0 0
      %743 = vmatpush1.bf16.msra.mxu0 %v638
      %744 = vmatprep.subr.bf16.mxu0 0
      %745 = vmatpush1.bf16.msra.mxu0 %v639
      %746 = vmatprep.subr.bf16.mxu0 0
      %747 = vmatpush1.bf16.msra.mxu0 %v640
      %748 = vmatprep.subr.bf16.mxu0 0
      %749 = vmatpush1.bf16.msra.mxu0 %v641
      %750 = vmatprep.subr.bf16.mxu0 0
      %751 = vmatpush1.bf16.msra.mxu0 %v642
      %752 = vmatprep.subr.bf16.mxu0 0
      %753 = vmatpush1.bf16.msra.mxu0 %v643
      %754 = vmatprep.subr.bf16.mxu0 0
      %755 = vmatpush1.bf16.msra.mxu0 %v644
      %756 = vmatprep.subr.bf16.mxu0 0
      %757 = vmatpush1.bf16.msra.mxu0 %v645
      %758 = vmatprep.mubr.bf16.mxu0 %v465
      %759 = vmatmul.mubr.bf16.gmra.mrb[0].mxu0 %v453
      %v760 = vpop.f32.mrb[0].mxu0
      %v761 = vadd.f32 %v713, %v760
      %v762 = vpop.f32.mrb[0].mxu0
      %v763 = vpop.f32.mrb[0].mxu0
      %v764 = vadd.f32 %v716, %v763
      %v765 = vpop.f32.mrb[0].mxu0
      %766 = vmatprep.mubr.bf16.mxu0 %v477
      %767 = vmatmul.mubr.bf16.gmra.mrb[0].mxu0 %v474
      %v768 = vpop.f32.mrb[0].mxu0
      %v769 = vadd.f32 %v721, %v768
      %v770 = vpop.f32.mrb[0].mxu0
      %v771 = vpop.f32.mrb[0].mxu0
      %v772 = vpop.f32.mrb[0].mxu0
      %773 = vdwg.mxu0
      %v838 = vunpack.c.l.b16 %v273
      %v839 = vunpack.c.l.b16 %v274
      %v840 = vunpack.c.l.b16 %v275
      %v841 = vunpack.c.l.b16 %v276
      %v842 = vunpack.c.l.b16 %v277
      %v843 = vunpack.c.l.b16 %v278
      %v844 = vunpack.c.l.b16 %v279
      %v845 = vunpack.c.l.b16 %v280
      %v846 = vunpack.c.l.b16 %v281
      %v847 = vunpack.c.l.b16 %v282
      %v848 = vunpack.c.l.b16 %v283
      %v849 = vunpack.c.l.b16 %v284
      %v850 = vunpack.c.l.b16 %v285
      %v851 = vunpack.c.l.b16 %v286
      %v852 = vunpack.c.l.b16 %v287
      %v853 = vunpack.c.l.b16 %v288
      %v854 = vunpack.c.l.b16 %v289
      %v855 = vunpack.c.l.b16 %v290
      %v856 = vunpack.c.l.b16 %v291
      %v857 = vunpack.c.l.b16 %v292
      %v858 = vunpack.c.l.b16 %v293
      %v859 = vunpack.c.l.b16 %v294
      %v860 = vunpack.c.l.b16 %v295
      %v861 = vunpack.c.l.b16 %v296
      %v862 = vunpack.c.l.b16 %v297
      %v863 = vunpack.c.l.b16 %v298
      %v864 = vunpack.c.l.b16 %v299
      %v865 = vunpack.c.l.b16 %v300
      %v866 = vunpack.c.l.b16 %v301
      %v867 = vunpack.c.l.b16 %v302
      %v868 = vunpack.c.l.b16 %v303
      %v869 = vunpack.c.l.b16 %v304
      %v870 = vunpack.c.l.b16 %v305
      %v871 = vunpack.c.l.b16 %v306
      %v872 = vunpack.c.l.b16 %v307
      %v873 = vunpack.c.l.b16 %v308
      %v874 = vunpack.c.l.b16 %v309
      %v875 = vunpack.c.l.b16 %v310
      %v876 = vunpack.c.l.b16 %v311
      %v877 = vunpack.c.l.b16 %v312
      %v878 = vunpack.c.l.b16 %v313
      %v879 = vunpack.c.l.b16 %v314
      %v880 = vunpack.c.l.b16 %v315
      %v881 = vunpack.c.l.b16 %v316
      %v882 = vunpack.c.l.b16 %v317
      %v883 = vunpack.c.l.b16 %v318
      %v884 = vunpack.c.l.b16 %v319
      %v885 = vunpack.c.l.b16 %v320
      %v886 = vunpack.c.l.b16 %v321
      %v887 = vunpack.c.l.b16 %v322
      %v888 = vunpack.c.l.b16 %v323
      %v889 = vunpack.c.l.b16 %v324
      %v890 = vunpack.c.l.b16 %v325
      %v891 = vunpack.c.l.b16 %v326
      %v892 = vunpack.c.l.b16 %v327
      %v893 = vunpack.c.l.b16 %v328
      %v894 = vunpack.c.l.b16 %v329
      %v895 = vunpack.c.l.b16 %v330
      %v896 = vunpack.c.l.b16 %v331
      %v897 = vunpack.c.l.b16 %v332
      %v898 = vunpack.c.l.b16 %v333
      %v899 = vunpack.c.l.b16 %v334
      %v900 = vunpack.c.l.b16 %v335
      %v901 = vunpack.c.l.b16 %v336
      %v902 = vpack.c.b16 %v839, %v838
      %v903 = vpack.c.b16 %v841, %v840
      %v904 = vpack.c.b16 %v843, %v842
      %v905 = vpack.c.b16 %v845, %v844
      %v906 = vpack.c.b16 %v847, %v846
      %v907 = vpack.c.b16 %v849, %v848
      %v908 = vpack.c.b16 %v851, %v850
      %v909 = vpack.c.b16 %v853, %v852
      %v910 = vpack.c.b16 %v855, %v854
      %v911 = vpack.c.b16 %v857, %v856
      %v912 = vpack.c.b16 %v859, %v858
      %v913 = vpack.c.b16 %v861, %v860
      %v914 = vpack.c.b16 %v863, %v862
      %v915 = vpack.c.b16 %v865, %v864
      %v916 = vpack.c.b16 %v867, %v866
      %v917 = vpack.c.b16 %v869, %v868
      %v918 = vpack.c.b16 %v871, %v870
      %v919 = vpack.c.b16 %v873, %v872
      %v920 = vpack.c.b16 %v875, %v874
      %v921 = vpack.c.b16 %v877, %v876
      %v922 = vpack.c.b16 %v879, %v878
      %v923 = vpack.c.b16 %v881, %v880
      %v924 = vpack.c.b16 %v883, %v882
      %v925 = vpack.c.b16 %v885, %v884
      %v926 = vpack.c.b16 %v887, %v886
      %v927 = vpack.c.b16 %v889, %v888
      %v928 = vpack.c.b16 %v891, %v890
      %v929 = vpack.c.b16 %v893, %v892
      %v930 = vpack.c.b16 %v895, %v894
      %v931 = vpack.c.b16 %v897, %v896
      %v932 = vpack.c.b16 %v899, %v898
      %v933 = vpack.c.b16 %v901, %v900
      %966 = vmatprep.subr.bf16.mxu0 0
      %967 = vmatpush1.bf16.msra.mxu0 %v902
      %968 = vmatprep.subr.bf16.mxu0 0
      %969 = vmatpush1.bf16.msra.mxu0 %v903
      %970 = vmatprep.subr.bf16.mxu0 0
      %971 = vmatpush1.bf16.msra.mxu0 %v904
      %972 = vmatprep.subr.bf16.mxu0 0
      %973 = vmatpush1.bf16.msra.mxu0 %v905
      %974 = vmatprep.subr.bf16.mxu0 0
      %975 = vmatpush1.bf16.msra.mxu0 %v906
      %976 = vmatprep.subr.bf16.mxu0 0
      %977 = vmatpush1.bf16.msra.mxu0 %v907
      %978 = vmatprep.subr.bf16.mxu0 0
      %979 = vmatpush1.bf16.msra.mxu0 %v908
      %980 = vmatprep.subr.bf16.mxu0 0
      %981 = vmatpush1.bf16.msra.mxu0 %v909
      %982 = vmatprep.subr.bf16.mxu0 0
      %983 = vmatpush1.bf16.msra.mxu0 %v910
      %984 = vmatprep.subr.bf16.mxu0 0
      %985 = vmatpush1.bf16.msra.mxu0 %v911
      %986 = vmatprep.subr.bf16.mxu0 0
      %987 = vmatpush1.bf16.msra.mxu0 %v912
      %988 = vmatprep.subr.bf16.mxu0 0
      %989 = vmatpush1.bf16.msra.mxu0 %v913
      %990 = vmatprep.subr.bf16.mxu0 0
      %991 = vmatpush1.bf16.msra.mxu0 %v914
      %992 = vmatprep.subr.bf16.mxu0 0
      %993 = vmatpush1.bf16.msra.mxu0 %v915
      %994 = vmatprep.subr.bf16.mxu0 0
      %995 = vmatpush1.bf16.msra.mxu0 %v916
      %996 = vmatprep.subr.bf16.mxu0 0
      %997 = vmatpush1.bf16.msra.mxu0 %v917
      %998 = vmatprep.mubr.bf16.mxu0 %v266
      %999 = vmatmul.mubr.bf16.gmra.mrb[0].mxu0 %v265
      %v1000 = vpop.f32.mrb[0].mxu0
      %v1001 = vadd.f32 %v761, %v1000
      %v1002 = vpop.f32.mrb[0].mxu0
      %v1003 = vpop.f32.mrb[0].mxu0
      %v1004 = vadd.f32 %v764, %v1003
      %v1005 = vpop.f32.mrb[0].mxu0
      %1006 = vmatprep.mubr.bf16.mxu0 %v270
      %1007 = vmatmul.mubr.bf16.gmra.mrb[0].mxu0 %v269
      %v1008 = vpop.f32.mrb[0].mxu0
      %v1009 = vadd.f32 %v769, %v1008
      %v1010 = vpop.f32.mrb[0].mxu0
      %v1011 = vpop.f32.mrb[0].mxu0
      %v1012 = vpop.f32.mrb[0].mxu0
      %1013 = vdwg.mxu0
      %1014 = vmatprep.subr.bf16.mxu0 0
      %1015 = vmatpush1.bf16.msra.mxu0 %v918
      %1016 = vmatprep.subr.bf16.mxu0 0
      %1017 = vmatpush1.bf16.msra.mxu0 %v919
      %1018 = vmatprep.subr.bf16.mxu0 0
      %1019 = vmatpush1.bf16.msra.mxu0 %v920
      %1020 = vmatprep.subr.bf16.mxu0 0
      %1021 = vmatpush1.bf16.msra.mxu0 %v921
      %1022 = vmatprep.subr.bf16.mxu0 0
      %1023 = vmatpush1.bf16.msra.mxu0 %v922
      %1024 = vmatprep.subr.bf16.mxu0 0
      %1025 = vmatpush1.bf16.msra.mxu0 %v923
      %1026 = vmatprep.subr.bf16.mxu0 0
      %1027 = vmatpush1.bf16.msra.mxu0 %v924
      %1028 = vmatprep.subr.bf16.mxu0 0
      %1029 = vmatpush1.bf16.msra.mxu0 %v925
      %1030 = vmatprep.subr.bf16.mxu0 0
      %1031 = vmatpush1.bf16.msra.mxu0 %v926
      %1032 = vmatprep.subr.bf16.mxu0 0
      %1033 = vmatpush1.bf16.msra.mxu0 %v927
      %1034 = vmatprep.subr.bf16.mxu0 0
      %1035 = vmatpush1.bf16.msra.mxu0 %v928
      %1036 = vmatprep.subr.bf16.mxu0 0
      %1037 = vmatpush1.bf16.msra.mxu0 %v929
      %1038 = vmatprep.subr.bf16.mxu0 0
      %1039 = vmatpush1.bf16.msra.mxu0 %v930
      %1040 = vmatprep.subr.bf16.mxu0 0
      %1041 = vmatpush1.bf16.msra.mxu0 %v931
      %1042 = vmatprep.subr.bf16.mxu0 0
      %1043 = vmatpush1.bf16.msra.mxu0 %v932
      %1044 = vmatprep.subr.bf16.mxu0 0
      %1045 = vmatpush1.bf16.msra.mxu0 %v933
      %1046 = vmatprep.mubr.bf16.mxu0 %v268
      %1047 = vmatmul.mubr.bf16.gmra.mrb[0].mxu0 %v267
      %v1048 = vpop.f32.mrb[0].mxu0
      %v1049 = vadd.f32 %v1001, %v1048
      %v1050 = vpop.f32.mrb[0].mxu0
      %v1051 = vpop.f32.mrb[0].mxu0
      %v1052 = vadd.f32 %v1004, %v1051
      %v1053 = vpop.f32.mrb[0].mxu0
      %1054 = vmatprep.mubr.bf16.mxu0 %v272
      %1055 = vmatmul.mubr.bf16.gmra.mrb[0].mxu0 %v271
      %v1056 = vpop.f32.mrb[0].mxu0
      %v1057 = vadd.f32 %v1009, %v1056
      %v1058 = vpop.f32.mrb[0].mxu0
      %v1059 = vpop.f32.mrb[0].mxu0
      %v1060 = vpop.f32.mrb[0].mxu0
      %1061 = vdwg.mxu0
      %v1062 = vld [vmem:[%s246] sm:$0xe0]
      %v1063 = vld [vmem:[%s246 + $0x8] sm:$0xe0]
      %v1064 = vld [vmem:[%s246 + $0x10] sm:$0xe0]
      %v1065 = vld [vmem:[%s246 + $0x18] sm:$0xe0]
      %v1066 = vld [vmem:[%s246 + $0x20] sm:$0xff]
      %v1067 = vld [vmem:[%s246 + $0x28] sm:$0xff]
      %v1068 = vld [vmem:[%s246 + $0x30] sm:$0xff]
      %v1069 = vld [vmem:[%s246 + $0x38] sm:$0xff]
      %v1070 = vld [vmem:[%s246 + $0x40] sm:$0xff]
      %v1071 = vld [vmem:[%s246 + $0x48] sm:$0xff]
      %v1072 = vld [vmem:[%s246 + $0x50] sm:$0xff]
      %v1073 = vld [vmem:[%s246 + $0x58] sm:$0xff]
      %v1074 = vld [vmem:[%s246 + $0x60] sm:$0x1]
      %v1075 = vld [vmem:[%s246 + $0x68] sm:$0x1]
      %v1076 = vld [vmem:[%s246 + $0x70] sm:$0x1]
      %v1077 = vld [vmem:[%s246 + $0x78] sm:$0x1]
      %v1078 = vpack.c.bf16 %v1066, %v1062
      %v1079 = vpack.c.bf16 %v1067, %v1063
      %v1080 = vpack.c.bf16 %v1068, %v1064
      %v1081 = vpack.c.bf16 %v1069, %v1065
      %v1082 = vpack.c.bf16 %v1074, %v1070
      %v1083 = vpack.c.bf16 %v1075, %v1071
      %v1084 = vpack.c.bf16 %v1076, %v1072
      %v1085 = vpack.c.bf16 %v1077, %v1073
      %v1086 = vld [vmem:[%s1 + $0x200] sm:$0xf]
      %v1087 = vld [vmem:[%s1 + $0x204] sm:$0xf]
      %v1088 = vld [vmem:[%s1 + $0x208] sm:$0xf]
      %v1089 = vld [vmem:[%s1 + $0x20c] sm:$0xf]
      %v1090 = vld [vmem:[%s1 + $0x210] sm:$0xf]
      %v1091 = vld [vmem:[%s1 + $0x214] sm:$0xf]
      %v1092 = vld [vmem:[%s1 + $0x218] sm:$0xf]
      %v1093 = vld [vmem:[%s1 + $0x21c] sm:$0xf]
      %v1094 = vld [vmem:[%s1 + $0x220] sm:$0xf]
      %v1095 = vld [vmem:[%s1 + $0x224] sm:$0xf]
      %v1096 = vld [vmem:[%s1 + $0x228] sm:$0xf]
      %v1097 = vld [vmem:[%s1 + $0x22c] sm:$0xf]
      %v1098 = vld [vmem:[%s1 + $0x230] sm:$0xf]
      %v1099 = vld [vmem:[%s1 + $0x234] sm:$0xf]
      %v1100 = vld [vmem:[%s1 + $0x238] sm:$0xf]
      %v1101 = vld [vmem:[%s1 + $0x23c] sm:$0xf]
      %v1102 = vld [vmem:[%s1 + $0x240] sm:$0xf]
      %v1103 = vld [vmem:[%s1 + $0x244] sm:$0xf]
      %v1104 = vld [vmem:[%s1 + $0x248] sm:$0xf]
      %v1105 = vld [vmem:[%s1 + $0x24c] sm:$0xf]
      %v1106 = vld [vmem:[%s1 + $0x250] sm:$0xf]
      %v1107 = vld [vmem:[%s1 + $0x254] sm:$0xf]
      %v1108 = vld [vmem:[%s1 + $0x258] sm:$0xf]
      %v1109 = vld [vmem:[%s1 + $0x25c] sm:$0xf]
      %v1110 = vld [vmem:[%s1 + $0x260] sm:$0xf]
      %v1111 = vld [vmem:[%s1 + $0x264] sm:$0xf]
      %v1112 = vld [vmem:[%s1 + $0x268] sm:$0xf]
      %v1113 = vld [vmem:[%s1 + $0x26c] sm:$0xf]
      %v1114 = vld [vmem:[%s1 + $0x270] sm:$0xf]
      %v1115 = vld [vmem:[%s1 + $0x274] sm:$0xf]
      %v1116 = vld [vmem:[%s1 + $0x278] sm:$0xf]
      %v1117 = vld [vmem:[%s1 + $0x27c] sm:$0xf]
      %v1118 = vld [vmem:[%s1 + $0x280] sm:$0xf]
      %v1119 = vld [vmem:[%s1 + $0x284] sm:$0xf]
      %v1120 = vld [vmem:[%s1 + $0x288] sm:$0xf]
      %v1121 = vld [vmem:[%s1 + $0x28c] sm:$0xf]
      %v1122 = vld [vmem:[%s1 + $0x290] sm:$0xf]
      %v1123 = vld [vmem:[%s1 + $0x294] sm:$0xf]
      %v1124 = vld [vmem:[%s1 + $0x298] sm:$0xf]
      %v1125 = vld [vmem:[%s1 + $0x29c] sm:$0xf]
      %v1126 = vld [vmem:[%s1 + $0x2a0] sm:$0xf]
      %v1127 = vld [vmem:[%s1 + $0x2a4] sm:$0xf]
      %v1128 = vld [vmem:[%s1 + $0x2a8] sm:$0xf]
      %v1129 = vld [vmem:[%s1 + $0x2ac] sm:$0xf]
      %v1130 = vld [vmem:[%s1 + $0x2b0] sm:$0xf]
      %v1131 = vld [vmem:[%s1 + $0x2b4] sm:$0xf]
      %v1132 = vld [vmem:[%s1 + $0x2b8] sm:$0xf]
      %v1133 = vld [vmem:[%s1 + $0x2bc] sm:$0xf]
      %v1134 = vld [vmem:[%s1 + $0x2c0] sm:$0xf]
      %v1135 = vld [vmem:[%s1 + $0x2c4] sm:$0xf]
      %v1136 = vld [vmem:[%s1 + $0x2c8] sm:$0xf]
      %v1137 = vld [vmem:[%s1 + $0x2cc] sm:$0xf]
      %v1138 = vld [vmem:[%s1 + $0x2d0] sm:$0xf]
      %v1139 = vld [vmem:[%s1 + $0x2d4] sm:$0xf]
      %v1140 = vld [vmem:[%s1 + $0x2d8] sm:$0xf]
      %v1141 = vld [vmem:[%s1 + $0x2dc] sm:$0xf]
      %v1142 = vld [vmem:[%s1 + $0x2e0] sm:$0xf]
      %v1143 = vld [vmem:[%s1 + $0x2e4] sm:$0xf]
      %v1144 = vld [vmem:[%s1 + $0x2e8] sm:$0xf]
      %v1145 = vld [vmem:[%s1 + $0x2ec] sm:$0xf]
      %v1146 = vld [vmem:[%s1 + $0x2f0] sm:$0xf]
      %v1147 = vld [vmem:[%s1 + $0x2f4] sm:$0xf]
      %v1148 = vld [vmem:[%s1 + $0x2f8] sm:$0xf]
      %v1149 = vld [vmem:[%s1 + $0x2fc] sm:$0xf]
      %vm1150 = vsmask.f32 5376
      %v1152 = vshrl.u32 %v1078, 16
      %v1154 = vrot.slane %v1152, 2
      %v1155 = vshll.u32 %v1078, 16
      %v1157 = vrot.slane %v1155, 3
      %v1158 = vor.u32 %v1154, %v1157
      %v1160 = vshrl.u32 %v1082, 16
      %v1162 = vrot.slane %v1160, 2
      %v1163 = vshll.u32 %v1082, 16
      %v1165 = vrot.slane %v1163, 3
      %v1166 = vor.u32 %v1162, %v1165
      %v1167 = vsel %vm1150, %v1158, %v1166
      %v1169 = vshrl.u32 %v1079, 16
      %v1171 = vrot.slane %v1169, 2
      %v1172 = vshll.u32 %v1079, 16
      %v1174 = vrot.slane %v1172, 3
      %v1175 = vor.u32 %v1171, %v1174
      %v1177 = vshrl.u32 %v1083, 16
      %v1179 = vrot.slane %v1177, 2
      %v1180 = vshll.u32 %v1083, 16
      %v1182 = vrot.slane %v1180, 3
      %v1183 = vor.u32 %v1179, %v1182
      %v1184 = vsel %vm1150, %v1175, %v1183
      %v1186 = vshrl.u32 %v1080, 16
      %v1188 = vrot.slane %v1186, 2
      %v1189 = vshll.u32 %v1080, 16
      %v1191 = vrot.slane %v1189, 3
      %v1192 = vor.u32 %v1188, %v1191
      %v1194 = vshrl.u32 %v1084, 16
      %v1196 = vrot.slane %v1194, 2
      %v1197 = vshll.u32 %v1084, 16
      %v1199 = vrot.slane %v1197, 3
      %v1200 = vor.u32 %v1196, %v1199
      %v1201 = vsel %vm1150, %v1192, %v1200
      %v1203 = vshrl.u32 %v1081, 16
      %v1205 = vrot.slane %v1203, 2
      %v1206 = vshll.u32 %v1081, 16
      %v1208 = vrot.slane %v1206, 3
      %v1209 = vor.u32 %v1205, %v1208
      %v1211 = vshrl.u32 %v1085, 16
      %v1213 = vrot.slane %v1211, 2
      %v1214 = vshll.u32 %v1085, 16
      %v1216 = vrot.slane %v1214, 3
      %v1217 = vor.u32 %v1213, %v1216
      %v1218 = vsel %vm1150, %v1209, %v1217
      %v1291 = vunpack.c.l.b16 %v1086
      %v1292 = vunpack.c.l.b16 %v1087
      %v1293 = vunpack.c.l.b16 %v1088
      %v1294 = vunpack.c.l.b16 %v1089
      %v1295 = vunpack.c.l.b16 %v1090
      %v1296 = vunpack.c.l.b16 %v1091
      %v1297 = vunpack.c.l.b16 %v1092
      %v1298 = vunpack.c.l.b16 %v1093
      %v1299 = vunpack.c.l.b16 %v1094
      %v1300 = vunpack.c.l.b16 %v1095
      %v1301 = vunpack.c.l.b16 %v1096
      %v1302 = vunpack.c.l.b16 %v1097
      %v1303 = vunpack.c.l.b16 %v1098
      %v1304 = vunpack.c.l.b16 %v1099
      %v1305 = vunpack.c.l.b16 %v1100
      %v1306 = vunpack.c.l.b16 %v1101
      %v1307 = vunpack.c.l.b16 %v1102
      %v1308 = vunpack.c.l.b16 %v1103
      %v1309 = vunpack.c.l.b16 %v1104
      %v1310 = vunpack.c.l.b16 %v1105
      %v1311 = vunpack.c.l.b16 %v1106
      %v1312 = vunpack.c.l.b16 %v1107
      %v1313 = vunpack.c.l.b16 %v1108
      %v1314 = vunpack.c.l.b16 %v1109
      %v1315 = vunpack.c.l.b16 %v1110
      %v1316 = vunpack.c.l.b16 %v1111
      %v1317 = vunpack.c.l.b16 %v1112
      %v1318 = vunpack.c.l.b16 %v1113
      %v1319 = vunpack.c.l.b16 %v1114
      %v1320 = vunpack.c.l.b16 %v1115
      %v1321 = vunpack.c.l.b16 %v1116
      %v1322 = vunpack.c.l.b16 %v1117
      %v1323 = vunpack.c.l.b16 %v1118
      %v1324 = vunpack.c.l.b16 %v1119
      %v1325 = vunpack.c.l.b16 %v1120
      %v1326 = vunpack.c.l.b16 %v1121
      %v1327 = vunpack.c.l.b16 %v1122
      %v1328 = vunpack.c.l.b16 %v1123
      %v1329 = vunpack.c.l.b16 %v1124
      %v1330 = vunpack.c.l.b16 %v1125
      %v1331 = vunpack.c.l.b16 %v1126
      %v1332 = vunpack.c.l.b16 %v1127
      %v1333 = vunpack.c.l.b16 %v1128
      %v1334 = vunpack.c.l.b16 %v1129
      %v1335 = vunpack.c.l.b16 %v1130
      %v1336 = vunpack.c.l.b16 %v1131
      %v1337 = vunpack.c.l.b16 %v1132
      %v1338 = vunpack.c.l.b16 %v1133
      %v1339 = vunpack.c.l.b16 %v1134
      %v1340 = vunpack.c.l.b16 %v1135
      %v1341 = vunpack.c.l.b16 %v1136
      %v1342 = vunpack.c.l.b16 %v1137
      %v1343 = vunpack.c.l.b16 %v1138
      %v1344 = vunpack.c.l.b16 %v1139
      %v1345 = vunpack.c.l.b16 %v1140
      %v1346 = vunpack.c.l.b16 %v1141
      %v1347 = vunpack.c.l.b16 %v1142
      %v1348 = vunpack.c.l.b16 %v1143
      %v1349 = vunpack.c.l.b16 %v1144
      %v1350 = vunpack.c.l.b16 %v1145
      %v1351 = vunpack.c.l.b16 %v1146
      %v1352 = vunpack.c.l.b16 %v1147
      %v1353 = vunpack.c.l.b16 %v1148
      %v1354 = vunpack.c.l.b16 %v1149
      %v1355 = vpack.c.b16 %v1292, %v1291
      %v1356 = vpack.c.b16 %v1294, %v1293
      %v1357 = vpack.c.b16 %v1296, %v1295
      %v1358 = vpack.c.b16 %v1298, %v1297
      %v1359 = vpack.c.b16 %v1300, %v1299
      %v1360 = vpack.c.b16 %v1302, %v1301
      %v1361 = vpack.c.b16 %v1304, %v1303
      %v1362 = vpack.c.b16 %v1306, %v1305
      %v1363 = vpack.c.b16 %v1308, %v1307
      %v1364 = vpack.c.b16 %v1310, %v1309
      %v1365 = vpack.c.b16 %v1312, %v1311
      %v1366 = vpack.c.b16 %v1314, %v1313
      %v1367 = vpack.c.b16 %v1316, %v1315
      %v1368 = vpack.c.b16 %v1318, %v1317
      %v1369 = vpack.c.b16 %v1320, %v1319
      %v1370 = vpack.c.b16 %v1322, %v1321
      %v1371 = vpack.c.b16 %v1324, %v1323
      %v1372 = vpack.c.b16 %v1326, %v1325
      %v1373 = vpack.c.b16 %v1328, %v1327
      %v1374 = vpack.c.b16 %v1330, %v1329
      %v1375 = vpack.c.b16 %v1332, %v1331
      %v1376 = vpack.c.b16 %v1334, %v1333
      %v1377 = vpack.c.b16 %v1336, %v1335
      %v1378 = vpack.c.b16 %v1338, %v1337
      %v1379 = vpack.c.b16 %v1340, %v1339
      %v1380 = vpack.c.b16 %v1342, %v1341
      %v1381 = vpack.c.b16 %v1344, %v1343
      %v1382 = vpack.c.b16 %v1346, %v1345
      %v1383 = vpack.c.b16 %v1348, %v1347
      %v1384 = vpack.c.b16 %v1350, %v1349
      %v1385 = vpack.c.b16 %v1352, %v1351
      %v1386 = vpack.c.b16 %v1354, %v1353
      %1419 = vmatprep.subr.bf16.mxu0 0
      %1420 = vmatpush1.bf16.msra.mxu0 %v1355
      %1421 = vmatprep.subr.bf16.mxu0 0
      %1422 = vmatpush1.bf16.msra.mxu0 %v1356
      %1423 = vmatprep.subr.bf16.mxu0 0
      %1424 = vmatpush1.bf16.msra.mxu0 %v1357
      %1425 = vmatprep.subr.bf16.mxu0 0
      %1426 = vmatpush1.bf16.msra.mxu0 %v1358
      %1427 = vmatprep.subr.bf16.mxu0 0
      %1428 = vmatpush1.bf16.msra.mxu0 %v1359
      %1429 = vmatprep.subr.bf16.mxu0 0
      %1430 = vmatpush1.bf16.msra.mxu0 %v1360
      %1431 = vmatprep.subr.bf16.mxu0 0
      %1432 = vmatpush1.bf16.msra.mxu0 %v1361
      %1433 = vmatprep.subr.bf16.mxu0 0
      %1434 = vmatpush1.bf16.msra.mxu0 %v1362
      %1435 = vmatprep.subr.bf16.mxu0 0
      %1436 = vmatpush1.bf16.msra.mxu0 %v1363
      %1437 = vmatprep.subr.bf16.mxu0 0
      %1438 = vmatpush1.bf16.msra.mxu0 %v1364
      %1439 = vmatprep.subr.bf16.mxu0 0
      %1440 = vmatpush1.bf16.msra.mxu0 %v1365
      %1441 = vmatprep.subr.bf16.mxu0 0
      %1442 = vmatpush1.bf16.msra.mxu0 %v1366
      %1443 = vmatprep.subr.bf16.mxu0 0
      %1444 = vmatpush1.bf16.msra.mxu0 %v1367
      %1445 = vmatprep.subr.bf16.mxu0 0
      %1446 = vmatpush1.bf16.msra.mxu0 %v1368
      %1447 = vmatprep.subr.bf16.mxu0 0
      %1448 = vmatpush1.bf16.msra.mxu0 %v1369
      %1449 = vmatprep.subr.bf16.mxu0 0
      %1450 = vmatpush1.bf16.msra.mxu0 %v1370
      %1451 = vmatprep.mubr.bf16.mxu0 %v1184
      %1452 = vmatmul.mubr.bf16.gmra.mrb[0].mxu0 %v1167
      %v1453 = vpop.f32.mrb[0].mxu0
      %v1454 = vadd.f32 0.0, %v1453
      %v1455 = vpop.f32.mrb[0].mxu0
      %v1456 = vpop.f32.mrb[0].mxu0
      %v1457 = vadd.f32 0.0, %v1456
      %v1458 = vpop.f32.mrb[0].mxu0
      %1459 = vmatprep.mubr.bf16.mxu0 %v1183
      %1460 = vmatmul.mubr.bf16.gmra.mrb[0].mxu0 %v1166
      %v1461 = vpop.f32.mrb[0].mxu0
      %v1462 = vadd.f32 0.0, %v1461
      %v1463 = vpop.f32.mrb[0].mxu0
      %v1464 = vpop.f32.mrb[0].mxu0
      %v1465 = vpop.f32.mrb[0].mxu0
      %1466 = vdwg.mxu0
      %1467 = vmatprep.subr.bf16.mxu0 0
      %1468 = vmatpush1.bf16.msra.mxu0 %v1371
      %1469 = vmatprep.subr.bf16.mxu0 0
      %1470 = vmatpush1.bf16.msra.mxu0 %v1372
      %1471 = vmatprep.subr.bf16.mxu0 0
      %1472 = vmatpush1.bf16.msra.mxu0 %v1373
      %1473 = vmatprep.subr.bf16.mxu0 0
      %1474 = vmatpush1.bf16.msra.mxu0 %v1374
      %1475 = vmatprep.subr.bf16.mxu0 0
      %1476 = vmatpush1.bf16.msra.mxu0 %v1375
      %1477 = vmatprep.subr.bf16.mxu0 0
      %1478 = vmatpush1.bf16.msra.mxu0 %v1376
      %1479 = vmatprep.subr.bf16.mxu0 0
      %1480 = vmatpush1.bf16.msra.mxu0 %v1377
      %1481 = vmatprep.subr.bf16.mxu0 0
      %1482 = vmatpush1.bf16.msra.mxu0 %v1378
      %1483 = vmatprep.subr.bf16.mxu0 0
      %1484 = vmatpush1.bf16.msra.mxu0 %v1379
      %1485 = vmatprep.subr.bf16.mxu0 0
      %1486 = vmatpush1.bf16.msra.mxu0 %v1380
      %1487 = vmatprep.subr.bf16.mxu0 0
      %1488 = vmatpush1.bf16.msra.mxu0 %v1381
      %1489 = vmatprep.subr.bf16.mxu0 0
      %1490 = vmatpush1.bf16.msra.mxu0 %v1382
      %1491 = vmatprep.subr.bf16.mxu0 0
      %1492 = vmatpush1.bf16.msra.mxu0 %v1383
      %1493 = vmatprep.subr.bf16.mxu0 0
      %1494 = vmatpush1.bf16.msra.mxu0 %v1384
      %1495 = vmatprep.subr.bf16.mxu0 0
      %1496 = vmatpush1.bf16.msra.mxu0 %v1385
      %1497 = vmatprep.subr.bf16.mxu0 0
      %1498 = vmatpush1.bf16.msra.mxu0 %v1386
      %1499 = vmatprep.mubr.bf16.mxu0 %v1218
      %1500 = vmatmul.mubr.bf16.gmra.mrb[0].mxu0 %v1201
      %v1501 = vpop.f32.mrb[0].mxu0
      %v1502 = vadd.f32 %v1454, %v1501
      %v1503 = vpop.f32.mrb[0].mxu0
      %v1504 = vpop.f32.mrb[0].mxu0
      %v1505 = vadd.f32 %v1457, %v1504
      %v1506 = vpop.f32.mrb[0].mxu0
      %1507 = vmatprep.mubr.bf16.mxu0 %v1217
      %1508 = vmatmul.mubr.bf16.gmra.mrb[0].mxu0 %v1200
      %v1509 = vpop.f32.mrb[0].mxu0
      %v1510 = vadd.f32 %v1462, %v1509
      %v1511 = vpop.f32.mrb[0].mxu0
      %v1512 = vpop.f32.mrb[0].mxu0
      %v1513 = vpop.f32.mrb[0].mxu0
      %1514 = vdwg.mxu0
      %v1515 = vadd.f32 %v1049, %v1502
      %v1516 = vadd.f32 %v1052, %v1505
      %v1517 = vadd.f32 %v1057, %v1510
      %v1518 = vld [vmem:[%s246] sm:$0xc0]
      %v1519 = vld [vmem:[%s246 + $0x8] sm:$0xc0]
      %v1520 = vld [vmem:[%s246 + $0x10] sm:$0xc0]
      %v1521 = vld [vmem:[%s246 + $0x18] sm:$0xc0]
      %v1522 = vld [vmem:[%s246 + $0x60] sm:$0x3]
      %v1523 = vld [vmem:[%s246 + $0x68] sm:$0x3]
      %v1524 = vld [vmem:[%s246 + $0x70] sm:$0x3]
      %v1525 = vld [vmem:[%s246 + $0x78] sm:$0x3]
      %v1526 = vpack.c.bf16 %v1066, %v1518
      %v1527 = vpack.c.bf16 %v1067, %v1519
      %v1528 = vpack.c.bf16 %v1068, %v1520
      %v1529 = vpack.c.bf16 %v1069, %v1521
      %v1530 = vpack.c.bf16 %v1522, %v1070
      %v1531 = vpack.c.bf16 %v1523, %v1071
      %v1532 = vpack.c.bf16 %v1524, %v1072
      %v1533 = vpack.c.bf16 %v1525, %v1073
      %v1534 = vld [vmem:[%s1 + $0x300] sm:$0xf]
      %v1535 = vld [vmem:[%s1 + $0x304] sm:$0xf]
      %v1536 = vld [vmem:[%s1 + $0x308] sm:$0xf]
      %v1537 = vld [vmem:[%s1 + $0x30c] sm:$0xf]
      %v1538 = vld [vmem:[%s1 + $0x310] sm:$0xf]
      %v1539 = vld [vmem:[%s1 + $0x314] sm:$0xf]
      %v1540 = vld [vmem:[%s1 + $0x318] sm:$0xf]
      %v1541 = vld [vmem:[%s1 + $0x31c] sm:$0xf]
      %v1542 = vld [vmem:[%s1 + $0x320] sm:$0xf]
      %v1543 = vld [vmem:[%s1 + $0x324] sm:$0xf]
      %v1544 = vld [vmem:[%s1 + $0x328] sm:$0xf]
      %v1545 = vld [vmem:[%s1 + $0x32c] sm:$0xf]
      %v1546 = vld [vmem:[%s1 + $0x330] sm:$0xf]
      %v1547 = vld [vmem:[%s1 + $0x334] sm:$0xf]
      %v1548 = vld [vmem:[%s1 + $0x338] sm:$0xf]
      %v1549 = vld [vmem:[%s1 + $0x33c] sm:$0xf]
      %v1550 = vld [vmem:[%s1 + $0x340] sm:$0xf]
      %v1551 = vld [vmem:[%s1 + $0x344] sm:$0xf]
      %v1552 = vld [vmem:[%s1 + $0x348] sm:$0xf]
      %v1553 = vld [vmem:[%s1 + $0x34c] sm:$0xf]
      %v1554 = vld [vmem:[%s1 + $0x350] sm:$0xf]
      %v1555 = vld [vmem:[%s1 + $0x354] sm:$0xf]
      %v1556 = vld [vmem:[%s1 + $0x358] sm:$0xf]
      %v1557 = vld [vmem:[%s1 + $0x35c] sm:$0xf]
      %v1558 = vld [vmem:[%s1 + $0x360] sm:$0xf]
      %v1559 = vld [vmem:[%s1 + $0x364] sm:$0xf]
      %v1560 = vld [vmem:[%s1 + $0x368] sm:$0xf]
      %v1561 = vld [vmem:[%s1 + $0x36c] sm:$0xf]
      %v1562 = vld [vmem:[%s1 + $0x370] sm:$0xf]
      %v1563 = vld [vmem:[%s1 + $0x374] sm:$0xf]
      %v1564 = vld [vmem:[%s1 + $0x378] sm:$0xf]
      %v1565 = vld [vmem:[%s1 + $0x37c] sm:$0xf]
      %v1566 = vld [vmem:[%s1 + $0x380] sm:$0xf]
      %v1567 = vld [vmem:[%s1 + $0x384] sm:$0xf]
      %v1568 = vld [vmem:[%s1 + $0x388] sm:$0xf]
      %v1569 = vld [vmem:[%s1 + $0x38c] sm:$0xf]
      %v1570 = vld [vmem:[%s1 + $0x390] sm:$0xf]
      %v1571 = vld [vmem:[%s1 + $0x394] sm:$0xf]
      %v1572 = vld [vmem:[%s1 + $0x398] sm:$0xf]
      %v1573 = vld [vmem:[%s1 + $0x39c] sm:$0xf]
      %v1574 = vld [vmem:[%s1 + $0x3a0] sm:$0xf]
      %v1575 = vld [vmem:[%s1 + $0x3a4] sm:$0xf]
      %v1576 = vld [vmem:[%s1 + $0x3a8] sm:$0xf]
      %v1577 = vld [vmem:[%s1 + $0x3ac] sm:$0xf]
      %v1578 = vld [vmem:[%s1 + $0x3b0] sm:$0xf]
      %v1579 = vld [vmem:[%s1 + $0x3b4] sm:$0xf]
      %v1580 = vld [vmem:[%s1 + $0x3b8] sm:$0xf]
      %v1581 = vld [vmem:[%s1 + $0x3bc] sm:$0xf]
      %v1582 = vld [vmem:[%s1 + $0x3c0] sm:$0xf]
      %v1583 = vld [vmem:[%s1 + $0x3c4] sm:$0xf]
      %v1584 = vld [vmem:[%s1 + $0x3c8] sm:$0xf]
      %v1585 = vld [vmem:[%s1 + $0x3cc] sm:$0xf]
      %v1586 = vld [vmem:[%s1 + $0x3d0] sm:$0xf]
      %v1587 = vld [vmem:[%s1 + $0x3d4] sm:$0xf]
      %v1588 = vld [vmem:[%s1 + $0x3d8] sm:$0xf]
      %v1589 = vld [vmem:[%s1 + $0x3dc] sm:$0xf]
      %v1590 = vld [vmem:[%s1 + $0x3e0] sm:$0xf]
      %v1591 = vld [vmem:[%s1 + $0x3e4] sm:$0xf]
      %v1592 = vld [vmem:[%s1 + $0x3e8] sm:$0xf]
      %v1593 = vld [vmem:[%s1 + $0x3ec] sm:$0xf]
      %v1594 = vld [vmem:[%s1 + $0x3f0] sm:$0xf]
      %v1595 = vld [vmem:[%s1 + $0x3f4] sm:$0xf]
      %v1596 = vld [vmem:[%s1 + $0x3f8] sm:$0xf]
      %v1597 = vld [vmem:[%s1 + $0x3fc] sm:$0xf]
      %vm1606 = vcmask 1044480
      %v1607 = vrot.slane %v1526, 3
      %v1608 = vrot.slane %v1530, 3
      %v1609 = vsel %vm1606, %v1607, %v1608
      %v1610 = vrot.slane %v1527, 3
      %v1611 = vrot.slane %v1531, 3
      %v1612 = vsel %vm1606, %v1610, %v1611
      %v1613 = vrot.slane %v1528, 3
      %v1614 = vrot.slane %v1532, 3
      %v1615 = vsel %vm1606, %v1613, %v1614
      %v1616 = vrot.slane %v1529, 3
      %v1617 = vrot.slane %v1533, 3
      %v1618 = vsel %vm1606, %v1616, %v1617
      %v1691 = vunpack.c.l.b16 %v1534
      %v1692 = vunpack.c.l.b16 %v1535
      %v1693 = vunpack.c.l.b16 %v1536
      %v1694 = vunpack.c.l.b16 %v1537
      %v1695 = vunpack.c.l.b16 %v1538
      %v1696 = vunpack.c.l.b16 %v1539
      %v1697 = vunpack.c.l.b16 %v1540
      %v1698 = vunpack.c.l.b16 %v1541
      %v1699 = vunpack.c.l.b16 %v1542
      %v1700 = vunpack.c.l.b16 %v1543
      %v1701 = vunpack.c.l.b16 %v1544
      %v1702 = vunpack.c.l.b16 %v1545
      %v1703 = vunpack.c.l.b16 %v1546
      %v1704 = vunpack.c.l.b16 %v1547
      %v1705 = vunpack.c.l.b16 %v1548
      %v1706 = vunpack.c.l.b16 %v1549
      %v1707 = vunpack.c.l.b16 %v1550
      %v1708 = vunpack.c.l.b16 %v1551
      %v1709 = vunpack.c.l.b16 %v1552
      %v1710 = vunpack.c.l.b16 %v1553
      %v1711 = vunpack.c.l.b16 %v1554
      %v1712 = vunpack.c.l.b16 %v1555
      %v1713 = vunpack.c.l.b16 %v1556
      %v1714 = vunpack.c.l.b16 %v1557
      %v1715 = vunpack.c.l.b16 %v1558
      %v1716 = vunpack.c.l.b16 %v1559
      %v1717 = vunpack.c.l.b16 %v1560
      %v1718 = vunpack.c.l.b16 %v1561
      %v1719 = vunpack.c.l.b16 %v1562
      %v1720 = vunpack.c.l.b16 %v1563
      %v1721 = vunpack.c.l.b16 %v1564
      %v1722 = vunpack.c.l.b16 %v1565
      %v1723 = vunpack.c.l.b16 %v1566
      %v1724 = vunpack.c.l.b16 %v1567
      %v1725 = vunpack.c.l.b16 %v1568
      %v1726 = vunpack.c.l.b16 %v1569
      %v1727 = vunpack.c.l.b16 %v1570
      %v1728 = vunpack.c.l.b16 %v1571
      %v1729 = vunpack.c.l.b16 %v1572
      %v1730 = vunpack.c.l.b16 %v1573
      %v1731 = vunpack.c.l.b16 %v1574
      %v1732 = vunpack.c.l.b16 %v1575
      %v1733 = vunpack.c.l.b16 %v1576
      %v1734 = vunpack.c.l.b16 %v1577
      %v1735 = vunpack.c.l.b16 %v1578
      %v1736 = vunpack.c.l.b16 %v1579
      %v1737 = vunpack.c.l.b16 %v1580
      %v1738 = vunpack.c.l.b16 %v1581
      %v1739 = vunpack.c.l.b16 %v1582
      %v1740 = vunpack.c.l.b16 %v1583
      %v1741 = vunpack.c.l.b16 %v1584
      %v1742 = vunpack.c.l.b16 %v1585
      %v1743 = vunpack.c.l.b16 %v1586
      %v1744 = vunpack.c.l.b16 %v1587
      %v1745 = vunpack.c.l.b16 %v1588
      %v1746 = vunpack.c.l.b16 %v1589
      %v1747 = vunpack.c.l.b16 %v1590
      %v1748 = vunpack.c.l.b16 %v1591
      %v1749 = vunpack.c.l.b16 %v1592
      %v1750 = vunpack.c.l.b16 %v1593
      %v1751 = vunpack.c.l.b16 %v1594
      %v1752 = vunpack.c.l.b16 %v1595
      %v1753 = vunpack.c.l.b16 %v1596
      %v1754 = vunpack.c.l.b16 %v1597
      %v1755 = vpack.c.b16 %v1692, %v1691
      %v1756 = vpack.c.b16 %v1694, %v1693
      %v1757 = vpack.c.b16 %v1696, %v1695
      %v1758 = vpack.c.b16 %v1698, %v1697
      %v1759 = vpack.c.b16 %v1700, %v1699
      %v1760 = vpack.c.b16 %v1702, %v1701
      %v1761 = vpack.c.b16 %v1704, %v1703
      %v1762 = vpack.c.b16 %v1706, %v1705
      %v1763 = vpack.c.b16 %v1708, %v1707
      %v1764 = vpack.c.b16 %v1710, %v1709
      %v1765 = vpack.c.b16 %v1712, %v1711
      %v1766 = vpack.c.b16 %v1714, %v1713
      %v1767 = vpack.c.b16 %v1716, %v1715
      %v1768 = vpack.c.b16 %v1718, %v1717
      %v1769 = vpack.c.b16 %v1720, %v1719
      %v1770 = vpack.c.b16 %v1722, %v1721
      %v1771 = vpack.c.b16 %v1724, %v1723
      %v1772 = vpack.c.b16 %v1726, %v1725
      %v1773 = vpack.c.b16 %v1728, %v1727
      %v1774 = vpack.c.b16 %v1730, %v1729
      %v1775 = vpack.c.b16 %v1732, %v1731
      %v1776 = vpack.c.b16 %v1734, %v1733
      %v1777 = vpack.c.b16 %v1736, %v1735
      %v1778 = vpack.c.b16 %v1738, %v1737
      %v1779 = vpack.c.b16 %v1740, %v1739
      %v1780 = vpack.c.b16 %v1742, %v1741
      %v1781 = vpack.c.b16 %v1744, %v1743
      %v1782 = vpack.c.b16 %v1746, %v1745
      %v1783 = vpack.c.b16 %v1748, %v1747
      %v1784 = vpack.c.b16 %v1750, %v1749
      %v1785 = vpack.c.b16 %v1752, %v1751
      %v1786 = vpack.c.b16 %v1754, %v1753
      %1819 = vmatprep.subr.bf16.mxu0 0
      %1820 = vmatpush1.bf16.msra.mxu0 %v1755
      %1821 = vmatprep.subr.bf16.mxu0 0
      %1822 = vmatpush1.bf16.msra.mxu0 %v1756
      %1823 = vmatprep.subr.bf16.mxu0 0
      %1824 = vmatpush1.bf16.msra.mxu0 %v1757
      %1825 = vmatprep.subr.bf16.mxu0 0
      %1826 = vmatpush1.bf16.msra.mxu0 %v1758
      %1827 = vmatprep.subr.bf16.mxu0 0
      %1828 = vmatpush1.bf16.msra.mxu0 %v1759
      %1829 = vmatprep.subr.bf16.mxu0 0
      %1830 = vmatpush1.bf16.msra.mxu0 %v1760
      %1831 = vmatprep.subr.bf16.mxu0 0
      %1832 = vmatpush1.bf16.msra.mxu0 %v1761
      %1833 = vmatprep.subr.bf16.mxu0 0
      %1834 = vmatpush1.bf16.msra.mxu0 %v1762
      %1835 = vmatprep.subr.bf16.mxu0 0
      %1836 = vmatpush1.bf16.msra.mxu0 %v1763
      %1837 = vmatprep.subr.bf16.mxu0 0
      %1838 = vmatpush1.bf16.msra.mxu0 %v1764
      %1839 = vmatprep.subr.bf16.mxu0 0
      %1840 = vmatpush1.bf16.msra.mxu0 %v1765
      %1841 = vmatprep.subr.bf16.mxu0 0
      %1842 = vmatpush1.bf16.msra.mxu0 %v1766
      %1843 = vmatprep.subr.bf16.mxu0 0
      %1844 = vmatpush1.bf16.msra.mxu0 %v1767
      %1845 = vmatprep.subr.bf16.mxu0 0
      %1846 = vmatpush1.bf16.msra.mxu0 %v1768
      %1847 = vmatprep.subr.bf16.mxu0 0
      %1848 = vmatpush1.bf16.msra.mxu0 %v1769
      %1849 = vmatprep.subr.bf16.mxu0 0
      %1850 = vmatpush1.bf16.msra.mxu0 %v1770
      %1851 = vmatprep.mubr.bf16.mxu0 %v1612
      %1852 = vmatmul.mubr.bf16.gmra.mrb[0].mxu0 %v1609
      %v1853 = vpop.f32.mrb[0].mxu0
      %v1854 = vadd.f32 0.0, %v1853
      %v1855 = vpop.f32.mrb[0].mxu0
      %v1856 = vpop.f32.mrb[0].mxu0
      %v1857 = vadd.f32 0.0, %v1856
      %v1858 = vpop.f32.mrb[0].mxu0
      %1859 = vmatprep.mubr.bf16.mxu0 %v1611
      %1860 = vmatmul.mubr.bf16.gmra.mrb[0].mxu0 %v1608
      %v1861 = vpop.f32.mrb[0].mxu0
      %v1862 = vadd.f32 0.0, %v1861
      %v1863 = vpop.f32.mrb[0].mxu0
      %v1864 = vpop.f32.mrb[0].mxu0
      %v1865 = vpop.f32.mrb[0].mxu0
      %1866 = vdwg.mxu0
      %1867 = vmatprep.subr.bf16.mxu0 0
      %1868 = vmatpush1.bf16.msra.mxu0 %v1771
      %1869 = vmatprep.subr.bf16.mxu0 0
      %1870 = vmatpush1.bf16.msra.mxu0 %v1772
      %1871 = vmatprep.subr.bf16.mxu0 0
      %1872 = vmatpush1.bf16.msra.mxu0 %v1773
      %1873 = vmatprep.subr.bf16.mxu0 0
      %1874 = vmatpush1.bf16.msra.mxu0 %v1774
      %1875 = vmatprep.subr.bf16.mxu0 0
      %1876 = vmatpush1.bf16.msra.mxu0 %v1775
      %1877 = vmatprep.subr.bf16.mxu0 0
      %1878 = vmatpush1.bf16.msra.mxu0 %v1776
      %1879 = vmatprep.subr.bf16.mxu0 0
      %1880 = vmatpush1.bf16.msra.mxu0 %v1777
      %1881 = vmatprep.subr.bf16.mxu0 0
      %1882 = vmatpush1.bf16.msra.mxu0 %v1778
      %1883 = vmatprep.subr.bf16.mxu0 0
      %1884 = vmatpush1.bf16.msra.mxu0 %v1779
      %1885 = vmatprep.subr.bf16.mxu0 0
      %1886 = vmatpush1.bf16.msra.mxu0 %v1780
      %1887 = vmatprep.subr.bf16.mxu0 0
      %1888 = vmatpush1.bf16.msra.mxu0 %v1781
      %1889 = vmatprep.subr.bf16.mxu0 0
      %1890 = vmatpush1.bf16.msra.mxu0 %v1782
      %1891 = vmatprep.subr.bf16.mxu0 0
      %1892 = vmatpush1.bf16.msra.mxu0 %v1783
      %1893 = vmatprep.subr.bf16.mxu0 0
      %1894 = vmatpush1.bf16.msra.mxu0 %v1784
      %1895 = vmatprep.subr.bf16.mxu0 0
      %1896 = vmatpush1.bf16.msra.mxu0 %v1785
      %1897 = vmatprep.subr.bf16.mxu0 0
      %1898 = vmatpush1.bf16.msra.mxu0 %v1786
      %1899 = vmatprep.mubr.bf16.mxu0 %v1618
      %1900 = vmatmul.mubr.bf16.gmra.mrb[0].mxu0 %v1615
      %v1901 = vpop.f32.mrb[0].mxu0
      %v1902 = vadd.f32 %v1854, %v1901
      %v1903 = vpop.f32.mrb[0].mxu0
      %v1904 = vpop.f32.mrb[0].mxu0
      %v1905 = vadd.f32 %v1857, %v1904
      %v1906 = vpop.f32.mrb[0].mxu0
      %1907 = vmatprep.mubr.bf16.mxu0 %v1617
      %1908 = vmatmul.mubr.bf16.gmra.mrb[0].mxu0 %v1614
      %v1909 = vpop.f32.mrb[0].mxu0
      %v1910 = vadd.f32 %v1862, %v1909
      %v1911 = vpop.f32.mrb[0].mxu0
      %v1912 = vpop.f32.mrb[0].mxu0
      %v1913 = vpop.f32.mrb[0].mxu0
      %1914 = vdwg.mxu0
      %v1915 = vadd.f32 %v1515, %v1902
      %v1916 = vadd.f32 %v1516, %v1905
      %v1917 = vadd.f32 %v1517, %v1910
      %v1918 = vld [vmem:[%s2] sm:$0x1]
      %v1920 = vlaneseq
      %v1921 = vshrl.u32 %v1920, 7
      %v1922 = vsub.s32 0, %v1921
      %v1923 = vrot.slane %v1918, %v1922
      %v1925 = vadd.f32 %v1915, %v1923
      %v1926 = vadd.f32 %v1916, %v1923
      %v1927 = vadd.f32 %v1917, %v1923
      %v1928 = vld [vmem:[%s5] sm:$0x1]
      %v1930 = vlaneseq
      %v1931 = vshrl.u32 %v1930, 7
      %v1932 = vsub.s32 0, %v1931
      %v1933 = vrot.slane %v1928, %v1932
      %v1935 = vmul.f32 %v1925, %v1933
      %v1936 = vmul.f32 %v1926, %v1933
      %v1937 = vmul.f32 %v1927, %v1933
      %1938 = vadd.xlane.f32.xlu0 %v1935
      %v1939 = vpop.xlane.xlu0 %1938
      %1940 = vadd.xlane.f32.xlu0 %v1936
      %v1941 = vpop.xlane.xlu0 %1940
      %vm1942 = vcmask 1043456
      %v1943 = vsel %vm1942, %v1937, 0.0
      %1944 = vadd.xlane.f32.xlu0 %v1943
      %v1945 = vpop.xlane.xlu0 %1944
      %v1946 = vmul.f32 %v1939, 0.015625
      %v1947 = vmul.f32 %v1941, 0.015625
      %v1948 = vmul.f32 %v1945, 0.015625
      %v1949 = vsub.f32 %v1925, %v1946
      %v1950 = vsub.f32 %v1926, %v1947
      %v1951 = vsub.f32 %v1927, %v1948
      %v1952 = vmul.f32 %v1949, %v1933
      %v1953 = vmul.f32 %v1950, %v1933
      %v1954 = vmul.f32 %v1951, %v1933
      %v1955 = vmul.f32 %v1952, %v1952
      %v1956 = vmul.f32 %v1953, %v1953
      %v1957 = vmul.f32 %v1954, %v1954
      %1958 = vadd.xlane.f32.xlu0 %v1955
      %v1959 = vpop.xlane.xlu0 %1958
      %1960 = vadd.xlane.f32.xlu0 %v1956
      %v1961 = vpop.xlane.xlu0 %1960
      %v1962 = vsel %vm1942, %v1957, 0.0
      %1963 = vadd.xlane.f32.xlu0 %v1962
      %v1964 = vpop.xlane.xlu0 %1963
      %v1965 = vmul.f32 %v1959, 0.015625
      %v1966 = vmul.f32 %v1961, 0.015625
      %v1967 = vmul.f32 %v1964, 0.015625
      %v1968 = vadd.f32 %v1965, 1e-06
      %v1969 = vadd.f32 %v1966, 1e-06
      %v1970 = vadd.f32 %v1967, 1e-06
      %v1971 = vrsqrt.pop %v1968
      %v1972 = vrsqrt.pop %v1969
      %v1973 = vrsqrt.pop %v1970
      %v1974 = vmul.f32 %v1952, %v1971
      %v1975 = vmul.f32 %v1953, %v1972
      %v1976 = vmul.f32 %v1954, %v1973
      %v1977 = vld [vmem:[%s3] sm:$0x1]
      %v1979 = vlaneseq
      %v1980 = vshrl.u32 %v1979, 7
      %v1981 = vsub.s32 0, %v1980
      %v1982 = vrot.slane %v1977, %v1981
      %v1984 = vmul.f32 %v1974, %v1982
      %v1985 = vmul.f32 %v1975, %v1982
      %v1986 = vmul.f32 %v1976, %v1982
      %v1987 = vld [vmem:[%s4] sm:$0x1]
      %v1989 = vlaneseq
      %v1990 = vshrl.u32 %v1989, 7
      %v1991 = vsub.s32 0, %v1990
      %v1992 = vrot.slane %v1987, %v1991
      %v1994 = vadd.f32 %v1984, %v1992
      %v1995 = vadd.f32 %v1985, %v1992
      %v1996 = vadd.f32 %v1986, %v1992
      %vm1997 = vcmp.ge.f32.partialorder %v1994, 0.0
      %vm1998 = vcmp.ge.f32.partialorder %v1995, 0.0
      %vm1999 = vcmp.ge.f32.partialorder %v1996, 0.0
      %v2000 = vmul.f32 %v1994, 0.2
      %v2001 = vmul.f32 %v1995, 0.2
      %v2002 = vmul.f32 %v1996, 0.2
      %v2003 = vsel %vm1997, %v1994, %v2000
      %v2004 = vsel %vm1998, %v1995, %v2001
      %v2005 = vsel %vm1999, %v1996, %v2002
      %2006 = vst [vmem:[%s251] sm:$0xff] %v2003
      %2007 = vst [vmem:[%s251 + $0x8] sm:$0xff] %v2004
      %2008 = vst [vmem:[%s251 + $0x10] sm:$0xf] %v2005
      %p2009 = scmp.lt.s32.totalorder %s17, 1
      %s2010 = scalar_select %p2009, %s17, 1
      %s2011 = smul.addr %s2010, 3
      %s2012 = smul.addr %s2011, 8
      %s2013 = scalar_lea.vmem %s6, %s2012
      // Predicated region
      $region45: #{discriminator_forward.7} parent=43 // pred_check
        %p2014 = pneg %p166
      $region46: #{discriminator_forward.7} parent=43 // pred_check_branch
        %2016 = sbr.rel (%p2014) target = $region48
      $region47: #{discriminator_forward.7} parent=43 // pred_region
        _
      $region48: #{discriminator_forward.7} parent=43 // pred_fallthru
        _
    $region44: #{discriminator_forward.7} parent=5 // pred_fallthru
      _
    %p2017 = scmp.le.s32.totalorder 2, %s12
    // Predicated region
    $region49: #{discriminator_forward.7} parent=5 // pred_check
      %p2018 = pneg %p2017
    $region50: #{discriminator_forward.7} parent=5 // pred_check_branch
      %2020 = sbr.rel (%p2018) target = $region52
    $region51: #{discriminator_forward.7} parent=5 // pred_region
      %s2021 = ssub.s32 %s12, 2
      // Predicated region
      $region53: #{discriminator_forward.7} parent=51 // pred_check
        %p2022 = pneg %p172
      $region54: #{discriminator_forward.7} parent=51 // pred_check_branch
        %2024 = sbr.rel (%p2022) target = $region56
      $region55: #{discriminator_forward.7} parent=51 // pred_region
        %p2025 = scmp.lt.s32.totalorder %s18, 1
        %s2026 = scalar_select %p2025, %s18, 1
        %s2027 = smul.addr %s2026, 3
        %s2028 = smul.addr %s2027, 8
        %s2029 = scalar_lea.vmem %s6, %s2028
      $region56: #{discriminator_forward.7} parent=51 // pred_fallthru
        _
    $region52: #{discriminator_forward.7} parent=5 // pred_fallthru
      _
  $region6: #{discriminator_forward.7} parent=0 // loop_footer
    %s16 = sadd.s32 1, %s12
  $region7: #{discriminator_forward.7} parent=0 // loop_footer_branch
    %11 = sbr.rel target = $region3
  $region8: #{discriminator_forward.7} parent=0 // loop_exit
    _

// kernel: discriminator_forward.8
$region0: #{discriminator_forward.8}
  #allocation0 [shape = 'u32[]', space=smem, size = 0x4, offset = 0x4, fixed_abs, tag = 'smem constant byte address 0x4 - core index']
  #allocation1 [shape = 'u32[144,128]{1,0:T(1,128)}', space=vmem, size = 0x12000, scoped, tag = 'internal scratch']
  %s0 = inlined_call_operand.vmem [shape: f32[2,40,128], index: 0, kind: input, shape index: {}]
  %s1 = inlined_call_operand.vmem [shape: f32[2,9,128], index: 1, kind: input, shape index: {}]
  %s2 = inlined_call_operand.vmem [shape: f32[2,1,128], index: 2, kind: input, shape index: {}]
  %s3 = inlined_call_operand.vmem [shape: f32[1,128], index: 3, kind: input, shape index: {}]
  %s4 = inlined_call_operand.vmem [shape: f32[1,128], index: 4, kind: input, shape index: {}]
  %s5 = inlined_call_operand.vmem [shape: f32[1,128], index: 5, kind: input, shape index: {}]
  %s6 = inlined_call_operand.vmem [shape: bf16[128,256], index: 6, kind: input, shape index: {}]
  %s7 = inlined_call_operand.vmem [shape: f32[1,256], index: 7, kind: input, shape index: {}]
  %s8 = inlined_call_operand.vmem [shape: bf16[256,128], index: 8, kind: input, shape index: {}]
  %s9 = inlined_call_operand.vmem [shape: f32[1,128], index: 9, kind: input, shape index: {}]
  %s10 = inlined_call_operand.vmem [shape: f32[1,128], index: 10, kind: input, shape index: {}]
  %s11 = inlined_call_operand.vmem [shape: f32[2,24,128], index: 11, kind: output, shape index: {}]
  %s12 = sld [smem:[#allocation0]]
  $region77: #{discriminator_forward.8} parent=0
    _
  %s14 = ssub.s32 1, %s12
  %s15 = scalar_select 0, %s14, %s12
  loop: start=0, step=1, limit=4
  $region2: #{discriminator_forward.8} parent=0 // loop_pre_header
    _
  $region3: #{discriminator_forward.8} parent=0 // loop_header
    %s17 = sphi 0, %s21
    %p18 = scmp.ge.s32.totalorder %s17, 4
    %s27 = sphi 0, %s29
    %s30 = sphi 0, %s27
    %s31 = sphi 0, %s30
    %s47 = sphi 0, %s31
    %s53 = sphi 0, %s55
    %s56 = sphi 0, %s53
    %s57 = sphi 0, %s56
    %s73 = sphi 0, %s57
    %s79 = sphi 0, %s81
    %s82 = sphi 0, %s79
    %s83 = sphi 0, %s82
    %s99 = sphi 0, %s83
    %s103 = sphi 0, %s103
    %s105 = sphi 0, %s103
    %s106 = sphi 0, %s105
    %s120 = sphi 0, %s106
    %s124 = sphi 0, %s124
    %s126 = sphi 0, %s124
    %s127 = sphi 0, %s126
    %s141 = sphi 0, %s127
    %s145 = sphi 0, %s145
    %s147 = sphi 0, %s145
    %s148 = sphi 0, %s147
    %s162 = sphi 0, %s148
    %s166 = sphi 0, %s166
    %s168 = sphi 0, %s166
    %s169 = sphi 0, %s168
    %s183 = sphi 0, %s169
    %s187 = sphi 0, %s187
    %s189 = sphi 0, %s187
    %s190 = sphi 0, %s189
    %s204 = sphi 0, %s190
    %s208 = sphi 0, %s208
    %s210 = sphi 0, %s208
    %s211 = sphi 0, %s210
    %s225 = sphi 0, %s211
    %s229 = sphi 0, %s229
    %s231 = sphi 0, %s229
    %s232 = sphi 0, %s231
    %s246 = sphi 0, %s232
    %s250 = sphi 0, %s250
    %s252 = sphi 0, %s250
    %s253 = sphi 0, %s252
    %s267 = sphi 0, %s253
    %s273 = sphi 0, %s275
    %s276 = sphi 0, %s273
    %s277 = sphi 0, %s276
    %s293 = sphi 0, %s277
  $region4: #{discriminator_forward.8} parent=0 // loop_header_branch
    %20 = sbr.rel (%p18) target = $region8
  $region5: #{discriminator_forward.8} parent=0 // loop_body
    %s22 = ssub.s32 %s17, 1
    %s23 = ssub.s32 %s17, 2
    %s24 = sadd.s32 %s17, 1
    %s25 = ssub.s32 %s17, %s24
    %p26 = scmp.eq.s32.totalorder %s25, 0
    %s28 = sadd.s32 %s27, 1
    %s29 = scalar_select %p26, %s27, %s28
    %p32 = pneg %p26
    %p33 = scmp.eq.s32.totalorder %s17, 1
    %p34 = por %p32, %p33
    %p35 = scmp.ne.s32.totalorder %s27, %s30
    %p36 = scmp.eq.s32.totalorder %s17, 0
    %p37 = por %p35, %p36
    %p38 = scmp.ne.s32.totalorder %s27, %s30
    %p39 = scmp.eq.s32.totalorder %s22, 1
    %p40 = por %p38, %p39
    %p41 = scmp.ne.s32.totalorder %s30, %s31
    %p42 = scmp.eq.s32.totalorder %s22, 0
    %p43 = por %p41, %p42
    %p44 = scmp.ne.s32.totalorder %s30, %s31
    %p45 = scmp.eq.s32.totalorder %s23, 1
    %p46 = por %p44, %p45
    %p48 = scmp.ne.s32.totalorder %s31, %s47
    %p49 = scmp.eq.s32.totalorder %s23, 0
    %p50 = por %p48, %p49
    %s51 = ssub.s32 %s17, %s24
    %p52 = scmp.eq.s32.totalorder %s51, 0
    %s54 = sadd.s32 %s53, 1
    %s55 = scalar_select %p52, %s53, %s54
    %p58 = pneg %p52
    %p59 = scmp.eq.s32.totalorder %s17, 1
    %p60 = por %p58, %p59
    %p61 = scmp.ne.s32.totalorder %s53, %s56
    %p62 = scmp.eq.s32.totalorder %s17, 0
    %p63 = por %p61, %p62
    %p64 = scmp.ne.s32.totalorder %s53, %s56
    %p65 = scmp.eq.s32.totalorder %s22, 1
    %p66 = por %p64, %p65
    %p67 = scmp.ne.s32.totalorder %s56, %s57
    %p68 = scmp.eq.s32.totalorder %s22, 0
    %p69 = por %p67, %p68
    %p70 = scmp.ne.s32.totalorder %s56, %s57
    %p71 = scmp.eq.s32.totalorder %s23, 1
    %p72 = por %p70, %p71
    %p74 = scmp.ne.s32.totalorder %s57, %s73
    %p75 = scmp.eq.s32.totalorder %s23, 0
    %p76 = por %p74, %p75
    %s77 = ssub.s32 %s17, %s24
    %p78 = scmp.eq.s32.totalorder %s77, 0
    %s80 = sadd.s32 %s79, 1
    %s81 = scalar_select %p78, %s79, %s80
    %p84 = pneg %p78
    %p85 = scmp.eq.s32.totalorder %s17, 1
    %p86 = por %p84, %p85
    %p87 = scmp.ne.s32.totalorder %s79, %s82
    %p88 = scmp.eq.s32.totalorder %s17, 0
    %p89 = por %p87, %p88
    %p90 = scmp.ne.s32.totalorder %s79, %s82
    %p91 = scmp.eq.s32.totalorder %s22, 1
    %p92 = por %p90, %p91
    %p93 = scmp.ne.s32.totalorder %s82, %s83
    %p94 = scmp.eq.s32.totalorder %s22, 0
    %p95 = por %p93, %p94
    %p96 = scmp.ne.s32.totalorder %s82, %s83
    %p97 = scmp.eq.s32.totalorder %s23, 1
    %p98 = por %p96, %p97
    %p100 = scmp.ne.s32.totalorder %s83, %s99
    %p101 = scmp.eq.s32.totalorder %s23, 0
    %p102 = por %p100, %p101
    %s104 = sadd.s32 %s103, 1
    %p107 = scmp.eq.s32.totalorder %s17, 1
    %p108 = scmp.ne.s32.totalorder %s103, %s105
    %p109 = scmp.eq.s32.totalorder %s17, 0
    %p110 = por %p108, %p109
    %p111 = scmp.ne.s32.totalorder %s103, %s105
    %p112 = scmp.eq.s32.totalorder %s22, 1
    %p113 = por %p111, %p112
    %p114 = scmp.ne.s32.totalorder %s105, %s106
    %p115 = scmp.eq.s32.totalorder %s22, 0
    %p116 = por %p114, %p115
    %p117 = scmp.ne.s32.totalorder %s105, %s106
    %p118 = scmp.eq.s32.totalorder %s23, 1
    %p119 = por %p117, %p118
    %p121 = scmp.ne.s32.totalorder %s106, %s120
    %p122 = scmp.eq.s32.totalorder %s23, 0
    %p123 = por %p121, %p122
    %s125 = sadd.s32 %s124, 1
    %p128 = scmp.eq.s32.totalorder %s17, 1
    %p129 = scmp.ne.s32.totalorder %s124, %s126
    %p130 = scmp.eq.s32.totalorder %s17, 0
    %p131 = por %p129, %p130
    %p132 = scmp.ne.s32.totalorder %s124, %s126
    %p133 = scmp.eq.s32.totalorder %s22, 1
    %p134 = por %p132, %p133
    %p135 = scmp.ne.s32.totalorder %s126, %s127
    %p136 = scmp.eq.s32.totalorder %s22, 0
    %p137 = por %p135, %p136
    %p138 = scmp.ne.s32.totalorder %s126, %s127
    %p139 = scmp.eq.s32.totalorder %s23, 1
    %p140 = por %p138, %p139
    %p142 = scmp.ne.s32.totalorder %s127, %s141
    %p143 = scmp.eq.s32.totalorder %s23, 0
    %p144 = por %p142, %p143
    %s146 = sadd.s32 %s145, 1
    %p149 = scmp.eq.s32.totalorder %s17, 1
    %p150 = scmp.ne.s32.totalorder %s145, %s147
    %p151 = scmp.eq.s32.totalorder %s17, 0
    %p152 = por %p150, %p151
    %p153 = scmp.ne.s32.totalorder %s145, %s147
    %p154 = scmp.eq.s32.totalorder %s22, 1
    %p155 = por %p153, %p154
    %p156 = scmp.ne.s32.totalorder %s147, %s148
    %p157 = scmp.eq.s32.totalorder %s22, 0
    %p158 = por %p156, %p157
    %p159 = scmp.ne.s32.totalorder %s147, %s148
    %p160 = scmp.eq.s32.totalorder %s23, 1
    %p161 = por %p159, %p160
    %p163 = scmp.ne.s32.totalorder %s148, %s162
    %p164 = scmp.eq.s32.totalorder %s23, 0
    %p165 = por %p163, %p164
    %s167 = sadd.s32 %s166, 1
    %p170 = scmp.eq.s32.totalorder %s17, 1
    %p171 = scmp.ne.s32.totalorder %s166, %s168
    %p172 = scmp.eq.s32.totalorder %s17, 0
    %p173 = por %p171, %p172
    %p174 = scmp.ne.s32.totalorder %s166, %s168
    %p175 = scmp.eq.s32.totalorder %s22, 1
    %p176 = por %p174, %p175
    %p177 = scmp.ne.s32.totalorder %s168, %s169
    %p178 = scmp.eq.s32.totalorder %s22, 0
    %p179 = por %p177, %p178
    %p180 = scmp.ne.s32.totalorder %s168, %s169
    %p181 = scmp.eq.s32.totalorder %s23, 1
    %p182 = por %p180, %p181
    %p184 = scmp.ne.s32.totalorder %s169, %s183
    %p185 = scmp.eq.s32.totalorder %s23, 0
    %p186 = por %p184, %p185
    %s188 = sadd.s32 %s187, 1
    %p191 = scmp.eq.s32.totalorder %s17, 1
    %p192 = scmp.ne.s32.totalorder %s187, %s189
    %p193 = scmp.eq.s32.totalorder %s17, 0
    %p194 = por %p192, %p193
    %p195 = scmp.ne.s32.totalorder %s187, %s189
    %p196 = scmp.eq.s32.totalorder %s22, 1
    %p197 = por %p195, %p196
    %p198 = scmp.ne.s32.totalorder %s189, %s190
    %p199 = scmp.eq.s32.totalorder %s22, 0
    %p200 = por %p198, %p199
    %p201 = scmp.ne.s32.totalorder %s189, %s190
    %p202 = scmp.eq.s32.totalorder %s23, 1
    %p203 = por %p201, %p202
    %p205 = scmp.ne.s32.totalorder %s190, %s204
    %p206 = scmp.eq.s32.totalorder %s23, 0
    %p207 = por %p205, %p206
    %s209 = sadd.s32 %s208, 1
    %p212 = scmp.eq.s32.totalorder %s17, 1
    %p213 = scmp.ne.s32.totalorder %s208, %s210
    %p214 = scmp.eq.s32.totalorder %s17, 0
    %p215 = por %p213, %p214
    %p216 = scmp.ne.s32.totalorder %s208, %s210
    %p217 = scmp.eq.s32.totalorder %s22, 1
    %p218 = por %p216, %p217
    %p219 = scmp.ne.s32.totalorder %s210, %s211
    %p220 = scmp.eq.s32.totalorder %s22, 0
    %p221 = por %p219, %p220
    %p222 = scmp.ne.s32.totalorder %s210, %s211
    %p223 = scmp.eq.s32.totalorder %s23, 1
    %p224 = por %p222, %p223
    %p226 = scmp.ne.s32.totalorder %s211, %s225
    %p227 = scmp.eq.s32.totalorder %s23, 0
    %p228 = por %p226, %p227
    %s230 = sadd.s32 %s229, 1
    %p233 = scmp.eq.s32.totalorder %s17, 1
    %p234 = scmp.ne.s32.totalorder %s229, %s231
    %p235 = scmp.eq.s32.totalorder %s17, 0
    %p236 = por %p234, %p235
    %p237 = scmp.ne.s32.totalorder %s229, %s231
    %p238 = scmp.eq.s32.totalorder %s22, 1
    %p239 = por %p237, %p238
    %p240 = scmp.ne.s32.totalorder %s231, %s232
    %p241 = scmp.eq.s32.totalorder %s22, 0
    %p242 = por %p240, %p241
    %p243 = scmp.ne.s32.totalorder %s231, %s232
    %p244 = scmp.eq.s32.totalorder %s23, 1
    %p245 = por %p243, %p244
    %p247 = scmp.ne.s32.totalorder %s232, %s246
    %p248 = scmp.eq.s32.totalorder %s23, 0
    %p249 = por %p247, %p248
    %s251 = sadd.s32 %s250, 1
    %p254 = scmp.eq.s32.totalorder %s17, 1
    %p255 = scmp.ne.s32.totalorder %s250, %s252
    %p256 = scmp.eq.s32.totalorder %s17, 0
    %p257 = por %p255, %p256
    %p258 = scmp.ne.s32.totalorder %s250, %s252
    %p259 = scmp.eq.s32.totalorder %s22, 1
    %p260 = por %p258, %p259
    %p261 = scmp.ne.s32.totalorder %s252, %s253
    %p262 = scmp.eq.s32.totalorder %s22, 0
    %p263 = por %p261, %p262
    %p264 = scmp.ne.s32.totalorder %s252, %s253
    %p265 = scmp.eq.s32.totalorder %s23, 1
    %p266 = por %p264, %p265
    %p268 = scmp.ne.s32.totalorder %s253, %s267
    %p269 = scmp.eq.s32.totalorder %s23, 0
    %p270 = por %p268, %p269
    %s271 = ssub.s32 %s17, %s24
    %p272 = scmp.eq.s32.totalorder %s271, 0
    %s274 = sadd.s32 %s273, 1
    %s275 = scalar_select %p272, %s273, %s274
    %p278 = pneg %p272
    %p279 = scmp.eq.s32.totalorder %s17, 1
    %p280 = por %p278, %p279
    %p281 = scmp.ne.s32.totalorder %s273, %s276
    %p282 = scmp.eq.s32.totalorder %s17, 0
    %p283 = por %p281, %p282
    %p284 = scmp.ne.s32.totalorder %s273, %s276
    %p285 = scmp.eq.s32.totalorder %s22, 1
    %p286 = por %p284, %p285
    %p287 = scmp.ne.s32.totalorder %s276, %s277
    %p288 = scmp.eq.s32.totalorder %s22, 0
    %p289 = por %p287, %p288
    %p290 = scmp.ne.s32.totalorder %s276, %s277
    %p291 = scmp.eq.s32.totalorder %s23, 1
    %p292 = por %p290, %p291
    %p294 = scmp.ne.s32.totalorder %s277, %s293
    %p295 = scmp.eq.s32.totalorder %s23, 0
    %p296 = por %p294, %p295
    %p297 = scmp.le.s32.totalorder 1, %s17
    %p298 = scmp.lt.s32.totalorder %s17, 3
    %p299 = pnand %p297, %p298
    %p300 = pneg %p299
    // Predicated region
    $region9: #{discriminator_forward.8} parent=5 // pred_check
      _
    $region10: #{discriminator_forward.8} parent=5 // pred_check_branch
      %302 = sbr.rel (%p299) target = $region12
    $region11: #{discriminator_forward.8} parent=5 // pred_region
      %s303 = ssub.s32 %s17, 1
      // Predicated region
      $region13: #{discriminator_forward.8} parent=11 // pred_check
        %p304 = pneg %p116
      $region14: #{discriminator_forward.8} parent=11 // pred_check_branch
        %306 = sbr.rel (%p304) target = $region16
      $region15: #{discriminator_forward.8} parent=11 // pred_region
        _
      $region16: #{discriminator_forward.8} parent=11 // pred_fallthru
        _
      // Predicated region
      $region17: #{discriminator_forward.8} parent=11 // pred_check
        %p307 = pneg %p137
      $region18: #{discriminator_forward.8} parent=11 // pred_check_branch
        %309 = sbr.rel (%p307) target = $region20
      $region19: #{discriminator_forward.8} parent=11 // pred_region
        _
      $region20: #{discriminator_forward.8} parent=11 // pred_fallthru
        _
      // Predicated region
      $region21: #{discriminator_forward.8} parent=11 // pred_check
        %p310 = pneg %p158
      $region22: #{discriminator_forward.8} parent=11 // pred_check_branch
        %312 = sbr.rel (%p310) target = $region24
      $region23: #{discriminator_forward.8} parent=11 // pred_region
        _
      $region24: #{discriminator_forward.8} parent=11 // pred_fallthru
        _
      // Predicated region
      $region25: #{discriminator_forward.8} parent=11 // pred_check
        %p313 = pneg %p179
      $region26: #{discriminator_forward.8} parent=11 // pred_check_branch
        %315 = sbr.rel (%p313) target = $region28
      $region27: #{discriminator_forward.8} parent=11 // pred_region
        _
      $region28: #{discriminator_forward.8} parent=11 // pred_fallthru
        _
      // Predicated region
      $region29: #{discriminator_forward.8} parent=11 // pred_check
        %p316 = pneg %p200
      $region30: #{discriminator_forward.8} parent=11 // pred_check_branch
        %318 = sbr.rel (%p316) target = $region32
      $region31: #{discriminator_forward.8} parent=11 // pred_region
        _
      $region32: #{discriminator_forward.8} parent=11 // pred_fallthru
        _
      // Predicated region
      $region33: #{discriminator_forward.8} parent=11 // pred_check
        %p319 = pneg %p221
      $region34: #{discriminator_forward.8} parent=11 // pred_check_branch
        %321 = sbr.rel (%p319) target = $region36
      $region35: #{discriminator_forward.8} parent=11 // pred_region
        _
      $region36: #{discriminator_forward.8} parent=11 // pred_fallthru
        _
      // Predicated region
      $region37: #{discriminator_forward.8} parent=11 // pred_check
        %p322 = pneg %p242
      $region38: #{discriminator_forward.8} parent=11 // pred_check_branch
        %324 = sbr.rel (%p322) target = $region40
      $region39: #{discriminator_forward.8} parent=11 // pred_region
        _
      $region40: #{discriminator_forward.8} parent=11 // pred_fallthru
        _
      // Predicated region
      $region41: #{discriminator_forward.8} parent=11 // pred_check
        %p325 = pneg %p263
      $region42: #{discriminator_forward.8} parent=11 // pred_check_branch
        %327 = sbr.rel (%p325) target = $region44
      $region43: #{discriminator_forward.8} parent=11 // pred_region
        _
      $region44: #{discriminator_forward.8} parent=11 // pred_fallthru
        _
    $region12: #{discriminator_forward.8} parent=5 // pred_fallthru
      _
    %p328 = scmp.lt.s32.totalorder %s17, 2
    // Predicated region
    $region45: #{discriminator_forward.8} parent=5 // pred_check
      %p329 = pneg %p328
    $region46: #{discriminator_forward.8} parent=5 // pred_check_branch
      %331 = sbr.rel (%p329) target = $region48
    $region47: #{discriminator_forward.8} parent=5 // pred_region
      // Predicated region
      $region49: #{discriminator_forward.8} parent=47 // pred_check
        %p332 = pneg %p37
      $region50: #{discriminator_forward.8} parent=47 // pred_check_branch
        %334 = sbr.rel (%p332) target = $region52
      $region51: #{discriminator_forward.8} parent=47 // pred_region
        %p335 = scmp.lt.s32.totalorder %s17, 1
        %s336 = scalar_select %p335, %s17, 1
        %s337 = smul.addr %s336, 5
        %s338 = smul.addr %s337, 8
        %s339 = scalar_lea.vmem %s0, %s338
      $region52: #{discriminator_forward.8} parent=47 // pred_fallthru
        _
      // Predicated region
      $region53: #{discriminator_forward.8} parent=47 // pred_check
        %p340 = pneg %p63
      $region54: #{discriminator_forward.8} parent=47 // pred_check_branch
        %342 = sbr.rel (%p340) target = $region56
      $region55: #{discriminator_forward.8} parent=47 // pred_region
        %p343 = scmp.lt.s32.totalorder %s17, 1
        %s344 = scalar_select %p343, %s17, 1
        %s345 = smul.addr %s344, 2
        %s346 = smul.addr %s345, 8
        %s347 = scalar_lea.vmem %s1, %s346
      $region56: #{discriminator_forward.8} parent=47 // pred_fallthru
        _
      // Predicated region
      $region57: #{discriminator_forward.8} parent=47 // pred_check
        %p348 = pneg %p89
      $region58: #{discriminator_forward.8} parent=47 // pred_check_branch
        %350 = sbr.rel (%p348) target = $region60
      $region59: #{discriminator_forward.8} parent=47 // pred_region
        %p351 = scmp.lt.s32.totalorder %s17, 1
        %s352 = scalar_select %p351, %s17, 1
        %s353 = scalar_lea.vmem %s2, %s352
      $region60: #{discriminator_forward.8} parent=47 // pred_fallthru
        _
    $region48: #{discriminator_forward.8} parent=5 // pred_fallthru
      _
    %p354 = scmp.le.s32.totalorder 1, %s17
    %p355 = scmp.lt.s32.totalorder %s17, 3
    %p356 = pnand %p354, %p355
    %p357 = pneg %p356
    // Predicated region
    $region61: #{discriminator_forward.8} parent=5 // pred_check
      _
    $region62: #{discriminator_forward.8} parent=5 // pred_check_branch
      %359 = sbr.rel (%p356) target = $region64
    $region63: #{discriminator_forward.8} parent=5 // pred_region
      %s360 = ssub.s32 %s17, 1
      %p361 = scmp.lt.s32.totalorder %s22, 1
      %s362 = scalar_select %p361, %s22, 1
      %s363 = smul.addr %s362, 5
      %s364 = smul.addr %s363, 8
      %s365 = scalar_lea.vmem %s0, %s364
      %p366 = pneg %p43
      %p367 = pneg %p40
      %p368 = scmp.lt.s32.totalorder %s22, 1
      %s369 = scalar_select %p368, %s22, 1
      %s370 = smul.addr %s369, 2
      %s371 = smul.addr %s370, 8
      %s372 = scalar_lea.vmem %s1, %s371
      %p373 = pneg %p69
      %p374 = pneg %p66
      %p375 = scmp.lt.s32.totalorder %s22, 1
      %s376 = scalar_select %p375, %s22, 1
      %s377 = scalar_lea.vmem %s2, %s376
      %p378 = pneg %p95
      %p379 = pneg %p92
      %p380 = pneg %p116
      %p381 = pneg %p113
      %p382 = pneg %p137
      %p383 = pneg %p134
      %p384 = pneg %p158
      %p385 = pneg %p155
      %p386 = pneg %p179
      %p387 = pneg %p176
      %p388 = pneg %p200
      %p389 = pneg %p197
      %p390 = pneg %p221
      %p391 = pneg %p218
      %p392 = pneg %p242
      %p393 = pneg %p239
      %p394 = pneg %p263
      %p395 = pneg %p260
      %p396 = pneg %p289
      %p397 = pneg %p286
      %p398 = scmp.lt.s32.totalorder %s22, 1
      %s399 = scalar_select %p398, %s22, 1
      %s400 = smul.addr %s399, 3
      %s401 = smul.addr %s400, 8
      %s402 = scalar_lea.vmem %s11, %s401
      %p403 = scmp.lt.s32.totalorder %s22, 1
      %s404 = scalar_select %p403, %s22, 1
      %s405 = smul.addr %s404, 5
      %s406 = smul.addr %s405, 8
      %s407 = scalar_lea.vmem %s0, %s406
      %p408 = scmp.lt.s32.totalorder %s22, 1
      %s409 = scalar_select %p408, %s22, 1
      %s410 = smul.addr %s409, 2
      %s411 = smul.addr %s410, 8
      %s412 = scalar_lea.vmem %s1, %s411
      %p413 = scmp.lt.s32.totalorder %s22, 1
      %s414 = scalar_select %p413, %s22, 1
      %s415 = scalar_lea.vmem %s2, %s414
      %p416 = scmp.lt.s32.totalorder %s22, 1
      %s417 = scalar_select %p416, %s22, 1
      %s418 = smul.addr %s417, 3
      %s419 = smul.addr %s418, 8
      %s420 = scalar_lea.vmem %s11, %s419
      %v422 = vld [vmem:[%s415] sm:$0x1]
      %v424 = vlaneseq
      %v425 = vshrl.u32 %v424, 7
      %v426 = vsub.s32 0, %v425
      %v427 = vrot.slane %v422, %v426
      %v429 = vadd.f32 %v427, 0.0
      %v430 = vld [vmem:[%s407] sm:$0xff]
      %v431 = vld [vmem:[%s407 + $0x8] sm:$0xff]
      %v432 = vld [vmem:[%s407 + $0x10] sm:$0xff]
      %v433 = vld [vmem:[%s412] sm:$0x1]
      %v434 = vlaneseq
      %v435 = vshrl.u32 %v434, 7
      %v436 = vsub.s32 0, %v435
      %v437 = vrot.slane %v433, %v436
      %v438 = vmul.f32 %v430, %v437
      %v439 = vmul.f32 %v431, %v437
      %v440 = vmul.f32 %v432, %v437
      %v441 = vadd.f32 %v429, %v438
      %v442 = vadd.f32 %v429, %v439
      %v443 = vadd.f32 %v429, %v440
      %v444 = vld [vmem:[%s407 + $0x1] sm:$0xff]
      %v445 = vld [vmem:[%s407 + $0x9] sm:$0xff]
      %v446 = vld [vmem:[%s407 + $0x11] sm:$0xff]
      %v447 = vld [vmem:[%s412 + $0x1] sm:$0x1]
      %v448 = vlaneseq
      %v449 = vshrl.u32 %v448, 7
      %v450 = vsub.s32 0, %v449
      %v451 = vrot.slane %v447, %v450
      %v452 = vmul.f32 %v444, %v451
      %v453 = vmul.f32 %v445, %v451
      %v454 = vmul.f32 %v446, %v451
      %v455 = vadd.f32 %v441, %v452
      %v456 = vadd.f32 %v442, %v453
      %v457 = vadd.f32 %v443, %v454
      %v458 = vld [vmem:[%s407 + $0x2] sm:$0xff]
      %v459 = vld [vmem:[%s407 + $0xa] sm:$0xff]
      %v460 = vld [vmem:[%s407 + $0x12] sm:$0xff]
      %v461 = vld [vmem:[%s412 + $0x2] sm:$0x1]
      %v462 = vlaneseq
      %v463 = vshrl.u32 %v462, 7
      %v464 = vsub.s32 0, %v463
      %v465 = vrot.slane %v461, %v464
      %v466 = vmul.f32 %v458, %v465
      %v467 = vmul.f32 %v459, %v465
      %v468 = vmul.f32 %v460, %v465
      %v469 = vadd.f32 %v455, %v466
      %v470 = vadd.f32 %v456, %v467
      %v471 = vadd.f32 %v457, %v468
      %v472 = vld [vmem:[%s407 + $0x6] sm:$0xff]
      %v473 = vld [vmem:[%s407 + $0xe] sm:$0xff]
      %v474 = vld [vmem:[%s407 + $0x16] sm:$0xff]
      %v475 = vld [vmem:[%s412 + $0x3] sm:$0x1]
      %v476 = vlaneseq
      %v477 = vshrl.u32 %v476, 7
      %v478 = vsub.s32 0, %v477
      %v479 = vrot.slane %v475, %v478
      %v480 = vmul.f32 %v472, %v479
      %v481 = vmul.f32 %v473, %v479
      %v482 = vmul.f32 %v474, %v479
      %v483 = vadd.f32 %v469, %v480
      %v484 = vadd.f32 %v470, %v481
      %v485 = vadd.f32 %v471, %v482
      %v486 = vld [vmem:[%s407 + $0x7] sm:$0xff]
      %v487 = vld [vmem:[%s407 + $0xf] sm:$0xff]
      %v488 = vld [vmem:[%s407 + $0x17] sm:$0xff]
      %v489 = vld [vmem:[%s412 + $0x4] sm:$0x1]
      %v490 = vlaneseq
      %v491 = vshrl.u32 %v490, 7
      %v492 = vsub.s32 0, %v491
      %v493 = vrot.slane %v489, %v492
      %v494 = vmul.f32 %v486, %v493
      %v495 = vmul.f32 %v487, %v493
      %v496 = vmul.f32 %v488, %v493
      %v497 = vadd.f32 %v483, %v494
      %v498 = vadd.f32 %v484, %v495
      %v499 = vadd.f32 %v485, %v496
      %v500 = vld [vmem:[%s407 + $0x18] sm:$0xff]
      %v501 = vld [vmem:[%s412 + $0x5] sm:$0x1]
      %v502 = vlaneseq
      %v503 = vshrl.u32 %v502, 7
      %v504 = vsub.s32 0, %v503
      %v505 = vrot.slane %v501, %v504
      %v506 = vmul.f32 %v431, %v505
      %v507 = vmul.f32 %v432, %v505
      %v508 = vmul.f32 %v500, %v505
      %v509 = vadd.f32 %v497, %v506
      %v510 = vadd.f32 %v498, %v507
      %v511 = vadd.f32 %v499, %v508
      %v512 = vld [vmem:[%s407 + $0xc] sm:$0xff]
      %v513 = vld [vmem:[%s407 + $0x14] sm:$0xff]
      %v514 = vld [vmem:[%s407 + $0x1c] sm:$0xff]
      %v515 = vld [vmem:[%s412 + $0x6] sm:$0x1]
      %v516 = vlaneseq
      %v517 = vshrl.u32 %v516, 7
      %v518 = vsub.s32 0, %v517
      %v519 = vrot.slane %v515, %v518
      %v520 = vmul.f32 %v512, %v519
      %v521 = vmul.f32 %v513, %v519
      %v522 = vmul.f32 %v514, %v519
      %v523 = vadd.f32 %v509, %v520
      %v524 = vadd.f32 %v510, %v521
      %v525 = vadd.f32 %v511, %v522
      %v526 = vld [vmem:[%s407 + $0xd] sm:$0xff]
      %v527 = vld [vmem:[%s407 + $0x15] sm:$0xff]
      %v528 = vld [vmem:[%s407 + $0x1d] sm:$0xff]
      %v529 = vld [vmem:[%s412 + $0x7] sm:$0x1]
      %v530 = vlaneseq
      %v531 = vshrl.u32 %v530, 7
      %v532 = vsub.s32 0, %v531
      %v533 = vrot.slane %v529, %v532
      %v534 = vmul.f32 %v526, %v533
      %v535 = vmul.f32 %v527, %v533
      %v536 = vmul.f32 %v528, %v533
      %v537 = vadd.f32 %v523, %v534
      %v538 = vadd.f32 %v524, %v535
      %v539 = vadd.f32 %v525, %v536
      %v540 = vld [vmem:[%s407 + $0x1e] sm:$0xff]
      %v541 = vld [vmem:[%s412 + $0x8] sm:$0x1]
      %v542 = vlaneseq
      %v543 = vshrl.u32 %v542, 7
      %v544 = vsub.s32 0, %v543
      %v545 = vrot.slane %v541, %v544
      %v546 = vmul.f32 %v473, %v545
      %v547 = vmul.f32 %v474, %v545
      %v548 = vmul.f32 %v540, %v545
      %v549 = vadd.f32 %v537, %v546
      %v550 = vadd.f32 %v538, %v547
      %v551 = vadd.f32 %v539, %v548
      %v552 = vld [vmem:[%s5] sm:$0x1]
      %v554 = vlaneseq
      %v555 = vshrl.u32 %v554, 7
      %v556 = vsub.s32 0, %v555
      %v557 = vrot.slane %v552, %v556
      %v559 = vmul.f32 %v549, %v557
      %v560 = vmul.f32 %v550, %v557
      %v561 = vmul.f32 %v551, %v557
      %562 = vadd.xlane.f32.xlu0 %v559
      %v563 = vpop.xlane.xlu0 %562
      %564 = vadd.xlane.f32.xlu0 %v560
      %v565 = vpop.xlane.xlu0 %564
      %566 = vadd.xlane.f32.xlu0 %v561
      %v567 = vpop.xlane.xlu0 %566
      %v568 = vmul.f32 %v563, 0.015625
      %v569 = vmul.f32 %v565, 0.015625
      %v570 = vmul.f32 %v567, 0.015625
      %v571 = vsub.f32 %v549, %v568
      %v572 = vsub.f32 %v550, %v569
      %v573 = vsub.f32 %v551, %v570
      %v574 = vmul.f32 %v571, %v557
      %v575 = vmul.f32 %v572, %v557
      %v576 = vmul.f32 %v573, %v557
      %v577 = vmul.f32 %v574, %v574
      %v578 = vmul.f32 %v575, %v575
      %v579 = vmul.f32 %v576, %v576
      %580 = vadd.xlane.f32.xlu0 %v577
      %v581 = vpop.xlane.xlu0 %580
      %582 = vadd.xlane.f32.xlu0 %v578
      %v583 = vpop.xlane.xlu0 %582
      %584 = vadd.xlane.f32.xlu0 %v579
      %v585 = vpop.xlane.xlu0 %584
      %v586 = vmul.f32 %v581, 0.015625
      %v587 = vmul.f32 %v583, 0.015625
      %v588 = vmul.f32 %v585, 0.015625
      %v589 = vadd.f32 %v586, 1e-06
      %v590 = vadd.f32 %v587, 1e-06
      %v591 = vadd.f32 %v588, 1e-06
      %v592 = vrsqrt.pop %v589
      %v593 = vrsqrt.pop %v590
      %v594 = vrsqrt.pop %v591
      %v595 = vmul.f32 %v574, %v592
      %v596 = vmul.f32 %v575, %v593
      %v597 = vmul.f32 %v576, %v594
      %v598 = vld [vmem:[%s3] sm:$0x1]
      %v600 = vlaneseq
      %v601 = vshrl.u32 %v600, 7
      %v602 = vsub.s32 0, %v601
      %v603 = vrot.slane %v598, %v602
      %v605 = vmul.f32 %v595, %v603
      %v606 = vmul.f32 %v596, %v603
      %v607 = vmul.f32 %v597, %v603
      %v608 = vld [vmem:[%s4] sm:$0x1]
      %v610 = vlaneseq
      %v611 = vshrl.u32 %v610, 7
      %v612 = vsub.s32 0, %v611
      %v613 = vrot.slane %v608, %v612
      %v615 = vadd.f32 %v605, %v613
      %v616 = vadd.f32 %v606, %v613
      %v617 = vadd.f32 %v607, %v613
      %v618 = vpack.c.bf16 %v616, %v615
      %v619 = vpack.c.bf16 %v617, %v617
      %v620 = vld [vmem:[%s6] sm:$0xff]
      %v621 = vld [vmem:[%s6 + $0x8] sm:$0xff]
      %v622 = vld [vmem:[%s6 + $0x10] sm:$0xff]
      %v623 = vld [vmem:[%s6 + $0x18] sm:$0xff]
      %v624 = vld [vmem:[%s6 + $0x20] sm:$0xff]
      %v625 = vld [vmem:[%s6 + $0x28] sm:$0xff]
      %v626 = vld [vmem:[%s6 + $0x30] sm:$0xff]
      %v627 = vld [vmem:[%s6 + $0x38] sm:$0xff]
      %v628 = vld [vmem:[%s6 + $0x40] sm:$0xff]
      %v629 = vld [vmem:[%s6 + $0x48] sm:$0xff]
      %v630 = vld [vmem:[%s6 + $0x50] sm:$0xff]
      %v631 = vld [vmem:[%s6 + $0x58] sm:$0xff]
      %v632 = vld [vmem:[%s6 + $0x60] sm:$0xff]
      %v633 = vld [vmem:[%s6 + $0x68] sm:$0xff]
      %v634 = vld [vmem:[%s6 + $0x70] sm:$0xff]
      %v635 = vld [vmem:[%s6 + $0x78] sm:$0xff]
      %v636 = vld [vmem:[%s7] sm:$0x3]
      %v638 = vlaneseq
      %v639 = vshrl.u32 %v638, 7
      %v640 = vsub.s32 0, %v639
      %v641 = vrot.slane %v636, %v640
      %v642 = vlaneseq
      %v643 = vshrl.u32 %v642, 7
      %v644 = vsub.s32 1, %v643
      %v645 = vrot.slane %v636, %v644
      %v664 = vunpack.c.l.b16 %v620
      %v665 = vunpack.c.h.b16 %v620
      %v666 = vunpack.c.l.b16 %v621
      %v667 = vunpack.c.h.b16 %v621
      %v668 = vunpack.c.l.b16 %v622
      %v669 = vunpack.c.h.b16 %v622
      %v670 = vunpack.c.l.b16 %v623
      %v671 = vunpack.c.h.b16 %v623
      %v672 = vunpack.c.l.b16 %v624
      %v673 = vunpack.c.h.b16 %v624
      %v674 = vunpack.c.l.b16 %v625
      %v675 = vunpack.c.h.b16 %v625
      %v676 = vunpack.c.l.b16 %v626
      %v677 = vunpack.c.h.b16 %v626
      %v678 = vunpack.c.l.b16 %v627
      %v679 = vunpack.c.h.b16 %v627
      %v680 = vunpack.c.l.b16 %v628
      %v681 = vunpack.c.h.b16 %v628
      %v682 = vunpack.c.l.b16 %v629
      %v683 = vunpack.c.h.b16 %v629
      %v684 = vunpack.c.l.b16 %v630
      %v685 = vunpack.c.h.b16 %v630
      %v686 = vunpack.c.l.b16 %v631
      %v687 = vunpack.c.h.b16 %v631
      %v688 = vunpack.c.l.b16 %v632
      %v689 = vunpack.c.h.b16 %v632
      %v690 = vunpack.c.l.b16 %v633
      %v691 = vunpack.c.h.b16 %v633
      %v692 = vunpack.c.l.b16 %v634
      %v693 = vunpack.c.h.b16 %v634
      %v694 = vunpack.c.l.b16 %v635
      %v695 = vunpack.c.h.b16 %v635
      %v696 = vpack.c.b16 %v666, %v664
      %v697 = vpack.c.b16 %v667, %v665
      %v698 = vpack.c.b16 %v670, %v668
      %v699 = vpack.c.b16 %v671, %v669
      %v700 = vpack.c.b16 %v674, %v672
      %v701 = vpack.c.b16 %v675, %v673
      %v702 = vpack.c.b16 %v678, %v676
      %v703 = vpack.c.b16 %v679, %v677
      %v704 = vpack.c.b16 %v682, %v680
      %v705 = vpack.c.b16 %v683, %v681
      %v706 = vpack.c.b16 %v686, %v684
      %v707 = vpack.c.b16 %v687, %v685
      %v708 = vpack.c.b16 %v690, %v688
      %v709 = vpack.c.b16 %v691, %v689
      %v710 = vpack.c.b16 %v694, %v692
      %v711 = vpack.c.b16 %v695, %v693
      %728 = vmatprep.subr.bf16.mxu0 %v697
      %729 = vmatpush1.bf16.msra.mxu0 %v696
      %730 = vmatprep.subr.bf16.mxu0 %v699
      %731 = vmatpush1.bf16.msra.mxu0 %v698
      %732 = vmatprep.subr.bf16.mxu0 %v701
      %733 = vmatpush1.bf16.msra.mxu0 %v700
      %734 = vmatprep.subr.bf16.mxu0 %v703
      %735 = vmatpush1.bf16.msra.mxu0 %v702
      %736 = vmatprep.subr.bf16.mxu0 %v705
      %737 = vmatpush1.bf16.msra.mxu0 %v704
      %738 = vmatprep.subr.bf16.mxu0 %v707
      %739 = vmatpush1.bf16.msra.mxu0 %v706
      %740 = vmatprep.subr.bf16.mxu0 %v709
      %741 = vmatpush1.bf16.msra.mxu0 %v708
      %742 = vmatprep.subr.bf16.mxu0 %v711
      %743 = vmatpush1.bf16.msra.mxu0 %v710
      %744 = vmatprep.subr.bf16.mxu0 0
      %745 = vmatpush1.bf16.msra.mxu0 0
      %746 = vmatprep.subr.bf16.mxu0 0
      %747 = vmatpush1.bf16.msra.mxu0 0
      %748 = vmatprep.subr.bf16.mxu0 0
      %749 = vmatpush1.bf16.msra.mxu0 0
      %750 = vmatprep.subr.bf16.mxu0 0
      %751 = vmatpush1.bf16.msra.mxu0 0
      %752 = vmatprep.subr.bf16.mxu0 0
      %753 = vmatpush1.bf16.msra.mxu0 0
      %754 = vmatprep.subr.bf16.mxu0 0
      %755 = vmatpush1.bf16.msra.mxu0 0
      %756 = vmatprep.subr.bf16.mxu0 0
      %757 = vmatpush1.bf16.msra.mxu0 0
      %758 = vmatprep.subr.bf16.mxu0 0
      %759 = vmatpush1.bf16.msra.mxu0 0
      %760 = vmatprep.mubr.bf16.mxu0 0
      %761 = vmatmul.mubr.bf16.gmra.mrb[0].mxu0 %v618
      %v762 = vpop.f32.mrb[0].mxu0
      %v763 = vadd.f32 %v641, %v762
      %v764 = vpop.f32.mrb[0].mxu0
      %v765 = vadd.f32 %v645, %v764
      %v766 = vpop.f32.mrb[0].mxu0
      %v767 = vadd.f32 %v641, %v766
      %v768 = vpop.f32.mrb[0].mxu0
      %v769 = vadd.f32 %v645, %v768
      %770 = vmatprep.mubr.bf16.mxu0 0
      %771 = vmatmul.mubr.bf16.gmra.mrb[0].mxu0 %v619
      %v772 = vpop.f32.mrb[0].mxu0
      %v773 = vadd.f32 %v641, %v772
      %v774 = vpop.f32.mrb[0].mxu0
      %v775 = vadd.f32 %v645, %v774
      %v776 = vpop.f32.mrb[0].mxu0
      %v777 = vpop.f32.mrb[0].mxu0
      %778 = vdwg.mxu0
      %v779 = vmul.f32 %v763, %v763
      %v780 = vmul.f32 %v765, %v765
      %v781 = vmul.f32 %v767, %v767
      %v782 = vmul.f32 %v769, %v769
      %v783 = vmul.f32 %v773, %v773
      %v784 = vmul.f32 %v775, %v775
      %v785 = vmul.f32 %v763, %v779
      %v786 = vmul.f32 %v765, %v780
      %v787 = vmul.f32 %v767, %v781
      %v788 = vmul.f32 %v769, %v782
      %v789 = vmul.f32 %v773, %v783
      %v790 = vmul.f32 %v775, %v784
      %v791 = vmul.f32 %v785, 0.044715
      %v792 = vmul.f32 %v786, 0.044715
      %v793 = vmul.f32 %v787, 0.044715
      %v794 = vmul.f32 %v788, 0.044715
      %v795 = vmul.f32 %v789, 0.044715
      %v796 = vmul.f32 %v790, 0.044715
      %v797 = vadd.f32 %v763, %v791
      %v798 = vadd.f32 %v765, %v792
      %v799 = vadd.f32 %v767, %v793
      %v800 = vadd.f32 %v769, %v794
      %v801 = vadd.f32 %v773, %v795
      %v802 = vadd.f32 %v775, %v796
      %v803 = vmul.f32 %v797, 0.7978846
      %v804 = vmul.f32 %v798, 0.7978846
      %v805 = vmul.f32 %v799, 0.7978846
      %v806 = vmul.f32 %v800, 0.7978846
      %v807 = vmul.f32 %v801, 0.7978846
      %v808 = vmul.f32 %v802, 0.7978846
      %v809 = vtanh.pop %v803
      %v810 = vtanh.pop %v804
      %v811 = vtanh.pop %v805
      %v812 = vtanh.pop %v806
      %v813 = vtanh.pop %v807
      %v814 = vtanh.pop %v808
      %v815 = vadd.f32 %v809, 1.0
      %v816 = vadd.f32 %v810, 1.0
      %v817 = vadd.f32 %v811, 1.0
      %v818 = vadd.f32 %v812, 1.0
      %v819 = vadd.f32 %v813, 1.0
      %v820 = vadd.f32 %v814, 1.0
      %v821 = vmul.f32 %v815, 0.5
      %v822 = vmul.f32 %v816, 0.5
      %v823 = vmul.f32 %v817, 0.5
      %v824 = vmul.f32 %v818, 0.5
      %v825 = vmul.f32 %v819, 0.5
      %v826 = vmul.f32 %v820, 0.5
      %v827 = vmul.f32 %v763, %v821
      %v828 = vmul.f32 %v765, %v822
      %v829 = vmul.f32 %v767, %v823
      %v830 = vmul.f32 %v769, %v824
      %v831 = vmul.f32 %v773, %v825
      %v832 = vmul.f32 %v775, %v826
      %v833 = vpack.c.bf16 %v829, %v827
      %v834 = vpack.c.bf16 %v830, %v828
      %v835 = vpack.c.bf16 %v831, %v831
      %v836 = vpack.c.bf16 %v832, %v832
      %v837 = vld [vmem:[%s8] sm:$0xf]
      %v838 = vld [vmem:[%s8 + $0x4] sm:$0xf]
      %v839 = vld [vmem:[%s8 + $0x8] sm:$0xf]
      %v840 = vld [vmem:[%s8 + $0xc] sm:$0xf]
      %v841 = vld [vmem:[%s8 + $0x10] sm:$0xf]
      %v842 = vld [vmem:[%s8 + $0x14] sm:$0xf]
      %v843 = vld [vmem:[%s8 + $0x18] sm:$0xf]
      %v844 = vld [vmem:[%s8 + $0x1c] sm:$0xf]
      %v845 = vld [vmem:[%s8 + $0x20] sm:$0xf]
      %v846 = vld [vmem:[%s8 + $0x24] sm:$0xf]
      %v847 = vld [vmem:[%s8 + $0x28] sm:$0xf]
      %v848 = vld [vmem:[%s8 + $0x2c] sm:$0xf]
      %v849 = vld [vmem:[%s8 + $0x30] sm:$0xf]
      %v850 = vld [vmem:[%s8 + $0x34] sm:$0xf]
      %v851 = vld [vmem:[%s8 + $0x38] sm:$0xf]
      %v852 = vld [vmem:[%s8 + $0x3c] sm:$0xf]
      %v853 = vld [vmem:[%s8 + $0x40] sm:$0xf]
      %v854 = vld [vmem:[%s8 + $0x44] sm:$0xf]
      %v855 = vld [vmem:[%s8 + $0x48] sm:$0xf]
      %v856 = vld [vmem:[%s8 + $0x4c] sm:$0xf]
      %v857 = vld [vmem:[%s8 + $0x50] sm:$0xf]
      %v858 = vld [vmem:[%s8 + $0x54] sm:$0xf]
      %v859 = vld [vmem:[%s8 + $0x58] sm:$0xf]
      %v860 = vld [vmem:[%s8 + $0x5c] sm:$0xf]
      %v861 = vld [vmem:[%s8 + $0x60] sm:$0xf]
      %v862 = vld [vmem:[%s8 + $0x64] sm:$0xf]
      %v863 = vld [vmem:[%s8 + $0x68] sm:$0xf]
      %v864 = vld [vmem:[%s8 + $0x6c] sm:$0xf]
      %v865 = vld [vmem:[%s8 + $0x70] sm:$0xf]
      %v866 = vld [vmem:[%s8 + $0x74] sm:$0xf]
      %v867 = vld [vmem:[%s8 + $0x78] sm:$0xf]
      %v868 = vld [vmem:[%s8 + $0x7c] sm:$0xf]
      %v869 = vld [vmem:[%s9] sm:$0x1]
      %v871 = vlaneseq
      %v872 = vshrl.u32 %v871, 7
      %v873 = vsub.s32 0, %v872
      %v874 = vrot.slane %v869, %v873
      %v908 = vunpack.c.l.b16 %v837
      %v909 = vunpack.c.l.b16 %v838
      %v910 = vunpack.c.l.b16 %v839
      %v911 = vunpack.c.l.b16 %v840
      %v912 = vunpack.c.l.b16 %v841
      %v913 = vunpack.c.l.b16 %v842
      %v914 = vunpack.c.l.b16 %v843
      %v915 = vunpack.c.l.b16 %v844
      %v916 = vunpack.c.l.b16 %v845
      %v917 = vunpack.c.l.b16 %v846
      %v918 = vunpack.c.l.b16 %v847
      %v919 = vunpack.c.l.b16 %v848
      %v920 = vunpack.c.l.b16 %v849
      %v921 = vunpack.c.l.b16 %v850
      %v922 = vunpack.c.l.b16 %v851
      %v923 = vunpack.c.l.b16 %v852
      %v924 = vunpack.c.l.b16 %v853
      %v925 = vunpack.c.l.b16 %v854
      %v926 = vunpack.c.l.b16 %v855
      %v927 = vunpack.c.l.b16 %v856
      %v928 = vunpack.c.l.b16 %v857
      %v929 = vunpack.c.l.b16 %v858
      %v930 = vunpack.c.l.b16 %v859
      %v931 = vunpack.c.l.b16 %v860
      %v932 = vunpack.c.l.b16 %v861
      %v933 = vunpack.c.l.b16 %v862
      %v934 = vunpack.c.l.b16 %v863
      %v935 = vunpack.c.l.b16 %v864
      %v936 = vunpack.c.l.b16 %v865
      %v937 = vunpack.c.l.b16 %v866
      %v938 = vunpack.c.l.b16 %v867
      %v939 = vunpack.c.l.b16 %v868
      %v940 = vpack.c.b16 %v909, %v908
      %v941 = vpack.c.b16 %v911, %v910
      %v942 = vpack.c.b16 %v913, %v912
      %v943 = vpack.c.b16 %v915, %v914
      %v944 = vpack.c.b16 %v917, %v916
      %v945 = vpack.c.b16 %v919, %v918
      %v946 = vpack.c.b16 %v921, %v920
      %v947 = vpack.c.b16 %v923, %v922
      %v948 = vpack.c.b16 %v925, %v924
      %v949 = vpack.c.b16 %v927, %v926
      %v950 = vpack.c.b16 %v929, %v928
      %v951 = vpack.c.b16 %v931, %v930
      %v952 = vpack.c.b16 %v933, %v932
      %v953 = vpack.c.b16 %v935, %v934
      %v954 = vpack.c.b16 %v937, %v936
      %v955 = vpack.c.b16 %v939, %v938
      %972 = vmatprep.subr.bf16.mxu0 0
      %973 = vmatpush1.bf16.msra.mxu0 %v940
      %974 = vmatprep.subr.bf16.mxu0 0
      %975 = vmatpush1.bf16.msra.mxu0 %v941
      %976 = vmatprep.subr.bf16.mxu0 0
      %977 = vmatpush1.bf16.msra.mxu0 %v942
      %978 = vmatprep.subr.bf16.mxu0 0
      %979 = vmatpush1.bf16.msra.mxu0 %v943
      %980 = vmatprep.subr.bf16.mxu0 0
      %981 = vmatpush1.bf16.msra.mxu0 %v944
      %982 = vmatprep.subr.bf16.mxu0 0
      %983 = vmatpush1.bf16.msra.mxu0 %v945
      %984 = vmatprep.subr.bf16.mxu0 0
      %985 = vmatpush1.bf16.msra.mxu0 %v946
      %986 = vmatprep.subr.bf16.mxu0 0
      %987 = vmatpush1.bf16.msra.mxu0 %v947
      %988 = vmatprep.subr.bf16.mxu0 0
      %989 = vmatpush1.bf16.msra.mxu0 %v948
      %990 = vmatprep.subr.bf16.mxu0 0
      %991 = vmatpush1.bf16.msra.mxu0 %v949
      %992 = vmatprep.subr.bf16.mxu0 0
      %993 = vmatpush1.bf16.msra.mxu0 %v950
      %994 = vmatprep.subr.bf16.mxu0 0
      %995 = vmatpush1.bf16.msra.mxu0 %v951
      %996 = vmatprep.subr.bf16.mxu0 0
      %997 = vmatpush1.bf16.msra.mxu0 %v952
      %998 = vmatprep.subr.bf16.mxu0 0
      %999 = vmatpush1.bf16.msra.mxu0 %v953
      %1000 = vmatprep.subr.bf16.mxu0 0
      %1001 = vmatpush1.bf16.msra.mxu0 %v954
      %1002 = vmatprep.subr.bf16.mxu0 0
      %1003 = vmatpush1.bf16.msra.mxu0 %v955
      %1004 = vmatprep.mubr.bf16.mxu0 %v834
      %1005 = vmatmul.mubr.bf16.gmra.mrb[0].mxu0 %v833
      %v1006 = vpop.f32.mrb[0].mxu0
      %v1007 = vadd.f32 %v874, %v1006
      %v1008 = vpop.f32.mrb[0].mxu0
      %v1009 = vpop.f32.mrb[0].mxu0
      %v1010 = vadd.f32 %v874, %v1009
      %v1011 = vpop.f32.mrb[0].mxu0
      %1012 = vmatprep.mubr.bf16.mxu0 %v836
      %1013 = vmatmul.mubr.bf16.gmra.mrb[0].mxu0 %v835
      %v1014 = vpop.f32.mrb[0].mxu0
      %v1015 = vadd.f32 %v874, %v1014
      %v1016 = vpop.f32.mrb[0].mxu0
      %v1017 = vpop.f32.mrb[0].mxu0
      %v1018 = vpop.f32.mrb[0].mxu0
      %1019 = vdwg.mxu0
      %v1020 = vld [vmem:[%s10] sm:$0x1]
      %v1022 = vlaneseq
      %v1023 = vshrl.u32 %v1022, 7
      %v1024 = vsub.s32 0, %v1023
      %v1025 = vrot.slane %v1020, %v1024
      %v1027 = vmul.f32 %v1025, %v1007
      %v1028 = vmul.f32 %v1025, %v1010
      %v1029 = vmul.f32 %v1025, %v1015
      %v1030 = vadd.f32 %v486, %v1027
      %v1031 = vadd.f32 %v487, %v1028
      %v1032 = vadd.f32 %v488, %v1029
      %1033 = vst [vmem:[%s420] sm:$0xff] %v1030
      %1034 = vst [vmem:[%s420 + $0x8] sm:$0xff] %v1031
      %1035 = vst [vmem:[%s420 + $0x10] sm:$0xff] %v1032
      %p1036 = scmp.lt.s32.totalorder %s22, 1
      %s1037 = scalar_select %p1036, %s22, 1
      %s1038 = smul.addr %s1037, 3
      %s1039 = smul.addr %s1038, 8
      %s1040 = scalar_lea.vmem %s11, %s1039
      // Predicated region
      $region65: #{discriminator_forward.8} parent=63 // pred_check
        %p1041 = pneg %p286
      $region66: #{discriminator_forward.8} parent=63 // pred_check_branch
        %1043 = sbr.rel (%p1041) target = $region68
      $region67: #{discriminator_forward.8} parent=63 // pred_region
        _
      $region68: #{discriminator_forward.8} parent=63 // pred_fallthru
        _
    $region64: #{discriminator_forward.8} parent=5 // pred_fallthru
      _
    %p1044 = scmp.le.s32.totalorder 2, %s17
    // Predicated region
    $region69: #{discriminator_forward.8} parent=5 // pred_check
      %p1045 = pneg %p1044
    $region70: #{discriminator_forward.8} parent=5 // pred_check_branch
      %1047 = sbr.rel (%p1045) target = $region72
    $region71: #{discriminator_forward.8} parent=5 // pred_region
      %s1048 = ssub.s32 %s17, 2
      // Predicated region
      $region73: #{discriminator_forward.8} parent=71 // pred_check
        %p1049 = pneg %p292
      $region74: #{discriminator_forward.8} parent=71 // pred_check_branch
        %1051 = sbr.rel (%p1049) target = $region76
      $region75: #{discriminator_forward.8} parent=71 // pred_region
        %p1052 = scmp.lt.s32.totalorder %s23, 1
        %s1053 = scalar_select %p1052, %s23, 1
        %s1054 = smul.addr %s1053, 3
        %s1055 = smul.addr %s1054, 8
        %s1056 = scalar_lea.vmem %s11, %s1055
      $region76: #{discriminator_forward.8} parent=71 // pred_fallthru
        _
    $region72: #{discriminator_forward.8} parent=5 // pred_fallthru
      _
  $region6: #{discriminator_forward.8} parent=0 // loop_footer
    %s21 = sadd.s32 1, %s17
  $region7: #{discriminator_forward.8} parent=0 // loop_footer_branch
    %16 = sbr.rel target = $region3
  $region8: #{discriminator_forward.8} parent=0 // loop_exit
    _

// kernel: discriminator_forward.10
$region0: #{discriminator_forward.10}
  #allocation0 [shape = 'u32[]', space=smem, size = 0x4, offset = 0x4, fixed_abs, tag = 'smem constant byte address 0x4 - core index']
  #allocation1 [shape = 'u32[144,128]{1,0:T(1,128)}', space=vmem, size = 0x12000, scoped, tag = 'internal scratch']
  %s0 = inlined_call_operand.vmem [shape: f32[2,16,128], index: 0, kind: input, shape index: {}]
  %s1 = inlined_call_operand.vmem [shape: f32[128,128], index: 1, kind: input, shape index: {}]
  %s2 = inlined_call_operand.vmem [shape: f32[1,128], index: 2, kind: input, shape index: {}]
  %s3 = inlined_call_operand.vmem [shape: f32[1,128], index: 3, kind: input, shape index: {}]
  %s4 = inlined_call_operand.vmem [shape: bf16[128,128], index: 4, kind: input, shape index: {}]
  %s5 = inlined_call_operand.vmem [shape: f32[1,128], index: 5, kind: input, shape index: {}]
  %s6 = inlined_call_operand.vmem [shape: bf16[128,128], index: 6, kind: input, shape index: {}]
  %s7 = inlined_call_operand.vmem [shape: f32[1,128], index: 7, kind: input, shape index: {}]
  %s8 = inlined_call_operand.vmem [shape: bf16[128,128], index: 8, kind: input, shape index: {}]
  %s9 = inlined_call_operand.vmem [shape: f32[1,128], index: 9, kind: input, shape index: {}]
  %s10 = inlined_call_operand.vmem [shape: bf16[128,128], index: 10, kind: input, shape index: {}]
  %s11 = inlined_call_operand.vmem [shape: f32[1,128], index: 11, kind: input, shape index: {}]
  %s12 = inlined_call_operand.vmem [shape: f32[2,16,128], index: 12, kind: output, shape index: {}]
  %s13 = sld [smem:[#allocation0]]
  $region81: #{discriminator_forward.10} parent=0
    _
  %s15 = ssub.s32 1, %s13
  %s16 = scalar_select 0, %s15, %s13
  loop: start=0, step=1, limit=4
  $region2: #{discriminator_forward.10} parent=0 // loop_pre_header
    _
  $region3: #{discriminator_forward.10} parent=0 // loop_header
    %s18 = sphi 0, %s22
    %p19 = scmp.ge.s32.totalorder %s18, 4
    %s28 = sphi 0, %s30
    %s31 = sphi 0, %s28
    %s32 = sphi 0, %s31
    %s48 = sphi 0, %s32
    %s52 = sphi 0, %s52
    %s54 = sphi 0, %s52
    %s55 = sphi 0, %s54
    %s69 = sphi 0, %s55
    %s73 = sphi 0, %s73
    %s75 = sphi 0, %s73
    %s76 = sphi 0, %s75
    %s90 = sphi 0, %s76
    %s94 = sphi 0, %s94
    %s96 = sphi 0, %s94
    %s97 = sphi 0, %s96
    %s111 = sphi 0, %s97
    %s115 = sphi 0, %s115
    %s117 = sphi 0, %s115
    %s118 = sphi 0, %s117
    %s132 = sphi 0, %s118
    %s136 = sphi 0, %s136
    %s138 = sphi 0, %s136
    %s139 = sphi 0, %s138
    %s153 = sphi 0, %s139
    %s157 = sphi 0, %s157
    %s159 = sphi 0, %s157
    %s160 = sphi 0, %s159
    %s174 = sphi 0, %s160
    %s178 = sphi 0, %s178
    %s180 = sphi 0, %s178
    %s181 = sphi 0, %s180
    %s195 = sphi 0, %s181
    %s199 = sphi 0, %s199
    %s201 = sphi 0, %s199
    %s202 = sphi 0, %s201
    %s216 = sphi 0, %s202
    %s220 = sphi 0, %s220
    %s222 = sphi 0, %s220
    %s223 = sphi 0, %s222
    %s237 = sphi 0, %s223
    %s241 = sphi 0, %s241
    %s243 = sphi 0, %s241
    %s244 = sphi 0, %s243
    %s258 = sphi 0, %s244
    %s262 = sphi 0, %s262
    %s264 = sphi 0, %s262
    %s265 = sphi 0, %s264
    %s279 = sphi 0, %s265
    %s285 = sphi 0, %s287
    %s288 = sphi 0, %s285
    %s289 = sphi 0, %s288
    %s305 = sphi 0, %s289
  $region4: #{discriminator_forward.10} parent=0 // loop_header_branch
    %21 = sbr.rel (%p19) target = $region8
  $region5: #{discriminator_forward.10} parent=0 // loop_body
    %s23 = ssub.s32 %s18, 1
    %s24 = ssub.s32 %s18, 2
    %s25 = sadd.s32 %s18, 1
    %s26 = ssub.s32 %s18, %s25
    %p27 = scmp.eq.s32.totalorder %s26, 0
    %s29 = sadd.s32 %s28, 1
    %s30 = scalar_select %p27, %s28, %s29
    %p33 = pneg %p27
    %p34 = scmp.eq.s32.totalorder %s18, 1
    %p35 = por %p33, %p34
    %p36 = scmp.ne.s32.totalorder %s28, %s31
    %p37 = scmp.eq.s32.totalorder %s18, 0
    %p38 = por %p36, %p37
    %p39 = scmp.ne.s32.totalorder %s28, %s31
    %p40 = scmp.eq.s32.totalorder %s23, 1
    %p41 = por %p39, %p40
    %p42 = scmp.ne.s32.totalorder %s31, %s32
    %p43 = scmp.eq.s32.totalorder %s23, 0
    %p44 = por %p42, %p43
    %p45 = scmp.ne.s32.totalorder %s31, %s32
    %p46 = scmp.eq.s32.totalorder %s24, 1
    %p47 = por %p45, %p46
    %p49 = scmp.ne.s32.totalorder %s32, %s48
    %p50 = scmp.eq.s32.totalorder %s24, 0
    %p51 = por %p49, %p50
    %s53 = sadd.s32 %s52, 1
    %p56 = scmp.eq.s32.totalorder %s18, 1
    %p57 = scmp.ne.s32.totalorder %s52, %s54
    %p58 = scmp.eq.s32.totalorder %s18, 0
    %p59 = por %p57, %p58
    %p60 = scmp.ne.s32.totalorder %s52, %s54
    %p61 = scmp.eq.s32.totalorder %s23, 1
    %p62 = por %p60, %p61
    %p63 = scmp.ne.s32.totalorder %s54, %s55
    %p64 = scmp.eq.s32.totalorder %s23, 0
    %p65 = por %p63, %p64
    %p66 = scmp.ne.s32.totalorder %s54, %s55
    %p67 = scmp.eq.s32.totalorder %s24, 1
    %p68 = por %p66, %p67
    %p70 = scmp.ne.s32.totalorder %s55, %s69
    %p71 = scmp.eq.s32.totalorder %s24, 0
    %p72 = por %p70, %p71
    %s74 = sadd.s32 %s73, 1
    %p77 = scmp.eq.s32.totalorder %s18, 1
    %p78 = scmp.ne.s32.totalorder %s73, %s75
    %p79 = scmp.eq.s32.totalorder %s18, 0
    %p80 = por %p78, %p79
    %p81 = scmp.ne.s32.totalorder %s73, %s75
    %p82 = scmp.eq.s32.totalorder %s23, 1
    %p83 = por %p81, %p82
    %p84 = scmp.ne.s32.totalorder %s75, %s76
    %p85 = scmp.eq.s32.totalorder %s23, 0
    %p86 = por %p84, %p85
    %p87 = scmp.ne.s32.totalorder %s75, %s76
    %p88 = scmp.eq.s32.totalorder %s24, 1
    %p89 = por %p87, %p88
    %p91 = scmp.ne.s32.totalorder %s76, %s90
    %p92 = scmp.eq.s32.totalorder %s24, 0
    %p93 = por %p91, %p92
    %s95 = sadd.s32 %s94, 1
    %p98 = scmp.eq.s32.totalorder %s18, 1
    %p99 = scmp.ne.s32.totalorder %s94, %s96
    %p100 = scmp.eq.s32.totalorder %s18, 0
    %p101 = por %p99, %p100
    %p102 = scmp.ne.s32.totalorder %s94, %s96
    %p103 = scmp.eq.s32.totalorder %s23, 1
    %p104 = por %p102, %p103
    %p105 = scmp.ne.s32.totalorder %s96, %s97
    %p106 = scmp.eq.s32.totalorder %s23, 0
    %p107 = por %p105, %p106
    %p108 = scmp.ne.s32.totalorder %s96, %s97
    %p109 = scmp.eq.s32.totalorder %s24, 1
    %p110 = por %p108, %p109
    %p112 = scmp.ne.s32.totalorder %s97, %s111
    %p113 = scmp.eq.s32.totalorder %s24, 0
    %p114 = por %p112, %p113
    %s116 = sadd.s32 %s115, 1
    %p119 = scmp.eq.s32.totalorder %s18, 1
    %p120 = scmp.ne.s32.totalorder %s115, %s117
    %p121 = scmp.eq.s32.totalorder %s18, 0
    %p122 = por %p120, %p121
    %p123 = scmp.ne.s32.totalorder %s115, %s117
    %p124 = scmp.eq.s32.totalorder %s23, 1
    %p125 = por %p123, %p124
    %p126 = scmp.ne.s32.totalorder %s117, %s118
    %p127 = scmp.eq.s32.totalorder %s23, 0
    %p128 = por %p126, %p127
    %p129 = scmp.ne.s32.totalorder %s117, %s118
    %p130 = scmp.eq.s32.totalorder %s24, 1
    %p131 = por %p129, %p130
    %p133 = scmp.ne.s32.totalorder %s118, %s132
    %p134 = scmp.eq.s32.totalorder %s24, 0
    %p135 = por %p133, %p134
    %s137 = sadd.s32 %s136, 1
    %p140 = scmp.eq.s32.totalorder %s18, 1
    %p141 = scmp.ne.s32.totalorder %s136, %s138
    %p142 = scmp.eq.s32.totalorder %s18, 0
    %p143 = por %p141, %p142
    %p144 = scmp.ne.s32.totalorder %s136, %s138
    %p145 = scmp.eq.s32.totalorder %s23, 1
    %p146 = por %p144, %p145
    %p147 = scmp.ne.s32.totalorder %s138, %s139
    %p148 = scmp.eq.s32.totalorder %s23, 0
    %p149 = por %p147, %p148
    %p150 = scmp.ne.s32.totalorder %s138, %s139
    %p151 = scmp.eq.s32.totalorder %s24, 1
    %p152 = por %p150, %p151
    %p154 = scmp.ne.s32.totalorder %s139, %s153
    %p155 = scmp.eq.s32.totalorder %s24, 0
    %p156 = por %p154, %p155
    %s158 = sadd.s32 %s157, 1
    %p161 = scmp.eq.s32.totalorder %s18, 1
    %p162 = scmp.ne.s32.totalorder %s157, %s159
    %p163 = scmp.eq.s32.totalorder %s18, 0
    %p164 = por %p162, %p163
    %p165 = scmp.ne.s32.totalorder %s157, %s159
    %p166 = scmp.eq.s32.totalorder %s23, 1
    %p167 = por %p165, %p166
    %p168 = scmp.ne.s32.totalorder %s159, %s160
    %p169 = scmp.eq.s32.totalorder %s23, 0
    %p170 = por %p168, %p169
    %p171 = scmp.ne.s32.totalorder %s159, %s160
    %p172 = scmp.eq.s32.totalorder %s24, 1
    %p173 = por %p171, %p172
    %p175 = scmp.ne.s32.totalorder %s160, %s174
    %p176 = scmp.eq.s32.totalorder %s24, 0
    %p177 = por %p175, %p176
    %s179 = sadd.s32 %s178, 1
    %p182 = scmp.eq.s32.totalorder %s18, 1
    %p183 = scmp.ne.s32.totalorder %s178, %s180
    %p184 = scmp.eq.s32.totalorder %s18, 0
    %p185 = por %p183, %p184
    %p186 = scmp.ne.s32.totalorder %s178, %s180
    %p187 = scmp.eq.s32.totalorder %s23, 1
    %p188 = por %p186, %p187
    %p189 = scmp.ne.s32.totalorder %s180, %s181
    %p190 = scmp.eq.s32.totalorder %s23, 0
    %p191 = por %p189, %p190
    %p192 = scmp.ne.s32.totalorder %s180, %s181
    %p193 = scmp.eq.s32.totalorder %s24, 1
    %p194 = por %p192, %p193
    %p196 = scmp.ne.s32.totalorder %s181, %s195
    %p197 = scmp.eq.s32.totalorder %s24, 0
    %p198 = por %p196, %p197
    %s200 = sadd.s32 %s199, 1
    %p203 = scmp.eq.s32.totalorder %s18, 1
    %p204 = scmp.ne.s32.totalorder %s199, %s201
    %p205 = scmp.eq.s32.totalorder %s18, 0
    %p206 = por %p204, %p205
    %p207 = scmp.ne.s32.totalorder %s199, %s201
    %p208 = scmp.eq.s32.totalorder %s23, 1
    %p209 = por %p207, %p208
    %p210 = scmp.ne.s32.totalorder %s201, %s202
    %p211 = scmp.eq.s32.totalorder %s23, 0
    %p212 = por %p210, %p211
    %p213 = scmp.ne.s32.totalorder %s201, %s202
    %p214 = scmp.eq.s32.totalorder %s24, 1
    %p215 = por %p213, %p214
    %p217 = scmp.ne.s32.totalorder %s202, %s216
    %p218 = scmp.eq.s32.totalorder %s24, 0
    %p219 = por %p217, %p218
    %s221 = sadd.s32 %s220, 1
    %p224 = scmp.eq.s32.totalorder %s18, 1
    %p225 = scmp.ne.s32.totalorder %s220, %s222
    %p226 = scmp.eq.s32.totalorder %s18, 0
    %p227 = por %p225, %p226
    %p228 = scmp.ne.s32.totalorder %s220, %s222
    %p229 = scmp.eq.s32.totalorder %s23, 1
    %p230 = por %p228, %p229
    %p231 = scmp.ne.s32.totalorder %s222, %s223
    %p232 = scmp.eq.s32.totalorder %s23, 0
    %p233 = por %p231, %p232
    %p234 = scmp.ne.s32.totalorder %s222, %s223
    %p235 = scmp.eq.s32.totalorder %s24, 1
    %p236 = por %p234, %p235
    %p238 = scmp.ne.s32.totalorder %s223, %s237
    %p239 = scmp.eq.s32.totalorder %s24, 0
    %p240 = por %p238, %p239
    %s242 = sadd.s32 %s241, 1
    %p245 = scmp.eq.s32.totalorder %s18, 1
    %p246 = scmp.ne.s32.totalorder %s241, %s243
    %p247 = scmp.eq.s32.totalorder %s18, 0
    %p248 = por %p246, %p247
    %p249 = scmp.ne.s32.totalorder %s241, %s243
    %p250 = scmp.eq.s32.totalorder %s23, 1
    %p251 = por %p249, %p250
    %p252 = scmp.ne.s32.totalorder %s243, %s244
    %p253 = scmp.eq.s32.totalorder %s23, 0
    %p254 = por %p252, %p253
    %p255 = scmp.ne.s32.totalorder %s243, %s244
    %p256 = scmp.eq.s32.totalorder %s24, 1
    %p257 = por %p255, %p256
    %p259 = scmp.ne.s32.totalorder %s244, %s258
    %p260 = scmp.eq.s32.totalorder %s24, 0
    %p261 = por %p259, %p260
    %s263 = sadd.s32 %s262, 1
    %p266 = scmp.eq.s32.totalorder %s18, 1
    %p267 = scmp.ne.s32.totalorder %s262, %s264
    %p268 = scmp.eq.s32.totalorder %s18, 0
    %p269 = por %p267, %p268
    %p270 = scmp.ne.s32.totalorder %s262, %s264
    %p271 = scmp.eq.s32.totalorder %s23, 1
    %p272 = por %p270, %p271
    %p273 = scmp.ne.s32.totalorder %s264, %s265
    %p274 = scmp.eq.s32.totalorder %s23, 0
    %p275 = por %p273, %p274
    %p276 = scmp.ne.s32.totalorder %s264, %s265
    %p277 = scmp.eq.s32.totalorder %s24, 1
    %p278 = por %p276, %p277
    %p280 = scmp.ne.s32.totalorder %s265, %s279
    %p281 = scmp.eq.s32.totalorder %s24, 0
    %p282 = por %p280, %p281
    %s283 = ssub.s32 %s18, %s25
    %p284 = scmp.eq.s32.totalorder %s283, 0
    %s286 = sadd.s32 %s285, 1
    %s287 = scalar_select %p284, %s285, %s286
    %p290 = pneg %p284
    %p291 = scmp.eq.s32.totalorder %s18, 1
    %p292 = por %p290, %p291
    %p293 = scmp.ne.s32.totalorder %s285, %s288
    %p294 = scmp.eq.s32.totalorder %s18, 0
    %p295 = por %p293, %p294
    %p296 = scmp.ne.s32.totalorder %s285, %s288
    %p297 = scmp.eq.s32.totalorder %s23, 1
    %p298 = por %p296, %p297
    %p299 = scmp.ne.s32.totalorder %s288, %s289
    %p300 = scmp.eq.s32.totalorder %s23, 0
    %p301 = por %p299, %p300
    %p302 = scmp.ne.s32.totalorder %s288, %s289
    %p303 = scmp.eq.s32.totalorder %s24, 1
    %p304 = por %p302, %p303
    %p306 = scmp.ne.s32.totalorder %s289, %s305
    %p307 = scmp.eq.s32.totalorder %s24, 0
    %p308 = por %p306, %p307
    %p309 = scmp.le.s32.totalorder 1, %s18
    %p310 = scmp.lt.s32.totalorder %s18, 3
    %p311 = pnand %p309, %p310
    %p312 = pneg %p311
    // Predicated region
    $region9: #{discriminator_forward.10} parent=5 // pred_check
      _
    $region10: #{discriminator_forward.10} parent=5 // pred_check_branch
      %314 = sbr.rel (%p311) target = $region12
    $region11: #{discriminator_forward.10} parent=5 // pred_region
      %s315 = ssub.s32 %s18, 1
      // Predicated region
      $region13: #{discriminator_forward.10} parent=11 // pred_check
        %p316 = pneg %p65
      $region14: #{discriminator_forward.10} parent=11 // pred_check_branch
        %318 = sbr.rel (%p316) target = $region16
      $region15: #{discriminator_forward.10} parent=11 // pred_region
        _
      $region16: #{discriminator_forward.10} parent=11 // pred_fallthru
        _
      // Predicated region
      $region17: #{discriminator_forward.10} parent=11 // pred_check
        %p319 = pneg %p86
      $region18: #{discriminator_forward.10} parent=11 // pred_check_branch
        %321 = sbr.rel (%p319) target = $region20
      $region19: #{discriminator_forward.10} parent=11 // pred_region
        _
      $region20: #{discriminator_forward.10} parent=11 // pred_fallthru
        _
      // Predicated region
      $region21: #{discriminator_forward.10} parent=11 // pred_check
        %p322 = pneg %p107
      $region22: #{discriminator_forward.10} parent=11 // pred_check_branch
        %324 = sbr.rel (%p322) target = $region24
      $region23: #{discriminator_forward.10} parent=11 // pred_region
        _
      $region24: #{discriminator_forward.10} parent=11 // pred_fallthru
        _
      // Predicated region
      $region25: #{discriminator_forward.10} parent=11 // pred_check
        %p325 = pneg %p128
      $region26: #{discriminator_forward.10} parent=11 // pred_check_branch
        %327 = sbr.rel (%p325) target = $region28
      $region27: #{discriminator_forward.10} parent=11 // pred_region
        _
      $region28: #{discriminator_forward.10} parent=11 // pred_fallthru
        _
      // Predicated region
      $region29: #{discriminator_forward.10} parent=11 // pred_check
        %p328 = pneg %p149
      $region30: #{discriminator_forward.10} parent=11 // pred_check_branch
        %330 = sbr.rel (%p328) target = $region32
      $region31: #{discriminator_forward.10} parent=11 // pred_region
        _
      $region32: #{discriminator_forward.10} parent=11 // pred_fallthru
        _
      // Predicated region
      $region33: #{discriminator_forward.10} parent=11 // pred_check
        %p331 = pneg %p170
      $region34: #{discriminator_forward.10} parent=11 // pred_check_branch
        %333 = sbr.rel (%p331) target = $region36
      $region35: #{discriminator_forward.10} parent=11 // pred_region
        _
      $region36: #{discriminator_forward.10} parent=11 // pred_fallthru
        _
      // Predicated region
      $region37: #{discriminator_forward.10} parent=11 // pred_check
        %p334 = pneg %p191
      $region38: #{discriminator_forward.10} parent=11 // pred_check_branch
        %336 = sbr.rel (%p334) target = $region40
      $region39: #{discriminator_forward.10} parent=11 // pred_region
        _
      $region40: #{discriminator_forward.10} parent=11 // pred_fallthru
        _
      // Predicated region
      $region41: #{discriminator_forward.10} parent=11 // pred_check
        %p337 = pneg %p212
      $region42: #{discriminator_forward.10} parent=11 // pred_check_branch
        %339 = sbr.rel (%p337) target = $region44
      $region43: #{discriminator_forward.10} parent=11 // pred_region
        _
      $region44: #{discriminator_forward.10} parent=11 // pred_fallthru
        _
      // Predicated region
      $region45: #{discriminator_forward.10} parent=11 // pred_check
        %p340 = pneg %p233
      $region46: #{discriminator_forward.10} parent=11 // pred_check_branch
        %342 = sbr.rel (%p340) target = $region48
      $region47: #{discriminator_forward.10} parent=11 // pred_region
        _
      $region48: #{discriminator_forward.10} parent=11 // pred_fallthru
        _
      // Predicated region
      $region49: #{discriminator_forward.10} parent=11 // pred_check
        %p343 = pneg %p254
      $region50: #{discriminator_forward.10} parent=11 // pred_check_branch
        %345 = sbr.rel (%p343) target = $region52
      $region51: #{discriminator_forward.10} parent=11 // pred_region
        _
      $region52: #{discriminator_forward.10} parent=11 // pred_fallthru
        _
      // Predicated region
      $region53: #{discriminator_forward.10} parent=11 // pred_check
        %p346 = pneg %p275
      $region54: #{discriminator_forward.10} parent=11 // pred_check_branch
        %348 = sbr.rel (%p346) target = $region56
      $region55: #{discriminator_forward.10} parent=11 // pred_region
        _
      $region56: #{discriminator_forward.10} parent=11 // pred_fallthru
        _
    $region12: #{discriminator_forward.10} parent=5 // pred_fallthru
      _
    %p349 = scmp.lt.s32.totalorder %s18, 2
    // Predicated region
    $region57: #{discriminator_forward.10} parent=5 // pred_check
      %p350 = pneg %p349
    $region58: #{discriminator_forward.10} parent=5 // pred_check_branch
      %352 = sbr.rel (%p350) target = $region60
    $region59: #{discriminator_forward.10} parent=5 // pred_region
      // Predicated region
      $region61: #{discriminator_forward.10} parent=59 // pred_check
        %p353 = pneg %p38
      $region62: #{discriminator_forward.10} parent=59 // pred_check_branch
        %355 = sbr.rel (%p353) target = $region64
      $region63: #{discriminator_forward.10} parent=59 // pred_region
        %p356 = scmp.lt.s32.totalorder %s18, 1
        %s357 = scalar_select %p356, %s18, 1
        %s358 = smul.addr %s357, 2
        %s359 = smul.addr %s358, 8
        %s360 = scalar_lea.vmem %s0, %s359
      $region64: #{discriminator_forward.10} parent=59 // pred_fallthru
        _
    $region60: #{discriminator_forward.10} parent=5 // pred_fallthru
      _
    %p361 = scmp.le.s32.totalorder 1, %s18
    %p362 = scmp.lt.s32.totalorder %s18, 3
    %p363 = pnand %p361, %p362
    %p364 = pneg %p363
    // Predicated region
    $region65: #{discriminator_forward.10} parent=5 // pred_check
      _
    $region66: #{discriminator_forward.10} parent=5 // pred_check_branch
      %366 = sbr.rel (%p363) target = $region68
    $region67: #{discriminator_forward.10} parent=5 // pred_region
      %s367 = ssub.s32 %s18, 1
      %p368 = scmp.lt.s32.totalorder %s23, 1
      %s369 = scalar_select %p368, %s23, 1
      %s370 = smul.addr %s369, 2
      %s371 = smul.addr %s370, 8
      %s372 = scalar_lea.vmem %s0, %s371
      %p373 = pneg %p44
      %p374 = pneg %p41
      %p375 = pneg %p65
      %p376 = pneg %p62
      %p377 = pneg %p86
      %p378 = pneg %p83
      %p379 = pneg %p107
      %p380 = pneg %p104
      %p381 = pneg %p128
      %p382 = pneg %p125
      %p383 = pneg %p149
      %p384 = pneg %p146
      %p385 = pneg %p170
      %p386 = pneg %p167
      %p387 = pneg %p191
      %p388 = pneg %p188
      %p389 = pneg %p212
      %p390 = pneg %p209
      %p391 = pneg %p233
      %p392 = pneg %p230
      %p393 = pneg %p254
      %p394 = pneg %p251
      %p395 = pneg %p275
      %p396 = pneg %p272
      %p397 = pneg %p301
      %p398 = pneg %p298
      %p399 = scmp.lt.s32.totalorder %s23, 1
      %s400 = scalar_select %p399, %s23, 1
      %s401 = smul.addr %s400, 2
      %s402 = smul.addr %s401, 8
      %s403 = scalar_lea.vmem %s12, %s402
      %p404 = scmp.lt.s32.totalorder %s23, 1
      %s405 = scalar_select %p404, %s23, 1
      %s406 = smul.addr %s405, 2
      %s407 = smul.addr %s406, 8
      %s408 = scalar_lea.vmem %s0, %s407
      %p409 = scmp.lt.s32.totalorder %s23, 1
      %s410 = scalar_select %p409, %s23, 1
      %s411 = smul.addr %s410, 2
      %s412 = smul.addr %s411, 8
      %s413 = scalar_lea.vmem %s12, %s412
      %v415 = vld [vmem:[%s408] sm:$0xff]
      %v416 = vld [vmem:[%s408 + $0x8] sm:$0xff]
      %v417 = vadd.f32 %v415, %v416
      %v418 = vrot.slane %v417, 4
      %v419 = vadd.f32 %v417, %v418
      %v420 = vrot.slane %v419, 2
      %v421 = vadd.f32 %v419, %v420
      %v422 = vrot.slane %v421, 1
      %v423 = vadd.f32 %v421, %v422
      %v424 = vmul.f32 %v415, %v415
      %v425 = vmul.f32 %v416, %v416
      %v426 = vadd.f32 %v424, %v425
      %v427 = vrot.slane %v426, 4
      %v428 = vadd.f32 %v426, %v427
      %v429 = vrot.slane %v428, 2
      %v430 = vadd.f32 %v428, %v429
      %v431 = vrot.slane %v430, 1
      %v432 = vadd.f32 %v430, %v431
      %v433 = vld [vmem:[%s1] sm:$0xff]
      %v434 = vld [vmem:[%s1 + $0x8] sm:$0xff]
      %v435 = vld [vmem:[%s1 + $0x10] sm:$0xff]
      %v436 = vld [vmem:[%s1 + $0x18] sm:$0xff]
      %v437 = vld [vmem:[%s1 + $0x20] sm:$0xff]
      %v438 = vld [vmem:[%s1 + $0x28] sm:$0xff]
      %v439 = vld [vmem:[%s1 + $0x30] sm:$0xff]
      %v440 = vld [vmem:[%s1 + $0x38] sm:$0xff]
      %v441 = vld [vmem:[%s1 + $0x40] sm:$0xff]
      %v442 = vld [vmem:[%s1 + $0x48] sm:$0xff]
      %v443 = vld [vmem:[%s1 + $0x50] sm:$0xff]
      %v444 = vld [vmem:[%s1 + $0x58] sm:$0xff]
      %v445 = vld [vmem:[%s1 + $0x60] sm:$0xff]
      %v446 = vld [vmem:[%s1 + $0x68] sm:$0xff]
      %v447 = vld [vmem:[%s1 + $0x70] sm:$0xff]
      %v448 = vld [vmem:[%s1 + $0x78] sm:$0xff]
      %449 = vmatprep.subr.mxu0 0.0
      %450 = vmatpush1.msra.mxu0 %v433
      %451 = vmatprep.subr.mxu0 0.0
      %452 = vmatpush1.msra.mxu0 %v434
      %453 = vmatprep.subr.mxu0 0.0
      %454 = vmatpush1.msra.mxu0 %v435
      %455 = vmatprep.subr.mxu0 0.0
      %456 = vmatpush1.msra.mxu0 %v436
      %457 = vmatprep.subr.mxu0 0.0
      %458 = vmatpush1.msra.mxu0 %v437
      %459 = vmatprep.subr.mxu0 0.0
      %460 = vmatpush1.msra.mxu0 %v438
      %461 = vmatprep.subr.mxu0 0.0
      %462 = vmatpush1.msra.mxu0 %v439
      %463 = vmatprep.subr.mxu0 0.0
      %464 = vmatpush1.msra.mxu0 %v440
      %465 = vmatprep.subr.mxu0 0.0
      %466 = vmatpush1.msra.mxu0 %v441
      %467 = vmatprep.subr.mxu0 0.0
      %468 = vmatpush1.msra.mxu0 %v442
      %469 = vmatprep.subr.mxu0 0.0
      %470 = vmatpush1.msra.mxu0 %v443
      %471 = vmatprep.subr.mxu0 0.0
      %472 = vmatpush1.msra.mxu0 %v444
      %473 = vmatprep.subr.mxu0 0.0
      %474 = vmatpush1.msra.mxu0 %v445
      %475 = vmatprep.subr.mxu0 0.0
      %476 = vmatpush1.msra.mxu0 %v446
      %477 = vmatprep.subr.mxu0 0.0
      %478 = vmatpush1.msra.mxu0 %v447
      %479 = vmatprep.subr.mxu0 0.0
      %480 = vmatpush1.msra.mxu0 %v448
      %481 = vmatprep.subr.mxu0 0.0
      %482 = vmatpush1.msra.mxu0 0.0
      %483 = vmatprep.subr.mxu0 0.0
      %484 = vmatpush1.msra.mxu0 0.0
      %485 = vmatprep.subr.mxu0 0.0
      %486 = vmatpush1.msra.mxu0 0.0
      %487 = vmatprep.subr.mxu0 0.0
      %488 = vmatpush1.msra.mxu0 0.0
      %489 = vmatprep.subr.mxu0 0.0
      %490 = vmatpush1.msra.mxu0 0.0
      %491 = vmatprep.subr.mxu0 0.0
      %492 = vmatpush1.msra.mxu0 0.0
      %493 = vmatprep.subr.mxu0 0.0
      %494 = vmatpush1.msra.mxu0 0.0
      %495 = vmatprep.subr.mxu0 0.0
      %496 = vmatpush1.msra.mxu0 0.0
      %497 = vmatprep.subr.mxu0 0.0
      %498 = vmatpush1.msra.mxu0 0.0
      %499 = vmatprep.subr.mxu0 0.0
      %500 = vmatpush1.msra.mxu0 0.0
      %501 = vmatprep.subr.mxu0 0.0
      %502 = vmatpush1.msra.mxu0 0.0
      %503 = vmatprep.subr.mxu0 0.0
      %504 = vmatpush1.msra.mxu0 0.0
      %505 = vmatprep.subr.mxu0 0.0
      %506 = vmatpush1.msra.mxu0 0.0
      %507 = vmatprep.subr.mxu0 0.0
      %508 = vmatpush1.msra.mxu0 0.0
      %509 = vmatprep.subr.mxu0 0.0
      %510 = vmatpush1.msra.mxu0 0.0
      %511 = vmatprep.subr.mxu0 0.0
      %512 = vmatpush1.msra.mxu0 0.0
      %513 = vmatprep.mubr.f32.mxu0 0.0
      %514 = vmatmul.mubr.f32.gmra.mrb[0].mxu0 %v423
      %v515 = vpop.f32.mrb[0].mxu0
      %v516 = vadd.f32 0.0, %v515
      %v517 = vpop.f32.mrb[0].mxu0
      %518 = vdwg.mxu0
      %v519 = vmul.f32 %v516, 0.03125
      %520 = vmatprep.subr.mxu0 0.0
      %521 = vmatpush1.msra.mxu0 %v433
      %522 = vmatprep.subr.mxu0 0.0
      %523 = vmatpush1.msra.mxu0 %v434
      %524 = vmatprep.subr.mxu0 0.0
      %525 = vmatpush1.msra.mxu0 %v435
      %526 = vmatprep.subr.mxu0 0.0
      %527 = vmatpush1.msra.mxu0 %v436
      %528 = vmatprep.subr.mxu0 0.0
      %529 = vmatpush1.msra.mxu0 %v437
      %530 = vmatprep.subr.mxu0 0.0
      %531 = vmatpush1.msra.mxu0 %v438
      %532 = vmatprep.subr.mxu0 0.0
      %533 = vmatpush1.msra.mxu0 %v439
      %534 = vmatprep.subr.mxu0 0.0
      %535 = vmatpush1.msra.mxu0 %v440
      %536 = vmatprep.subr.mxu0 0.0
      %537 = vmatpush1.msra.mxu0 %v441
      %538 = vmatprep.subr.mxu0 0.0
      %539 = vmatpush1.msra.mxu0 %v442
      %540 = vmatprep.subr.mxu0 0.0
      %541 = vmatpush1.msra.mxu0 %v443
      %542 = vmatprep.subr.mxu0 0.0
      %543 = vmatpush1.msra.mxu0 %v444
      %544 = vmatprep.subr.mxu0 0.0
      %545 = vmatpush1.msra.mxu0 %v445
      %546 = vmatprep.subr.mxu0 0.0
      %547 = vmatpush1.msra.mxu0 %v446
      %548 = vmatprep.subr.mxu0 0.0
      %549 = vmatpush1.msra.mxu0 %v447
      %550 = vmatprep.subr.mxu0 0.0
      %551 = vmatpush1.msra.mxu0 %v448
      %552 = vmatprep.subr.mxu0 0.0
      %553 = vmatpush1.msra.mxu0 0.0
      %554 = vmatprep.subr.mxu0 0.0
      %555 = vmatpush1.msra.mxu0 0.0
      %556 = vmatprep.subr.mxu0 0.0
      %557 = vmatpush1.msra.mxu0 0.0
      %558 = vmatprep.subr.mxu0 0.0
      %559 = vmatpush1.msra.mxu0 0.0
      %560 = vmatprep.subr.mxu0 0.0
      %561 = vmatpush1.msra.mxu0 0.0
      %562 = vmatprep.subr.mxu0 0.0
      %563 = vmatpush1.msra.mxu0 0.0
      %564 = vmatprep.subr.mxu0 0.0
      %565 = vmatpush1.msra.mxu0 0.0
      %566 = vmatprep.subr.mxu0 0.0
      %567 = vmatpush1.msra.mxu0 0.0
      %568 = vmatprep.subr.mxu0 0.0
      %569 = vmatpush1.msra.mxu0 0.0
      %570 = vmatprep.subr.mxu0 0.0
      %571 = vmatpush1.msra.mxu0 0.0
      %572 = vmatprep.subr.mxu0 0.0
      %573 = vmatpush1.msra.mxu0 0.0
      %574 = vmatprep.subr.mxu0 0.0
      %575 = vmatpush1.msra.mxu0 0.0
      %576 = vmatprep.subr.mxu0 0.0
      %577 = vmatpush1.msra.mxu0 0.0
      %578 = vmatprep.subr.mxu0 0.0
      %579 = vmatpush1.msra.mxu0 0.0
      %580 = vmatprep.subr.mxu0 0.0
      %581 = vmatpush1.msra.mxu0 0.0
      %582 = vmatprep.subr.mxu0 0.0
      %583 = vmatpush1.msra.mxu0 0.0
      %584 = vmatprep.mubr.f32.mxu0 0.0
      %585 = vmatmul.mubr.f32.gmra.mrb[0].mxu0 %v432
      %v586 = vpop.f32.mrb[0].mxu0
      %v587 = vadd.f32 0.0, %v586
      %v588 = vpop.f32.mrb[0].mxu0
      %589 = vdwg.mxu0
      %v590 = vmul.f32 %v587, 0.03125
      %v591 = vmul.f32 %v519, %v519
      %v592 = vsub.f32 %v590, %v591
      %v593 = vmax.f32 %v592, 0.0
      %v594 = vlaneseq
      %v595 = vshrl.u32 %v594, 7
      %v596 = vsub.s32 0, %v595
      %v597 = vrot.slane %v519, %v596
      %v598 = vsub.f32 %v415, %v597
      %v599 = vsub.f32 %v416, %v597
      %v600 = vadd.f32 %v593, 1e-06
      %v601 = vrsqrt.pop %v600
      %v602 = vlaneseq
      %v603 = vshrl.u32 %v602, 7
      %v604 = vsub.s32 0, %v603
      %v605 = vrot.slane %v601, %v604
      %v606 = vmul.f32 %v598, %v605
      %v607 = vmul.f32 %v599, %v605
      %v608 = vld [vmem:[%s2] sm:$0x1]
      %v610 = vlaneseq
      %v611 = vshrl.u32 %v610, 7
      %v612 = vsub.s32 0, %v611
      %v613 = vrot.slane %v608, %v612
      %v615 = vmul.f32 %v606, %v613
      %v616 = vmul.f32 %v607, %v613
      %v617 = vld [vmem:[%s3] sm:$0x1]
      %v619 = vlaneseq
      %v620 = vshrl.u32 %v619, 7
      %v621 = vsub.s32 0, %v620
      %v622 = vrot.slane %v617, %v621
      %v624 = vadd.f32 %v615, %v622
      %v625 = vadd.f32 %v616, %v622
      %v626 = vpack.c.bf16 %v625, %v624
      %v627 = vld [vmem:[%s4] sm:$0xf]
      %v628 = vld [vmem:[%s4 + $0x4] sm:$0xf]
      %v629 = vld [vmem:[%s4 + $0x8] sm:$0xf]
      %v630 = vld [vmem:[%s4 + $0xc] sm:$0xf]
      %v631 = vld [vmem:[%s4 + $0x10] sm:$0xf]
      %v632 = vld [vmem:[%s4 + $0x14] sm:$0xf]
      %v633 = vld [vmem:[%s4 + $0x18] sm:$0xf]
      %v634 = vld [vmem:[%s4 + $0x1c] sm:$0xf]
      %v635 = vld [vmem:[%s4 + $0x20] sm:$0xf]
      %v636 = vld [vmem:[%s4 + $0x24] sm:$0xf]
      %v637 = vld [vmem:[%s4 + $0x28] sm:$0xf]
      %v638 = vld [vmem:[%s4 + $0x2c] sm:$0xf]
      %v639 = vld [vmem:[%s4 + $0x30] sm:$0xf]
      %v640 = vld [vmem:[%s4 + $0x34] sm:$0xf]
      %v641 = vld [vmem:[%s4 + $0x38] sm:$0xf]
      %v642 = vld [vmem:[%s4 + $0x3c] sm:$0xf]
      %v643 = vld [vmem:[%s5] sm:$0x1]
      %v645 = vlaneseq
      %v646 = vshrl.u32 %v645, 7
      %v647 = vsub.s32 0, %v646
      %v648 = vrot.slane %v643, %v647
      %v666 = vunpack.c.l.b16 %v627
      %v667 = vunpack.c.l.b16 %v628
      %v668 = vunpack.c.l.b16 %v629
      %v669 = vunpack.c.l.b16 %v630
      %v670 = vunpack.c.l.b16 %v631
      %v671 = vunpack.c.l.b16 %v632
      %v672 = vunpack.c.l.b16 %v633
      %v673 = vunpack.c.l.b16 %v634
      %v674 = vunpack.c.l.b16 %v635
      %v675 = vunpack.c.l.b16 %v636
      %v676 = vunpack.c.l.b16 %v637
      %v677 = vunpack.c.l.b16 %v638
      %v678 = vunpack.c.l.b16 %v639
      %v679 = vunpack.c.l.b16 %v640
      %v680 = vunpack.c.l.b16 %v641
      %v681 = vunpack.c.l.b16 %v642
      %v682 = vpack.c.b16 %v667, %v666
      %v683 = vpack.c.b16 %v669, %v668
      %v684 = vpack.c.b16 %v671, %v670
      %v685 = vpack.c.b16 %v673, %v672
      %v686 = vpack.c.b16 %v675, %v674
      %v687 = vpack.c.b16 %v677, %v676
      %v688 = vpack.c.b16 %v679, %v678
      %v689 = vpack.c.b16 %v681, %v680
      %698 = vmatprep.subr.bf16.mxu0 0
      %699 = vmatpush1.bf16.msra.mxu0 %v682
      %700 = vmatprep.subr.bf16.mxu0 0
      %701 = vmatpush1.bf16.msra.mxu0 %v683
      %702 = vmatprep.subr.bf16.mxu0 0
      %703 = vmatpush1.bf16.msra.mxu0 %v684
      %704 = vmatprep.subr.bf16.mxu0 0
      %705 = vmatpush1.bf16.msra.mxu0 %v685
      %706 = vmatprep.subr.bf16.mxu0 0
      %707 = vmatpush1.bf16.msra.mxu0 %v686
      %708 = vmatprep.subr.bf16.mxu0 0
      %709 = vmatpush1.bf16.msra.mxu0 %v687
      %710 = vmatprep.subr.bf16.mxu0 0
      %711 = vmatpush1.bf16.msra.mxu0 %v688
      %712 = vmatprep.subr.bf16.mxu0 0
      %713 = vmatpush1.bf16.msra.mxu0 %v689
      %714 = vmatprep.subr.bf16.mxu0 0
      %715 = vmatpush1.bf16.msra.mxu0 0
      %716 = vmatprep.subr.bf16.mxu0 0
      %717 = vmatpush1.bf16.msra.mxu0 0
      %718 = vmatprep.subr.bf16.mxu0 0
      %719 = vmatpush1.bf16.msra.mxu0 0
      %720 = vmatprep.subr.bf16.mxu0 0
      %721 = vmatpush1.bf16.msra.mxu0 0
      %722 = vmatprep.subr.bf16.mxu0 0
      %723 = vmatpush1.bf16.msra.mxu0 0
      %724 = vmatprep.subr.bf16.mxu0 0
      %725 = vmatpush1.bf16.msra.mxu0 0
      %726 = vmatprep.subr.bf16.mxu0 0
      %727 = vmatpush1.bf16.msra.mxu0 0
      %728 = vmatprep.subr.bf16.mxu0 0
      %729 = vmatpush1.bf16.msra.mxu0 0
      %730 = vmatprep.mubr.bf16.mxu0 0
      %731 = vmatmul.mubr.bf16.gmra.mrb[0].mxu0 %v626
      %v732 = vpop.f32.mrb[0].mxu0
      %v733 = vadd.f32 %v648, %v732
      %v734 = vpop.f32.mrb[0].mxu0
      %v735 = vpop.f32.mrb[0].mxu0
      %v736 = vadd.f32 %v648, %v735
      %v737 = vpop.f32.mrb[0].mxu0
      %738 = vdwg.mxu0
      %v739 = vld [vmem:[%s6] sm:$0xf]
      %v740 = vld [vmem:[%s6 + $0x4] sm:$0xf]
      %v741 = vld [vmem:[%s6 + $0x8] sm:$0xf]
      %v742 = vld [vmem:[%s6 + $0xc] sm:$0xf]
      %v743 = vld [vmem:[%s6 + $0x10] sm:$0xf]
      %v744 = vld [vmem:[%s6 + $0x14] sm:$0xf]
      %v745 = vld [vmem:[%s6 + $0x18] sm:$0xf]
      %v746 = vld [vmem:[%s6 + $0x1c] sm:$0xf]
      %v747 = vld [vmem:[%s6 + $0x20] sm:$0xf]
      %v748 = vld [vmem:[%s6 + $0x24] sm:$0xf]
      %v749 = vld [vmem:[%s6 + $0x28] sm:$0xf]
      %v750 = vld [vmem:[%s6 + $0x2c] sm:$0xf]
      %v751 = vld [vmem:[%s6 + $0x30] sm:$0xf]
      %v752 = vld [vmem:[%s6 + $0x34] sm:$0xf]
      %v753 = vld [vmem:[%s6 + $0x38] sm:$0xf]
      %v754 = vld [vmem:[%s6 + $0x3c] sm:$0xf]
      %v755 = vld [vmem:[%s7] sm:$0x1]
      %v757 = vlaneseq
      %v758 = vshrl.u32 %v757, 7
      %v759 = vsub.s32 0, %v758
      %v760 = vrot.slane %v755, %v759
      %v778 = vunpack.c.l.b16 %v739
      %v779 = vunpack.c.l.b16 %v740
      %v780 = vunpack.c.l.b16 %v741
      %v781 = vunpack.c.l.b16 %v742
      %v782 = vunpack.c.l.b16 %v743
      %v783 = vunpack.c.l.b16 %v744
      %v784 = vunpack.c.l.b16 %v745
      %v785 = vunpack.c.l.b16 %v746
      %v786 = vunpack.c.l.b16 %v747
      %v787 = vunpack.c.l.b16 %v748
      %v788 = vunpack.c.l.b16 %v749
      %v789 = vunpack.c.l.b16 %v750
      %v790 = vunpack.c.l.b16 %v751
      %v791 = vunpack.c.l.b16 %v752
      %v792 = vunpack.c.l.b16 %v753
      %v793 = vunpack.c.l.b16 %v754
      %v794 = vpack.c.b16 %v779, %v778
      %v795 = vpack.c.b16 %v781, %v780
      %v796 = vpack.c.b16 %v783, %v782
      %v797 = vpack.c.b16 %v785, %v784
      %v798 = vpack.c.b16 %v787, %v786
      %v799 = vpack.c.b16 %v789, %v788
      %v800 = vpack.c.b16 %v791, %v790
      %v801 = vpack.c.b16 %v793, %v792
      %810 = vmatprep.subr.bf16.mxu0 0
      %811 = vmatpush1.bf16.msra.mxu0 %v794
      %812 = vmatprep.subr.bf16.mxu0 0
      %813 = vmatpush1.bf16.msra.mxu0 %v795
      %814 = vmatprep.subr.bf16.mxu0 0
      %815 = vmatpush1.bf16.msra.mxu0 %v796
      %816 = vmatprep.subr.bf16.mxu0 0
      %817 = vmatpush1.bf16.msra.mxu0 %v797
      %818 = vmatprep.subr.bf16.mxu0 0
      %819 = vmatpush1.bf16.msra.mxu0 %v798
      %820 = vmatprep.subr.bf16.mxu0 0
      %821 = vmatpush1.bf16.msra.mxu0 %v799
      %822 = vmatprep.subr.bf16.mxu0 0
      %823 = vmatpush1.bf16.msra.mxu0 %v800
      %824 = vmatprep.subr.bf16.mxu0 0
      %825 = vmatpush1.bf16.msra.mxu0 %v801
      %826 = vmatprep.subr.bf16.mxu0 0
      %827 = vmatpush1.bf16.msra.mxu0 0
      %828 = vmatprep.subr.bf16.mxu0 0
      %829 = vmatpush1.bf16.msra.mxu0 0
      %830 = vmatprep.subr.bf16.mxu0 0
      %831 = vmatpush1.bf16.msra.mxu0 0
      %832 = vmatprep.subr.bf16.mxu0 0
      %833 = vmatpush1.bf16.msra.mxu0 0
      %834 = vmatprep.subr.bf16.mxu0 0
      %835 = vmatpush1.bf16.msra.mxu0 0
      %836 = vmatprep.subr.bf16.mxu0 0
      %837 = vmatpush1.bf16.msra.mxu0 0
      %838 = vmatprep.subr.bf16.mxu0 0
      %839 = vmatpush1.bf16.msra.mxu0 0
      %840 = vmatprep.subr.bf16.mxu0 0
      %841 = vmatpush1.bf16.msra.mxu0 0
      %842 = vmatprep.mubr.bf16.mxu0 0
      %843 = vmatmul.mubr.bf16.gmra.mrb[0].mxu0 %v626
      %v844 = vpop.f32.mrb[0].mxu0
      %v845 = vadd.f32 %v760, %v844
      %v846 = vpop.f32.mrb[0].mxu0
      %v847 = vpop.f32.mrb[0].mxu0
      %v848 = vadd.f32 %v760, %v847
      %v849 = vpop.f32.mrb[0].mxu0
      %850 = vdwg.mxu0
      %v851 = vld [vmem:[%s8] sm:$0xf]
      %v852 = vld [vmem:[%s8 + $0x4] sm:$0xf]
      %v853 = vld [vmem:[%s8 + $0x8] sm:$0xf]
      %v854 = vld [vmem:[%s8 + $0xc] sm:$0xf]
      %v855 = vld [vmem:[%s8 + $0x10] sm:$0xf]
      %v856 = vld [vmem:[%s8 + $0x14] sm:$0xf]
      %v857 = vld [vmem:[%s8 + $0x18] sm:$0xf]
      %v858 = vld [vmem:[%s8 + $0x1c] sm:$0xf]
      %v859 = vld [vmem:[%s8 + $0x20] sm:$0xf]
      %v860 = vld [vmem:[%s8 + $0x24] sm:$0xf]
      %v861 = vld [vmem:[%s8 + $0x28] sm:$0xf]
      %v862 = vld [vmem:[%s8 + $0x2c] sm:$0xf]
      %v863 = vld [vmem:[%s8 + $0x30] sm:$0xf]
      %v864 = vld [vmem:[%s8 + $0x34] sm:$0xf]
      %v865 = vld [vmem:[%s8 + $0x38] sm:$0xf]
      %v866 = vld [vmem:[%s8 + $0x3c] sm:$0xf]
      %v867 = vld [vmem:[%s9] sm:$0x1]
      %v869 = vlaneseq
      %v870 = vshrl.u32 %v869, 7
      %v871 = vsub.s32 0, %v870
      %v872 = vrot.slane %v867, %v871
      %v890 = vunpack.c.l.b16 %v851
      %v891 = vunpack.c.l.b16 %v852
      %v892 = vunpack.c.l.b16 %v853
      %v893 = vunpack.c.l.b16 %v854
      %v894 = vunpack.c.l.b16 %v855
      %v895 = vunpack.c.l.b16 %v856
      %v896 = vunpack.c.l.b16 %v857
      %v897 = vunpack.c.l.b16 %v858
      %v898 = vunpack.c.l.b16 %v859
      %v899 = vunpack.c.l.b16 %v860
      %v900 = vunpack.c.l.b16 %v861
      %v901 = vunpack.c.l.b16 %v862
      %v902 = vunpack.c.l.b16 %v863
      %v903 = vunpack.c.l.b16 %v864
      %v904 = vunpack.c.l.b16 %v865
      %v905 = vunpack.c.l.b16 %v866
      %v906 = vpack.c.b16 %v891, %v890
      %v907 = vpack.c.b16 %v893, %v892
      %v908 = vpack.c.b16 %v895, %v894
      %v909 = vpack.c.b16 %v897, %v896
      %v910 = vpack.c.b16 %v899, %v898
      %v911 = vpack.c.b16 %v901, %v900
      %v912 = vpack.c.b16 %v903, %v902
      %v913 = vpack.c.b16 %v905, %v904
      %922 = vmatprep.subr.bf16.mxu0 0
      %923 = vmatpush1.bf16.msra.mxu0 %v906
      %924 = vmatprep.subr.bf16.mxu0 0
      %925 = vmatpush1.bf16.msra.mxu0 %v907
      %926 = vmatprep.subr.bf16.mxu0 0
      %927 = vmatpush1.bf16.msra.mxu0 %v908
      %928 = vmatprep.subr.bf16.mxu0 0
      %929 = vmatpush1.bf16.msra.mxu0 %v909
      %930 = vmatprep.subr.bf16.mxu0 0
      %931 = vmatpush1.bf16.msra.mxu0 %v910
      %932 = vmatprep.subr.bf16.mxu0 0
      %933 = vmatpush1.bf16.msra.mxu0 %v911
      %934 = vmatprep.subr.bf16.mxu0 0
      %935 = vmatpush1.bf16.msra.mxu0 %v912
      %936 = vmatprep.subr.bf16.mxu0 0
      %937 = vmatpush1.bf16.msra.mxu0 %v913
      %938 = vmatprep.subr.bf16.mxu0 0
      %939 = vmatpush1.bf16.msra.mxu0 0
      %940 = vmatprep.subr.bf16.mxu0 0
      %941 = vmatpush1.bf16.msra.mxu0 0
      %942 = vmatprep.subr.bf16.mxu0 0
      %943 = vmatpush1.bf16.msra.mxu0 0
      %944 = vmatprep.subr.bf16.mxu0 0
      %945 = vmatpush1.bf16.msra.mxu0 0
      %946 = vmatprep.subr.bf16.mxu0 0
      %947 = vmatpush1.bf16.msra.mxu0 0
      %948 = vmatprep.subr.bf16.mxu0 0
      %949 = vmatpush1.bf16.msra.mxu0 0
      %950 = vmatprep.subr.bf16.mxu0 0
      %951 = vmatpush1.bf16.msra.mxu0 0
      %952 = vmatprep.subr.bf16.mxu0 0
      %953 = vmatpush1.bf16.msra.mxu0 0
      %954 = vmatprep.mubr.bf16.mxu0 0
      %955 = vmatmul.mubr.bf16.gmra.mrb[0].mxu0 %v626
      %v956 = vpop.f32.mrb[0].mxu0
      %v957 = vadd.f32 %v872, %v956
      %v958 = vpop.f32.mrb[0].mxu0
      %v959 = vpop.f32.mrb[0].mxu0
      %v960 = vadd.f32 %v872, %v959
      %v961 = vpop.f32.mrb[0].mxu0
      %962 = vdwg.mxu0
      %v963 = vpack.c.bf16 %v736, %v733
      %v964 = vpack.c.bf16 %v848, %v845
      %965 = vmatprep.subr.bf16.mxu0 0
      %966 = vmatpush1.bf16.xpose.msra.mxu0 %v964
      %967 = vmatprep.subr.bf16.mxu0 0
      %968 = vmatpush1.bf16.xpose.msra.mxu0 0
      %969 = vmatprep.subr.bf16.mxu0 0
      %970 = vmatpush1.bf16.xpose.msra.mxu0 0
      %971 = vmatprep.subr.bf16.mxu0 0
      %972 = vmatpush1.bf16.xpose.msra.mxu0 0
      %973 = vmatprep.subr.bf16.mxu0 0
      %974 = vmatpush1.bf16.xpose.msra.mxu0 0
      %975 = vmatprep.subr.bf16.mxu0 0
      %976 = vmatpush1.bf16.xpose.msra.mxu0 0
      %977 = vmatprep.subr.bf16.mxu0 0
      %978 = vmatpush1.bf16.xpose.msra.mxu0 0
      %979 = vmatprep.subr.bf16.mxu0 0
      %980 = vmatpush1.bf16.xpose.msra.mxu0 0
      %981 = vmatprep.subr.bf16.mxu0 0
      %982 = vmatpush1.bf16.xpose.msra.mxu0 0
      %983 = vmatprep.subr.bf16.mxu0 0
      %984 = vmatpush1.bf16.xpose.msra.mxu0 0
      %985 = vmatprep.subr.bf16.mxu0 0
      %986 = vmatpush1.bf16.xpose.msra.mxu0 0
      %987 = vmatprep.subr.bf16.mxu0 0
      %988 = vmatpush1.bf16.xpose.msra.mxu0 0
      %989 = vmatprep.subr.bf16.mxu0 0
      %990 = vmatpush1.bf16.xpose.msra.mxu0 0
      %991 = vmatprep.subr.bf16.mxu0 0
      %992 = vmatpush1.bf16.xpose.msra.mxu0 0
      %993 = vmatprep.subr.bf16.mxu0 0
      %994 = vmatpush1.bf16.xpose.msra.mxu0 0
      %995 = vmatprep.subr.bf16.mxu0 0
      %996 = vmatpush1.bf16.xpose.msra.mxu0 0
      %997 = vmatprep.mubr.bf16.mxu0 0
      %998 = vmatmul.mubr.bf16.gmra.mrb[0].mxu0 %v963
      %v999 = vpop.f32.mrb[0].mxu0
      %v1000 = vadd.f32 0.0, %v999
      %v1001 = vpop.f32.mrb[0].mxu0
      %v1002 = vpop.f32.mrb[0].mxu0
      %v1003 = vadd.f32 0.0, %v1002
      %v1004 = vpop.f32.mrb[0].mxu0
      %1005 = vdwg.mxu0
      %v1006 = vmul.f32 %v1000, 0.125
      %v1007 = vmul.f32 %v1003, 0.125
      %vm1008 = vcmask 130048
      %v1009 = vsel %vm1008, %v1006, -inf
      %1010 = vmax.xlane.f32.xlu0 %v1009
      %v1011 = vpop.xlane.xlu0 %1010
      %v1012 = vsel %vm1008, %v1007, -inf
      %1013 = vmax.xlane.f32.xlu0 %v1012
      %v1014 = vpop.xlane.xlu0 %1013
      %v1015 = vsub.f32 %v1006, %v1011
      %v1016 = vsub.f32 %v1007, %v1014
      %v1017 = vmul.f32 %v1015, 1.442695
      %v1018 = vpow.pop %v1017
      %v1019 = vmul.f32 %v1016, 1.442695
      %v1020 = vpow.pop %v1019
      %v1021 = vsel %vm1008, %v1018, 0.0
      %1022 = vadd.xlane.f32.xlu0 %v1021
      %v1023 = vpop.xlane.xlu0 %1022
      %v1024 = vsel %vm1008, %v1020, 0.0
      %1025 = vadd.xlane.f32.xlu0 %v1024
      %v1026 = vpop.xlane.xlu0 %1025
      %v1027 = vrcp.pop %v1023
      %v1028 = vrcp.pop %v1026
      %v1029 = vmul.f32 %v1018, %v1027
      %v1030 = vmul.f32 %v1020, %v1028
      %v1031 = vpack.c.bf16 %v1030, %v1029
      %v1032 = vpack.c.bf16 %v960, %v957
      %v1034 = vsel %vm1008, %v1031, 0
      %1036 = vmatprep.subr.bf16.mxu0 0
      %1037 = vmatpush1.bf16.msra.mxu0 %v1032
      %1038 = vmatprep.subr.bf16.mxu0 0
      %1039 = vmatpush1.bf16.msra.mxu0 0
      %1040 = vmatprep.subr.bf16.mxu0 0
      %1041 = vmatpush1.bf16.msra.mxu0 0
      %1042 = vmatprep.subr.bf16.mxu0 0
      %1043 = vmatpush1.bf16.msra.mxu0 0
      %1044 = vmatprep.subr.bf16.mxu0 0
      %1045 = vmatpush1.bf16.msra.mxu0 0
      %1046 = vmatprep.subr.bf16.mxu0 0
      %1047 = vmatpush1.bf16.msra.mxu0 0
      %1048 = vmatprep.subr.bf16.mxu0 0
      %1049 = vmatpush1.bf16.msra.mxu0 0
      %1050 = vmatprep.subr.bf16.mxu0 0
      %1051 = vmatpush1.bf16.msra.mxu0 0
      %1052 = vmatprep.subr.bf16.mxu0 0
      %1053 = vmatpush1.bf16.msra.mxu0 0
      %1054 = vmatprep.subr.bf16.mxu0 0
      %1055 = vmatpush1.bf16.msra.mxu0 0
      %1056 = vmatprep.subr.bf16.mxu0 0
      %1057 = vmatpush1.bf16.msra.mxu0 0
      %1058 = vmatprep.subr.bf16.mxu0 0
      %1059 = vmatpush1.bf16.msra.mxu0 0
      %1060 = vmatprep.subr.bf16.mxu0 0
      %1061 = vmatpush1.bf16.msra.mxu0 0
      %1062 = vmatprep.subr.bf16.mxu0 0
      %1063 = vmatpush1.bf16.msra.mxu0 0
      %1064 = vmatprep.subr.bf16.mxu0 0
      %1065 = vmatpush1.bf16.msra.mxu0 0
      %1066 = vmatprep.subr.bf16.mxu0 0
      %1067 = vmatpush1.bf16.msra.mxu0 0
      %1068 = vmatprep.mubr.bf16.mxu0 0
      %1069 = vmatmul.mubr.bf16.gmra.mrb[0].mxu0 %v1034
      %v1070 = vpop.f32.mrb[0].mxu0
      %v1071 = vadd.f32 0.0, %v1070
      %v1072 = vpop.f32.mrb[0].mxu0
      %v1073 = vpop.f32.mrb[0].mxu0
      %v1074 = vadd.f32 0.0, %v1073
      %v1075 = vpop.f32.mrb[0].mxu0
      %1076 = vdwg.mxu0
      %v1077 = vpack.c.bf16 %v1074, %v1071
      %v1078 = vld [vmem:[%s10] sm:$0xf]
      %v1079 = vld [vmem:[%s10 + $0x4] sm:$0xf]
      %v1080 = vld [vmem:[%s10 + $0x8] sm:$0xf]
      %v1081 = vld [vmem:[%s10 + $0xc] sm:$0xf]
      %v1082 = vld [vmem:[%s10 + $0x10] sm:$0xf]
      %v1083 = vld [vmem:[%s10 + $0x14] sm:$0xf]
      %v1084 = vld [vmem:[%s10 + $0x18] sm:$0xf]
      %v1085 = vld [vmem:[%s10 + $0x1c] sm:$0xf]
      %v1086 = vld [vmem:[%s10 + $0x20] sm:$0xf]
      %v1087 = vld [vmem:[%s10 + $0x24] sm:$0xf]
      %v1088 = vld [vmem:[%s10 + $0x28] sm:$0xf]
      %v1089 = vld [vmem:[%s10 + $0x2c] sm:$0xf]
      %v1090 = vld [vmem:[%s10 + $0x30] sm:$0xf]
      %v1091 = vld [vmem:[%s10 + $0x34] sm:$0xf]
      %v1092 = vld [vmem:[%s10 + $0x38] sm:$0xf]
      %v1093 = vld [vmem:[%s10 + $0x3c] sm:$0xf]
      %v1094 = vld [vmem:[%s11] sm:$0x1]
      %v1096 = vlaneseq
      %v1097 = vshrl.u32 %v1096, 7
      %v1098 = vsub.s32 0, %v1097
      %v1099 = vrot.slane %v1094, %v1098
      %v1117 = vunpack.c.l.b16 %v1078
      %v1118 = vunpack.c.l.b16 %v1079
      %v1119 = vunpack.c.l.b16 %v1080
      %v1120 = vunpack.c.l.b16 %v1081
      %v1121 = vunpack.c.l.b16 %v1082
      %v1122 = vunpack.c.l.b16 %v1083
      %v1123 = vunpack.c.l.b16 %v1084
      %v1124 = vunpack.c.l.b16 %v1085
      %v1125 = vunpack.c.l.b16 %v1086
      %v1126 = vunpack.c.l.b16 %v1087
      %v1127 = vunpack.c.l.b16 %v1088
      %v1128 = vunpack.c.l.b16 %v1089
      %v1129 = vunpack.c.l.b16 %v1090
      %v1130 = vunpack.c.l.b16 %v1091
      %v1131 = vunpack.c.l.b16 %v1092
      %v1132 = vunpack.c.l.b16 %v1093
      %v1133 = vpack.c.b16 %v1118, %v1117
      %v1134 = vpack.c.b16 %v1120, %v1119
      %v1135 = vpack.c.b16 %v1122, %v1121
      %v1136 = vpack.c.b16 %v1124, %v1123
      %v1137 = vpack.c.b16 %v1126, %v1125
      %v1138 = vpack.c.b16 %v1128, %v1127
      %v1139 = vpack.c.b16 %v1130, %v1129
      %v1140 = vpack.c.b16 %v1132, %v1131
      %1149 = vmatprep.subr.bf16.mxu0 0
      %1150 = vmatpush1.bf16.msra.mxu0 %v1133
      %1151 = vmatprep.subr.bf16.mxu0 0
      %1152 = vmatpush1.bf16.msra.mxu0 %v1134
      %1153 = vmatprep.subr.bf16.mxu0 0
      %1154 = vmatpush1.bf16.msra.mxu0 %v1135
      %1155 = vmatprep.subr.bf16.mxu0 0
      %1156 = vmatpush1.bf16.msra.mxu0 %v1136
      %1157 = vmatprep.subr.bf16.mxu0 0
      %1158 = vmatpush1.bf16.msra.mxu0 %v1137
      %1159 = vmatprep.subr.bf16.mxu0 0
      %1160 = vmatpush1.bf16.msra.mxu0 %v1138
      %1161 = vmatprep.subr.bf16.mxu0 0
      %1162 = vmatpush1.bf16.msra.mxu0 %v1139
      %1163 = vmatprep.subr.bf16.mxu0 0
      %1164 = vmatpush1.bf16.msra.mxu0 %v1140
      %1165 = vmatprep.subr.bf16.mxu0 0
      %1166 = vmatpush1.bf16.msra.mxu0 0
      %1167 = vmatprep.subr.bf16.mxu0 0
      %1168 = vmatpush1.bf16.msra.mxu0 0
      %1169 = vmatprep.subr.bf16.mxu0 0
      %1170 = vmatpush1.bf16.msra.mxu0 0
      %1171 = vmatprep.subr.bf16.mxu0 0
      %1172 = vmatpush1.bf16.msra.mxu0 0
      %1173 = vmatprep.subr.bf16.mxu0 0
      %1174 = vmatpush1.bf16.msra.mxu0 0
      %1175 = vmatprep.subr.bf16.mxu0 0
      %1176 = vmatpush1.bf16.msra.mxu0 0
      %1177 = vmatprep.subr.bf16.mxu0 0
      %1178 = vmatpush1.bf16.msra.mxu0 0
      %1179 = vmatprep.subr.bf16.mxu0 0
      %1180 = vmatpush1.bf16.msra.mxu0 0
      %1181 = vmatprep.mubr.bf16.mxu0 0
      %1182 = vmatmul.mubr.bf16.gmra.mrb[0].mxu0 %v1077
      %v1183 = vpop.f32.mrb[0].mxu0
      %v1184 = vadd.f32 %v1099, %v1183
      %v1185 = vpop.f32.mrb[0].mxu0
      %v1186 = vpop.f32.mrb[0].mxu0
      %v1187 = vadd.f32 %v1099, %v1186
      %v1188 = vpop.f32.mrb[0].mxu0
      %1189 = vdwg.mxu0
      %v1190 = vadd.f32 %v415, %v1184
      %v1191 = vadd.f32 %v416, %v1187
      %1192 = vst [vmem:[%s413] sm:$0xff] %v1190
      %1193 = vst [vmem:[%s413 + $0x8] sm:$0xff] %v1191
      %p1194 = scmp.lt.s32.totalorder %s23, 1
      %s1195 = scalar_select %p1194, %s23, 1
      %s1196 = smul.addr %s1195, 2
      %s1197 = smul.addr %s1196, 8
      %s1198 = scalar_lea.vmem %s12, %s1197
      // Predicated region
      $region69: #{discriminator_forward.10} parent=67 // pred_check
        %p1199 = pneg %p298
      $region70: #{discriminator_forward.10} parent=67 // pred_check_branch
        %1201 = sbr.rel (%p1199) target = $region72
      $region71: #{discriminator_forward.10} parent=67 // pred_region
        _
      $region72: #{discriminator_forward.10} parent=67 // pred_fallthru
        _
    $region68: #{discriminator_forward.10} parent=5 // pred_fallthru
      _
    %p1202 = scmp.le.s32.totalorder 2, %s18
    // Predicated region
    $region73: #{discriminator_forward.10} parent=5 // pred_check
      %p1203 = pneg %p1202
    $region74: #{discriminator_forward.10} parent=5 // pred_check_branch
      %1205 = sbr.rel (%p1203) target = $region76
    $region75: #{discriminator_forward.10} parent=5 // pred_region
      %s1206 = ssub.s32 %s18, 2
      // Predicated region
      $region77: #{discriminator_forward.10} parent=75 // pred_check
        %p1207 = pneg %p304
      $region78: #{discriminator_forward.10} parent=75 // pred_check_branch
        %1209 = sbr.rel (%p1207) target = $region80
      $region79: #{discriminator_forward.10} parent=75 // pred_region
        %p1210 = scmp.lt.s32.totalorder %s24, 1
        %s1211 = scalar_select %p1210, %s24, 1
        %s1212 = smul.addr %s1211, 2
        %s1213 = smul.addr %s1212, 8
        %s1214 = scalar_lea.vmem %s12, %s1213
      $region80: #{discriminator_forward.10} parent=75 // pred_fallthru
        _
    $region76: #{discriminator_forward.10} parent=5 // pred_fallthru
      _
  $region6: #{discriminator_forward.10} parent=0 // loop_footer
    %s22 = sadd.s32 1, %s18
  $region7: #{discriminator_forward.10} parent=0 // loop_footer_branch
    %17 = sbr.rel target = $region3
  $region8: #{discriminator_forward.10} parent=0 // loop_exit
    _

// kernel: discriminator_forward.11
$region0: #{discriminator_forward.11}
  #allocation0 [shape = 'u32[]', space=smem, size = 0x4, offset = 0x4, fixed_abs, tag = 'smem constant byte address 0x4 - core index']
  #allocation1 [shape = 'u32[144,128]{1,0:T(1,128)}', space=vmem, size = 0x12000, scoped, tag = 'internal scratch']
  %s0 = inlined_call_operand.vmem [shape: f32[2,40,128], index: 0, kind: input, shape index: {}]
  %s1 = inlined_call_operand.vmem [shape: bf16[2048,128], index: 1, kind: input, shape index: {}]
  %s2 = inlined_call_operand.vmem [shape: f32[1,128], index: 2, kind: input, shape index: {}]
  %s3 = inlined_call_operand.vmem [shape: f32[1,128], index: 3, kind: input, shape index: {}, may-alias: {3,4,5}]
  %s4 = inlined_call_operand.vmem [shape: f32[1,128], index: 4, kind: input, shape index: {}, may-alias: {3,4,5}]
  %s5 = inlined_call_operand.vmem [shape: f32[1,128], index: 5, kind: input, shape index: {}, may-alias: {3,4,5}]
  %s6 = inlined_call_operand.vmem [shape: f32[2,18,128], index: 6, kind: output, shape index: {}]
  %s7 = sld [smem:[#allocation0]]
  $region57: #{discriminator_forward.11} parent=0
    _
  %s9 = ssub.s32 1, %s7
  %s10 = scalar_select 0, %s9, %s7
  loop: start=0, step=1, limit=4
  $region2: #{discriminator_forward.11} parent=0 // loop_pre_header
    _
  $region3: #{discriminator_forward.11} parent=0 // loop_header
    %s12 = sphi 0, %s16
    %p13 = scmp.ge.s32.totalorder %s12, 4
    %s22 = sphi 0, %s24
    %s25 = sphi 0, %s22
    %s26 = sphi 0, %s25
    %s42 = sphi 0, %s26
    %s46 = sphi 0, %s46
    %s48 = sphi 0, %s46
    %s49 = sphi 0, %s48
    %s63 = sphi 0, %s49
    %s67 = sphi 0, %s67
    %s69 = sphi 0, %s67
    %s70 = sphi 0, %s69
    %s84 = sphi 0, %s70
    %s88 = sphi 0, %s88
    %s90 = sphi 0, %s88
    %s91 = sphi 0, %s90
    %s105 = sphi 0, %s91
    %s109 = sphi 0, %s109
    %s111 = sphi 0, %s109
    %s112 = sphi 0, %s111
    %s126 = sphi 0, %s112
    %s130 = sphi 0, %s130
    %s132 = sphi 0, %s130
    %s133 = sphi 0, %s132
    %s147 = sphi 0, %s133
    %s153 = sphi 0, %s155
    %s156 = sphi 0, %s153
    %s157 = sphi 0, %s156
    %s173 = sphi 0, %s157
  $region4: #{discriminator_forward.11} parent=0 // loop_header_branch
    %15 = sbr.rel (%p13) target = $region8
  $region5: #{discriminator_forward.11} parent=0 // loop_body
    %s17 = ssub.s32 %s12, 1
    %s18 = ssub.s32 %s12, 2
    %s19 = sadd.s32 %s12, 1
    %s20 = ssub.s32 %s12, %s19
    %p21 = scmp.eq.s32.totalorder %s20, 0
    %s23 = sadd.s32 %s22, 1
    %s24 = scalar_select %p21, %s22, %s23
    %p27 = pneg %p21
    %p28 = scmp.eq.s32.totalorder %s12, 1
    %p29 = por %p27, %p28
    %p30 = scmp.ne.s32.totalorder %s22, %s25
    %p31 = scmp.eq.s32.totalorder %s12, 0
    %p32 = por %p30, %p31
    %p33 = scmp.ne.s32.totalorder %s22, %s25
    %p34 = scmp.eq.s32.totalorder %s17, 1
    %p35 = por %p33, %p34
    %p36 = scmp.ne.s32.totalorder %s25, %s26
    %p37 = scmp.eq.s32.totalorder %s17, 0
    %p38 = por %p36, %p37
    %p39 = scmp.ne.s32.totalorder %s25, %s26
    %p40 = scmp.eq.s32.totalorder %s18, 1
    %p41 = por %p39, %p40
    %p43 = scmp.ne.s32.totalorder %s26, %s42
    %p44 = scmp.eq.s32.totalorder %s18, 0
    %p45 = por %p43, %p44
    %s47 = sadd.s32 %s46, 1
    %p50 = scmp.eq.s32.totalorder %s12, 1
    %p51 = scmp.ne.s32.totalorder %s46, %s48
    %p52 = scmp.eq.s32.totalorder %s12, 0
    %p53 = por %p51, %p52
    %p54 = scmp.ne.s32.totalorder %s46, %s48
    %p55 = scmp.eq.s32.totalorder %s17, 1
    %p56 = por %p54, %p55
    %p57 = scmp.ne.s32.totalorder %s48, %s49
    %p58 = scmp.eq.s32.totalorder %s17, 0
    %p59 = por %p57, %p58
    %p60 = scmp.ne.s32.totalorder %s48, %s49
    %p61 = scmp.eq.s32.totalorder %s18, 1
    %p62 = por %p60, %p61
    %p64 = scmp.ne.s32.totalorder %s49, %s63
    %p65 = scmp.eq.s32.totalorder %s18, 0
    %p66 = por %p64, %p65
    %s68 = sadd.s32 %s67, 1
    %p71 = scmp.eq.s32.totalorder %s12, 1
    %p72 = scmp.ne.s32.totalorder %s67, %s69
    %p73 = scmp.eq.s32.totalorder %s12, 0
    %p74 = por %p72, %p73
    %p75 = scmp.ne.s32.totalorder %s67, %s69
    %p76 = scmp.eq.s32.totalorder %s17, 1
    %p77 = por %p75, %p76
    %p78 = scmp.ne.s32.totalorder %s69, %s70
    %p79 = scmp.eq.s32.totalorder %s17, 0
    %p80 = por %p78, %p79
    %p81 = scmp.ne.s32.totalorder %s69, %s70
    %p82 = scmp.eq.s32.totalorder %s18, 1
    %p83 = por %p81, %p82
    %p85 = scmp.ne.s32.totalorder %s70, %s84
    %p86 = scmp.eq.s32.totalorder %s18, 0
    %p87 = por %p85, %p86
    %s89 = sadd.s32 %s88, 1
    %p92 = scmp.eq.s32.totalorder %s12, 1
    %p93 = scmp.ne.s32.totalorder %s88, %s90
    %p94 = scmp.eq.s32.totalorder %s12, 0
    %p95 = por %p93, %p94
    %p96 = scmp.ne.s32.totalorder %s88, %s90
    %p97 = scmp.eq.s32.totalorder %s17, 1
    %p98 = por %p96, %p97
    %p99 = scmp.ne.s32.totalorder %s90, %s91
    %p100 = scmp.eq.s32.totalorder %s17, 0
    %p101 = por %p99, %p100
    %p102 = scmp.ne.s32.totalorder %s90, %s91
    %p103 = scmp.eq.s32.totalorder %s18, 1
    %p104 = por %p102, %p103
    %p106 = scmp.ne.s32.totalorder %s91, %s105
    %p107 = scmp.eq.s32.totalorder %s18, 0
    %p108 = por %p106, %p107
    %s110 = sadd.s32 %s109, 1
    %p113 = scmp.eq.s32.totalorder %s12, 1
    %p114 = scmp.ne.s32.totalorder %s109, %s111
    %p115 = scmp.eq.s32.totalorder %s12, 0
    %p116 = por %p114, %p115
    %p117 = scmp.ne.s32.totalorder %s109, %s111
    %p118 = scmp.eq.s32.totalorder %s17, 1
    %p119 = por %p117, %p118
    %p120 = scmp.ne.s32.totalorder %s111, %s112
    %p121 = scmp.eq.s32.totalorder %s17, 0
    %p122 = por %p120, %p121
    %p123 = scmp.ne.s32.totalorder %s111, %s112
    %p124 = scmp.eq.s32.totalorder %s18, 1
    %p125 = por %p123, %p124
    %p127 = scmp.ne.s32.totalorder %s112, %s126
    %p128 = scmp.eq.s32.totalorder %s18, 0
    %p129 = por %p127, %p128
    %s131 = sadd.s32 %s130, 1
    %p134 = scmp.eq.s32.totalorder %s12, 1
    %p135 = scmp.ne.s32.totalorder %s130, %s132
    %p136 = scmp.eq.s32.totalorder %s12, 0
    %p137 = por %p135, %p136
    %p138 = scmp.ne.s32.totalorder %s130, %s132
    %p139 = scmp.eq.s32.totalorder %s17, 1
    %p140 = por %p138, %p139
    %p141 = scmp.ne.s32.totalorder %s132, %s133
    %p142 = scmp.eq.s32.totalorder %s17, 0
    %p143 = por %p141, %p142
    %p144 = scmp.ne.s32.totalorder %s132, %s133
    %p145 = scmp.eq.s32.totalorder %s18, 1
    %p146 = por %p144, %p145
    %p148 = scmp.ne.s32.totalorder %s133, %s147
    %p149 = scmp.eq.s32.totalorder %s18, 0
    %p150 = por %p148, %p149
    %s151 = ssub.s32 %s12, %s19
    %p152 = scmp.eq.s32.totalorder %s151, 0
    %s154 = sadd.s32 %s153, 1
    %s155 = scalar_select %p152, %s153, %s154
    %p158 = pneg %p152
    %p159 = scmp.eq.s32.totalorder %s12, 1
    %p160 = por %p158, %p159
    %p161 = scmp.ne.s32.totalorder %s153, %s156
    %p162 = scmp.eq.s32.totalorder %s12, 0
    %p163 = por %p161, %p162
    %p164 = scmp.ne.s32.totalorder %s153, %s156
    %p165 = scmp.eq.s32.totalorder %s17, 1
    %p166 = por %p164, %p165
    %p167 = scmp.ne.s32.totalorder %s156, %s157
    %p168 = scmp.eq.s32.totalorder %s17, 0
    %p169 = por %p167, %p168
    %p170 = scmp.ne.s32.totalorder %s156, %s157
    %p171 = scmp.eq.s32.totalorder %s18, 1
    %p172 = por %p170, %p171
    %p174 = scmp.ne.s32.totalorder %s157, %s173
    %p175 = scmp.eq.s32.totalorder %s18, 0
    %p176 = por %p174, %p175
    %p177 = scmp.le.s32.totalorder 1, %s12
    %p178 = scmp.lt.s32.totalorder %s12, 3
    %p179 = pnand %p177, %p178
    %p180 = pneg %p179
    // Predicated region
    $region9: #{discriminator_forward.11} parent=5 // pred_check
      _
    $region10: #{discriminator_forward.11} parent=5 // pred_check_branch
      %182 = sbr.rel (%p179) target = $region12
    $region11: #{discriminator_forward.11} parent=5 // pred_region
      %s183 = ssub.s32 %s12, 1
      // Predicated region
      $region13: #{discriminator_forward.11} parent=11 // pred_check
        %p184 = pneg %p59
      $region14: #{discriminator_forward.11} parent=11 // pred_check_branch
        %186 = sbr.rel (%p184) target = $region16
      $region15: #{discriminator_forward.11} parent=11 // pred_region
        _
      $region16: #{discriminator_forward.11} parent=11 // pred_fallthru
        _
      // Predicated region
      $region17: #{discriminator_forward.11} parent=11 // pred_check
        %p187 = pneg %p80
      $region18: #{discriminator_forward.11} parent=11 // pred_check_branch
        %189 = sbr.rel (%p187) target = $region20
      $region19: #{discriminator_forward.11} parent=11 // pred_region
        _
      $region20: #{discriminator_forward.11} parent=11 // pred_fallthru
        _
      // Predicated region
      $region21: #{discriminator_forward.11} parent=11 // pred_check
        %p190 = pneg %p101
      $region22: #{discriminator_forward.11} parent=11 // pred_check_branch
        %192 = sbr.rel (%p190) target = $region24
      $region23: #{discriminator_forward.11} parent=11 // pred_region
        _
      $region24: #{discriminator_forward.11} parent=11 // pred_fallthru
        _
      // Predicated region
      $region25: #{discriminator_forward.11} parent=11 // pred_check
        %p193 = pneg %p122
      $region26: #{discriminator_forward.11} parent=11 // pred_check_branch
        %195 = sbr.rel (%p193) target = $region28
      $region27: #{discriminator_forward.11} parent=11 // pred_region
        _
      $region28: #{discriminator_forward.11} parent=11 // pred_fallthru
        _
      // Predicated region
      $region29: #{discriminator_forward.11} parent=11 // pred_check
        %p196 = pneg %p143
      $region30: #{discriminator_forward.11} parent=11 // pred_check_branch
        %198 = sbr.rel (%p196) target = $region32
      $region31: #{discriminator_forward.11} parent=11 // pred_region
        _
      $region32: #{discriminator_forward.11} parent=11 // pred_fallthru
        _
    $region12: #{discriminator_forward.11} parent=5 // pred_fallthru
      _
    %p199 = scmp.lt.s32.totalorder %s12, 2
    // Predicated region
    $region33: #{discriminator_forward.11} parent=5 // pred_check
      %p200 = pneg %p199
    $region34: #{discriminator_forward.11} parent=5 // pred_check_branch
      %202 = sbr.rel (%p200) target = $region36
    $region35: #{discriminator_forward.11} parent=5 // pred_region
      // Predicated region
      $region37: #{discriminator_forward.11} parent=35 // pred_check
        %p203 = pneg %p32
      $region38: #{discriminator_forward.11} parent=35 // pred_check_branch
        %205 = sbr.rel (%p203) target = $region40
      $region39: #{discriminator_forward.11} parent=35 // pred_region
        %p206 = scmp.lt.s32.totalorder %s12, 1
        %s207 = scalar_select %p206, %s12, 1
        %s208 = smul.addr %s207, 5
        %s209 = smul.addr %s208, 8
        %s210 = scalar_lea.vmem %s0, %s209
      $region40: #{discriminator_forward.11} parent=35 // pred_fallthru
        _
    $region36: #{discriminator_forward.11} parent=5 // pred_fallthru
      _
    %p211 = scmp.le.s32.totalorder 1, %s12
    %p212 = scmp.lt.s32.totalorder %s12, 3
    %p213 = pnand %p211, %p212
    %p214 = pneg %p213
    // Predicated region
    $region41: #{discriminator_forward.11} parent=5 // pred_check
      _
    $region42: #{discriminator_forward.11} parent=5 // pred_check_branch
      %216 = sbr.rel (%p213) target = $region44
    $region43: #{discriminator_forward.11} parent=5 // pred_region
      %s217 = ssub.s32 %s12, 1
      %p218 = scmp.lt.s32.totalorder %s17, 1
      %s219 = scalar_select %p218, %s17, 1
      %s220 = smul.addr %s219, 5
      %s221 = smul.addr %s220, 8
      %s222 = scalar_lea.vmem %s0, %s221
      %p223 = pneg %p38
      %p224 = pneg %p35
      %p225 = pneg %p59
      %p226 = pneg %p56
      %p227 = pneg %p80
      %p228 = pneg %p77
      %p229 = pneg %p101
      %p230 = pneg %p98
      %p231 = pneg %p122
      %p232 = pneg %p119
      %p233 = pneg %p143
      %p234 = pneg %p140
      %p235 = pneg %p169
      %p236 = pneg %p166
      %p237 = scmp.lt.s32.totalorder %s17, 1
      %s238 = scalar_select %p237, %s17, 1
      %s239 = smul.addr %s238, 3
      %s240 = smul.addr %s239, 8
      %s241 = scalar_lea.vmem %s6, %s240
      %p242 = scmp.lt.s32.totalorder %s17, 1
      %s243 = scalar_select %p242, %s17, 1
      %s244 = smul.addr %s243, 5
      %s245 = smul.addr %s244, 8
      %s246 = scalar_lea.vmem %s0, %s245
      %p247 = scmp.lt.s32.totalorder %s17, 1
      %s248 = scalar_select %p247, %s17, 1
      %s249 = smul.addr %s248, 3
      %s250 = smul.addr %s249, 8
      %s251 = scalar_lea.vmem %s6, %s250
      %v253 = vld [vmem:[%s246] sm:$0xff]
      %v254 = vld [vmem:[%s246 + $0x8] sm:$0xff]
      %v255 = vld [vmem:[%s246 + $0x10] sm:$0x3]
      %v256 = vpack.c.bf16 %v254, %v253
      %v257 = vpack.c.bf16 %v255, %v255
      %v258 = vld [vmem:[%s1] sm:$0xf]
      %v259 = vld [vmem:[%s1 + $0x4] sm:$0xf]
      %v260 = vld [vmem:[%s1 + $0x8] sm:$0xf]
      %v261 = vld [vmem:[%s1 + $0xc] sm:$0xf]
      %v262 = vld [vmem:[%s1 + $0x10] sm:$0xf]
      %v263 = vld [vmem:[%s1 + $0x14] sm:$0xf]
      %v264 = vld [vmem:[%s1 + $0x18] sm:$0xf]
      %v265 = vld [vmem:[%s1 + $0x1c] sm:$0xf]
      %v266 = vld [vmem:[%s1 + $0x20] sm:$0xf]
      %v267 = vld [vmem:[%s1 + $0x24] sm:$0xf]
      %v268 = vld [vmem:[%s1 + $0x28] sm:$0xf]
      %v269 = vld [vmem:[%s1 + $0x2c] sm:$0xf]
      %v270 = vld [vmem:[%s1 + $0x30] sm:$0xf]
      %v271 = vld [vmem:[%s1 + $0x34] sm:$0xf]
      %v272 = vld [vmem:[%s1 + $0x38] sm:$0xf]
      %v273 = vld [vmem:[%s1 + $0x3c] sm:$0xf]
      %v274 = vld [vmem:[%s246 + $0x1] sm:$0xff]
      %v275 = vld [vmem:[%s246 + $0x9] sm:$0xff]
      %v276 = vld [vmem:[%s246 + $0x11] sm:$0x3]
      %v277 = vpack.c.bf16 %v275, %v274
      %v278 = vpack.c.bf16 %v276, %v276
      %v279 = vld [vmem:[%s1 + $0x40] sm:$0xf]
      %v280 = vld [vmem:[%s1 + $0x44] sm:$0xf]
      %v281 = vld [vmem:[%s1 + $0x48] sm:$0xf]
      %v282 = vld [vmem:[%s1 + $0x4c] sm:$0xf]
      %v283 = vld [vmem:[%s1 + $0x50] sm:$0xf]
      %v284 = vld [vmem:[%s1 + $0x54] sm:$0xf]
      %v285 = vld [vmem:[%s1 + $0x58] sm:$0xf]
      %v286 = vld [vmem:[%s1 + $0x5c] sm:$0xf]
      %v287 = vld [vmem:[%s1 + $0x60] sm:$0xf]
      %v288 = vld [vmem:[%s1 + $0x64] sm:$0xf]
      %v289 = vld [vmem:[%s1 + $0x68] sm:$0xf]
      %v290 = vld [vmem:[%s1 + $0x6c] sm:$0xf]
      %v291 = vld [vmem:[%s1 + $0x70] sm:$0xf]
      %v292 = vld [vmem:[%s1 + $0x74] sm:$0xf]
      %v293 = vld [vmem:[%s1 + $0x78] sm:$0xf]
      %v294 = vld [vmem:[%s1 + $0x7c] sm:$0xf]
      %v311 = vunpack.c.l.b16 %v279
      %v312 = vunpack.c.l.b16 %v280
      %v313 = vunpack.c.l.b16 %v281
      %v314 = vunpack.c.l.b16 %v282
      %v315 = vunpack.c.l.b16 %v283
      %v316 = vunpack.c.l.b16 %v284
      %v317 = vunpack.c.l.b16 %v285
      %v318 = vunpack.c.l.b16 %v286
      %v319 = vunpack.c.l.b16 %v287
      %v320 = vunpack.c.l.b16 %v288
      %v321 = vunpack.c.l.b16 %v289
      %v322 = vunpack.c.l.b16 %v290
      %v323 = vunpack.c.l.b16 %v291
      %v324 = vunpack.c.l.b16 %v292
      %v325 = vunpack.c.l.b16 %v293
      %v326 = vunpack.c.l.b16 %v294
      %v327 = vpack.c.b16 %v312, %v311
      %v328 = vpack.c.b16 %v314, %v313
      %v329 = vpack.c.b16 %v316, %v315
      %v330 = vpack.c.b16 %v318, %v317
      %v331 = vpack.c.b16 %v320, %v319
      %v332 = vpack.c.b16 %v322, %v321
      %v333 = vpack.c.b16 %v324, %v323
      %v334 = vpack.c.b16 %v326, %v325
      %343 = vmatprep.subr.bf16.mxu0 0
      %344 = vmatpush1.bf16.msra.mxu0 %v327
      %345 = vmatprep.subr.bf16.mxu0 0
      %346 = vmatpush1.bf16.msra.mxu0 %v328
      %347 = vmatprep.subr.bf16.mxu0 0
      %348 = vmatpush1.bf16.msra.mxu0 %v329
      %349 = vmatprep.subr.bf16.mxu0 0
      %350 = vmatpush1.bf16.msra.mxu0 %v330
      %351 = vmatprep.subr.bf16.mxu0 0
      %352 = vmatpush1.bf16.msra.mxu0 %v331
      %353 = vmatprep.subr.bf16.mxu0 0
      %354 = vmatpush1.bf16.msra.mxu0 %v332
      %355 = vmatprep.subr.bf16.mxu0 0
      %356 = vmatpush1.bf16.msra.mxu0 %v333
      %357 = vmatprep.subr.bf16.mxu0 0
      %358 = vmatpush1.bf16.msra.mxu0 %v334
      %359 = vmatprep.subr.bf16.mxu0 0
      %360 = vmatpush1.bf16.msra.mxu0 0
      %361 = vmatprep.subr.bf16.mxu0 0
      %362 = vmatpush1.bf16.msra.mxu0 0
      %363 = vmatprep.subr.bf16.mxu0 0
      %364 = vmatpush1.bf16.msra.mxu0 0
      %365 = vmatprep.subr.bf16.mxu0 0
      %366 = vmatpush1.bf16.msra.mxu0 0
      %367 = vmatprep.subr.bf16.mxu0 0
      %368 = vmatpush1.bf16.msra.mxu0 0
      %369 = vmatprep.subr.bf16.mxu0 0
      %370 = vmatpush1.bf16.msra.mxu0 0
      %371 = vmatprep.subr.bf16.mxu0 0
      %372 = vmatpush1.bf16.msra.mxu0 0
      %373 = vmatprep.subr.bf16.mxu0 0
      %374 = vmatpush1.bf16.msra.mxu0 0
      %375 = vmatprep.mubr.bf16.mxu0 0
      %376 = vmatmul.mubr.bf16.gmra.mrb[0].mxu0 %v277
      %v377 = vpop.f32.mrb[0].mxu0
      %v378 = vadd.f32 0.0, %v377
      %v379 = vpop.f32.mrb[0].mxu0
      %v380 = vpop.f32.mrb[0].mxu0
      %v381 = vadd.f32 0.0, %v380
      %v382 = vpop.f32.mrb[0].mxu0
      %383 = vmatprep.mubr.bf16.mxu0 0
      %384 = vmatmul.mubr.bf16.gmra.mrb[0].mxu0 %v278
      %v385 = vpop.f32.mrb[0].mxu0
      %v386 = vadd.f32 0.0, %v385
      %v387 = vpop.f32.mrb[0].mxu0
      %v388 = vpop.f32.mrb[0].mxu0
      %v389 = vpop.f32.mrb[0].mxu0
      %390 = vdwg.mxu0
      %v407 = vunpack.c.l.b16 %v258
      %v408 = vunpack.c.l.b16 %v259
      %v409 = vunpack.c.l.b16 %v260
      %v410 = vunpack.c.l.b16 %v261
      %v411 = vunpack.c.l.b16 %v262
      %v412 = vunpack.c.l.b16 %v263
      %v413 = vunpack.c.l.b16 %v264
      %v414 = vunpack.c.l.b16 %v265
      %v415 = vunpack.c.l.b16 %v266
      %v416 = vunpack.c.l.b16 %v267
      %v417 = vunpack.c.l.b16 %v268
      %v418 = vunpack.c.l.b16 %v269
      %v419 = vunpack.c.l.b16 %v270
      %v420 = vunpack.c.l.b16 %v271
      %v421 = vunpack.c.l.b16 %v272
      %v422 = vunpack.c.l.b16 %v273
      %v423 = vpack.c.b16 %v408, %v407
      %v424 = vpack.c.b16 %v410, %v409
      %v425 = vpack.c.b16 %v412, %v411
      %v426 = vpack.c.b16 %v414, %v413
      %v427 = vpack.c.b16 %v416, %v415
      %v428 = vpack.c.b16 %v418, %v417
      %v429 = vpack.c.b16 %v420, %v419
      %v430 = vpack.c.b16 %v422, %v421
      %439 = vmatprep.subr.bf16.mxu0 0
      %440 = vmatpush1.bf16.msra.mxu0 %v423
      %441 = vmatprep.subr.bf16.mxu0 0
      %442 = vmatpush1.bf16.msra.mxu0 %v424
      %443 = vmatprep.subr.bf16.mxu0 0
      %444 = vmatpush1.bf16.msra.mxu0 %v425
      %445 = vmatprep.subr.bf16.mxu0 0
      %446 = vmatpush1.bf16.msra.mxu0 %v426
      %447 = vmatprep.subr.bf16.mxu0 0
      %448 = vmatpush1.bf16.msra.mxu0 %v427
      %449 = vmatprep.subr.bf16.mxu0 0
      %450 = vmatpush1.bf16.msra.mxu0 %v428
      %451 = vmatprep.subr.bf16.mxu0 0
      %452 = vmatpush1.bf16.msra.mxu0 %v429
      %453 = vmatprep.subr.bf16.mxu0 0
      %454 = vmatpush1.bf16.msra.mxu0 %v430
      %455 = vmatprep.subr.bf16.mxu0 0
      %456 = vmatpush1.bf16.msra.mxu0 0
      %457 = vmatprep.subr.bf16.mxu0 0
      %458 = vmatpush1.bf16.msra.mxu0 0
      %459 = vmatprep.subr.bf16.mxu0 0
      %460 = vmatpush1.bf16.msra.mxu0 0
      %461 = vmatprep.subr.bf16.mxu0 0
      %462 = vmatpush1.bf16.msra.mxu0 0
      %463 = vmatprep.subr.bf16.mxu0 0
      %464 = vmatpush1.bf16.msra.mxu0 0
      %465 = vmatprep.subr.bf16.mxu0 0
      %466 = vmatpush1.bf16.msra.mxu0 0
      %467 = vmatprep.subr.bf16.mxu0 0
      %468 = vmatpush1.bf16.msra.mxu0 0
      %469 = vmatprep.subr.bf16.mxu0 0
      %470 = vmatpush1.bf16.msra.mxu0 0
      %471 = vmatprep.mubr.bf16.mxu0 0
      %472 = vmatmul.mubr.bf16.gmra.mrb[0].mxu0 %v256
      %v473 = vpop.f32.mrb[0].mxu0
      %v474 = vadd.f32 %v378, %v473
      %v475 = vpop.f32.mrb[0].mxu0
      %v476 = vpop.f32.mrb[0].mxu0
      %v477 = vadd.f32 %v381, %v476
      %v478 = vpop.f32.mrb[0].mxu0
      %479 = vmatprep.mubr.bf16.mxu0 0
      %480 = vmatmul.mubr.bf16.gmra.mrb[0].mxu0 %v257
      %v481 = vpop.f32.mrb[0].mxu0
      %v482 = vadd.f32 %v386, %v481
      %v483 = vpop.f32.mrb[0].mxu0
      %v484 = vpop.f32.mrb[0].mxu0
      %v485 = vpop.f32.mrb[0].mxu0
      %486 = vdwg.mxu0
      %v487 = vld [vmem:[%s246 + $0x2] sm:$0xff]
      %v488 = vld [vmem:[%s246 + $0xa] sm:$0xff]
      %v489 = vld [vmem:[%s246 + $0x12] sm:$0x3]
      %v490 = vpack.c.bf16 %v488, %v487
      %v491 = vpack.c.bf16 %v489, %v489
      %v492 = vld [vmem:[%s1 + $0x80] sm:$0xf]
      %v493 = vld [vmem:[%s1 + $0x84] sm:$0xf]
      %v494 = vld [vmem:[%s1 + $0x88] sm:$0xf]
      %v495 = vld [vmem:[%s1 + $0x8c] sm:$0xf]
      %v496 = vld [vmem:[%s1 + $0x90] sm:$0xf]
      %v497 = vld [vmem:[%s1 + $0x94] sm:$0xf]
      %v498 = vld [vmem:[%s1 + $0x98] sm:$0xf]
      %v499 = vld [vmem:[%s1 + $0x9c] sm:$0xf]
      %v500 = vld [vmem:[%s1 + $0xa0] sm:$0xf]
      %v501 = vld [vmem:[%s1 + $0xa4] sm:$0xf]
      %v502 = vld [vmem:[%s1 + $0xa8] sm:$0xf]
      %v503 = vld [vmem:[%s1 + $0xac] sm:$0xf]
      %v504 = vld [vmem:[%s1 + $0xb0] sm:$0xf]
      %v505 = vld [vmem:[%s1 + $0xb4] sm:$0xf]
      %v506 = vld [vmem:[%s1 + $0xb8] sm:$0xf]
      %v507 = vld [vmem:[%s1 + $0xbc] sm:$0xf]
      %v524 = vunpack.c.l.b16 %v492
      %v525 = vunpack.c.l.b16 %v493
      %v526 = vunpack.c.l.b16 %v494
      %v527 = vunpack.c.l.b16 %v495
      %v528 = vunpack.c.l.b16 %v496
      %v529 = vunpack.c.l.b16 %v497
      %v530 = vunpack.c.l.b16 %v498
      %v531 = vunpack.c.l.b16 %v499
      %v532 = vunpack.c.l.b16 %v500
      %v533 = vunpack.c.l.b16 %v501
      %v534 = vunpack.c.l.b16 %v502
      %v535 = vunpack.c.l.b16 %v503
      %v536 = vunpack.c.l.b16 %v504
      %v537 = vunpack.c.l.b16 %v505
      %v538 = vunpack.c.l.b16 %v506
      %v539 = vunpack.c.l.b16 %v507
      %v540 = vpack.c.b16 %v525, %v524
      %v541 = vpack.c.b16 %v527, %v526
      %v542 = vpack.c.b16 %v529, %v528
      %v543 = vpack.c.b16 %v531, %v530
      %v544 = vpack.c.b16 %v533, %v532
      %v545 = vpack.c.b16 %v535, %v534
      %v546 = vpack.c.b16 %v537, %v536
      %v547 = vpack.c.b16 %v539, %v538
      %556 = vmatprep.subr.bf16.mxu0 0
      %557 = vmatpush1.bf16.msra.mxu0 %v540
      %558 = vmatprep.subr.bf16.mxu0 0
      %559 = vmatpush1.bf16.msra.mxu0 %v541
      %560 = vmatprep.subr.bf16.mxu0 0
      %561 = vmatpush1.bf16.msra.mxu0 %v542
      %562 = vmatprep.subr.bf16.mxu0 0
      %563 = vmatpush1.bf16.msra.mxu0 %v543
      %564 = vmatprep.subr.bf16.mxu0 0
      %565 = vmatpush1.bf16.msra.mxu0 %v544
      %566 = vmatprep.subr.bf16.mxu0 0
      %567 = vmatpush1.bf16.msra.mxu0 %v545
      %568 = vmatprep.subr.bf16.mxu0 0
      %569 = vmatpush1.bf16.msra.mxu0 %v546
      %570 = vmatprep.subr.bf16.mxu0 0
      %571 = vmatpush1.bf16.msra.mxu0 %v547
      %572 = vmatprep.subr.bf16.mxu0 0
      %573 = vmatpush1.bf16.msra.mxu0 0
      %574 = vmatprep.subr.bf16.mxu0 0
      %575 = vmatpush1.bf16.msra.mxu0 0
      %576 = vmatprep.subr.bf16.mxu0 0
      %577 = vmatpush1.bf16.msra.mxu0 0
      %578 = vmatprep.subr.bf16.mxu0 0
      %579 = vmatpush1.bf16.msra.mxu0 0
      %580 = vmatprep.subr.bf16.mxu0 0
      %581 = vmatpush1.bf16.msra.mxu0 0
      %582 = vmatprep.subr.bf16.mxu0 0
      %583 = vmatpush1.bf16.msra.mxu0 0
      %584 = vmatprep.subr.bf16.mxu0 0
      %585 = vmatpush1.bf16.msra.mxu0 0
      %586 = vmatprep.subr.bf16.mxu0 0
      %587 = vmatpush1.bf16.msra.mxu0 0
      %588 = vmatprep.mubr.bf16.mxu0 0
      %589 = vmatmul.mubr.bf16.gmra.mrb[0].mxu0 %v490
      %v590 = vpop.f32.mrb[0].mxu0
      %v591 = vadd.f32 0.0, %v590
      %v592 = vpop.f32.mrb[0].mxu0
      %v593 = vpop.f32.mrb[0].mxu0
      %v594 = vadd.f32 0.0, %v593
      %v595 = vpop.f32.mrb[0].mxu0
      %596 = vmatprep.mubr.bf16.mxu0 0
      %597 = vmatmul.mubr.bf16.gmra.mrb[0].mxu0 %v491
      %v598 = vpop.f32.mrb[0].mxu0
      %v599 = vadd.f32 0.0, %v598
      %v600 = vpop.f32.mrb[0].mxu0
      %v601 = vpop.f32.mrb[0].mxu0
      %v602 = vpop.f32.mrb[0].mxu0
      %603 = vdwg.mxu0
      %v604 = vadd.f32 %v474, %v591
      %v605 = vadd.f32 %v477, %v594
      %v606 = vadd.f32 %v482, %v599
      %v607 = vld [vmem:[%s246 + $0x3] sm:$0xff]
      %v608 = vld [vmem:[%s246 + $0xb] sm:$0xff]
      %v609 = vld [vmem:[%s246 + $0x13] sm:$0x3]
      %v610 = vpack.c.bf16 %v608, %v607
      %v611 = vpack.c.bf16 %v609, %v609
      %v612 = vld [vmem:[%s1 + $0xc0] sm:$0xf]
      %v613 = vld [vmem:[%s1 + $0xc4] sm:$0xf]
      %v614 = vld [vmem:[%s1 + $0xc8] sm:$0xf]
      %v615 = vld [vmem:[%s1 + $0xcc] sm:$0xf]
      %v616 = vld [vmem:[%s1 + $0xd0] sm:$0xf]
      %v617 = vld [vmem:[%s1 + $0xd4] sm:$0xf]
      %v618 = vld [vmem:[%s1 + $0xd8] sm:$0xf]
      %v619 = vld [vmem:[%s1 + $0xdc] sm:$0xf]
      %v620 = vld [vmem:[%s1 + $0xe0] sm:$0xf]
      %v621 = vld [vmem:[%s1 + $0xe4] sm:$0xf]
      %v622 = vld [vmem:[%s1 + $0xe8] sm:$0xf]
      %v623 = vld [vmem:[%s1 + $0xec] sm:$0xf]
      %v624 = vld [vmem:[%s1 + $0xf0] sm:$0xf]
      %v625 = vld [vmem:[%s1 + $0xf4] sm:$0xf]
      %v626 = vld [vmem:[%s1 + $0xf8] sm:$0xf]
      %v627 = vld [vmem:[%s1 + $0xfc] sm:$0xf]
      %v644 = vunpack.c.l.b16 %v612
      %v645 = vunpack.c.l.b16 %v613
      %v646 = vunpack.c.l.b16 %v614
      %v647 = vunpack.c.l.b16 %v615
      %v648 = vunpack.c.l.b16 %v616
      %v649 = vunpack.c.l.b16 %v617
      %v650 = vunpack.c.l.b16 %v618
      %v651 = vunpack.c.l.b16 %v619
      %v652 = vunpack.c.l.b16 %v620
      %v653 = vunpack.c.l.b16 %v621
      %v654 = vunpack.c.l.b16 %v622
      %v655 = vunpack.c.l.b16 %v623
      %v656 = vunpack.c.l.b16 %v624
      %v657 = vunpack.c.l.b16 %v625
      %v658 = vunpack.c.l.b16 %v626
      %v659 = vunpack.c.l.b16 %v627
      %v660 = vpack.c.b16 %v645, %v644
      %v661 = vpack.c.b16 %v647, %v646
      %v662 = vpack.c.b16 %v649, %v648
      %v663 = vpack.c.b16 %v651, %v650
      %v664 = vpack.c.b16 %v653, %v652
      %v665 = vpack.c.b16 %v655, %v654
      %v666 = vpack.c.b16 %v657, %v656
      %v667 = vpack.c.b16 %v659, %v658
      %676 = vmatprep.subr.bf16.mxu0 0
      %677 = vmatpush1.bf16.msra.mxu0 %v660
      %678 = vmatprep.subr.bf16.mxu0 0
      %679 = vmatpush1.bf16.msra.mxu0 %v661
      %680 = vmatprep.subr.bf16.mxu0 0
      %681 = vmatpush1.bf16.msra.mxu0 %v662
      %682 = vmatprep.subr.bf16.mxu0 0
      %683 = vmatpush1.bf16.msra.mxu0 %v663
      %684 = vmatprep.subr.bf16.mxu0 0
      %685 = vmatpush1.bf16.msra.mxu0 %v664
      %686 = vmatprep.subr.bf16.mxu0 0
      %687 = vmatpush1.bf16.msra.mxu0 %v665
      %688 = vmatprep.subr.bf16.mxu0 0
      %689 = vmatpush1.bf16.msra.mxu0 %v666
      %690 = vmatprep.subr.bf16.mxu0 0
      %691 = vmatpush1.bf16.msra.mxu0 %v667
      %692 = vmatprep.subr.bf16.mxu0 0
      %693 = vmatpush1.bf16.msra.mxu0 0
      %694 = vmatprep.subr.bf16.mxu0 0
      %695 = vmatpush1.bf16.msra.mxu0 0
      %696 = vmatprep.subr.bf16.mxu0 0
      %697 = vmatpush1.bf16.msra.mxu0 0
      %698 = vmatprep.subr.bf16.mxu0 0
      %699 = vmatpush1.bf16.msra.mxu0 0
      %700 = vmatprep.subr.bf16.mxu0 0
      %701 = vmatpush1.bf16.msra.mxu0 0
      %702 = vmatprep.subr.bf16.mxu0 0
      %703 = vmatpush1.bf16.msra.mxu0 0
      %704 = vmatprep.subr.bf16.mxu0 0
      %705 = vmatpush1.bf16.msra.mxu0 0
      %706 = vmatprep.subr.bf16.mxu0 0
      %707 = vmatpush1.bf16.msra.mxu0 0
      %708 = vmatprep.mubr.bf16.mxu0 0
      %709 = vmatmul.mubr.bf16.gmra.mrb[0].mxu0 %v610
      %v710 = vpop.f32.mrb[0].mxu0
      %v711 = vadd.f32 0.0, %v710
      %v712 = vpop.f32.mrb[0].mxu0
      %v713 = vpop.f32.mrb[0].mxu0
      %v714 = vadd.f32 0.0, %v713
      %v715 = vpop.f32.mrb[0].mxu0
      %716 = vmatprep.mubr.bf16.mxu0 0
      %717 = vmatmul.mubr.bf16.gmra.mrb[0].mxu0 %v611
      %v718 = vpop.f32.mrb[0].mxu0
      %v719 = vadd.f32 0.0, %v718
      %v720 = vpop.f32.mrb[0].mxu0
      %v721 = vpop.f32.mrb[0].mxu0
      %v722 = vpop.f32.mrb[0].mxu0
      %723 = vdwg.mxu0
      %v724 = vadd.f32 %v604, %v711
      %v725 = vadd.f32 %v605, %v714
      %v726 = vadd.f32 %v606, %v719
      %v727 = vld [vmem:[%s246 + $0x6] sm:$0xff]
      %v728 = vld [vmem:[%s246 + $0xe] sm:$0xff]
      %v729 = vld [vmem:[%s246 + $0x16] sm:$0x3]
      %v730 = vpack.c.bf16 %v728, %v727
      %v731 = vpack.c.bf16 %v729, %v729
      %v732 = vld [vmem:[%s1 + $0x100] sm:$0xf]
      %v733 = vld [vmem:[%s1 + $0x104] sm:$0xf]
      %v734 = vld [vmem:[%s1 + $0x108] sm:$0xf]
      %v735 = vld [vmem:[%s1 + $0x10c] sm:$0xf]
      %v736 = vld [vmem:[%s1 + $0x110] sm:$0xf]
      %v737 = vld [vmem:[%s1 + $0x114] sm:$0xf]
      %v738 = vld [vmem:[%s1 + $0x118] sm:$0xf]
      %v739 = vld [vmem:[%s1 + $0x11c] sm:$0xf]
      %v740 = vld [vmem:[%s1 + $0x120] sm:$0xf]
      %v741 = vld [vmem:[%s1 + $0x124] sm:$0xf]
      %v742 = vld [vmem:[%s1 + $0x128] sm:$0xf]
      %v743 = vld [vmem:[%s1 + $0x12c] sm:$0xf]
      %v744 = vld [vmem:[%s1 + $0x130] sm:$0xf]
      %v745 = vld [vmem:[%s1 + $0x134] sm:$0xf]
      %v746 = vld [vmem:[%s1 + $0x138] sm:$0xf]
      %v747 = vld [vmem:[%s1 + $0x13c] sm:$0xf]
      %v764 = vunpack.c.l.b16 %v732
      %v765 = vunpack.c.l.b16 %v733
      %v766 = vunpack.c.l.b16 %v734
      %v767 = vunpack.c.l.b16 %v735
      %v768 = vunpack.c.l.b16 %v736
      %v769 = vunpack.c.l.b16 %v737
      %v770 = vunpack.c.l.b16 %v738
      %v771 = vunpack.c.l.b16 %v739
      %v772 = vunpack.c.l.b16 %v740
      %v773 = vunpack.c.l.b16 %v741
      %v774 = vunpack.c.l.b16 %v742
      %v775 = vunpack.c.l.b16 %v743
      %v776 = vunpack.c.l.b16 %v744
      %v777 = vunpack.c.l.b16 %v745
      %v778 = vunpack.c.l.b16 %v746
      %v779 = vunpack.c.l.b16 %v747
      %v780 = vpack.c.b16 %v765, %v764
      %v781 = vpack.c.b16 %v767, %v766
      %v782 = vpack.c.b16 %v769, %v768
      %v783 = vpack.c.b16 %v771, %v770
      %v784 = vpack.c.b16 %v773, %v772
      %v785 = vpack.c.b16 %v775, %v774
      %v786 = vpack.c.b16 %v777, %v776
      %v787 = vpack.c.b16 %v779, %v778
      %796 = vmatprep.subr.bf16.mxu0 0
      %797 = vmatpush1.bf16.msra.mxu0 %v780
      %798 = vmatprep.subr.bf16.mxu0 0
      %799 = vmatpush1.bf16.msra.mxu0 %v781
      %800 = vmatprep.subr.bf16.mxu0 0
      %801 = vmatpush1.bf16.msra.mxu0 %v782
      %802 = vmatprep.subr.bf16.mxu0 0
      %803 = vmatpush1.bf16.msra.mxu0 %v783
      %804 = vmatprep.subr.bf16.mxu0 0
      %805 = vmatpush1.bf16.msra.mxu0 %v784
      %806 = vmatprep.subr.bf16.mxu0 0
      %807 = vmatpush1.bf16.msra.mxu0 %v785
      %808 = vmatprep.subr.bf16.mxu0 0
      %809 = vmatpush1.bf16.msra.mxu0 %v786
      %810 = vmatprep.subr.bf16.mxu0 0
      %811 = vmatpush1.bf16.msra.mxu0 %v787
      %812 = vmatprep.subr.bf16.mxu0 0
      %813 = vmatpush1.bf16.msra.mxu0 0
      %814 = vmatprep.subr.bf16.mxu0 0
      %815 = vmatpush1.bf16.msra.mxu0 0
      %816 = vmatprep.subr.bf16.mxu0 0
      %817 = vmatpush1.bf16.msra.mxu0 0
      %818 = vmatprep.subr.bf16.mxu0 0
      %819 = vmatpush1.bf16.msra.mxu0 0
      %820 = vmatprep.subr.bf16.mxu0 0
      %821 = vmatpush1.bf16.msra.mxu0 0
      %822 = vmatprep.subr.bf16.mxu0 0
      %823 = vmatpush1.bf16.msra.mxu0 0
      %824 = vmatprep.subr.bf16.mxu0 0
      %825 = vmatpush1.bf16.msra.mxu0 0
      %826 = vmatprep.subr.bf16.mxu0 0
      %827 = vmatpush1.bf16.msra.mxu0 0
      %828 = vmatprep.mubr.bf16.mxu0 0
      %829 = vmatmul.mubr.bf16.gmra.mrb[0].mxu0 %v730
      %v830 = vpop.f32.mrb[0].mxu0
      %v831 = vadd.f32 0.0, %v830
      %v832 = vpop.f32.mrb[0].mxu0
      %v833 = vpop.f32.mrb[0].mxu0
      %v834 = vadd.f32 0.0, %v833
      %v835 = vpop.f32.mrb[0].mxu0
      %836 = vmatprep.mubr.bf16.mxu0 0
      %837 = vmatmul.mubr.bf16.gmra.mrb[0].mxu0 %v731
      %v838 = vpop.f32.mrb[0].mxu0
      %v839 = vadd.f32 0.0, %v838
      %v840 = vpop.f32.mrb[0].mxu0
      %v841 = vpop.f32.mrb[0].mxu0
      %v842 = vpop.f32.mrb[0].mxu0
      %843 = vdwg.mxu0
      %v844 = vadd.f32 %v724, %v831
      %v845 = vadd.f32 %v725, %v834
      %v846 = vadd.f32 %v726, %v839
      %v847 = vld [vmem:[%s246 + $0x7] sm:$0xff]
      %v848 = vld [vmem:[%s246 + $0xf] sm:$0xff]
      %v849 = vld [vmem:[%s246 + $0x17] sm:$0x3]
      %v850 = vpack.c.bf16 %v848, %v847
      %v851 = vpack.c.bf16 %v849, %v849
      %v852 = vld [vmem:[%s1 + $0x140] sm:$0xf]
      %v853 = vld [vmem:[%s1 + $0x144] sm:$0xf]
      %v854 = vld [vmem:[%s1 + $0x148] sm:$0xf]
      %v855 = vld [vmem:[%s1 + $0x14c] sm:$0xf]
      %v856 = vld [vmem:[%s1 + $0x150] sm:$0xf]
      %v857 = vld [vmem:[%s1 + $0x154] sm:$0xf]
      %v858 = vld [vmem:[%s1 + $0x158] sm:$0xf]
      %v859 = vld [vmem:[%s1 + $0x15c] sm:$0xf]
      %v860 = vld [vmem:[%s1 + $0x160] sm:$0xf]
      %v861 = vld [vmem:[%s1 + $0x164] sm:$0xf]
      %v862 = vld [vmem:[%s1 + $0x168] sm:$0xf]
      %v863 = vld [vmem:[%s1 + $0x16c] sm:$0xf]
      %v864 = vld [vmem:[%s1 + $0x170] sm:$0xf]
      %v865 = vld [vmem:[%s1 + $0x174] sm:$0xf]
      %v866 = vld [vmem:[%s1 + $0x178] sm:$0xf]
      %v867 = vld [vmem:[%s1 + $0x17c] sm:$0xf]
      %v884 = vunpack.c.l.b16 %v852
      %v885 = vunpack.c.l.b16 %v853
      %v886 = vunpack.c.l.b16 %v854
      %v887 = vunpack.c.l.b16 %v855
      %v888 = vunpack.c.l.b16 %v856
      %v889 = vunpack.c.l.b16 %v857
      %v890 = vunpack.c.l.b16 %v858
      %v891 = vunpack.c.l.b16 %v859
      %v892 = vunpack.c.l.b16 %v860
      %v893 = vunpack.c.l.b16 %v861
      %v894 = vunpack.c.l.b16 %v862
      %v895 = vunpack.c.l.b16 %v863
      %v896 = vunpack.c.l.b16 %v864
      %v897 = vunpack.c.l.b16 %v865
      %v898 = vunpack.c.l.b16 %v866
      %v899 = vunpack.c.l.b16 %v867
      %v900 = vpack.c.b16 %v885, %v884
      %v901 = vpack.c.b16 %v887, %v886
      %v902 = vpack.c.b16 %v889, %v888
      %v903 = vpack.c.b16 %v891, %v890
      %v904 = vpack.c.b16 %v893, %v892
      %v905 = vpack.c.b16 %v895, %v894
      %v906 = vpack.c.b16 %v897, %v896
      %v907 = vpack.c.b16 %v899, %v898
      %916 = vmatprep.subr.bf16.mxu0 0
      %917 = vmatpush1.bf16.msra.mxu0 %v900
      %918 = vmatprep.subr.bf16.mxu0 0
      %919 = vmatpush1.bf16.msra.mxu0 %v901
      %920 = vmatprep.subr.bf16.mxu0 0
      %921 = vmatpush1.bf16.msra.mxu0 %v902
      %922 = vmatprep.subr.bf16.mxu0 0
      %923 = vmatpush1.bf16.msra.mxu0 %v903
      %924 = vmatprep.subr.bf16.mxu0 0
      %925 = vmatpush1.bf16.msra.mxu0 %v904
      %926 = vmatprep.subr.bf16.mxu0 0
      %927 = vmatpush1.bf16.msra.mxu0 %v905
      %928 = vmatprep.subr.bf16.mxu0 0
      %929 = vmatpush1.bf16.msra.mxu0 %v906
      %930 = vmatprep.subr.bf16.mxu0 0
      %931 = vmatpush1.bf16.msra.mxu0 %v907
      %932 = vmatprep.subr.bf16.mxu0 0
      %933 = vmatpush1.bf16.msra.mxu0 0
      %934 = vmatprep.subr.bf16.mxu0 0
      %935 = vmatpush1.bf16.msra.mxu0 0
      %936 = vmatprep.subr.bf16.mxu0 0
      %937 = vmatpush1.bf16.msra.mxu0 0
      %938 = vmatprep.subr.bf16.mxu0 0
      %939 = vmatpush1.bf16.msra.mxu0 0
      %940 = vmatprep.subr.bf16.mxu0 0
      %941 = vmatpush1.bf16.msra.mxu0 0
      %942 = vmatprep.subr.bf16.mxu0 0
      %943 = vmatpush1.bf16.msra.mxu0 0
      %944 = vmatprep.subr.bf16.mxu0 0
      %945 = vmatpush1.bf16.msra.mxu0 0
      %946 = vmatprep.subr.bf16.mxu0 0
      %947 = vmatpush1.bf16.msra.mxu0 0
      %948 = vmatprep.mubr.bf16.mxu0 0
      %949 = vmatmul.mubr.bf16.gmra.mrb[0].mxu0 %v850
      %v950 = vpop.f32.mrb[0].mxu0
      %v951 = vadd.f32 0.0, %v950
      %v952 = vpop.f32.mrb[0].mxu0
      %v953 = vpop.f32.mrb[0].mxu0
      %v954 = vadd.f32 0.0, %v953
      %v955 = vpop.f32.mrb[0].mxu0
      %956 = vmatprep.mubr.bf16.mxu0 0
      %957 = vmatmul.mubr.bf16.gmra.mrb[0].mxu0 %v851
      %v958 = vpop.f32.mrb[0].mxu0
      %v959 = vadd.f32 0.0, %v958
      %v960 = vpop.f32.mrb[0].mxu0
      %v961 = vpop.f32.mrb[0].mxu0
      %v962 = vpop.f32.mrb[0].mxu0
      %963 = vdwg.mxu0
      %v964 = vadd.f32 %v844, %v951
      %v965 = vadd.f32 %v845, %v954
      %v966 = vadd.f32 %v846, %v959
      %v967 = vld [vmem:[%s246 + $0x8] sm:$0xff]
      %v968 = vld [vmem:[%s246 + $0x10] sm:$0xff]
      %v969 = vld [vmem:[%s246 + $0x18] sm:$0x3]
      %v970 = vpack.c.bf16 %v968, %v967
      %v971 = vpack.c.bf16 %v969, %v969
      %v972 = vld [vmem:[%s1 + $0x180] sm:$0xf]
      %v973 = vld [vmem:[%s1 + $0x184] sm:$0xf]
      %v974 = vld [vmem:[%s1 + $0x188] sm:$0xf]
      %v975 = vld [vmem:[%s1 + $0x18c] sm:$0xf]
      %v976 = vld [vmem:[%s1 + $0x190] sm:$0xf]
      %v977 = vld [vmem:[%s1 + $0x194] sm:$0xf]
      %v978 = vld [vmem:[%s1 + $0x198] sm:$0xf]
      %v979 = vld [vmem:[%s1 + $0x19c] sm:$0xf]
      %v980 = vld [vmem:[%s1 + $0x1a0] sm:$0xf]
      %v981 = vld [vmem:[%s1 + $0x1a4] sm:$0xf]
      %v982 = vld [vmem:[%s1 + $0x1a8] sm:$0xf]
      %v983 = vld [vmem:[%s1 + $0x1ac] sm:$0xf]
      %v984 = vld [vmem:[%s1 + $0x1b0] sm:$0xf]
      %v985 = vld [vmem:[%s1 + $0x1b4] sm:$0xf]
      %v986 = vld [vmem:[%s1 + $0x1b8] sm:$0xf]
      %v987 = vld [vmem:[%s1 + $0x1bc] sm:$0xf]
      %v1004 = vunpack.c.l.b16 %v972
      %v1005 = vunpack.c.l.b16 %v973
      %v1006 = vunpack.c.l.b16 %v974
      %v1007 = vunpack.c.l.b16 %v975
      %v1008 = vunpack.c.l.b16 %v976
      %v1009 = vunpack.c.l.b16 %v977
      %v1010 = vunpack.c.l.b16 %v978
      %v1011 = vunpack.c.l.b16 %v979
      %v1012 = vunpack.c.l.b16 %v980
      %v1013 = vunpack.c.l.b16 %v981
      %v1014 = vunpack.c.l.b16 %v982
      %v1015 = vunpack.c.l.b16 %v983
      %v1016 = vunpack.c.l.b16 %v984
      %v1017 = vunpack.c.l.b16 %v985
      %v1018 = vunpack.c.l.b16 %v986
      %v1019 = vunpack.c.l.b16 %v987
      %v1020 = vpack.c.b16 %v1005, %v1004
      %v1021 = vpack.c.b16 %v1007, %v1006
      %v1022 = vpack.c.b16 %v1009, %v1008
      %v1023 = vpack.c.b16 %v1011, %v1010
      %v1024 = vpack.c.b16 %v1013, %v1012
      %v1025 = vpack.c.b16 %v1015, %v1014
      %v1026 = vpack.c.b16 %v1017, %v1016
      %v1027 = vpack.c.b16 %v1019, %v1018
      %1036 = vmatprep.subr.bf16.mxu0 0
      %1037 = vmatpush1.bf16.msra.mxu0 %v1020
      %1038 = vmatprep.subr.bf16.mxu0 0
      %1039 = vmatpush1.bf16.msra.mxu0 %v1021
      %1040 = vmatprep.subr.bf16.mxu0 0
      %1041 = vmatpush1.bf16.msra.mxu0 %v1022
      %1042 = vmatprep.subr.bf16.mxu0 0
      %1043 = vmatpush1.bf16.msra.mxu0 %v1023
      %1044 = vmatprep.subr.bf16.mxu0 0
      %1045 = vmatpush1.bf16.msra.mxu0 %v1024
      %1046 = vmatprep.subr.bf16.mxu0 0
      %1047 = vmatpush1.bf16.msra.mxu0 %v1025
      %1048 = vmatprep.subr.bf16.mxu0 0
      %1049 = vmatpush1.bf16.msra.mxu0 %v1026
      %1050 = vmatprep.subr.bf16.mxu0 0
      %1051 = vmatpush1.bf16.msra.mxu0 %v1027
      %1052 = vmatprep.subr.bf16.mxu0 0
      %1053 = vmatpush1.bf16.msra.mxu0 0
      %1054 = vmatprep.subr.bf16.mxu0 0
      %1055 = vmatpush1.bf16.msra.mxu0 0
      %1056 = vmatprep.subr.bf16.mxu0 0
      %1057 = vmatpush1.bf16.msra.mxu0 0
      %1058 = vmatprep.subr.bf16.mxu0 0
      %1059 = vmatpush1.bf16.msra.mxu0 0
      %1060 = vmatprep.subr.bf16.mxu0 0
      %1061 = vmatpush1.bf16.msra.mxu0 0
      %1062 = vmatprep.subr.bf16.mxu0 0
      %1063 = vmatpush1.bf16.msra.mxu0 0
      %1064 = vmatprep.subr.bf16.mxu0 0
      %1065 = vmatpush1.bf16.msra.mxu0 0
      %1066 = vmatprep.subr.bf16.mxu0 0
      %1067 = vmatpush1.bf16.msra.mxu0 0
      %1068 = vmatprep.mubr.bf16.mxu0 0
      %1069 = vmatmul.mubr.bf16.gmra.mrb[0].mxu0 %v970
      %v1070 = vpop.f32.mrb[0].mxu0
      %v1071 = vadd.f32 0.0, %v1070
      %v1072 = vpop.f32.mrb[0].mxu0
      %v1073 = vpop.f32.mrb[0].mxu0
      %v1074 = vadd.f32 0.0, %v1073
      %v1075 = vpop.f32.mrb[0].mxu0
      %1076 = vmatprep.mubr.bf16.mxu0 0
      %1077 = vmatmul.mubr.bf16.gmra.mrb[0].mxu0 %v971
      %v1078 = vpop.f32.mrb[0].mxu0
      %v1079 = vadd.f32 0.0, %v1078
      %v1080 = vpop.f32.mrb[0].mxu0
      %v1081 = vpop.f32.mrb[0].mxu0
      %v1082 = vpop.f32.mrb[0].mxu0
      %1083 = vdwg.mxu0
      %v1084 = vadd.f32 %v964, %v1071
      %v1085 = vadd.f32 %v965, %v1074
      %v1086 = vadd.f32 %v966, %v1079
      %v1087 = vld [vmem:[%s246 + $0x9] sm:$0xff]
      %v1088 = vld [vmem:[%s246 + $0x11] sm:$0xff]
      %v1089 = vld [vmem:[%s246 + $0x19] sm:$0x3]
      %v1090 = vpack.c.bf16 %v1088, %v1087
      %v1091 = vpack.c.bf16 %v1089, %v1089
      %v1092 = vld [vmem:[%s1 + $0x1c0] sm:$0xf]
      %v1093 = vld [vmem:[%s1 + $0x1c4] sm:$0xf]
      %v1094 = vld [vmem:[%s1 + $0x1c8] sm:$0xf]
      %v1095 = vld [vmem:[%s1 + $0x1cc] sm:$0xf]
      %v1096 = vld [vmem:[%s1 + $0x1d0] sm:$0xf]
      %v1097 = vld [vmem:[%s1 + $0x1d4] sm:$0xf]
      %v1098 = vld [vmem:[%s1 + $0x1d8] sm:$0xf]
      %v1099 = vld [vmem:[%s1 + $0x1dc] sm:$0xf]
      %v1100 = vld [vmem:[%s1 + $0x1e0] sm:$0xf]
      %v1101 = vld [vmem:[%s1 + $0x1e4] sm:$0xf]
      %v1102 = vld [vmem:[%s1 + $0x1e8] sm:$0xf]
      %v1103 = vld [vmem:[%s1 + $0x1ec] sm:$0xf]
      %v1104 = vld [vmem:[%s1 + $0x1f0] sm:$0xf]
      %v1105 = vld [vmem:[%s1 + $0x1f4] sm:$0xf]
      %v1106 = vld [vmem:[%s1 + $0x1f8] sm:$0xf]
      %v1107 = vld [vmem:[%s1 + $0x1fc] sm:$0xf]
      %v1124 = vunpack.c.l.b16 %v1092
      %v1125 = vunpack.c.l.b16 %v1093
      %v1126 = vunpack.c.l.b16 %v1094
      %v1127 = vunpack.c.l.b16 %v1095
      %v1128 = vunpack.c.l.b16 %v1096
      %v1129 = vunpack.c.l.b16 %v1097
      %v1130 = vunpack.c.l.b16 %v1098
      %v1131 = vunpack.c.l.b16 %v1099
      %v1132 = vunpack.c.l.b16 %v1100
      %v1133 = vunpack.c.l.b16 %v1101
      %v1134 = vunpack.c.l.b16 %v1102
      %v1135 = vunpack.c.l.b16 %v1103
      %v1136 = vunpack.c.l.b16 %v1104
      %v1137 = vunpack.c.l.b16 %v1105
      %v1138 = vunpack.c.l.b16 %v1106
      %v1139 = vunpack.c.l.b16 %v1107
      %v1140 = vpack.c.b16 %v1125, %v1124
      %v1141 = vpack.c.b16 %v1127, %v1126
      %v1142 = vpack.c.b16 %v1129, %v1128
      %v1143 = vpack.c.b16 %v1131, %v1130
      %v1144 = vpack.c.b16 %v1133, %v1132
      %v1145 = vpack.c.b16 %v1135, %v1134
      %v1146 = vpack.c.b16 %v1137, %v1136
      %v1147 = vpack.c.b16 %v1139, %v1138
      %1156 = vmatprep.subr.bf16.mxu0 0
      %1157 = vmatpush1.bf16.msra.mxu0 %v1140
      %1158 = vmatprep.subr.bf16.mxu0 0
      %1159 = vmatpush1.bf16.msra.mxu0 %v1141
      %1160 = vmatprep.subr.bf16.mxu0 0
      %1161 = vmatpush1.bf16.msra.mxu0 %v1142
      %1162 = vmatprep.subr.bf16.mxu0 0
      %1163 = vmatpush1.bf16.msra.mxu0 %v1143
      %1164 = vmatprep.subr.bf16.mxu0 0
      %1165 = vmatpush1.bf16.msra.mxu0 %v1144
      %1166 = vmatprep.subr.bf16.mxu0 0
      %1167 = vmatpush1.bf16.msra.mxu0 %v1145
      %1168 = vmatprep.subr.bf16.mxu0 0
      %1169 = vmatpush1.bf16.msra.mxu0 %v1146
      %1170 = vmatprep.subr.bf16.mxu0 0
      %1171 = vmatpush1.bf16.msra.mxu0 %v1147
      %1172 = vmatprep.subr.bf16.mxu0 0
      %1173 = vmatpush1.bf16.msra.mxu0 0
      %1174 = vmatprep.subr.bf16.mxu0 0
      %1175 = vmatpush1.bf16.msra.mxu0 0
      %1176 = vmatprep.subr.bf16.mxu0 0
      %1177 = vmatpush1.bf16.msra.mxu0 0
      %1178 = vmatprep.subr.bf16.mxu0 0
      %1179 = vmatpush1.bf16.msra.mxu0 0
      %1180 = vmatprep.subr.bf16.mxu0 0
      %1181 = vmatpush1.bf16.msra.mxu0 0
      %1182 = vmatprep.subr.bf16.mxu0 0
      %1183 = vmatpush1.bf16.msra.mxu0 0
      %1184 = vmatprep.subr.bf16.mxu0 0
      %1185 = vmatpush1.bf16.msra.mxu0 0
      %1186 = vmatprep.subr.bf16.mxu0 0
      %1187 = vmatpush1.bf16.msra.mxu0 0
      %1188 = vmatprep.mubr.bf16.mxu0 0
      %1189 = vmatmul.mubr.bf16.gmra.mrb[0].mxu0 %v1090
      %v1190 = vpop.f32.mrb[0].mxu0
      %v1191 = vadd.f32 0.0, %v1190
      %v1192 = vpop.f32.mrb[0].mxu0
      %v1193 = vpop.f32.mrb[0].mxu0
      %v1194 = vadd.f32 0.0, %v1193
      %v1195 = vpop.f32.mrb[0].mxu0
      %1196 = vmatprep.mubr.bf16.mxu0 0
      %1197 = vmatmul.mubr.bf16.gmra.mrb[0].mxu0 %v1091
      %v1198 = vpop.f32.mrb[0].mxu0
      %v1199 = vadd.f32 0.0, %v1198
      %v1200 = vpop.f32.mrb[0].mxu0
      %v1201 = vpop.f32.mrb[0].mxu0
      %v1202 = vpop.f32.mrb[0].mxu0
      %1203 = vdwg.mxu0
      %v1204 = vadd.f32 %v1084, %v1191
      %v1205 = vadd.f32 %v1085, %v1194
      %v1206 = vadd.f32 %v1086, %v1199
      %v1207 = vld [vmem:[%s246 + $0xc] sm:$0xff]
      %v1208 = vld [vmem:[%s246 + $0x14] sm:$0xff]
      %v1209 = vld [vmem:[%s246 + $0x1c] sm:$0x3]
      %v1210 = vpack.c.bf16 %v1208, %v1207
      %v1211 = vpack.c.bf16 %v1209, %v1209
      %v1212 = vld [vmem:[%s1 + $0x200] sm:$0xf]
      %v1213 = vld [vmem:[%s1 + $0x204] sm:$0xf]
      %v1214 = vld [vmem:[%s1 + $0x208] sm:$0xf]
      %v1215 = vld [vmem:[%s1 + $0x20c] sm:$0xf]
      %v1216 = vld [vmem:[%s1 + $0x210] sm:$0xf]
      %v1217 = vld [vmem:[%s1 + $0x214] sm:$0xf]
      %v1218 = vld [vmem:[%s1 + $0x218] sm:$0xf]
      %v1219 = vld [vmem:[%s1 + $0x21c] sm:$0xf]
      %v1220 = vld [vmem:[%s1 + $0x220] sm:$0xf]
      %v1221 = vld [vmem:[%s1 + $0x224] sm:$0xf]
      %v1222 = vld [vmem:[%s1 + $0x228] sm:$0xf]
      %v1223 = vld [vmem:[%s1 + $0x22c] sm:$0xf]
      %v1224 = vld [vmem:[%s1 + $0x230] sm:$0xf]
      %v1225 = vld [vmem:[%s1 + $0x234] sm:$0xf]
      %v1226 = vld [vmem:[%s1 + $0x238] sm:$0xf]
      %v1227 = vld [vmem:[%s1 + $0x23c] sm:$0xf]
      %v1244 = vunpack.c.l.b16 %v1212
      %v1245 = vunpack.c.l.b16 %v1213
      %v1246 = vunpack.c.l.b16 %v1214
      %v1247 = vunpack.c.l.b16 %v1215
      %v1248 = vunpack.c.l.b16 %v1216
      %v1249 = vunpack.c.l.b16 %v1217
      %v1250 = vunpack.c.l.b16 %v1218
      %v1251 = vunpack.c.l.b16 %v1219
      %v1252 = vunpack.c.l.b16 %v1220
      %v1253 = vunpack.c.l.b16 %v1221
      %v1254 = vunpack.c.l.b16 %v1222
      %v1255 = vunpack.c.l.b16 %v1223
      %v1256 = vunpack.c.l.b16 %v1224
      %v1257 = vunpack.c.l.b16 %v1225
      %v1258 = vunpack.c.l.b16 %v1226
      %v1259 = vunpack.c.l.b16 %v1227
      %v1260 = vpack.c.b16 %v1245, %v1244
      %v1261 = vpack.c.b16 %v1247, %v1246
      %v1262 = vpack.c.b16 %v1249, %v1248
      %v1263 = vpack.c.b16 %v1251, %v1250
      %v1264 = vpack.c.b16 %v1253, %v1252
      %v1265 = vpack.c.b16 %v1255, %v1254
      %v1266 = vpack.c.b16 %v1257, %v1256
      %v1267 = vpack.c.b16 %v1259, %v1258
      %1276 = vmatprep.subr.bf16.mxu0 0
      %1277 = vmatpush1.bf16.msra.mxu0 %v1260
      %1278 = vmatprep.subr.bf16.mxu0 0
      %1279 = vmatpush1.bf16.msra.mxu0 %v1261
      %1280 = vmatprep.subr.bf16.mxu0 0
      %1281 = vmatpush1.bf16.msra.mxu0 %v1262
      %1282 = vmatprep.subr.bf16.mxu0 0
      %1283 = vmatpush1.bf16.msra.mxu0 %v1263
      %1284 = vmatprep.subr.bf16.mxu0 0
      %1285 = vmatpush1.bf16.msra.mxu0 %v1264
      %1286 = vmatprep.subr.bf16.mxu0 0
      %1287 = vmatpush1.bf16.msra.mxu0 %v1265
      %1288 = vmatprep.subr.bf16.mxu0 0
      %1289 = vmatpush1.bf16.msra.mxu0 %v1266
      %1290 = vmatprep.subr.bf16.mxu0 0
      %1291 = vmatpush1.bf16.msra.mxu0 %v1267
      %1292 = vmatprep.subr.bf16.mxu0 0
      %1293 = vmatpush1.bf16.msra.mxu0 0
      %1294 = vmatprep.subr.bf16.mxu0 0
      %1295 = vmatpush1.bf16.msra.mxu0 0
      %1296 = vmatprep.subr.bf16.mxu0 0
      %1297 = vmatpush1.bf16.msra.mxu0 0
      %1298 = vmatprep.subr.bf16.mxu0 0
      %1299 = vmatpush1.bf16.msra.mxu0 0
      %1300 = vmatprep.subr.bf16.mxu0 0
      %1301 = vmatpush1.bf16.msra.mxu0 0
      %1302 = vmatprep.subr.bf16.mxu0 0
      %1303 = vmatpush1.bf16.msra.mxu0 0
      %1304 = vmatprep.subr.bf16.mxu0 0
      %1305 = vmatpush1.bf16.msra.mxu0 0
      %1306 = vmatprep.subr.bf16.mxu0 0
      %1307 = vmatpush1.bf16.msra.mxu0 0
      %1308 = vmatprep.mubr.bf16.mxu0 0
      %1309 = vmatmul.mubr.bf16.gmra.mrb[0].mxu0 %v1210
      %v1310 = vpop.f32.mrb[0].mxu0
      %v1311 = vadd.f32 0.0, %v1310
      %v1312 = vpop.f32.mrb[0].mxu0
      %v1313 = vpop.f32.mrb[0].mxu0
      %v1314 = vadd.f32 0.0, %v1313
      %v1315 = vpop.f32.mrb[0].mxu0
      %1316 = vmatprep.mubr.bf16.mxu0 0
      %1317 = vmatmul.mubr.bf16.gmra.mrb[0].mxu0 %v1211
      %v1318 = vpop.f32.mrb[0].mxu0
      %v1319 = vadd.f32 0.0, %v1318
      %v1320 = vpop.f32.mrb[0].mxu0
      %v1321 = vpop.f32.mrb[0].mxu0
      %v1322 = vpop.f32.mrb[0].mxu0
      %1323 = vdwg.mxu0
      %v1324 = vadd.f32 %v1204, %v1311
      %v1325 = vadd.f32 %v1205, %v1314
      %v1326 = vadd.f32 %v1206, %v1319
      %v1327 = vld [vmem:[%s246 + $0xd] sm:$0xff]
      %v1328 = vld [vmem:[%s246 + $0x15] sm:$0xff]
      %v1329 = vld [vmem:[%s246 + $0x1d] sm:$0x3]
      %v1330 = vpack.c.bf16 %v1328, %v1327
      %v1331 = vpack.c.bf16 %v1329, %v1329
      %v1332 = vld [vmem:[%s1 + $0x240] sm:$0xf]
      %v1333 = vld [vmem:[%s1 + $0x244] sm:$0xf]
      %v1334 = vld [vmem:[%s1 + $0x248] sm:$0xf]
      %v1335 = vld [vmem:[%s1 + $0x24c] sm:$0xf]
      %v1336 = vld [vmem:[%s1 + $0x250] sm:$0xf]
      %v1337 = vld [vmem:[%s1 + $0x254] sm:$0xf]
      %v1338 = vld [vmem:[%s1 + $0x258] sm:$0xf]
      %v1339 = vld [vmem:[%s1 + $0x25c] sm:$0xf]
      %v1340 = vld [vmem:[%s1 + $0x260] sm:$0xf]
      %v1341 = vld [vmem:[%s1 + $0x264] sm:$0xf]
      %v1342 = vld [vmem:[%s1 + $0x268] sm:$0xf]
      %v1343 = vld [vmem:[%s1 + $0x26c] sm:$0xf]
      %v1344 = vld [vmem:[%s1 + $0x270] sm:$0xf]
      %v1345 = vld [vmem:[%s1 + $0x274] sm:$0xf]
      %v1346 = vld [vmem:[%s1 + $0x278] sm:$0xf]
      %v1347 = vld [vmem:[%s1 + $0x27c] sm:$0xf]
      %v1364 = vunpack.c.l.b16 %v1332
      %v1365 = vunpack.c.l.b16 %v1333
      %v1366 = vunpack.c.l.b16 %v1334
      %v1367 = vunpack.c.l.b16 %v1335
      %v1368 = vunpack.c.l.b16 %v1336
      %v1369 = vunpack.c.l.b16 %v1337
      %v1370 = vunpack.c.l.b16 %v1338
      %v1371 = vunpack.c.l.b16 %v1339
      %v1372 = vunpack.c.l.b16 %v1340
      %v1373 = vunpack.c.l.b16 %v1341
      %v1374 = vunpack.c.l.b16 %v1342
      %v1375 = vunpack.c.l.b16 %v1343
      %v1376 = vunpack.c.l.b16 %v1344
      %v1377 = vunpack.c.l.b16 %v1345
      %v1378 = vunpack.c.l.b16 %v1346
      %v1379 = vunpack.c.l.b16 %v1347
      %v1380 = vpack.c.b16 %v1365, %v1364
      %v1381 = vpack.c.b16 %v1367, %v1366
      %v1382 = vpack.c.b16 %v1369, %v1368
      %v1383 = vpack.c.b16 %v1371, %v1370
      %v1384 = vpack.c.b16 %v1373, %v1372
      %v1385 = vpack.c.b16 %v1375, %v1374
      %v1386 = vpack.c.b16 %v1377, %v1376
      %v1387 = vpack.c.b16 %v1379, %v1378
      %1396 = vmatprep.subr.bf16.mxu0 0
      %1397 = vmatpush1.bf16.msra.mxu0 %v1380
      %1398 = vmatprep.subr.bf16.mxu0 0
      %1399 = vmatpush1.bf16.msra.mxu0 %v1381
      %1400 = vmatprep.subr.bf16.mxu0 0
      %1401 = vmatpush1.bf16.msra.mxu0 %v1382
      %1402 = vmatprep.subr.bf16.mxu0 0
      %1403 = vmatpush1.bf16.msra.mxu0 %v1383
      %1404 = vmatprep.subr.bf16.mxu0 0
      %1405 = vmatpush1.bf16.msra.mxu0 %v1384
      %1406 = vmatprep.subr.bf16.mxu0 0
      %1407 = vmatpush1.bf16.msra.mxu0 %v1385
      %1408 = vmatprep.subr.bf16.mxu0 0
      %1409 = vmatpush1.bf16.msra.mxu0 %v1386
      %1410 = vmatprep.subr.bf16.mxu0 0
      %1411 = vmatpush1.bf16.msra.mxu0 %v1387
      %1412 = vmatprep.subr.bf16.mxu0 0
      %1413 = vmatpush1.bf16.msra.mxu0 0
      %1414 = vmatprep.subr.bf16.mxu0 0
      %1415 = vmatpush1.bf16.msra.mxu0 0
      %1416 = vmatprep.subr.bf16.mxu0 0
      %1417 = vmatpush1.bf16.msra.mxu0 0
      %1418 = vmatprep.subr.bf16.mxu0 0
      %1419 = vmatpush1.bf16.msra.mxu0 0
      %1420 = vmatprep.subr.bf16.mxu0 0
      %1421 = vmatpush1.bf16.msra.mxu0 0
      %1422 = vmatprep.subr.bf16.mxu0 0
      %1423 = vmatpush1.bf16.msra.mxu0 0
      %1424 = vmatprep.subr.bf16.mxu0 0
      %1425 = vmatpush1.bf16.msra.mxu0 0
      %1426 = vmatprep.subr.bf16.mxu0 0
      %1427 = vmatpush1.bf16.msra.mxu0 0
      %1428 = vmatprep.mubr.bf16.mxu0 0
      %1429 = vmatmul.mubr.bf16.gmra.mrb[0].mxu0 %v1330
      %v1430 = vpop.f32.mrb[0].mxu0
      %v1431 = vadd.f32 0.0, %v1430
      %v1432 = vpop.f32.mrb[0].mxu0
      %v1433 = vpop.f32.mrb[0].mxu0
      %v1434 = vadd.f32 0.0, %v1433
      %v1435 = vpop.f32.mrb[0].mxu0
      %1436 = vmatprep.mubr.bf16.mxu0 0
      %1437 = vmatmul.mubr.bf16.gmra.mrb[0].mxu0 %v1331
      %v1438 = vpop.f32.mrb[0].mxu0
      %v1439 = vadd.f32 0.0, %v1438
      %v1440 = vpop.f32.mrb[0].mxu0
      %v1441 = vpop.f32.mrb[0].mxu0
      %v1442 = vpop.f32.mrb[0].mxu0
      %1443 = vdwg.mxu0
      %v1444 = vadd.f32 %v1324, %v1431
      %v1445 = vadd.f32 %v1325, %v1434
      %v1446 = vadd.f32 %v1326, %v1439
      %v1447 = vld [vmem:[%s246 + $0xe] sm:$0xff]
      %v1448 = vld [vmem:[%s246 + $0x16] sm:$0xff]
      %v1449 = vld [vmem:[%s246 + $0x1e] sm:$0x3]
      %v1450 = vpack.c.bf16 %v1448, %v1447
      %v1451 = vpack.c.bf16 %v1449, %v1449
      %v1452 = vld [vmem:[%s1 + $0x280] sm:$0xf]
      %v1453 = vld [vmem:[%s1 + $0x284] sm:$0xf]
      %v1454 = vld [vmem:[%s1 + $0x288] sm:$0xf]
      %v1455 = vld [vmem:[%s1 + $0x28c] sm:$0xf]
      %v1456 = vld [vmem:[%s1 + $0x290] sm:$0xf]
      %v1457 = vld [vmem:[%s1 + $0x294] sm:$0xf]
      %v1458 = vld [vmem:[%s1 + $0x298] sm:$0xf]
      %v1459 = vld [vmem:[%s1 + $0x29c] sm:$0xf]
      %v1460 = vld [vmem:[%s1 + $0x2a0] sm:$0xf]
      %v1461 = vld [vmem:[%s1 + $0x2a4] sm:$0xf]
      %v1462 = vld [vmem:[%s1 + $0x2a8] sm:$0xf]
      %v1463 = vld [vmem:[%s1 + $0x2ac] sm:$0xf]
      %v1464 = vld [vmem:[%s1 + $0x2b0] sm:$0xf]
      %v1465 = vld [vmem:[%s1 + $0x2b4] sm:$0xf]
      %v1466 = vld [vmem:[%s1 + $0x2b8] sm:$0xf]
      %v1467 = vld [vmem:[%s1 + $0x2bc] sm:$0xf]
      %v1484 = vunpack.c.l.b16 %v1452
      %v1485 = vunpack.c.l.b16 %v1453
      %v1486 = vunpack.c.l.b16 %v1454
      %v1487 = vunpack.c.l.b16 %v1455
      %v1488 = vunpack.c.l.b16 %v1456
      %v1489 = vunpack.c.l.b16 %v1457
      %v1490 = vunpack.c.l.b16 %v1458
      %v1491 = vunpack.c.l.b16 %v1459
      %v1492 = vunpack.c.l.b16 %v1460
      %v1493 = vunpack.c.l.b16 %v1461
      %v1494 = vunpack.c.l.b16 %v1462
      %v1495 = vunpack.c.l.b16 %v1463
      %v1496 = vunpack.c.l.b16 %v1464
      %v1497 = vunpack.c.l.b16 %v1465
      %v1498 = vunpack.c.l.b16 %v1466
      %v1499 = vunpack.c.l.b16 %v1467
      %v1500 = vpack.c.b16 %v1485, %v1484
      %v1501 = vpack.c.b16 %v1487, %v1486
      %v1502 = vpack.c.b16 %v1489, %v1488
      %v1503 = vpack.c.b16 %v1491, %v1490
      %v1504 = vpack.c.b16 %v1493, %v1492
      %v1505 = vpack.c.b16 %v1495, %v1494
      %v1506 = vpack.c.b16 %v1497, %v1496
      %v1507 = vpack.c.b16 %v1499, %v1498
      %1516 = vmatprep.subr.bf16.mxu0 0
      %1517 = vmatpush1.bf16.msra.mxu0 %v1500
      %1518 = vmatprep.subr.bf16.mxu0 0
      %1519 = vmatpush1.bf16.msra.mxu0 %v1501
      %1520 = vmatprep.subr.bf16.mxu0 0
      %1521 = vmatpush1.bf16.msra.mxu0 %v1502
      %1522 = vmatprep.subr.bf16.mxu0 0
      %1523 = vmatpush1.bf16.msra.mxu0 %v1503
      %1524 = vmatprep.subr.bf16.mxu0 0
      %1525 = vmatpush1.bf16.msra.mxu0 %v1504
      %1526 = vmatprep.subr.bf16.mxu0 0
      %1527 = vmatpush1.bf16.msra.mxu0 %v1505
      %1528 = vmatprep.subr.bf16.mxu0 0
      %1529 = vmatpush1.bf16.msra.mxu0 %v1506
      %1530 = vmatprep.subr.bf16.mxu0 0
      %1531 = vmatpush1.bf16.msra.mxu0 %v1507
      %1532 = vmatprep.subr.bf16.mxu0 0
      %1533 = vmatpush1.bf16.msra.mxu0 0
      %1534 = vmatprep.subr.bf16.mxu0 0
      %1535 = vmatpush1.bf16.msra.mxu0 0
      %1536 = vmatprep.subr.bf16.mxu0 0
      %1537 = vmatpush1.bf16.msra.mxu0 0
      %1538 = vmatprep.subr.bf16.mxu0 0
      %1539 = vmatpush1.bf16.msra.mxu0 0
      %1540 = vmatprep.subr.bf16.mxu0 0
      %1541 = vmatpush1.bf16.msra.mxu0 0
      %1542 = vmatprep.subr.bf16.mxu0 0
      %1543 = vmatpush1.bf16.msra.mxu0 0
      %1544 = vmatprep.subr.bf16.mxu0 0
      %1545 = vmatpush1.bf16.msra.mxu0 0
      %1546 = vmatprep.subr.bf16.mxu0 0
      %1547 = vmatpush1.bf16.msra.mxu0 0
      %1548 = vmatprep.mubr.bf16.mxu0 0
      %1549 = vmatmul.mubr.bf16.gmra.mrb[0].mxu0 %v1450
      %v1550 = vpop.f32.mrb[0].mxu0
      %v1551 = vadd.f32 0.0, %v1550
      %v1552 = vpop.f32.mrb[0].mxu0
      %v1553 = vpop.f32.mrb[0].mxu0
      %v1554 = vadd.f32 0.0, %v1553
      %v1555 = vpop.f32.mrb[0].mxu0
      %1556 = vmatprep.mubr.bf16.mxu0 0
      %1557 = vmatmul.mubr.bf16.gmra.mrb[0].mxu0 %v1451
      %v1558 = vpop.f32.mrb[0].mxu0
      %v1559 = vadd.f32 0.0, %v1558
      %v1560 = vpop.f32.mrb[0].mxu0
      %v1561 = vpop.f32.mrb[0].mxu0
      %v1562 = vpop.f32.mrb[0].mxu0
      %1563 = vdwg.mxu0
      %v1564 = vadd.f32 %v1444, %v1551
      %v1565 = vadd.f32 %v1445, %v1554
      %v1566 = vadd.f32 %v1446, %v1559
      %v1567 = vld [vmem:[%s246 + $0xf] sm:$0xff]
      %v1568 = vld [vmem:[%s246 + $0x17] sm:$0xff]
      %v1569 = vld [vmem:[%s246 + $0x1f] sm:$0x3]
      %v1570 = vpack.c.bf16 %v1568, %v1567
      %v1571 = vpack.c.bf16 %v1569, %v1569
      %v1572 = vld [vmem:[%s1 + $0x2c0] sm:$0xf]
      %v1573 = vld [vmem:[%s1 + $0x2c4] sm:$0xf]
      %v1574 = vld [vmem:[%s1 + $0x2c8] sm:$0xf]
      %v1575 = vld [vmem:[%s1 + $0x2cc] sm:$0xf]
      %v1576 = vld [vmem:[%s1 + $0x2d0] sm:$0xf]
      %v1577 = vld [vmem:[%s1 + $0x2d4] sm:$0xf]
      %v1578 = vld [vmem:[%s1 + $0x2d8] sm:$0xf]
      %v1579 = vld [vmem:[%s1 + $0x2dc] sm:$0xf]
      %v1580 = vld [vmem:[%s1 + $0x2e0] sm:$0xf]
      %v1581 = vld [vmem:[%s1 + $0x2e4] sm:$0xf]
      %v1582 = vld [vmem:[%s1 + $0x2e8] sm:$0xf]
      %v1583 = vld [vmem:[%s1 + $0x2ec] sm:$0xf]
      %v1584 = vld [vmem:[%s1 + $0x2f0] sm:$0xf]
      %v1585 = vld [vmem:[%s1 + $0x2f4] sm:$0xf]
      %v1586 = vld [vmem:[%s1 + $0x2f8] sm:$0xf]
      %v1587 = vld [vmem:[%s1 + $0x2fc] sm:$0xf]
      %v1604 = vunpack.c.l.b16 %v1572
      %v1605 = vunpack.c.l.b16 %v1573
      %v1606 = vunpack.c.l.b16 %v1574
      %v1607 = vunpack.c.l.b16 %v1575
      %v1608 = vunpack.c.l.b16 %v1576
      %v1609 = vunpack.c.l.b16 %v1577
      %v1610 = vunpack.c.l.b16 %v1578
      %v1611 = vunpack.c.l.b16 %v1579
      %v1612 = vunpack.c.l.b16 %v1580
      %v1613 = vunpack.c.l.b16 %v1581
      %v1614 = vunpack.c.l.b16 %v1582
      %v1615 = vunpack.c.l.b16 %v1583
      %v1616 = vunpack.c.l.b16 %v1584
      %v1617 = vunpack.c.l.b16 %v1585
      %v1618 = vunpack.c.l.b16 %v1586
      %v1619 = vunpack.c.l.b16 %v1587
      %v1620 = vpack.c.b16 %v1605, %v1604
      %v1621 = vpack.c.b16 %v1607, %v1606
      %v1622 = vpack.c.b16 %v1609, %v1608
      %v1623 = vpack.c.b16 %v1611, %v1610
      %v1624 = vpack.c.b16 %v1613, %v1612
      %v1625 = vpack.c.b16 %v1615, %v1614
      %v1626 = vpack.c.b16 %v1617, %v1616
      %v1627 = vpack.c.b16 %v1619, %v1618
      %1636 = vmatprep.subr.bf16.mxu0 0
      %1637 = vmatpush1.bf16.msra.mxu0 %v1620
      %1638 = vmatprep.subr.bf16.mxu0 0
      %1639 = vmatpush1.bf16.msra.mxu0 %v1621
      %1640 = vmatprep.subr.bf16.mxu0 0
      %1641 = vmatpush1.bf16.msra.mxu0 %v1622
      %1642 = vmatprep.subr.bf16.mxu0 0
      %1643 = vmatpush1.bf16.msra.mxu0 %v1623
      %1644 = vmatprep.subr.bf16.mxu0 0
      %1645 = vmatpush1.bf16.msra.mxu0 %v1624
      %1646 = vmatprep.subr.bf16.mxu0 0
      %1647 = vmatpush1.bf16.msra.mxu0 %v1625
      %1648 = vmatprep.subr.bf16.mxu0 0
      %1649 = vmatpush1.bf16.msra.mxu0 %v1626
      %1650 = vmatprep.subr.bf16.mxu0 0
      %1651 = vmatpush1.bf16.msra.mxu0 %v1627
      %1652 = vmatprep.subr.bf16.mxu0 0
      %1653 = vmatpush1.bf16.msra.mxu0 0
      %1654 = vmatprep.subr.bf16.mxu0 0
      %1655 = vmatpush1.bf16.msra.mxu0 0
      %1656 = vmatprep.subr.bf16.mxu0 0
      %1657 = vmatpush1.bf16.msra.mxu0 0
      %1658 = vmatprep.subr.bf16.mxu0 0
      %1659 = vmatpush1.bf16.msra.mxu0 0
      %1660 = vmatprep.subr.bf16.mxu0 0
      %1661 = vmatpush1.bf16.msra.mxu0 0
      %1662 = vmatprep.subr.bf16.mxu0 0
      %1663 = vmatpush1.bf16.msra.mxu0 0
      %1664 = vmatprep.subr.bf16.mxu0 0
      %1665 = vmatpush1.bf16.msra.mxu0 0
      %1666 = vmatprep.subr.bf16.mxu0 0
      %1667 = vmatpush1.bf16.msra.mxu0 0
      %1668 = vmatprep.mubr.bf16.mxu0 0
      %1669 = vmatmul.mubr.bf16.gmra.mrb[0].mxu0 %v1570
      %v1670 = vpop.f32.mrb[0].mxu0
      %v1671 = vadd.f32 0.0, %v1670
      %v1672 = vpop.f32.mrb[0].mxu0
      %v1673 = vpop.f32.mrb[0].mxu0
      %v1674 = vadd.f32 0.0, %v1673
      %v1675 = vpop.f32.mrb[0].mxu0
      %1676 = vmatprep.mubr.bf16.mxu0 0
      %1677 = vmatmul.mubr.bf16.gmra.mrb[0].mxu0 %v1571
      %v1678 = vpop.f32.mrb[0].mxu0
      %v1679 = vadd.f32 0.0, %v1678
      %v1680 = vpop.f32.mrb[0].mxu0
      %v1681 = vpop.f32.mrb[0].mxu0
      %v1682 = vpop.f32.mrb[0].mxu0
      %1683 = vdwg.mxu0
      %v1684 = vadd.f32 %v1564, %v1671
      %v1685 = vadd.f32 %v1565, %v1674
      %v1686 = vadd.f32 %v1566, %v1679
      %v1687 = vld [vmem:[%s246 + $0x12] sm:$0xff]
      %v1688 = vld [vmem:[%s246 + $0x1a] sm:$0xff]
      %v1689 = vld [vmem:[%s246 + $0x22] sm:$0x3]
      %v1690 = vpack.c.bf16 %v1688, %v1687
      %v1691 = vpack.c.bf16 %v1689, %v1689
      %v1692 = vld [vmem:[%s1 + $0x300] sm:$0xf]
      %v1693 = vld [vmem:[%s1 + $0x304] sm:$0xf]
      %v1694 = vld [vmem:[%s1 + $0x308] sm:$0xf]
      %v1695 = vld [vmem:[%s1 + $0x30c] sm:$0xf]
      %v1696 = vld [vmem:[%s1 + $0x310] sm:$0xf]
      %v1697 = vld [vmem:[%s1 + $0x314] sm:$0xf]
      %v1698 = vld [vmem:[%s1 + $0x318] sm:$0xf]
      %v1699 = vld [vmem:[%s1 + $0x31c] sm:$0xf]
      %v1700 = vld [vmem:[%s1 + $0x320] sm:$0xf]
      %v1701 = vld [vmem:[%s1 + $0x324] sm:$0xf]
      %v1702 = vld [vmem:[%s1 + $0x328] sm:$0xf]
      %v1703 = vld [vmem:[%s1 + $0x32c] sm:$0xf]
      %v1704 = vld [vmem:[%s1 + $0x330] sm:$0xf]
      %v1705 = vld [vmem:[%s1 + $0x334] sm:$0xf]
      %v1706 = vld [vmem:[%s1 + $0x338] sm:$0xf]
      %v1707 = vld [vmem:[%s1 + $0x33c] sm:$0xf]
      %v1724 = vunpack.c.l.b16 %v1692
      %v1725 = vunpack.c.l.b16 %v1693
      %v1726 = vunpack.c.l.b16 %v1694
      %v1727 = vunpack.c.l.b16 %v1695
      %v1728 = vunpack.c.l.b16 %v1696
      %v1729 = vunpack.c.l.b16 %v1697
      %v1730 = vunpack.c.l.b16 %v1698
      %v1731 = vunpack.c.l.b16 %v1699
      %v1732 = vunpack.c.l.b16 %v1700
      %v1733 = vunpack.c.l.b16 %v1701
      %v1734 = vunpack.c.l.b16 %v1702
      %v1735 = vunpack.c.l.b16 %v1703
      %v1736 = vunpack.c.l.b16 %v1704
      %v1737 = vunpack.c.l.b16 %v1705
      %v1738 = vunpack.c.l.b16 %v1706
      %v1739 = vunpack.c.l.b16 %v1707
      %v1740 = vpack.c.b16 %v1725, %v1724
      %v1741 = vpack.c.b16 %v1727, %v1726
      %v1742 = vpack.c.b16 %v1729, %v1728
      %v1743 = vpack.c.b16 %v1731, %v1730
      %v1744 = vpack.c.b16 %v1733, %v1732
      %v1745 = vpack.c.b16 %v1735, %v1734
      %v1746 = vpack.c.b16 %v1737, %v1736
      %v1747 = vpack.c.b16 %v1739, %v1738
      %1756 = vmatprep.subr.bf16.mxu0 0
      %1757 = vmatpush1.bf16.msra.mxu0 %v1740
      %1758 = vmatprep.subr.bf16.mxu0 0
      %1759 = vmatpush1.bf16.msra.mxu0 %v1741
      %1760 = vmatprep.subr.bf16.mxu0 0
      %1761 = vmatpush1.bf16.msra.mxu0 %v1742
      %1762 = vmatprep.subr.bf16.mxu0 0
      %1763 = vmatpush1.bf16.msra.mxu0 %v1743
      %1764 = vmatprep.subr.bf16.mxu0 0
      %1765 = vmatpush1.bf16.msra.mxu0 %v1744
      %1766 = vmatprep.subr.bf16.mxu0 0
      %1767 = vmatpush1.bf16.msra.mxu0 %v1745
      %1768 = vmatprep.subr.bf16.mxu0 0
      %1769 = vmatpush1.bf16.msra.mxu0 %v1746
      %1770 = vmatprep.subr.bf16.mxu0 0
      %1771 = vmatpush1.bf16.msra.mxu0 %v1747
      %1772 = vmatprep.subr.bf16.mxu0 0
      %1773 = vmatpush1.bf16.msra.mxu0 0
      %1774 = vmatprep.subr.bf16.mxu0 0
      %1775 = vmatpush1.bf16.msra.mxu0 0
      %1776 = vmatprep.subr.bf16.mxu0 0
      %1777 = vmatpush1.bf16.msra.mxu0 0
      %1778 = vmatprep.subr.bf16.mxu0 0
      %1779 = vmatpush1.bf16.msra.mxu0 0
      %1780 = vmatprep.subr.bf16.mxu0 0
      %1781 = vmatpush1.bf16.msra.mxu0 0
      %1782 = vmatprep.subr.bf16.mxu0 0
      %1783 = vmatpush1.bf16.msra.mxu0 0
      %1784 = vmatprep.subr.bf16.mxu0 0
      %1785 = vmatpush1.bf16.msra.mxu0 0
      %1786 = vmatprep.subr.bf16.mxu0 0
      %1787 = vmatpush1.bf16.msra.mxu0 0
      %1788 = vmatprep.mubr.bf16.mxu0 0
      %1789 = vmatmul.mubr.bf16.gmra.mrb[0].mxu0 %v1690
      %v1790 = vpop.f32.mrb[0].mxu0
      %v1791 = vadd.f32 0.0, %v1790
      %v1792 = vpop.f32.mrb[0].mxu0
      %v1793 = vpop.f32.mrb[0].mxu0
      %v1794 = vadd.f32 0.0, %v1793
      %v1795 = vpop.f32.mrb[0].mxu0
      %1796 = vmatprep.mubr.bf16.mxu0 0
      %1797 = vmatmul.mubr.bf16.gmra.mrb[0].mxu0 %v1691
      %v1798 = vpop.f32.mrb[0].mxu0
      %v1799 = vadd.f32 0.0, %v1798
      %v1800 = vpop.f32.mrb[0].mxu0
      %v1801 = vpop.f32.mrb[0].mxu0
      %v1802 = vpop.f32.mrb[0].mxu0
      %1803 = vdwg.mxu0
      %v1804 = vadd.f32 %v1684, %v1791
      %v1805 = vadd.f32 %v1685, %v1794
      %v1806 = vadd.f32 %v1686, %v1799
      %v1807 = vld [vmem:[%s246 + $0x13] sm:$0xff]
      %v1808 = vld [vmem:[%s246 + $0x1b] sm:$0xff]
      %v1809 = vld [vmem:[%s246 + $0x23] sm:$0x3]
      %v1810 = vpack.c.bf16 %v1808, %v1807
      %v1811 = vpack.c.bf16 %v1809, %v1809
      %v1812 = vld [vmem:[%s1 + $0x340] sm:$0xf]
      %v1813 = vld [vmem:[%s1 + $0x344] sm:$0xf]
      %v1814 = vld [vmem:[%s1 + $0x348] sm:$0xf]
      %v1815 = vld [vmem:[%s1 + $0x34c] sm:$0xf]
      %v1816 = vld [vmem:[%s1 + $0x350] sm:$0xf]
      %v1817 = vld [vmem:[%s1 + $0x354] sm:$0xf]
      %v1818 = vld [vmem:[%s1 + $0x358] sm:$0xf]
      %v1819 = vld [vmem:[%s1 + $0x35c] sm:$0xf]
      %v1820 = vld [vmem:[%s1 + $0x360] sm:$0xf]
      %v1821 = vld [vmem:[%s1 + $0x364] sm:$0xf]
      %v1822 = vld [vmem:[%s1 + $0x368] sm:$0xf]
      %v1823 = vld [vmem:[%s1 + $0x36c] sm:$0xf]
      %v1824 = vld [vmem:[%s1 + $0x370] sm:$0xf]
      %v1825 = vld [vmem:[%s1 + $0x374] sm:$0xf]
      %v1826 = vld [vmem:[%s1 + $0x378] sm:$0xf]
      %v1827 = vld [vmem:[%s1 + $0x37c] sm:$0xf]
      %v1844 = vunpack.c.l.b16 %v1812
      %v1845 = vunpack.c.l.b16 %v1813
      %v1846 = vunpack.c.l.b16 %v1814
      %v1847 = vunpack.c.l.b16 %v1815
      %v1848 = vunpack.c.l.b16 %v1816
      %v1849 = vunpack.c.l.b16 %v1817
      %v1850 = vunpack.c.l.b16 %v1818
      %v1851 = vunpack.c.l.b16 %v1819
      %v1852 = vunpack.c.l.b16 %v1820
      %v1853 = vunpack.c.l.b16 %v1821
      %v1854 = vunpack.c.l.b16 %v1822
      %v1855 = vunpack.c.l.b16 %v1823
      %v1856 = vunpack.c.l.b16 %v1824
      %v1857 = vunpack.c.l.b16 %v1825
      %v1858 = vunpack.c.l.b16 %v1826
      %v1859 = vunpack.c.l.b16 %v1827
      %v1860 = vpack.c.b16 %v1845, %v1844
      %v1861 = vpack.c.b16 %v1847, %v1846
      %v1862 = vpack.c.b16 %v1849, %v1848
      %v1863 = vpack.c.b16 %v1851, %v1850
      %v1864 = vpack.c.b16 %v1853, %v1852
      %v1865 = vpack.c.b16 %v1855, %v1854
      %v1866 = vpack.c.b16 %v1857, %v1856
      %v1867 = vpack.c.b16 %v1859, %v1858
      %1876 = vmatprep.subr.bf16.mxu0 0
      %1877 = vmatpush1.bf16.msra.mxu0 %v1860
      %1878 = vmatprep.subr.bf16.mxu0 0
      %1879 = vmatpush1.bf16.msra.mxu0 %v1861
      %1880 = vmatprep.subr.bf16.mxu0 0
      %1881 = vmatpush1.bf16.msra.mxu0 %v1862
      %1882 = vmatprep.subr.bf16.mxu0 0
      %1883 = vmatpush1.bf16.msra.mxu0 %v1863
      %1884 = vmatprep.subr.bf16.mxu0 0
      %1885 = vmatpush1.bf16.msra.mxu0 %v1864
      %1886 = vmatprep.subr.bf16.mxu0 0
      %1887 = vmatpush1.bf16.msra.mxu0 %v1865
      %1888 = vmatprep.subr.bf16.mxu0 0
      %1889 = vmatpush1.bf16.msra.mxu0 %v1866
      %1890 = vmatprep.subr.bf16.mxu0 0
      %1891 = vmatpush1.bf16.msra.mxu0 %v1867
      %1892 = vmatprep.subr.bf16.mxu0 0
      %1893 = vmatpush1.bf16.msra.mxu0 0
      %1894 = vmatprep.subr.bf16.mxu0 0
      %1895 = vmatpush1.bf16.msra.mxu0 0
      %1896 = vmatprep.subr.bf16.mxu0 0
      %1897 = vmatpush1.bf16.msra.mxu0 0
      %1898 = vmatprep.subr.bf16.mxu0 0
      %1899 = vmatpush1.bf16.msra.mxu0 0
      %1900 = vmatprep.subr.bf16.mxu0 0
      %1901 = vmatpush1.bf16.msra.mxu0 0
      %1902 = vmatprep.subr.bf16.mxu0 0
      %1903 = vmatpush1.bf16.msra.mxu0 0
      %1904 = vmatprep.subr.bf16.mxu0 0
      %1905 = vmatpush1.bf16.msra.mxu0 0
      %1906 = vmatprep.subr.bf16.mxu0 0
      %1907 = vmatpush1.bf16.msra.mxu0 0
      %1908 = vmatprep.mubr.bf16.mxu0 0
      %1909 = vmatmul.mubr.bf16.gmra.mrb[0].mxu0 %v1810
      %v1910 = vpop.f32.mrb[0].mxu0
      %v1911 = vadd.f32 0.0, %v1910
      %v1912 = vpop.f32.mrb[0].mxu0
      %v1913 = vpop.f32.mrb[0].mxu0
      %v1914 = vadd.f32 0.0, %v1913
      %v1915 = vpop.f32.mrb[0].mxu0
      %1916 = vmatprep.mubr.bf16.mxu0 0
      %1917 = vmatmul.mubr.bf16.gmra.mrb[0].mxu0 %v1811
      %v1918 = vpop.f32.mrb[0].mxu0
      %v1919 = vadd.f32 0.0, %v1918
      %v1920 = vpop.f32.mrb[0].mxu0
      %v1921 = vpop.f32.mrb[0].mxu0
      %v1922 = vpop.f32.mrb[0].mxu0
      %1923 = vdwg.mxu0
      %v1924 = vadd.f32 %v1804, %v1911
      %v1925 = vadd.f32 %v1805, %v1914
      %v1926 = vadd.f32 %v1806, %v1919
      %v1927 = vld [vmem:[%s246 + $0x14] sm:$0xff]
      %v1928 = vld [vmem:[%s246 + $0x1c] sm:$0xff]
      %v1929 = vld [vmem:[%s246 + $0x24] sm:$0x3]
      %v1930 = vpack.c.bf16 %v1928, %v1927
      %v1931 = vpack.c.bf16 %v1929, %v1929
      %v1932 = vld [vmem:[%s1 + $0x380] sm:$0xf]
      %v1933 = vld [vmem:[%s1 + $0x384] sm:$0xf]
      %v1934 = vld [vmem:[%s1 + $0x388] sm:$0xf]
      %v1935 = vld [vmem:[%s1 + $0x38c] sm:$0xf]
      %v1936 = vld [vmem:[%s1 + $0x390] sm:$0xf]
      %v1937 = vld [vmem:[%s1 + $0x394] sm:$0xf]
      %v1938 = vld [vmem:[%s1 + $0x398] sm:$0xf]
      %v1939 = vld [vmem:[%s1 + $0x39c] sm:$0xf]
      %v1940 = vld [vmem:[%s1 + $0x3a0] sm:$0xf]
      %v1941 = vld [vmem:[%s1 + $0x3a4] sm:$0xf]
      %v1942 = vld [vmem:[%s1 + $0x3a8] sm:$0xf]
      %v1943 = vld [vmem:[%s1 + $0x3ac] sm:$0xf]
      %v1944 = vld [vmem:[%s1 + $0x3b0] sm:$0xf]
      %v1945 = vld [vmem:[%s1 + $0x3b4] sm:$0xf]
      %v1946 = vld [vmem:[%s1 + $0x3b8] sm:$0xf]
      %v1947 = vld [vmem:[%s1 + $0x3bc] sm:$0xf]
      %v1964 = vunpack.c.l.b16 %v1932
      %v1965 = vunpack.c.l.b16 %v1933
      %v1966 = vunpack.c.l.b16 %v1934
      %v1967 = vunpack.c.l.b16 %v1935
      %v1968 = vunpack.c.l.b16 %v1936
      %v1969 = vunpack.c.l.b16 %v1937
      %v1970 = vunpack.c.l.b16 %v1938
      %v1971 = vunpack.c.l.b16 %v1939
      %v1972 = vunpack.c.l.b16 %v1940
      %v1973 = vunpack.c.l.b16 %v1941
      %v1974 = vunpack.c.l.b16 %v1942
      %v1975 = vunpack.c.l.b16 %v1943
      %v1976 = vunpack.c.l.b16 %v1944
      %v1977 = vunpack.c.l.b16 %v1945
      %v1978 = vunpack.c.l.b16 %v1946
      %v1979 = vunpack.c.l.b16 %v1947
      %v1980 = vpack.c.b16 %v1965, %v1964
      %v1981 = vpack.c.b16 %v1967, %v1966
      %v1982 = vpack.c.b16 %v1969, %v1968
      %v1983 = vpack.c.b16 %v1971, %v1970
      %v1984 = vpack.c.b16 %v1973, %v1972
      %v1985 = vpack.c.b16 %v1975, %v1974
      %v1986 = vpack.c.b16 %v1977, %v1976
      %v1987 = vpack.c.b16 %v1979, %v1978
      %1996 = vmatprep.subr.bf16.mxu0 0
      %1997 = vmatpush1.bf16.msra.mxu0 %v1980
      %1998 = vmatprep.subr.bf16.mxu0 0
      %1999 = vmatpush1.bf16.msra.mxu0 %v1981
      %2000 = vmatprep.subr.bf16.mxu0 0
      %2001 = vmatpush1.bf16.msra.mxu0 %v1982
      %2002 = vmatprep.subr.bf16.mxu0 0
      %2003 = vmatpush1.bf16.msra.mxu0 %v1983
      %2004 = vmatprep.subr.bf16.mxu0 0
      %2005 = vmatpush1.bf16.msra.mxu0 %v1984
      %2006 = vmatprep.subr.bf16.mxu0 0
      %2007 = vmatpush1.bf16.msra.mxu0 %v1985
      %2008 = vmatprep.subr.bf16.mxu0 0
      %2009 = vmatpush1.bf16.msra.mxu0 %v1986
      %2010 = vmatprep.subr.bf16.mxu0 0
      %2011 = vmatpush1.bf16.msra.mxu0 %v1987
      %2012 = vmatprep.subr.bf16.mxu0 0
      %2013 = vmatpush1.bf16.msra.mxu0 0
      %2014 = vmatprep.subr.bf16.mxu0 0
      %2015 = vmatpush1.bf16.msra.mxu0 0
      %2016 = vmatprep.subr.bf16.mxu0 0
      %2017 = vmatpush1.bf16.msra.mxu0 0
      %2018 = vmatprep.subr.bf16.mxu0 0
      %2019 = vmatpush1.bf16.msra.mxu0 0
      %2020 = vmatprep.subr.bf16.mxu0 0
      %2021 = vmatpush1.bf16.msra.mxu0 0
      %2022 = vmatprep.subr.bf16.mxu0 0
      %2023 = vmatpush1.bf16.msra.mxu0 0
      %2024 = vmatprep.subr.bf16.mxu0 0
      %2025 = vmatpush1.bf16.msra.mxu0 0
      %2026 = vmatprep.subr.bf16.mxu0 0
      %2027 = vmatpush1.bf16.msra.mxu0 0
      %2028 = vmatprep.mubr.bf16.mxu0 0
      %2029 = vmatmul.mubr.bf16.gmra.mrb[0].mxu0 %v1930
      %v2030 = vpop.f32.mrb[0].mxu0
      %v2031 = vadd.f32 0.0, %v2030
      %v2032 = vpop.f32.mrb[0].mxu0
      %v2033 = vpop.f32.mrb[0].mxu0
      %v2034 = vadd.f32 0.0, %v2033
      %v2035 = vpop.f32.mrb[0].mxu0
      %2036 = vmatprep.mubr.bf16.mxu0 0
      %2037 = vmatmul.mubr.bf16.gmra.mrb[0].mxu0 %v1931
      %v2038 = vpop.f32.mrb[0].mxu0
      %v2039 = vadd.f32 0.0, %v2038
      %v2040 = vpop.f32.mrb[0].mxu0
      %v2041 = vpop.f32.mrb[0].mxu0
      %v2042 = vpop.f32.mrb[0].mxu0
      %2043 = vdwg.mxu0
      %v2044 = vadd.f32 %v1924, %v2031
      %v2045 = vadd.f32 %v1925, %v2034
      %v2046 = vadd.f32 %v1926, %v2039
      %v2047 = vld [vmem:[%s246 + $0x15] sm:$0xff]
      %v2048 = vld [vmem:[%s246 + $0x1d] sm:$0xff]
      %v2049 = vld [vmem:[%s246 + $0x25] sm:$0x3]
      %v2050 = vpack.c.bf16 %v2048, %v2047
      %v2051 = vpack.c.bf16 %v2049, %v2049
      %v2052 = vld [vmem:[%s1 + $0x3c0] sm:$0xf]
      %v2053 = vld [vmem:[%s1 + $0x3c4] sm:$0xf]
      %v2054 = vld [vmem:[%s1 + $0x3c8] sm:$0xf]
      %v2055 = vld [vmem:[%s1 + $0x3cc] sm:$0xf]
      %v2056 = vld [vmem:[%s1 + $0x3d0] sm:$0xf]
      %v2057 = vld [vmem:[%s1 + $0x3d4] sm:$0xf]
      %v2058 = vld [vmem:[%s1 + $0x3d8] sm:$0xf]
      %v2059 = vld [vmem:[%s1 + $0x3dc] sm:$0xf]
      %v2060 = vld [vmem:[%s1 + $0x3e0] sm:$0xf]
      %v2061 = vld [vmem:[%s1 + $0x3e4] sm:$0xf]
      %v2062 = vld [vmem:[%s1 + $0x3e8] sm:$0xf]
      %v2063 = vld [vmem:[%s1 + $0x3ec] sm:$0xf]
      %v2064 = vld [vmem:[%s1 + $0x3f0] sm:$0xf]
      %v2065 = vld [vmem:[%s1 + $0x3f4] sm:$0xf]
      %v2066 = vld [vmem:[%s1 + $0x3f8] sm:$0xf]
      %v2067 = vld [vmem:[%s1 + $0x3fc] sm:$0xf]
      %v2084 = vunpack.c.l.b16 %v2052
      %v2085 = vunpack.c.l.b16 %v2053
      %v2086 = vunpack.c.l.b16 %v2054
      %v2087 = vunpack.c.l.b16 %v2055
      %v2088 = vunpack.c.l.b16 %v2056
      %v2089 = vunpack.c.l.b16 %v2057
      %v2090 = vunpack.c.l.b16 %v2058
      %v2091 = vunpack.c.l.b16 %v2059
      %v2092 = vunpack.c.l.b16 %v2060
      %v2093 = vunpack.c.l.b16 %v2061
      %v2094 = vunpack.c.l.b16 %v2062
      %v2095 = vunpack.c.l.b16 %v2063
      %v2096 = vunpack.c.l.b16 %v2064
      %v2097 = vunpack.c.l.b16 %v2065
      %v2098 = vunpack.c.l.b16 %v2066
      %v2099 = vunpack.c.l.b16 %v2067
      %v2100 = vpack.c.b16 %v2085, %v2084
      %v2101 = vpack.c.b16 %v2087, %v2086
      %v2102 = vpack.c.b16 %v2089, %v2088
      %v2103 = vpack.c.b16 %v2091, %v2090
      %v2104 = vpack.c.b16 %v2093, %v2092
      %v2105 = vpack.c.b16 %v2095, %v2094
      %v2106 = vpack.c.b16 %v2097, %v2096
      %v2107 = vpack.c.b16 %v2099, %v2098
      %2116 = vmatprep.subr.bf16.mxu0 0
      %2117 = vmatpush1.bf16.msra.mxu0 %v2100
      %2118 = vmatprep.subr.bf16.mxu0 0
      %2119 = vmatpush1.bf16.msra.mxu0 %v2101
      %2120 = vmatprep.subr.bf16.mxu0 0
      %2121 = vmatpush1.bf16.msra.mxu0 %v2102
      %2122 = vmatprep.subr.bf16.mxu0 0
      %2123 = vmatpush1.bf16.msra.mxu0 %v2103
      %2124 = vmatprep.subr.bf16.mxu0 0
      %2125 = vmatpush1.bf16.msra.mxu0 %v2104
      %2126 = vmatprep.subr.bf16.mxu0 0
      %2127 = vmatpush1.bf16.msra.mxu0 %v2105
      %2128 = vmatprep.subr.bf16.mxu0 0
      %2129 = vmatpush1.bf16.msra.mxu0 %v2106
      %2130 = vmatprep.subr.bf16.mxu0 0
      %2131 = vmatpush1.bf16.msra.mxu0 %v2107
      %2132 = vmatprep.subr.bf16.mxu0 0
      %2133 = vmatpush1.bf16.msra.mxu0 0
      %2134 = vmatprep.subr.bf16.mxu0 0
      %2135 = vmatpush1.bf16.msra.mxu0 0
      %2136 = vmatprep.subr.bf16.mxu0 0
      %2137 = vmatpush1.bf16.msra.mxu0 0
      %2138 = vmatprep.subr.bf16.mxu0 0
      %2139 = vmatpush1.bf16.msra.mxu0 0
      %2140 = vmatprep.subr.bf16.mxu0 0
      %2141 = vmatpush1.bf16.msra.mxu0 0
      %2142 = vmatprep.subr.bf16.mxu0 0
      %2143 = vmatpush1.bf16.msra.mxu0 0
      %2144 = vmatprep.subr.bf16.mxu0 0
      %2145 = vmatpush1.bf16.msra.mxu0 0
      %2146 = vmatprep.subr.bf16.mxu0 0
      %2147 = vmatpush1.bf16.msra.mxu0 0
      %2148 = vmatprep.mubr.bf16.mxu0 0
      %2149 = vmatmul.mubr.bf16.gmra.mrb[0].mxu0 %v2050
      %v2150 = vpop.f32.mrb[0].mxu0
      %v2151 = vadd.f32 0.0, %v2150
      %v2152 = vpop.f32.mrb[0].mxu0
      %v2153 = vpop.f32.mrb[0].mxu0
      %v2154 = vadd.f32 0.0, %v2153
      %v2155 = vpop.f32.mrb[0].mxu0
      %2156 = vmatprep.mubr.bf16.mxu0 0
      %2157 = vmatmul.mubr.bf16.gmra.mrb[0].mxu0 %v2051
      %v2158 = vpop.f32.mrb[0].mxu0
      %v2159 = vadd.f32 0.0, %v2158
      %v2160 = vpop.f32.mrb[0].mxu0
      %v2161 = vpop.f32.mrb[0].mxu0
      %v2162 = vpop.f32.mrb[0].mxu0
      %2163 = vdwg.mxu0
      %v2164 = vadd.f32 %v2044, %v2151
      %v2165 = vadd.f32 %v2045, %v2154
      %v2166 = vadd.f32 %v2046, %v2159
      %v2167 = vld [vmem:[%s2] sm:$0x1]
      %v2169 = vlaneseq
      %v2170 = vshrl.u32 %v2169, 7
      %v2171 = vsub.s32 0, %v2170
      %v2172 = vrot.slane %v2167, %v2171
      %v2174 = vadd.f32 %v2164, %v2172
      %v2175 = vadd.f32 %v2165, %v2172
      %v2176 = vadd.f32 %v2166, %v2172
      %2177 = vst [vmem:[%s251] sm:$0xff] %v2174
      %2178 = vst [vmem:[%s251 + $0x8] sm:$0xff] %v2175
      %2179 = vst [vmem:[%s251 + $0x10] sm:$0x3] %v2176
      %p2180 = scmp.lt.s32.totalorder %s17, 1
      %s2181 = scalar_select %p2180, %s17, 1
      %s2182 = smul.addr %s2181, 3
      %s2183 = smul.addr %s2182, 8
      %s2184 = scalar_lea.vmem %s6, %s2183
      // Predicated region
      $region45: #{discriminator_forward.11} parent=43 // pred_check
        %p2185 = pneg %p166
      $region46: #{discriminator_forward.11} parent=43 // pred_check_branch
        %2187 = sbr.rel (%p2185) target = $region48
      $region47: #{discriminator_forward.11} parent=43 // pred_region
        _
      $region48: #{discriminator_forward.11} parent=43 // pred_fallthru
        _
    $region44: #{discriminator_forward.11} parent=5 // pred_fallthru
      _
    %p2188 = scmp.le.s32.totalorder 2, %s12
    // Predicated region
    $region49: #{discriminator_forward.11} parent=5 // pred_check
      %p2189 = pneg %p2188
    $region50: #{discriminator_forward.11} parent=5 // pred_check_branch
      %2191 = sbr.rel (%p2189) target = $region52
    $region51: #{discriminator_forward.11} parent=5 // pred_region
      %s2192 = ssub.s32 %s12, 2
      // Predicated region
      $region53: #{discriminator_forward.11} parent=51 // pred_check
        %p2193 = pneg %p172
      $region54: #{discriminator_forward.11} parent=51 // pred_check_branch
        %2195 = sbr.rel (%p2193) target = $region56
      $region55: #{discriminator_forward.11} parent=51 // pred_region
        %p2196 = scmp.lt.s32.totalorder %s18, 1
        %s2197 = scalar_select %p2196, %s18, 1
        %s2198 = smul.addr %s2197, 3
        %s2199 = smul.addr %s2198, 8
        %s2200 = scalar_lea.vmem %s6, %s2199
      $region56: #{discriminator_forward.11} parent=51 // pred_fallthru
        _
    $region52: #{discriminator_forward.11} parent=5 // pred_fallthru
      _
  $region6: #{discriminator_forward.11} parent=0 // loop_footer
    %s16 = sadd.s32 1, %s12
  $region7: #{discriminator_forward.11} parent=0 // loop_footer_branch
    %11 = sbr.rel target = $region3
  $region8: #{discriminator_forward.11} parent=0 // loop_exit
    _

</llo_original>
